<compile_context>
chip_gen: v6e
topology: v6e:2x2x1
jax: 0.10.0
libtpu: 0.0.40
codegen_flags: <defaults>
</compile_context>

<pallas_src>
import math

import jax
import jax.numpy as jnp
from jax import lax
from jax.experimental import pallas as pl
from jax.experimental.pallas import tpu as pltpu

BN_EPS = 1e-5


# ---------------------------------------------------------------------------
# small helpers
# ---------------------------------------------------------------------------
def _round_up(x, m):
    return ((x + m - 1) // m) * m


def _pick_tk(kp):
    """K tile: prefer 256 (native MXU K on v6e/v7x), else 128."""
    for t in (256, 128):
        if kp % t == 0:
            return t
    return kp


def _vmem_limit_bytes():
    """Generation-aware scoped-VMEM limit (~100 MiB on 128 MiB parts, ~50 MiB on v7x)."""
    try:
        cap = pltpu.get_tpu_info().vmem_capacity_bytes
        return int(min(100 * 1024 * 1024, int(cap * 0.78)))
    except Exception:
        return 48 * 1024 * 1024   # conservative: safe on every generation


def _pick_tile_h(H, W, Wp, P, Cp, tk, n_conv, vmem_budget):
    """Largest row-band height whose working set fits the VMEM budget."""
    step = 8 // math.gcd(8, W)          # keeps tile_h * W a multiple of 8
    max_th = _round_up(H, step)
    cands, th = [], step
    while th < max_th:
        cands.append(th)
        th *= 2
    cands.append(max_th)
    n_taps = 1 + 9 * (n_conv - 1)
    for th in sorted(set(cands), reverse=True):
        x_blk = (th + 2 * P) * Wp * tk * 2 * 2        # bf16 halo block, double-buffered
        acc = n_conv * th * W * Cp * 4                # per-branch fp32 accumulators
        epi = 2 * th * W * Cp * 4                     # projection epilogue temporaries
        outb = th * W * Cp * 4 * 2                    # fp32 out block, double-buffered
        w_k = n_taps * tk * Cp * 2 * 2                # k-sliced conv weights
        w_res = (n_conv + 1) * Cp * Cp * 2 + (n_conv + 2) * Cp * 4
        if x_blk + acc + epi + outb + w_k + w_res <= 0.7 * vmem_budget:
            return th
    return step


# ---------------------------------------------------------------------------
# fused ASPP kernel (1x1 branch + atrous branches + projection)
# ---------------------------------------------------------------------------
def _make_fused_kernel(rates, P, tile_h, W, n_conv):
    n_rates = len(rates)
    THW = tile_h * W

    def kernel(*refs):
        if n_rates:
            (x_ref, w0_ref, wtaps_ref, cbias_ref, wproj_ref, pbias_ref,
             o_ref, acc_ref) = refs
        else:
            (x_ref, w0_ref, cbias_ref, wproj_ref, pbias_ref,
             o_ref, acc_ref) = refs
            wtaps_ref = None

        k = pl.program_id(2)

        @pl.when(k == 0)
        def _():
            acc_ref[...] = jnp.zeros_like(acc_ref)

        def slab(r0, c0):
            # (tile_h, W, tk) window of the padded row band -> (tile_h * W, tk)
            xs = x_ref[0, 0, r0:r0 + tile_h, c0:c0 + W, :]
            return xs.reshape(THW, xs.shape[-1])

        # branch 0: 1x1 conv (reads the band interior; no separate HBM copy of x)
        acc_ref[0] = acc_ref[0] + jnp.dot(
            slab(P, P), w0_ref[...], preferred_element_type=jnp.float32)

        # atrous 3x3 branches: 9 shifted matmuls each, taps sliced in VMEM.
        for b, rate in enumerate(rates):
            base = P - rate
            part = None
            for ky in range(3):
                for kx in range(3):
                    d = jnp.dot(slab(base + ky * rate, base + kx * rate),
                                wtaps_ref[b, ky * 3 + kx],
                                preferred_element_type=jnp.float32)
                    part = d if part is None else part + d
            acc_ref[b + 1] = acc_ref[b + 1] + part

        # last K step: per-branch bias+ReLU, project through the per-branch slice
        # of W_proj, add pooled-branch + projection bias, final ReLU, store.
        @pl.when(k == pl.num_programs(2) - 1)
        def _():
            proj = None
            for b in range(n_conv):
                y = jnp.maximum(acc_ref[b] + cbias_ref[b], 0.0).astype(jnp.bfloat16)
                d = jnp.dot(y, wproj_ref[b], preferred_element_type=jnp.float32)
                proj = d if proj is None else proj + d
            out = proj + pbias_ref[0]
            o_ref[0, 0] = jnp.maximum(out, 0.0).astype(o_ref.dtype)

    return kernel


def _fused_aspp(xb, w0, w_taps, cbias, wproj, pbias, *, rates, P, tile_h, W,
                tk, vmem_limit):
    N, R, rows, Wp, Kp = xb.shape
    Cp = w0.shape[1]
    n_conv = cbias.shape[0]
    n_rates = len(rates)
    KT = Kp // tk
    THW = tile_h * W

    kernel = _make_fused_kernel(rates, P, tile_h, W, n_conv)

    in_specs = [
        pl.BlockSpec((1, 1, rows, Wp, tk), lambda n, r, k: (n, r, 0, 0, k)),
        pl.BlockSpec((tk, Cp), lambda n, r, k: (k, 0)),
    ]
    inputs = [xb, w0]
    if n_rates:
        in_specs.append(
            pl.BlockSpec((n_rates, 9, tk, Cp), lambda n, r, k: (0, 0, k, 0)))
        inputs.append(w_taps)
    in_specs += [
        pl.BlockSpec((n_conv, 1, Cp), lambda n, r, k: (0, 0, 0)),
        pl.BlockSpec((n_conv, Cp, Cp), lambda n, r, k: (0, 0, 0)),
        pl.BlockSpec((1, 1, Cp), lambda n, r, k: (n, 0, 0)),
    ]
    inputs += [cbias, wproj, pbias]

    return pl.pallas_call(
        kernel,
        out_shape=jax.ShapeDtypeStruct((N, R, THW, Cp), jnp.float32),
        grid_spec=pltpu.PrefetchScalarGridSpec(
            num_scalar_prefetch=0,
            grid=(N, R, KT),
            in_specs=in_specs,
            out_specs=pl.BlockSpec((1, 1, THW, Cp), lambda n, r, k: (n, r, 0, 0)),
            scratch_shapes=[pltpu.VMEM((n_conv, THW, Cp), jnp.float32)],
        ),
        compiler_params=pltpu.CompilerParams(
            dimension_semantics=("parallel", "parallel", "arbitrary"),
            vmem_limit_bytes=vmem_limit),
    )(*inputs)


# ---------------------------------------------------------------------------
# Parameters (deterministic synthetic init, eval-mode BatchNorm folded)
# ---------------------------------------------------------------------------
def _fold_bn(gamma, beta, mean, var):
    scale = gamma / jnp.sqrt(var + BN_EPS)
    bias = beta - mean * scale
    return scale, bias


def _init_bn(key, c):
    k1, k2, k3, k4 = jax.random.split(key, 4)
    gamma = jax.random.uniform(k1, (c,), jnp.float32, 0.5, 1.5)
    beta = 0.1 * jax.random.normal(k2, (c,), jnp.float32)
    mean = 0.1 * jax.random.normal(k3, (c,), jnp.float32)
    var = jax.random.uniform(k4, (c,), jnp.float32, 0.5, 1.5)
    return _fold_bn(gamma, beta, mean, var)


def init_aspp_params(key, in_channels, atrous_rates, out_channels):
    n_branches = 1 + len(atrous_rates) + 1
    keys = list(jax.random.split(key, 2 * (n_branches + 1)))
    ki = iter(keys)
    params = {}
    params["w0"] = 0.1 * jax.random.normal(
        next(ki), (out_channels, in_channels, 1, 1), jnp.float32)
    params["bn0"] = _init_bn(next(ki), out_channels)
    params["w_atrous"] = []
    params["bn_atrous"] = []
    for _ in atrous_rates:
        params["w_atrous"].append(0.1 * jax.random.normal(
            next(ki), (out_channels, in_channels, 3, 3), jnp.float32))
        params["bn_atrous"].append(_init_bn(next(ki), out_channels))
    params["w_pool"] = 0.1 * jax.random.normal(
        next(ki), (out_channels, in_channels, 1, 1), jnp.float32)
    params["bn_pool"] = _init_bn(next(ki), out_channels)
    params["w_proj"] = 0.1 * jax.random.normal(
        next(ki), (out_channels, n_branches * out_channels, 1, 1), jnp.float32)
    params["bn_proj"] = _init_bn(next(ki), out_channels)
    return params


# ---------------------------------------------------------------------------
# ASPP forward (Pallas-backed)
# ---------------------------------------------------------------------------
def aspp_forward(x_nchw, params, atrous_rates, tile_h=None):
    atrous_rates = tuple(int(r) for r in atrous_rates)
    N, Cin, H, W = x_nchw.shape
    Cout = params["w0"].shape[0]
    n_rates = len(atrous_rates)
    n_conv = 1 + n_rates                 # branches computed inside the kernel
    n_total = n_conv + 1                 # + pooling branch
    Cin_p = _round_up(Cin, 128)
    Cout_p = _round_up(Cout, 128)

    x = jnp.transpose(x_nchw, (0, 2, 3, 1)).astype(jnp.float32)      # NHWC f32

    P = max(atrous_rates) if atrous_rates else 0
    Wp = _round_up(W + 2 * P, 8)
    tk = _pick_tk(Cin_p)
    vmem_limit = _vmem_limit_bytes()
    if tile_h is None:
        tile_h = _pick_tile_h(H, W, Wp, P, Cout_p, tk, n_conv, vmem_limit)
    R = -(-H // tile_h)
    H_pad = R * tile_h
    rows = tile_h + 2 * P

    # spatially + channel padded bf16 activation, band-expanded so each row
    # band (with its halo) is a rectangular, non-overlapping block.
    xp = jnp.pad(x, ((0, 0), (P, P + H_pad - H), (P, Wp - W - P),
                     (0, Cin_p - Cin))).astype(jnp.bfloat16)
    if R == 1:
        xb = xp[:, None]
    else:
        xb = jnp.stack(
            [xp[:, r * tile_h:r * tile_h + rows] for r in range(R)], axis=1)

    # ---- fold eval-mode BN into weights / per-channel biases ---------------
    def pad_bias(b):
        return jnp.pad(b, (0, Cout_p - Cout)).astype(jnp.float32)

    s0, b0 = params["bn0"]
    w0 = params["w0"].reshape(Cout, Cin).T * s0[None, :]
    w0 = jnp.pad(w0, ((0, Cin_p - Cin), (0, Cout_p - Cout))).astype(jnp.bfloat16)

    biases = [pad_bias(b0)]
    taps = []
    for w, (s, b) in zip(params["w_atrous"], params["bn_atrous"]):
        wt = jnp.transpose(w, (2, 3, 1, 0)).reshape(9, Cin, Cout) * s[None, None, :]
        wt = jnp.pad(wt, ((0, 0), (0, Cin_p - Cin), (0, Cout_p - Cout)))
        taps.append(wt.astype(jnp.bfloat16))
        biases.append(pad_bias(b))
    w_taps = jnp.stack(taps, axis=0) if taps else None   # (n_rates, 9, Kp, Cp)
    cbias = jnp.stack(biases, axis=0).reshape(n_conv, 1, Cout_p)

    spr, bpr = params["bn_proj"]
    wpr = params["w_proj"].reshape(Cout, n_total * Cout).T * spr[None, :]
    wproj = jnp.stack(
        [jnp.pad(wpr[i * Cout:(i + 1) * Cout],
                 ((0, Cout_p - Cout), (0, Cout_p - Cout)))
         for i in range(n_conv)], axis=0).astype(jnp.bfloat16)       # (nc, Cp, Cp)

    # ---- pooling branch (fp32, tiny) folded into the projection as a
    # per-batch bias.  AdaptiveAvgPool2d(1) -> 1x1 conv + BN + ReLU is
    # spatially constant; bilinear upsampling of a 1x1 map is that constant.
    pooled = jnp.mean(x, axis=(1, 2))                                # (N, Cin)
    sp, bp = params["bn_pool"]
    wp = params["w_pool"].reshape(Cout, Cin).T * sp[None, :]
    yp = jnp.maximum(pooled @ wp + bp[None, :], 0.0)                 # (N, Cout)
    pool_contrib = yp @ wpr[n_conv * Cout:(n_conv + 1) * Cout]       # (N, Cout)
    pbias = jnp.pad(pool_contrib + bpr[None, :],
                    ((0, 0), (0, Cout_p - Cout)))
    pbias = pbias.reshape(N, 1, Cout_p).astype(jnp.float32)

    out4 = _fused_aspp(xb, w0, w_taps, cbias, wproj, pbias,
                       rates=atrous_rates, P=P, tile_h=tile_h, W=W,
                       tk=tk, vmem_limit=vmem_limit)
    # TODO(synk): nn.Dropout(0.5) is identity in eval mode; training-mode
    # dropout and batch-statistic BatchNorm are not implemented.
    out = out4.reshape(N, H_pad, W, Cout_p)[:, :H, :, :Cout]
    return jnp.transpose(out, (0, 3, 1, 2))


# ---------------------------------------------------------------------------
# Pure-JAX reference (for correctness check only)
# ---------------------------------------------------------------------------
def aspp_reference(x_nchw, params, atrous_rates):
    x = jnp.transpose(x_nchw, (0, 2, 3, 1)).astype(jnp.float32)

    def conv_bn_relu(inp, w, sb, dilation, padding):
        s, b = sb
        w_hwio = jnp.transpose(w, (2, 3, 1, 0))
        y = lax.conv_general_dilated(
            inp, w_hwio, window_strides=(1, 1),
            padding=[(padding, padding), (padding, padding)],
            rhs_dilation=(dilation, dilation),
            dimension_numbers=("NHWC", "HWIO", "NHWC"))
        return jnp.maximum(y * s + b, 0.0)

    outs = [conv_bn_relu(x, params["w0"], params["bn0"], 1, 0)]
    for rate, w, bn in zip(atrous_rates, params["w_atrous"],
                           params["bn_atrous"]):
        outs.append(conv_bn_relu(x, w, bn, rate, rate))
    pooled = jnp.mean(x, axis=(1, 2), keepdims=True)
    yp = conv_bn_relu(pooled, params["w_pool"], params["bn_pool"], 1, 0)
    N, H, W, _ = x.shape
    outs.append(jnp.broadcast_to(yp, (N, H, W, yp.shape[-1])))
    cat = jnp.concatenate(outs, axis=-1)
    out = conv_bn_relu(cat, params["w_proj"], params["bn_proj"], 1, 0)
    return jnp.transpose(out, (0, 3, 1, 2))


if __name__ == "__main__":
    key = jax.random.PRNGKey(0)
    kx, kp = jax.random.split(key)

    # small shapes consistent with ASPP(in_channels=4, atrous_rates=[2,3], out_channels=8)
    N, Cin, H, W = 2, 4, 16, 16
    Cout = 8
    atrous_rates = (2, 3)

    x = jax.random.normal(kx, (N, Cin, H, W), jnp.float32)
    params = init_aspp_params(kp, Cin, list(atrous_rates), Cout)
    ref = jax.block_until_ready(aspp_reference(x, params, atrous_rates))

    # banded path: 2 row bands of height 8 -> exercises the halo handling.
    banded = jax.jit(lambda xv, pv: aspp_forward(xv, pv, atrous_rates, tile_h=8))
    out = jax.block_until_ready(banded(x, params))
    assert out.shape == (N, Cout, H, W), out.shape
    err = float(jnp.max(jnp.abs(out - ref)))
    assert jnp.allclose(out, ref, rtol=2e-2, atol=2e-2), err

    # default path: VMEM-budgeted tile_h (single band at this size).
    auto = jax.jit(lambda xv, pv: aspp_forward(xv, pv, atrous_rates))
    out2 = jax.block_until_ready(auto(x, params))
    err2 = float(jnp.max(jnp.abs(out2 - ref)))
    assert jnp.allclose(out2, ref, rtol=2e-2, atol=2e-2), err2

    # multi-K-step accumulation path (Cin padded to 384 -> 3 K tiles of 128).
    N2, Cin2, H2, W2, Cout2 = 1, 320, 8, 8, 8
    x2 = jax.random.normal(jax.random.PRNGKey(1), (N2, Cin2, H2, W2), jnp.float32)
    params2 = init_aspp_params(jax.random.PRNGKey(2), Cin2, list(atrous_rates), Cout2)
    out3 = jax.block_until_ready(
        jax.jit(lambda xv, pv: aspp_forward(xv, pv, atrous_rates))(x2, params2))
    ref3 = jax.block_until_ready(aspp_reference(x2, params2, atrous_rates))
    err3 = float(jnp.max(jnp.abs(out3 - ref3)))
    assert jnp.allclose(out3, ref3, rtol=2e-2, atol=2e-2), err3

    print("KERNEL_OK")
</pallas_src>

<mosaic_0001>
module attributes {stable_mosaic.version = 11 : i64} {
  func.func @kernel(%arg0: i32, %arg1: i32, %arg2: i32, %arg3: memref<1x1x14x24x128xbf16, #tpu.memory_space<vmem>>, %arg4: memref<128x128xbf16, #tpu.memory_space<vmem>>, %arg5: memref<2x9x128x128xbf16, #tpu.memory_space<vmem>>, %arg6: memref<3x1x128xf32, #tpu.memory_space<vmem>>, %arg7: memref<3x128x128xbf16, #tpu.memory_space<vmem>>, %arg8: memref<1x1x128xf32, #tpu.memory_space<vmem>>, %arg9: memref<1x1x128x128xf32, #tpu.memory_space<vmem>>, %arg10: memref<3x128x128xf32, #tpu.memory_space<vmem>>) attributes {dimension_semantics = [#tpu.dimension_semantics<parallel>, #tpu.dimension_semantics<parallel>, #tpu.dimension_semantics<arbitrary>], iteration_bounds = array<i64: 2, 2, 1>, scalar_prefetch = 0 : i64, scratch_operands = 1 : i64, tpu.core_type = #tpu.core_type<tc>, window_params = [{transform_indices = @transform_0, window_bounds = array<i64: 1, 1, 14, 24, 128>}, {transform_indices = @transform_1, window_bounds = array<i64: 128, 128>}, {transform_indices = @transform_2, window_bounds = array<i64: 2, 9, 128, 128>}, {pipeline_mode = #tpu.pipeline_mode<synchronous>, transform_indices = @transform_3, window_bounds = array<i64: 3, 1, 128>}, {pipeline_mode = #tpu.pipeline_mode<synchronous>, transform_indices = @transform_4, window_bounds = array<i64: 3, 128, 128>}, {transform_indices = @transform_5, window_bounds = array<i64: 1, 1, 128>}, {transform_indices = @transform_6, window_bounds = array<i64: 1, 1, 128, 128>}]} {
    %c0_i32 = arith.constant 0 : i32
    %0 = arith.cmpi eq, %arg2, %c0_i32 : i32
    %1 = arith.extui %0 : i1 to i32
    %c0_i32_0 = arith.constant 0 : i32
    %2 = arith.cmpi ne, %1, %c0_i32_0 : i32
    scf.if %2 {
      %cst_199 = arith.constant 0.000000e+00 : f32
      %153 = vector.broadcast %cst_199 : f32 to vector<3x128x128xf32>
      %c0_200 = arith.constant 0 : index
      %c0_201 = arith.constant 0 : index
      %c0_202 = arith.constant 0 : index
      %154 = vector.load %arg10[%c0_200, %c0_201, %c0_202] : memref<3x128x128xf32, #tpu.memory_space<vmem>>, vector<3x128x128xf32>
      tpu.vector_store %arg10[%c0_200, %c0_201, %c0_202], %153 {strides = array<i32>} : memref<3x128x128xf32, #tpu.memory_space<vmem>>, vector<3x128x128xf32>,
    } else {
    }
    %c0 = arith.constant 0 : index
    %c0_1 = arith.constant 0 : index
    %c0_2 = arith.constant 0 : index
    %3 = vector.load %arg10[%c0, %c0_1, %c0_2] : memref<3x128x128xf32, #tpu.memory_space<vmem>>, vector<1x128x128xf32>
    %4 = vector.shape_cast %3 : vector<1x128x128xf32> to vector<128x128xf32>
    %c0_3 = arith.constant 0 : index
    %c0_4 = arith.constant 0 : index
    %c3 = arith.constant 3 : index
    %c3_5 = arith.constant 3 : index
    %c0_6 = arith.constant 0 : index
    %5 = vector.load %arg3[%c0_3, %c0_4, %c3, %c3_5, %c0_6] : memref<1x1x14x24x128xbf16, #tpu.memory_space<vmem>>, vector<1x1x8x16x128xbf16>
    %6 = vector.shape_cast %5 : vector<1x1x8x16x128xbf16> to vector<8x16x128xbf16>
    %7 = vector.shape_cast %6 : vector<8x16x128xbf16> to vector<128x128xbf16>
    %c0_7 = arith.constant 0 : index
    %c0_8 = arith.constant 0 : index
    %8 = vector.load %arg4[%c0_7, %c0_8] : memref<128x128xbf16, #tpu.memory_space<vmem>>, vector<128x128xbf16>
    %cst = arith.constant dense<0.000000e+00> : vector<128x128xf32>
    %9 = tpu.matmul %7, %8, %cst {dimension_numbers = #tpu.dot_dimension_numbers<[1], [0], [0], [1], [0, 0, 1, 1], [], []>} : vector<128x128xbf16>, vector<128x128xbf16>, vector<128x128xf32> -> vector<128x128xf32>
    %10 = arith.addf %4, %9 : vector<128x128xf32>
    %c0_9 = arith.constant 0 : index
    %c0_10 = arith.constant 0 : index
    %c0_11 = arith.constant 0 : index
    %11 = vector.load %arg10[%c0_9, %c0_10, %c0_11] : memref<3x128x128xf32, #tpu.memory_space<vmem>>, vector<1x128x128xf32>
    %12 = vector.shape_cast %11 : vector<1x128x128xf32> to vector<128x128xf32>
    %13 = vector.shape_cast %10 : vector<128x128xf32> to vector<1x128x128xf32>
    tpu.vector_store %arg10[%c0_9, %c0_10, %c0_11], %13 {strides = array<i32>} : memref<3x128x128xf32, #tpu.memory_space<vmem>>, vector<1x128x128xf32>,
    %c0_12 = arith.constant 0 : index
    %c0_13 = arith.constant 0 : index
    %c1 = arith.constant 1 : index
    %c1_14 = arith.constant 1 : index
    %c0_15 = arith.constant 0 : index
    %14 = vector.load %arg3[%c0_12, %c0_13, %c1, %c1_14, %c0_15] : memref<1x1x14x24x128xbf16, #tpu.memory_space<vmem>>, vector<1x1x8x16x128xbf16>
    %15 = vector.shape_cast %14 : vector<1x1x8x16x128xbf16> to vector<8x16x128xbf16>
    %16 = vector.shape_cast %15 : vector<8x16x128xbf16> to vector<128x128xbf16>
    %c0_16 = arith.constant 0 : index
    %c0_17 = arith.constant 0 : index
    %c0_18 = arith.constant 0 : index
    %c0_19 = arith.constant 0 : index
    %17 = vector.load %arg5[%c0_16, %c0_17, %c0_18, %c0_19] : memref<2x9x128x128xbf16, #tpu.memory_space<vmem>>, vector<1x1x128x128xbf16>
    %18 = vector.shape_cast %17 : vector<1x1x128x128xbf16> to vector<128x128xbf16>
    %cst_20 = arith.constant dense<0.000000e+00> : vector<128x128xf32>
    %19 = tpu.matmul %16, %18, %cst_20 {dimension_numbers = #tpu.dot_dimension_numbers<[1], [0], [0], [1], [0, 0, 1, 1], [], []>} : vector<128x128xbf16>, vector<128x128xbf16>, vector<128x128xf32> -> vector<128x128xf32>
    %c0_21 = arith.constant 0 : index
    %c0_22 = arith.constant 0 : index
    %c1_23 = arith.constant 1 : index
    %c3_24 = arith.constant 3 : index
    %c0_25 = arith.constant 0 : index
    %20 = vector.load %arg3[%c0_21, %c0_22, %c1_23, %c3_24, %c0_25] : memref<1x1x14x24x128xbf16, #tpu.memory_space<vmem>>, vector<1x1x8x16x128xbf16>
    %21 = vector.shape_cast %20 : vector<1x1x8x16x128xbf16> to vector<8x16x128xbf16>
    %22 = vector.shape_cast %21 : vector<8x16x128xbf16> to vector<128x128xbf16>
    %c0_26 = arith.constant 0 : index
    %c1_27 = arith.constant 1 : index
    %c0_28 = arith.constant 0 : index
    %c0_29 = arith.constant 0 : index
    %23 = vector.load %arg5[%c0_26, %c1_27, %c0_28, %c0_29] : memref<2x9x128x128xbf16, #tpu.memory_space<vmem>>, vector<1x1x128x128xbf16>
    %24 = vector.shape_cast %23 : vector<1x1x128x128xbf16> to vector<128x128xbf16>
    %cst_30 = arith.constant dense<0.000000e+00> : vector<128x128xf32>
    %25 = tpu.matmul %22, %24, %cst_30 {dimension_numbers = #tpu.dot_dimension_numbers<[1], [0], [0], [1], [0, 0, 1, 1], [], []>} : vector<128x128xbf16>, vector<128x128xbf16>, vector<128x128xf32> -> vector<128x128xf32>
    %26 = arith.addf %19, %25 : vector<128x128xf32>
    %c0_31 = arith.constant 0 : index
    %c0_32 = arith.constant 0 : index
    %c1_33 = arith.constant 1 : index
    %c5 = arith.constant 5 : index
    %c0_34 = arith.constant 0 : index
    %27 = vector.load %arg3[%c0_31, %c0_32, %c1_33, %c5, %c0_34] : memref<1x1x14x24x128xbf16, #tpu.memory_space<vmem>>, vector<1x1x8x16x128xbf16>
    %28 = vector.shape_cast %27 : vector<1x1x8x16x128xbf16> to vector<8x16x128xbf16>
    %29 = vector.shape_cast %28 : vector<8x16x128xbf16> to vector<128x128xbf16>
    %c0_35 = arith.constant 0 : index
    %c2 = arith.constant 2 : index
    %c0_36 = arith.constant 0 : index
    %c0_37 = arith.constant 0 : index
    %30 = vector.load %arg5[%c0_35, %c2, %c0_36, %c0_37] : memref<2x9x128x128xbf16, #tpu.memory_space<vmem>>, vector<1x1x128x128xbf16>
    %31 = vector.shape_cast %30 : vector<1x1x128x128xbf16> to vector<128x128xbf16>
    %cst_38 = arith.constant dense<0.000000e+00> : vector<128x128xf32>
    %32 = tpu.matmul %29, %31, %cst_38 {dimension_numbers = #tpu.dot_dimension_numbers<[1], [0], [0], [1], [0, 0, 1, 1], [], []>} : vector<128x128xbf16>, vector<128x128xbf16>, vector<128x128xf32> -> vector<128x128xf32>
    %33 = arith.addf %26, %32 : vector<128x128xf32>
    %c0_39 = arith.constant 0 : index
    %c0_40 = arith.constant 0 : index
    %c3_41 = arith.constant 3 : index
    %c1_42 = arith.constant 1 : index
    %c0_43 = arith.constant 0 : index
    %34 = vector.load %arg3[%c0_39, %c0_40, %c3_41, %c1_42, %c0_43] : memref<1x1x14x24x128xbf16, #tpu.memory_space<vmem>>, vector<1x1x8x16x128xbf16>
    %35 = vector.shape_cast %34 : vector<1x1x8x16x128xbf16> to vector<8x16x128xbf16>
    %36 = vector.shape_cast %35 : vector<8x16x128xbf16> to vector<128x128xbf16>
    %c0_44 = arith.constant 0 : index
    %c3_45 = arith.constant 3 : index
    %c0_46 = arith.constant 0 : index
    %c0_47 = arith.constant 0 : index
    %37 = vector.load %arg5[%c0_44, %c3_45, %c0_46, %c0_47] : memref<2x9x128x128xbf16, #tpu.memory_space<vmem>>, vector<1x1x128x128xbf16>
    %38 = vector.shape_cast %37 : vector<1x1x128x128xbf16> to vector<128x128xbf16>
    %cst_48 = arith.constant dense<0.000000e+00> : vector<128x128xf32>
    %39 = tpu.matmul %36, %38, %cst_48 {dimension_numbers = #tpu.dot_dimension_numbers<[1], [0], [0], [1], [0, 0, 1, 1], [], []>} : vector<128x128xbf16>, vector<128x128xbf16>, vector<128x128xf32> -> vector<128x128xf32>
    %40 = arith.addf %33, %39 : vector<128x128xf32>
    %c0_49 = arith.constant 0 : index
    %c0_50 = arith.constant 0 : index
    %c3_51 = arith.constant 3 : index
    %c3_52 = arith.constant 3 : index
    %c0_53 = arith.constant 0 : index
    %41 = vector.load %arg3[%c0_49, %c0_50, %c3_51, %c3_52, %c0_53] : memref<1x1x14x24x128xbf16, #tpu.memory_space<vmem>>, vector<1x1x8x16x128xbf16>
    %42 = vector.shape_cast %41 : vector<1x1x8x16x128xbf16> to vector<8x16x128xbf16>
    %43 = vector.shape_cast %42 : vector<8x16x128xbf16> to vector<128x128xbf16>
    %c0_54 = arith.constant 0 : index
    %c4 = arith.constant 4 : index
    %c0_55 = arith.constant 0 : index
    %c0_56 = arith.constant 0 : index
    %44 = vector.load %arg5[%c0_54, %c4, %c0_55, %c0_56] : memref<2x9x128x128xbf16, #tpu.memory_space<vmem>>, vector<1x1x128x128xbf16>
    %45 = vector.shape_cast %44 : vector<1x1x128x128xbf16> to vector<128x128xbf16>
    %cst_57 = arith.constant dense<0.000000e+00> : vector<128x128xf32>
    %46 = tpu.matmul %43, %45, %cst_57 {dimension_numbers = #tpu.dot_dimension_numbers<[1], [0], [0], [1], [0, 0, 1, 1], [], []>} : vector<128x128xbf16>, vector<128x128xbf16>, vector<128x128xf32> -> vector<128x128xf32>
    %47 = arith.addf %40, %46 : vector<128x128xf32>
    %c0_58 = arith.constant 0 : index
    %c0_59 = arith.constant 0 : index
    %c3_60 = arith.constant 3 : index
    %c5_61 = arith.constant 5 : index
    %c0_62 = arith.constant 0 : index
    %48 = vector.load %arg3[%c0_58, %c0_59, %c3_60, %c5_61, %c0_62] : memref<1x1x14x24x128xbf16, #tpu.memory_space<vmem>>, vector<1x1x8x16x128xbf16>
    %49 = vector.shape_cast %48 : vector<1x1x8x16x128xbf16> to vector<8x16x128xbf16>
    %50 = vector.shape_cast %49 : vector<8x16x128xbf16> to vector<128x128xbf16>
    %c0_63 = arith.constant 0 : index
    %c5_64 = arith.constant 5 : index
    %c0_65 = arith.constant 0 : index
    %c0_66 = arith.constant 0 : index
    %51 = vector.load %arg5[%c0_63, %c5_64, %c0_65, %c0_66] : memref<2x9x128x128xbf16, #tpu.memory_space<vmem>>, vector<1x1x128x128xbf16>
    %52 = vector.shape_cast %51 : vector<1x1x128x128xbf16> to vector<128x128xbf16>
    %cst_67 = arith.constant dense<0.000000e+00> : vector<128x128xf32>
    %53 = tpu.matmul %50, %52, %cst_67 {dimension_numbers = #tpu.dot_dimension_numbers<[1], [0], [0], [1], [0, 0, 1, 1], [], []>} : vector<128x128xbf16>, vector<128x128xbf16>, vector<128x128xf32> -> vector<128x128xf32>
    %54 = arith.addf %47, %53 : vector<128x128xf32>
    %c0_68 = arith.constant 0 : index
    %c0_69 = arith.constant 0 : index
    %c5_70 = arith.constant 5 : index
    %c1_71 = arith.constant 1 : index
    %c0_72 = arith.constant 0 : index
    %55 = vector.load %arg3[%c0_68, %c0_69, %c5_70, %c1_71, %c0_72] : memref<1x1x14x24x128xbf16, #tpu.memory_space<vmem>>, vector<1x1x8x16x128xbf16>
    %56 = vector.shape_cast %55 : vector<1x1x8x16x128xbf16> to vector<8x16x128xbf16>
    %57 = vector.shape_cast %56 : vector<8x16x128xbf16> to vector<128x128xbf16>
    %c0_73 = arith.constant 0 : index
    %c6 = arith.constant 6 : index
    %c0_74 = arith.constant 0 : index
    %c0_75 = arith.constant 0 : index
    %58 = vector.load %arg5[%c0_73, %c6, %c0_74, %c0_75] : memref<2x9x128x128xbf16, #tpu.memory_space<vmem>>, vector<1x1x128x128xbf16>
    %59 = vector.shape_cast %58 : vector<1x1x128x128xbf16> to vector<128x128xbf16>
    %cst_76 = arith.constant dense<0.000000e+00> : vector<128x128xf32>
    %60 = tpu.matmul %57, %59, %cst_76 {dimension_numbers = #tpu.dot_dimension_numbers<[1], [0], [0], [1], [0, 0, 1, 1], [], []>} : vector<128x128xbf16>, vector<128x128xbf16>, vector<128x128xf32> -> vector<128x128xf32>
    %61 = arith.addf %54, %60 : vector<128x128xf32>
    %c0_77 = arith.constant 0 : index
    %c0_78 = arith.constant 0 : index
    %c5_79 = arith.constant 5 : index
    %c3_80 = arith.constant 3 : index
    %c0_81 = arith.constant 0 : index
    %62 = vector.load %arg3[%c0_77, %c0_78, %c5_79, %c3_80, %c0_81] : memref<1x1x14x24x128xbf16, #tpu.memory_space<vmem>>, vector<1x1x8x16x128xbf16>
    %63 = vector.shape_cast %62 : vector<1x1x8x16x128xbf16> to vector<8x16x128xbf16>
    %64 = vector.shape_cast %63 : vector<8x16x128xbf16> to vector<128x128xbf16>
    %c0_82 = arith.constant 0 : index
    %c7 = arith.constant 7 : index
    %c0_83 = arith.constant 0 : index
    %c0_84 = arith.constant 0 : index
    %65 = vector.load %arg5[%c0_82, %c7, %c0_83, %c0_84] : memref<2x9x128x128xbf16, #tpu.memory_space<vmem>>, vector<1x1x128x128xbf16>
    %66 = vector.shape_cast %65 : vector<1x1x128x128xbf16> to vector<128x128xbf16>
    %cst_85 = arith.constant dense<0.000000e+00> : vector<128x128xf32>
    %67 = tpu.matmul %64, %66, %cst_85 {dimension_numbers = #tpu.dot_dimension_numbers<[1], [0], [0], [1], [0, 0, 1, 1], [], []>} : vector<128x128xbf16>, vector<128x128xbf16>, vector<128x128xf32> -> vector<128x128xf32>
    %68 = arith.addf %61, %67 : vector<128x128xf32>
    %c0_86 = arith.constant 0 : index
    %c0_87 = arith.constant 0 : index
    %c5_88 = arith.constant 5 : index
    %c5_89 = arith.constant 5 : index
    %c0_90 = arith.constant 0 : index
    %69 = vector.load %arg3[%c0_86, %c0_87, %c5_88, %c5_89, %c0_90] : memref<1x1x14x24x128xbf16, #tpu.memory_space<vmem>>, vector<1x1x8x16x128xbf16>
    %70 = vector.shape_cast %69 : vector<1x1x8x16x128xbf16> to vector<8x16x128xbf16>
    %71 = vector.shape_cast %70 : vector<8x16x128xbf16> to vector<128x128xbf16>
    %c0_91 = arith.constant 0 : index
    %c8 = arith.constant 8 : index
    %c0_92 = arith.constant 0 : index
    %c0_93 = arith.constant 0 : index
    %72 = vector.load %arg5[%c0_91, %c8, %c0_92, %c0_93] : memref<2x9x128x128xbf16, #tpu.memory_space<vmem>>, vector<1x1x128x128xbf16>
    %73 = vector.shape_cast %72 : vector<1x1x128x128xbf16> to vector<128x128xbf16>
    %cst_94 = arith.constant dense<0.000000e+00> : vector<128x128xf32>
    %74 = tpu.matmul %71, %73, %cst_94 {dimension_numbers = #tpu.dot_dimension_numbers<[1], [0], [0], [1], [0, 0, 1, 1], [], []>} : vector<128x128xbf16>, vector<128x128xbf16>, vector<128x128xf32> -> vector<128x128xf32>
    %75 = arith.addf %68, %74 : vector<128x128xf32>
    %c1_95 = arith.constant 1 : index
    %c0_96 = arith.constant 0 : index
    %c0_97 = arith.constant 0 : index
    %76 = vector.load %arg10[%c1_95, %c0_96, %c0_97] : memref<3x128x128xf32, #tpu.memory_space<vmem>>, vector<1x128x128xf32>
    %77 = vector.shape_cast %76 : vector<1x128x128xf32> to vector<128x128xf32>
    %78 = arith.addf %77, %75 : vector<128x128xf32>
    %c1_98 = arith.constant 1 : index
    %c0_99 = arith.constant 0 : index
    %c0_100 = arith.constant 0 : index
    %79 = vector.load %arg10[%c1_98, %c0_99, %c0_100] : memref<3x128x128xf32, #tpu.memory_space<vmem>>, vector<1x128x128xf32>
    %80 = vector.shape_cast %79 : vector<1x128x128xf32> to vector<128x128xf32>
    %81 = vector.shape_cast %78 : vector<128x128xf32> to vector<1x128x128xf32>
    tpu.vector_store %arg10[%c1_98, %c0_99, %c0_100], %81 {strides = array<i32>} : memref<3x128x128xf32, #tpu.memory_space<vmem>>, vector<1x128x128xf32>,
    %c0_101 = arith.constant 0 : index
    %c0_102 = arith.constant 0 : index
    %c0_103 = arith.constant 0 : index
    %c0_104 = arith.constant 0 : index
    %c0_105 = arith.constant 0 : index
    %82 = vector.load %arg3[%c0_101, %c0_102, %c0_103, %c0_104, %c0_105] : memref<1x1x14x24x128xbf16, #tpu.memory_space<vmem>>, vector<1x1x8x16x128xbf16>
    %83 = vector.shape_cast %82 : vector<1x1x8x16x128xbf16> to vector<8x16x128xbf16>
    %84 = vector.shape_cast %83 : vector<8x16x128xbf16> to vector<128x128xbf16>
    %c1_106 = arith.constant 1 : index
    %c0_107 = arith.constant 0 : index
    %c0_108 = arith.constant 0 : index
    %c0_109 = arith.constant 0 : index
    %85 = vector.load %arg5[%c1_106, %c0_107, %c0_108, %c0_109] : memref<2x9x128x128xbf16, #tpu.memory_space<vmem>>, vector<1x1x128x128xbf16>
    %86 = vector.shape_cast %85 : vector<1x1x128x128xbf16> to vector<128x128xbf16>
    %cst_110 = arith.constant dense<0.000000e+00> : vector<128x128xf32>
    %87 = tpu.matmul %84, %86, %cst_110 {dimension_numbers = #tpu.dot_dimension_numbers<[1], [0], [0], [1], [0, 0, 1, 1], [], []>} : vector<128x128xbf16>, vector<128x128xbf16>, vector<128x128xf32> -> vector<128x128xf32>
    %c0_111 = arith.constant 0 : index
    %c0_112 = arith.constant 0 : index
    %c0_113 = arith.constant 0 : index
    %c3_114 = arith.constant 3 : index
    %c0_115 = arith.constant 0 : index
    %88 = vector.load %arg3[%c0_111, %c0_112, %c0_113, %c3_114, %c0_115] : memref<1x1x14x24x128xbf16, #tpu.memory_space<vmem>>, vector<1x1x8x16x128xbf16>
    %89 = vector.shape_cast %88 : vector<1x1x8x16x128xbf16> to vector<8x16x128xbf16>
    %90 = vector.shape_cast %89 : vector<8x16x128xbf16> to vector<128x128xbf16>
    %c1_116 = arith.constant 1 : index
    %c1_117 = arith.constant 1 : index
    %c0_118 = arith.constant 0 : index
    %c0_119 = arith.constant 0 : index
    %91 = vector.load %arg5[%c1_116, %c1_117, %c0_118, %c0_119] : memref<2x9x128x128xbf16, #tpu.memory_space<vmem>>, vector<1x1x128x128xbf16>
    %92 = vector.shape_cast %91 : vector<1x1x128x128xbf16> to vector<128x128xbf16>
    %cst_120 = arith.constant dense<0.000000e+00> : vector<128x128xf32>
    %93 = tpu.matmul %90, %92, %cst_120 {dimension_numbers = #tpu.dot_dimension_numbers<[1], [0], [0], [1], [0, 0, 1, 1], [], []>} : vector<128x128xbf16>, vector<128x128xbf16>, vector<128x128xf32> -> vector<128x128xf32>
    %94 = arith.addf %87, %93 : vector<128x128xf32>
    %c0_121 = arith.constant 0 : index
    %c0_122 = arith.constant 0 : index
    %c0_123 = arith.constant 0 : index
    %c6_124 = arith.constant 6 : index
    %c0_125 = arith.constant 0 : index
    %95 = vector.load %arg3[%c0_121, %c0_122, %c0_123, %c6_124, %c0_125] : memref<1x1x14x24x128xbf16, #tpu.memory_space<vmem>>, vector<1x1x8x16x128xbf16>
    %96 = vector.shape_cast %95 : vector<1x1x8x16x128xbf16> to vector<8x16x128xbf16>
    %97 = vector.shape_cast %96 : vector<8x16x128xbf16> to vector<128x128xbf16>
    %c1_126 = arith.constant 1 : index
    %c2_127 = arith.constant 2 : index
    %c0_128 = arith.constant 0 : index
    %c0_129 = arith.constant 0 : index
    %98 = vector.load %arg5[%c1_126, %c2_127, %c0_128, %c0_129] : memref<2x9x128x128xbf16, #tpu.memory_space<vmem>>, vector<1x1x128x128xbf16>
    %99 = vector.shape_cast %98 : vector<1x1x128x128xbf16> to vector<128x128xbf16>
    %cst_130 = arith.constant dense<0.000000e+00> : vector<128x128xf32>
    %100 = tpu.matmul %97, %99, %cst_130 {dimension_numbers = #tpu.dot_dimension_numbers<[1], [0], [0], [1], [0, 0, 1, 1], [], []>} : vector<128x128xbf16>, vector<128x128xbf16>, vector<128x128xf32> -> vector<128x128xf32>
    %101 = arith.addf %94, %100 : vector<128x128xf32>
    %c0_131 = arith.constant 0 : index
    %c0_132 = arith.constant 0 : index
    %c3_133 = arith.constant 3 : index
    %c0_134 = arith.constant 0 : index
    %c0_135 = arith.constant 0 : index
    %102 = vector.load %arg3[%c0_131, %c0_132, %c3_133, %c0_134, %c0_135] : memref<1x1x14x24x128xbf16, #tpu.memory_space<vmem>>, vector<1x1x8x16x128xbf16>
    %103 = vector.shape_cast %102 : vector<1x1x8x16x128xbf16> to vector<8x16x128xbf16>
    %104 = vector.shape_cast %103 : vector<8x16x128xbf16> to vector<128x128xbf16>
    %c1_136 = arith.constant 1 : index
    %c3_137 = arith.constant 3 : index
    %c0_138 = arith.constant 0 : index
    %c0_139 = arith.constant 0 : index
    %105 = vector.load %arg5[%c1_136, %c3_137, %c0_138, %c0_139] : memref<2x9x128x128xbf16, #tpu.memory_space<vmem>>, vector<1x1x128x128xbf16>
    %106 = vector.shape_cast %105 : vector<1x1x128x128xbf16> to vector<128x128xbf16>
    %cst_140 = arith.constant dense<0.000000e+00> : vector<128x128xf32>
    %107 = tpu.matmul %104, %106, %cst_140 {dimension_numbers = #tpu.dot_dimension_numbers<[1], [0], [0], [1], [0, 0, 1, 1], [], []>} : vector<128x128xbf16>, vector<128x128xbf16>, vector<128x128xf32> -> vector<128x128xf32>
    %108 = arith.addf %101, %107 : vector<128x128xf32>
    %c0_141 = arith.constant 0 : index
    %c0_142 = arith.constant 0 : index
    %c3_143 = arith.constant 3 : index
    %c3_144 = arith.constant 3 : index
    %c0_145 = arith.constant 0 : index
    %109 = vector.load %arg3[%c0_141, %c0_142, %c3_143, %c3_144, %c0_145] : memref<1x1x14x24x128xbf16, #tpu.memory_space<vmem>>, vector<1x1x8x16x128xbf16>
    %110 = vector.shape_cast %109 : vector<1x1x8x16x128xbf16> to vector<8x16x128xbf16>
    %111 = vector.shape_cast %110 : vector<8x16x128xbf16> to vector<128x128xbf16>
    %c1_146 = arith.constant 1 : index
    %c4_147 = arith.constant 4 : index
    %c0_148 = arith.constant 0 : index
    %c0_149 = arith.constant 0 : index
    %112 = vector.load %arg5[%c1_146, %c4_147, %c0_148, %c0_149] : memref<2x9x128x128xbf16, #tpu.memory_space<vmem>>, vector<1x1x128x128xbf16>
    %113 = vector.shape_cast %112 : vector<1x1x128x128xbf16> to vector<128x128xbf16>
    %cst_150 = arith.constant dense<0.000000e+00> : vector<128x128xf32>
    %114 = tpu.matmul %111, %113, %cst_150 {dimension_numbers = #tpu.dot_dimension_numbers<[1], [0], [0], [1], [0, 0, 1, 1], [], []>} : vector<128x128xbf16>, vector<128x128xbf16>, vector<128x128xf32> -> vector<128x128xf32>
    %115 = arith.addf %108, %114 : vector<128x128xf32>
    %c0_151 = arith.constant 0 : index
    %c0_152 = arith.constant 0 : index
    %c3_153 = arith.constant 3 : index
    %c6_154 = arith.constant 6 : index
    %c0_155 = arith.constant 0 : index
    %116 = vector.load %arg3[%c0_151, %c0_152, %c3_153, %c6_154, %c0_155] : memref<1x1x14x24x128xbf16, #tpu.memory_space<vmem>>, vector<1x1x8x16x128xbf16>
    %117 = vector.shape_cast %116 : vector<1x1x8x16x128xbf16> to vector<8x16x128xbf16>
    %118 = vector.shape_cast %117 : vector<8x16x128xbf16> to vector<128x128xbf16>
    %c1_156 = arith.constant 1 : index
    %c5_157 = arith.constant 5 : index
    %c0_158 = arith.constant 0 : index
    %c0_159 = arith.constant 0 : index
    %119 = vector.load %arg5[%c1_156, %c5_157, %c0_158, %c0_159] : memref<2x9x128x128xbf16, #tpu.memory_space<vmem>>, vector<1x1x128x128xbf16>
    %120 = vector.shape_cast %119 : vector<1x1x128x128xbf16> to vector<128x128xbf16>
    %cst_160 = arith.constant dense<0.000000e+00> : vector<128x128xf32>
    %121 = tpu.matmul %118, %120, %cst_160 {dimension_numbers = #tpu.dot_dimension_numbers<[1], [0], [0], [1], [0, 0, 1, 1], [], []>} : vector<128x128xbf16>, vector<128x128xbf16>, vector<128x128xf32> -> vector<128x128xf32>
    %122 = arith.addf %115, %121 : vector<128x128xf32>
    %c0_161 = arith.constant 0 : index
    %c0_162 = arith.constant 0 : index
    %c6_163 = arith.constant 6 : index
    %c0_164 = arith.constant 0 : index
    %c0_165 = arith.constant 0 : index
    %123 = vector.load %arg3[%c0_161, %c0_162, %c6_163, %c0_164, %c0_165] : memref<1x1x14x24x128xbf16, #tpu.memory_space<vmem>>, vector<1x1x8x16x128xbf16>
    %124 = vector.shape_cast %123 : vector<1x1x8x16x128xbf16> to vector<8x16x128xbf16>
    %125 = vector.shape_cast %124 : vector<8x16x128xbf16> to vector<128x128xbf16>
    %c1_166 = arith.constant 1 : index
    %c6_167 = arith.constant 6 : index
    %c0_168 = arith.constant 0 : index
    %c0_169 = arith.constant 0 : index
    %126 = vector.load %arg5[%c1_166, %c6_167, %c0_168, %c0_169] : memref<2x9x128x128xbf16, #tpu.memory_space<vmem>>, vector<1x1x128x128xbf16>
    %127 = vector.shape_cast %126 : vector<1x1x128x128xbf16> to vector<128x128xbf16>
    %cst_170 = arith.constant dense<0.000000e+00> : vector<128x128xf32>
    %128 = tpu.matmul %125, %127, %cst_170 {dimension_numbers = #tpu.dot_dimension_numbers<[1], [0], [0], [1], [0, 0, 1, 1], [], []>} : vector<128x128xbf16>, vector<128x128xbf16>, vector<128x128xf32> -> vector<128x128xf32>
    %129 = arith.addf %122, %128 : vector<128x128xf32>
    %c0_171 = arith.constant 0 : index
    %c0_172 = arith.constant 0 : index
    %c6_173 = arith.constant 6 : index
    %c3_174 = arith.constant 3 : index
    %c0_175 = arith.constant 0 : index
    %130 = vector.load %arg3[%c0_171, %c0_172, %c6_173, %c3_174, %c0_175] : memref<1x1x14x24x128xbf16, #tpu.memory_space<vmem>>, vector<1x1x8x16x128xbf16>
    %131 = vector.shape_cast %130 : vector<1x1x8x16x128xbf16> to vector<8x16x128xbf16>
    %132 = vector.shape_cast %131 : vector<8x16x128xbf16> to vector<128x128xbf16>
    %c1_176 = arith.constant 1 : index
    %c7_177 = arith.constant 7 : index
    %c0_178 = arith.constant 0 : index
    %c0_179 = arith.constant 0 : index
    %133 = vector.load %arg5[%c1_176, %c7_177, %c0_178, %c0_179] : memref<2x9x128x128xbf16, #tpu.memory_space<vmem>>, vector<1x1x128x128xbf16>
    %134 = vector.shape_cast %133 : vector<1x1x128x128xbf16> to vector<128x128xbf16>
    %cst_180 = arith.constant dense<0.000000e+00> : vector<128x128xf32>
    %135 = tpu.matmul %132, %134, %cst_180 {dimension_numbers = #tpu.dot_dimension_numbers<[1], [0], [0], [1], [0, 0, 1, 1], [], []>} : vector<128x128xbf16>, vector<128x128xbf16>, vector<128x128xf32> -> vector<128x128xf32>
    %136 = arith.addf %129, %135 : vector<128x128xf32>
    %c0_181 = arith.constant 0 : index
    %c0_182 = arith.constant 0 : index
    %c6_183 = arith.constant 6 : index
    %c6_184 = arith.constant 6 : index
    %c0_185 = arith.constant 0 : index
    %137 = vector.load %arg3[%c0_181, %c0_182, %c6_183, %c6_184, %c0_185] : memref<1x1x14x24x128xbf16, #tpu.memory_space<vmem>>, vector<1x1x8x16x128xbf16>
    %138 = vector.shape_cast %137 : vector<1x1x8x16x128xbf16> to vector<8x16x128xbf16>
    %139 = vector.shape_cast %138 : vector<8x16x128xbf16> to vector<128x128xbf16>
    %c1_186 = arith.constant 1 : index
    %c8_187 = arith.constant 8 : index
    %c0_188 = arith.constant 0 : index
    %c0_189 = arith.constant 0 : index
    %140 = vector.load %arg5[%c1_186, %c8_187, %c0_188, %c0_189] : memref<2x9x128x128xbf16, #tpu.memory_space<vmem>>, vector<1x1x128x128xbf16>
    %141 = vector.shape_cast %140 : vector<1x1x128x128xbf16> to vector<128x128xbf16>
    %cst_190 = arith.constant dense<0.000000e+00> : vector<128x128xf32>
    %142 = tpu.matmul %139, %141, %cst_190 {dimension_numbers = #tpu.dot_dimension_numbers<[1], [0], [0], [1], [0, 0, 1, 1], [], []>} : vector<128x128xbf16>, vector<128x128xbf16>, vector<128x128xf32> -> vector<128x128xf32>
    %143 = arith.addf %136, %142 : vector<128x128xf32>
    %c2_191 = arith.constant 2 : index
    %c0_192 = arith.constant 0 : index
    %c0_193 = arith.constant 0 : index
    %144 = vector.load %arg10[%c2_191, %c0_192, %c0_193] : memref<3x128x128xf32, #tpu.memory_space<vmem>>, vector<1x128x128xf32>
    %145 = vector.shape_cast %144 : vector<1x128x128xf32> to vector<128x128xf32>
    %146 = arith.addf %145, %143 : vector<128x128xf32>
    %c2_194 = arith.constant 2 : index
    %c0_195 = arith.constant 0 : index
    %c0_196 = arith.constant 0 : index
    %147 = vector.load %arg10[%c2_194, %c0_195, %c0_196] : memref<3x128x128xf32, #tpu.memory_space<vmem>>, vector<1x128x128xf32>
    %148 = vector.shape_cast %147 : vector<1x128x128xf32> to vector<128x128xf32>
    %149 = vector.shape_cast %146 : vector<128x128xf32> to vector<1x128x128xf32>
    tpu.vector_store %arg10[%c2_194, %c0_195, %c0_196], %149 {strides = array<i32>} : memref<3x128x128xf32, #tpu.memory_space<vmem>>, vector<1x128x128xf32>,
    %c0_i32_197 = arith.constant 0 : i32
    %150 = arith.cmpi eq, %arg2, %c0_i32_197 : i32
    %151 = arith.extui %150 : i1 to i32
    %c0_i32_198 = arith.constant 0 : i32
    %152 = arith.cmpi ne, %151, %c0_i32_198 : i32
    scf.if %152 {
      %c0_199 = arith.constant 0 : index
      %c0_200 = arith.constant 0 : index
      %c0_201 = arith.constant 0 : index
      %153 = vector.load %arg10[%c0_199, %c0_200, %c0_201] : memref<3x128x128xf32, #tpu.memory_space<vmem>>, vector<1x128x128xf32>
      %154 = vector.shape_cast %153 : vector<1x128x128xf32> to vector<128x128xf32>
      %c0_202 = arith.constant 0 : index
      %c0_203 = arith.constant 0 : index
      %c0_204 = arith.constant 0 : index
      %155 = vector.load %arg6[%c0_202, %c0_203, %c0_204] : memref<3x1x128xf32, #tpu.memory_space<vmem>>, vector<1x1x128xf32>
      %156 = vector.shape_cast %155 : vector<1x1x128xf32> to vector<1x128xf32>
      %157 = vector.broadcast %156 : vector<1x128xf32> to vector<128x128xf32>
      %158 = arith.addf %154, %157 : vector<128x128xf32>
      %cst_205 = arith.constant 0.000000e+00 : f32
      %159 = vector.broadcast %cst_205 : f32 to vector<128x128xf32>
      %160 = arith.maximumf %158, %159 : vector<128x128xf32>
      %161 = arith.truncf %160 : vector<128x128xf32> to vector<128x128xbf16>
      %c0_206 = arith.constant 0 : index
      %c0_207 = arith.constant 0 : index
      %c0_208 = arith.constant 0 : index
      %162 = vector.load %arg7[%c0_206, %c0_207, %c0_208] : memref<3x128x128xbf16, #tpu.memory_space<vmem>>, vector<1x128x128xbf16>
      %163 = vector.shape_cast %162 : vector<1x128x128xbf16> to vector<128x128xbf16>
      %cst_209 = arith.constant dense<0.000000e+00> : vector<128x128xf32>
      %164 = tpu.matmul %161, %163, %cst_209 {dimension_numbers = #tpu.dot_dimension_numbers<[1], [0], [0], [1], [0, 0, 1, 1], [], []>} : vector<128x128xbf16>, vector<128x128xbf16>, vector<128x128xf32> -> vector<128x128xf32>
      %c1_210 = arith.constant 1 : index
      %c0_211 = arith.constant 0 : index
      %c0_212 = arith.constant 0 : index
      %165 = vector.load %arg10[%c1_210, %c0_211, %c0_212] : memref<3x128x128xf32, #tpu.memory_space<vmem>>, vector<1x128x128xf32>
      %166 = vector.shape_cast %165 : vector<1x128x128xf32> to vector<128x128xf32>
      %c1_213 = arith.constant 1 : index
      %c0_214 = arith.constant 0 : index
      %c0_215 = arith.constant 0 : index
      %167 = vector.load %arg6[%c1_213, %c0_214, %c0_215] : memref<3x1x128xf32, #tpu.memory_space<vmem>>, vector<1x1x128xf32>
      %168 = vector.shape_cast %167 : vector<1x1x128xf32> to vector<1x128xf32>
      %169 = vector.broadcast %168 : vector<1x128xf32> to vector<128x128xf32>
      %170 = arith.addf %166, %169 : vector<128x128xf32>
      %cst_216 = arith.constant 0.000000e+00 : f32
      %171 = vector.broadcast %cst_216 : f32 to vector<128x128xf32>
      %172 = arith.maximumf %170, %171 : vector<128x128xf32>
      %173 = arith.truncf %172 : vector<128x128xf32> to vector<128x128xbf16>
      %c1_217 = arith.constant 1 : index
      %c0_218 = arith.constant 0 : index
      %c0_219 = arith.constant 0 : index
      %174 = vector.load %arg7[%c1_217, %c0_218, %c0_219] : memref<3x128x128xbf16, #tpu.memory_space<vmem>>, vector<1x128x128xbf16>
      %175 = vector.shape_cast %174 : vector<1x128x128xbf16> to vector<128x128xbf16>
      %cst_220 = arith.constant dense<0.000000e+00> : vector<128x128xf32>
      %176 = tpu.matmul %173, %175, %cst_220 {dimension_numbers = #tpu.dot_dimension_numbers<[1], [0], [0], [1], [0, 0, 1, 1], [], []>} : vector<128x128xbf16>, vector<128x128xbf16>, vector<128x128xf32> -> vector<128x128xf32>
      %177 = arith.addf %164, %176 : vector<128x128xf32>
      %c2_221 = arith.constant 2 : index
      %c0_222 = arith.constant 0 : index
      %c0_223 = arith.constant 0 : index
      %178 = vector.load %arg10[%c2_221, %c0_222, %c0_223] : memref<3x128x128xf32, #tpu.memory_space<vmem>>, vector<1x128x128xf32>
      %179 = vector.shape_cast %178 : vector<1x128x128xf32> to vector<128x128xf32>
      %c2_224 = arith.constant 2 : index
      %c0_225 = arith.constant 0 : index
      %c0_226 = arith.constant 0 : index
      %180 = vector.load %arg6[%c2_224, %c0_225, %c0_226] : memref<3x1x128xf32, #tpu.memory_space<vmem>>, vector<1x1x128xf32>
      %181 = vector.shape_cast %180 : vector<1x1x128xf32> to vector<1x128xf32>
      %182 = vector.broadcast %181 : vector<1x128xf32> to vector<128x128xf32>
      %183 = arith.addf %179, %182 : vector<128x128xf32>
      %cst_227 = arith.constant 0.000000e+00 : f32
      %184 = vector.broadcast %cst_227 : f32 to vector<128x128xf32>
      %185 = arith.maximumf %183, %184 : vector<128x128xf32>
      %186 = arith.truncf %185 : vector<128x128xf32> to vector<128x128xbf16>
      %c2_228 = arith.constant 2 : index
      %c0_229 = arith.constant 0 : index
      %c0_230 = arith.constant 0 : index
      %187 = vector.load %arg7[%c2_228, %c0_229, %c0_230] : memref<3x128x128xbf16, #tpu.memory_space<vmem>>, vector<1x128x128xbf16>
      %188 = vector.shape_cast %187 : vector<1x128x128xbf16> to vector<128x128xbf16>
      %cst_231 = arith.constant dense<0.000000e+00> : vector<128x128xf32>
      %189 = tpu.matmul %186, %188, %cst_231 {dimension_numbers = #tpu.dot_dimension_numbers<[1], [0], [0], [1], [0, 0, 1, 1], [], []>} : vector<128x128xbf16>, vector<128x128xbf16>, vector<128x128xf32> -> vector<128x128xf32>
      %190 = arith.addf %177, %189 : vector<128x128xf32>
      %c0_232 = arith.constant 0 : index
      %c0_233 = arith.constant 0 : index
      %c0_234 = arith.constant 0 : index
      %191 = vector.load %arg8[%c0_232, %c0_233, %c0_234] : memref<1x1x128xf32, #tpu.memory_space<vmem>>, vector<1x1x128xf32>
      %192 = vector.shape_cast %191 : vector<1x1x128xf32> to vector<1x128xf32>
      %193 = vector.broadcast %192 : vector<1x128xf32> to vector<128x128xf32>
      %194 = arith.addf %190, %193 : vector<128x128xf32>
      %cst_235 = arith.constant 0.000000e+00 : f32
      %195 = vector.broadcast %cst_235 : f32 to vector<128x128xf32>
      %196 = arith.maximumf %194, %195 : vector<128x128xf32>
      %c0_236 = arith.constant 0 : index
      %c0_237 = arith.constant 0 : index
      %c0_238 = arith.constant 0 : index
      %c0_239 = arith.constant 0 : index
      %197 = vector.load %arg9[%c0_236, %c0_237, %c0_238, %c0_239] : memref<1x1x128x128xf32, #tpu.memory_space<vmem>>, vector<1x1x128x128xf32>
      %198 = vector.shape_cast %197 : vector<1x1x128x128xf32> to vector<128x128xf32>
      %199 = vector.shape_cast %196 : vector<128x128xf32> to vector<1x1x128x128xf32>
      tpu.vector_store %arg9[%c0_236, %c0_237, %c0_238, %c0_239], %199 {strides = array<i32>} : memref<1x1x128x128xf32, #tpu.memory_space<vmem>>, vector<1x1x128x128xf32>,
    } else {
    }
    return
  }
  func.func @transform_0(%arg0: i32, %arg1: i32, %arg2: i32) -> (i32, i32, i32, i32, i32) {
    %c0_i32 = arith.constant 0 : i32
    %c0_i32_0 = arith.constant 0 : i32
    %c0_i32_1 = arith.constant 0 : i32
    return %arg0, %arg1, %c0_i32, %c0_i32_0, %arg2 : i32, i32, i32, i32, i32
  }
  func.func @transform_1(%arg0: i32, %arg1: i32, %arg2: i32) -> (i32, i32) {
    %c0_i32 = arith.constant 0 : i32
    %c0_i32_0 = arith.constant 0 : i32
    return %arg2, %c0_i32 : i32, i32
  }
  func.func @transform_2(%arg0: i32, %arg1: i32, %arg2: i32) -> (i32, i32, i32, i32) {
    %c0_i32 = arith.constant 0 : i32
    %c0_i32_0 = arith.constant 0 : i32
    %c0_i32_1 = arith.constant 0 : i32
    %c0_i32_2 = arith.constant 0 : i32
    return %c0_i32, %c0_i32_0, %arg2, %c0_i32_1 : i32, i32, i32, i32
  }
  func.func @transform_3(%arg0: i32, %arg1: i32, %arg2: i32) -> (i32, i32, i32) {
    %c0_i32 = arith.constant 0 : i32
    %c0_i32_0 = arith.constant 0 : i32
    %c0_i32_1 = arith.constant 0 : i32
    %c0_i32_2 = arith.constant 0 : i32
    return %c0_i32, %c0_i32_0, %c0_i32_1 : i32, i32, i32
  }
  func.func @transform_4(%arg0: i32, %arg1: i32, %arg2: i32) -> (i32, i32, i32) {
    %c0_i32 = arith.constant 0 : i32
    %c0_i32_0 = arith.constant 0 : i32
    %c0_i32_1 = arith.constant 0 : i32
    %c0_i32_2 = arith.constant 0 : i32
    return %c0_i32, %c0_i32_0, %c0_i32_1 : i32, i32, i32
  }
  func.func @transform_5(%arg0: i32, %arg1: i32, %arg2: i32) -> (i32, i32, i32) {
    %c0_i32 = arith.constant 0 : i32
    %c0_i32_0 = arith.constant 0 : i32
    %c0_i32_1 = arith.constant 0 : i32
    return %arg0, %c0_i32, %c0_i32_0 : i32, i32, i32
  }
  func.func @transform_6(%arg0: i32, %arg1: i32, %arg2: i32) -> (i32, i32, i32, i32) {
    %c0_i32 = arith.constant 0 : i32
    %c0_i32_0 = arith.constant 0 : i32
    %c0_i32_1 = arith.constant 0 : i32
    return %arg0, %arg1, %c0_i32, %c0_i32_0 : i32, i32, i32, i32
  }
}

</mosaic_0001>

<llo_original>
// kernel: _lambda_.1
$region0: #{_lambda_.1}
  #allocation0 [shape = 'u32[]', space=smem, size = 0x4, offset = 0x4, fixed_abs, tag = 'smem constant byte address 0x4 - core index']
  #allocation1 [shape = 'u32[144,128]{1,0:T(1,128)}', space=vmem, size = 0x12000, scoped, tag = 'internal scratch']
  #allocation2 [shape = 'f32[3,128,128]{2,1,0:T(8,128)}', space=vmem, size = 0x30000, scoped, tag = 'scratch operand']
  %s0 = inlined_call_operand.vmem [shape: bf16[2,2,14,24,128], index: 0, kind: input, shape index: {}]
  %s1 = inlined_call_operand.vmem [shape: bf16[128,128], index: 1, kind: input, shape index: {}]
  %s2 = inlined_call_operand.vmem [shape: bf16[2,9,128,128], index: 2, kind: input, shape index: {}]
  %s3 = inlined_call_operand.vmem [shape: f32[3,1,128], index: 3, kind: input, shape index: {}]
  %s4 = inlined_call_operand.vmem [shape: bf16[3,128,128], index: 4, kind: input, shape index: {}]
  %s5 = inlined_call_operand.vmem [shape: f32[2,1,128], index: 5, kind: input, shape index: {}]
  %s6 = inlined_call_operand.vmem [shape: f32[2,2,128,128], index: 6, kind: output, shape index: {}]
  %s7 = sld [smem:[#allocation0]]
  $region65: #{_lambda_.1} parent=0
    _
  %s9 = ssub.s32 1, %s7
  %s10 = scalar_select 0, %s9, %s7
  loop: start=0, step=1, limit=6
  $region2: #{_lambda_.1} parent=0 // loop_pre_header
    _
  $region3: #{_lambda_.1} parent=0 // loop_header
    %s12 = sphi 0, %s16
    %p13 = scmp.ge.s32.totalorder %s12, 6
    %s19 = sphi 0, %s38
    %s20 = sphi 0, %s34
    %s21 = sphi 0, %s30
    %s22 = sphi 0, %s19
    %s23 = sphi 0, %s20
    %s24 = sphi 0, %s21
    %s25 = sphi 0, %s22
    %s26 = sphi 0, %s23
    %s27 = sphi 0, %s24
    %s45 = sphi 0, %s47
    %s48 = sphi 0, %s45
    %s49 = sphi 0, %s48
    %s65 = sphi 0, %s49
    %s71 = sphi 0, %s73
    %s74 = sphi 0, %s71
    %s75 = sphi 0, %s74
    %s91 = sphi 0, %s75
    %s97 = sphi 0, %s99
    %s100 = sphi 0, %s97
    %s101 = sphi 0, %s100
    %s117 = sphi 0, %s101
    %s121 = sphi 0, %s121
    %s123 = sphi 0, %s121
    %s124 = sphi 0, %s123
    %s138 = sphi 0, %s124
    %s142 = sphi 0, %s142
    %s144 = sphi 0, %s142
    %s145 = sphi 0, %s144
    %s159 = sphi 0, %s145
    %s165 = sphi 0, %s167
    %s168 = sphi 0, %s165
    %s169 = sphi 0, %s168
    %s185 = sphi 0, %s169
    %s193 = sphi 0, %s195
    %s196 = sphi 0, %s193
    %s197 = sphi 0, %s196
    %s213 = sphi 0, %s197
  $region4: #{_lambda_.1} parent=0 // loop_header_branch
    %15 = sbr.rel (%p13) target = $region8
  $region5: #{_lambda_.1} parent=0 // loop_body
    %s17 = ssub.s32 %s12, 1
    %s18 = ssub.s32 %s12, 2
    %s28 = sadd.s32 1, %s21
    %p29 = scmp.ge.s32.totalorder %s28, 1
    %s30 = scalar_select %p29, 0, %s28
    %s31 = sadd.s32 1, %s20
    %s32 = scalar_select %p29, %s31, %s20
    %p33 = scmp.ge.s32.totalorder %s32, 2
    %s34 = scalar_select %p33, 0, %s32
    %s35 = sadd.s32 1, %s19
    %s36 = scalar_select %p33, %s35, %s19
    %p37 = scmp.ge.s32.totalorder %s36, 2
    %s38 = scalar_select %p37, 0, %s36
    %s39 = ssub.s32 %s19, %s38
    %s40 = ssub.s32 %s20, %s34
    %s41 = sor.u32 %s39, %s40
    %s42 = ssub.s32 %s21, %s30
    %s43 = sor.u32 %s41, %s42
    %p44 = scmp.eq.s32.totalorder %s43, 0
    %s46 = sadd.s32 %s45, 1
    %s47 = scalar_select %p44, %s45, %s46
    %p50 = pneg %p44
    %p51 = scmp.eq.s32.totalorder %s12, 3
    %p52 = por %p50, %p51
    %p53 = scmp.ne.s32.totalorder %s45, %s48
    %p54 = scmp.eq.s32.totalorder %s12, 0
    %p55 = por %p53, %p54
    %p56 = scmp.ne.s32.totalorder %s45, %s48
    %p57 = scmp.eq.s32.totalorder %s17, 3
    %p58 = por %p56, %p57
    %p59 = scmp.ne.s32.totalorder %s48, %s49
    %p60 = scmp.eq.s32.totalorder %s17, 0
    %p61 = por %p59, %p60
    %p62 = scmp.ne.s32.totalorder %s48, %s49
    %p63 = scmp.eq.s32.totalorder %s18, 3
    %p64 = por %p62, %p63
    %p66 = scmp.ne.s32.totalorder %s49, %s65
    %p67 = scmp.eq.s32.totalorder %s18, 0
    %p68 = por %p66, %p67
    %s69 = ssub.s32 %s21, %s30
    %p70 = scmp.eq.s32.totalorder %s69, 0
    %s72 = sadd.s32 %s71, 1
    %s73 = scalar_select %p70, %s71, %s72
    %p76 = pneg %p70
    %p77 = scmp.eq.s32.totalorder %s12, 3
    %p78 = por %p76, %p77
    %p79 = scmp.ne.s32.totalorder %s71, %s74
    %p80 = scmp.eq.s32.totalorder %s12, 0
    %p81 = por %p79, %p80
    %p82 = scmp.ne.s32.totalorder %s71, %s74
    %p83 = scmp.eq.s32.totalorder %s17, 3
    %p84 = por %p82, %p83
    %p85 = scmp.ne.s32.totalorder %s74, %s75
    %p86 = scmp.eq.s32.totalorder %s17, 0
    %p87 = por %p85, %p86
    %p88 = scmp.ne.s32.totalorder %s74, %s75
    %p89 = scmp.eq.s32.totalorder %s18, 3
    %p90 = por %p88, %p89
    %p92 = scmp.ne.s32.totalorder %s75, %s91
    %p93 = scmp.eq.s32.totalorder %s18, 0
    %p94 = por %p92, %p93
    %s95 = ssub.s32 %s21, %s30
    %p96 = scmp.eq.s32.totalorder %s95, 0
    %s98 = sadd.s32 %s97, 1
    %s99 = scalar_select %p96, %s97, %s98
    %p102 = pneg %p96
    %p103 = scmp.eq.s32.totalorder %s12, 3
    %p104 = por %p102, %p103
    %p105 = scmp.ne.s32.totalorder %s97, %s100
    %p106 = scmp.eq.s32.totalorder %s12, 0
    %p107 = por %p105, %p106
    %p108 = scmp.ne.s32.totalorder %s97, %s100
    %p109 = scmp.eq.s32.totalorder %s17, 3
    %p110 = por %p108, %p109
    %p111 = scmp.ne.s32.totalorder %s100, %s101
    %p112 = scmp.eq.s32.totalorder %s17, 0
    %p113 = por %p111, %p112
    %p114 = scmp.ne.s32.totalorder %s100, %s101
    %p115 = scmp.eq.s32.totalorder %s18, 3
    %p116 = por %p114, %p115
    %p118 = scmp.ne.s32.totalorder %s101, %s117
    %p119 = scmp.eq.s32.totalorder %s18, 0
    %p120 = por %p118, %p119
    %s122 = sadd.s32 %s121, 1
    %p125 = scmp.eq.s32.totalorder %s12, 3
    %p126 = scmp.ne.s32.totalorder %s121, %s123
    %p127 = scmp.eq.s32.totalorder %s12, 0
    %p128 = por %p126, %p127
    %p129 = scmp.ne.s32.totalorder %s121, %s123
    %p130 = scmp.eq.s32.totalorder %s17, 3
    %p131 = por %p129, %p130
    %p132 = scmp.ne.s32.totalorder %s123, %s124
    %p133 = scmp.eq.s32.totalorder %s17, 0
    %p134 = por %p132, %p133
    %p135 = scmp.ne.s32.totalorder %s123, %s124
    %p136 = scmp.eq.s32.totalorder %s18, 3
    %p137 = por %p135, %p136
    %p139 = scmp.ne.s32.totalorder %s124, %s138
    %p140 = scmp.eq.s32.totalorder %s18, 0
    %p141 = por %p139, %p140
    %s143 = sadd.s32 %s142, 1
    %p146 = scmp.eq.s32.totalorder %s12, 3
    %p147 = scmp.ne.s32.totalorder %s142, %s144
    %p148 = scmp.eq.s32.totalorder %s12, 0
    %p149 = por %p147, %p148
    %p150 = scmp.ne.s32.totalorder %s142, %s144
    %p151 = scmp.eq.s32.totalorder %s17, 3
    %p152 = por %p150, %p151
    %p153 = scmp.ne.s32.totalorder %s144, %s145
    %p154 = scmp.eq.s32.totalorder %s17, 0
    %p155 = por %p153, %p154
    %p156 = scmp.ne.s32.totalorder %s144, %s145
    %p157 = scmp.eq.s32.totalorder %s18, 3
    %p158 = por %p156, %p157
    %p160 = scmp.ne.s32.totalorder %s145, %s159
    %p161 = scmp.eq.s32.totalorder %s18, 0
    %p162 = por %p160, %p161
    %s163 = ssub.s32 %s19, %s38
    %p164 = scmp.eq.s32.totalorder %s163, 0
    %s166 = sadd.s32 %s165, 1
    %s167 = scalar_select %p164, %s165, %s166
    %p170 = pneg %p164
    %p171 = scmp.eq.s32.totalorder %s12, 3
    %p172 = por %p170, %p171
    %p173 = scmp.ne.s32.totalorder %s165, %s168
    %p174 = scmp.eq.s32.totalorder %s12, 0
    %p175 = por %p173, %p174
    %p176 = scmp.ne.s32.totalorder %s165, %s168
    %p177 = scmp.eq.s32.totalorder %s17, 3
    %p178 = por %p176, %p177
    %p179 = scmp.ne.s32.totalorder %s168, %s169
    %p180 = scmp.eq.s32.totalorder %s17, 0
    %p181 = por %p179, %p180
    %p182 = scmp.ne.s32.totalorder %s168, %s169
    %p183 = scmp.eq.s32.totalorder %s18, 3
    %p184 = por %p182, %p183
    %p186 = scmp.ne.s32.totalorder %s169, %s185
    %p187 = scmp.eq.s32.totalorder %s18, 0
    %p188 = por %p186, %p187
    %s189 = ssub.s32 %s19, %s38
    %s190 = ssub.s32 %s20, %s34
    %s191 = sor.u32 %s189, %s190
    %p192 = scmp.eq.s32.totalorder %s191, 0
    %s194 = sadd.s32 %s193, 1
    %s195 = scalar_select %p192, %s193, %s194
    %p198 = pneg %p192
    %p199 = scmp.eq.s32.totalorder %s12, 3
    %p200 = por %p198, %p199
    %p201 = scmp.ne.s32.totalorder %s193, %s196
    %p202 = scmp.eq.s32.totalorder %s12, 0
    %p203 = por %p201, %p202
    %p204 = scmp.ne.s32.totalorder %s193, %s196
    %p205 = scmp.eq.s32.totalorder %s17, 3
    %p206 = por %p204, %p205
    %p207 = scmp.ne.s32.totalorder %s196, %s197
    %p208 = scmp.eq.s32.totalorder %s17, 0
    %p209 = por %p207, %p208
    %p210 = scmp.ne.s32.totalorder %s196, %s197
    %p211 = scmp.eq.s32.totalorder %s18, 3
    %p212 = por %p210, %p211
    %p214 = scmp.ne.s32.totalorder %s197, %s213
    %p215 = scmp.eq.s32.totalorder %s18, 0
    %p216 = por %p214, %p215
    %p217 = scmp.le.s32.totalorder 1, %s12
    %p218 = scmp.lt.s32.totalorder %s12, 5
    %p219 = pnand %p217, %p218
    %p220 = pneg %p219
    // Predicated region
    $region9: #{_lambda_.1} parent=5 // pred_check
      _
    $region10: #{_lambda_.1} parent=5 // pred_check_branch
      %222 = sbr.rel (%p219) target = $region12
    $region11: #{_lambda_.1} parent=5 // pred_region
      %s223 = ssub.s32 %s12, 1
      // Predicated region
      $region13: #{_lambda_.1} parent=11 // pred_check
        %p224 = pneg %p87
      $region14: #{_lambda_.1} parent=11 // pred_check_branch
        %226 = sbr.rel (%p224) target = $region16
      $region15: #{_lambda_.1} parent=11 // pred_region
        %s227 = smul.u32 16, %s24
        %p228 = scmp.lt.s32.totalorder %s227, 15
        %s229 = scalar_select %p228, %s227, 15
        %s230 = smul.addr %s229, 4
        %s231 = scalar_lea.vmem %s1, %s230
        %s232 = smul.u32 16, %s24
      $region16: #{_lambda_.1} parent=11 // pred_fallthru
        _
      // Predicated region
      $region17: #{_lambda_.1} parent=11 // pred_check
        %p233 = pneg %p113
      $region18: #{_lambda_.1} parent=11 // pred_check_branch
        %235 = sbr.rel (%p233) target = $region20
      $region19: #{_lambda_.1} parent=11 // pred_region
        %s236 = smul.u32 16, %s24
        %p237 = scmp.lt.s32.totalorder %s236, 15
        %s238 = scalar_select %p237, %s236, 15
        %s239 = smul.addr %s238, 4
        %s240 = scalar_lea.vmem %s2, %s239
        %s241 = smul.u32 16, %s24
      $region20: #{_lambda_.1} parent=11 // pred_fallthru
        _
      // Predicated region
      $region21: #{_lambda_.1} parent=11 // pred_check
        %p242 = pneg %p134
      $region22: #{_lambda_.1} parent=11 // pred_check_branch
        %244 = sbr.rel (%p242) target = $region24
      $region23: #{_lambda_.1} parent=11 // pred_region
        _
      $region24: #{_lambda_.1} parent=11 // pred_fallthru
        _
      // Predicated region
      $region25: #{_lambda_.1} parent=11 // pred_check
        %p245 = pneg %p155
      $region26: #{_lambda_.1} parent=11 // pred_check_branch
        %247 = sbr.rel (%p245) target = $region28
      $region27: #{_lambda_.1} parent=11 // pred_region
        _
      $region28: #{_lambda_.1} parent=11 // pred_fallthru
        _
    $region12: #{_lambda_.1} parent=5 // pred_fallthru
      _
    %p248 = scmp.lt.s32.totalorder %s12, 4
    // Predicated region
    $region29: #{_lambda_.1} parent=5 // pred_check
      %p249 = pneg %p248
    $region30: #{_lambda_.1} parent=5 // pred_check_branch
      %251 = sbr.rel (%p249) target = $region32
    $region31: #{_lambda_.1} parent=5 // pred_region
      // Predicated region
      $region33: #{_lambda_.1} parent=31 // pred_check
        %p252 = pneg %p55
      $region34: #{_lambda_.1} parent=31 // pred_check_branch
        %254 = sbr.rel (%p252) target = $region36
      $region35: #{_lambda_.1} parent=31 // pred_region
        %p255 = scmp.lt.s32.totalorder %s19, 1
        %s256 = scalar_select %p255, %s19, 1
        %p257 = scmp.lt.s32.totalorder %s20, 1
        %s258 = scalar_select %p257, %s20, 1
        %p259 = scmp.lt.s32.totalorder %s21, 0
        %s260 = scalar_select %p259, %s21, 0
        %s261 = smul.addr %s258, 42
        %s262 = sadd.s32 %s260, %s261
        %s263 = smul.addr %s256, 84
        %s264 = sadd.s32 %s262, %s263
        %s265 = smul.addr %s264, 4
        %s266 = scalar_lea.vmem %s0, %s265
      $region36: #{_lambda_.1} parent=31 // pred_fallthru
        _
      // Predicated region
      $region37: #{_lambda_.1} parent=31 // pred_check
        %p267 = pneg %p175
      $region38: #{_lambda_.1} parent=31 // pred_check_branch
        %269 = sbr.rel (%p267) target = $region40
      $region39: #{_lambda_.1} parent=31 // pred_region
        %p270 = scmp.lt.s32.totalorder %s19, 1
        %s271 = scalar_select %p270, %s19, 1
        %s272 = scalar_lea.vmem %s5, %s271
      $region40: #{_lambda_.1} parent=31 // pred_fallthru
        _
    $region32: #{_lambda_.1} parent=5 // pred_fallthru
      _
    %p273 = scmp.le.s32.totalorder 1, %s12
    %p274 = scmp.lt.s32.totalorder %s12, 5
    %p275 = pnand %p273, %p274
    %p276 = pneg %p275
    // Predicated region
    $region41: #{_lambda_.1} parent=5 // pred_check
      _
    $region42: #{_lambda_.1} parent=5 // pred_check_branch
      %278 = sbr.rel (%p275) target = $region44
    $region43: #{_lambda_.1} parent=5 // pred_region
      %s279 = ssub.s32 %s12, 1
      %p280 = scmp.lt.s32.totalorder %s22, 1
      %s281 = scalar_select %p280, %s22, 1
      %p282 = scmp.lt.s32.totalorder %s23, 1
      %s283 = scalar_select %p282, %s23, 1
      %p284 = scmp.lt.s32.totalorder %s24, 0
      %s285 = scalar_select %p284, %s24, 0
      %s286 = smul.addr %s283, 42
      %s287 = sadd.s32 %s285, %s286
      %s288 = smul.addr %s281, 84
      %s289 = sadd.s32 %s287, %s288
      %s290 = smul.addr %s289, 4
      %s291 = scalar_lea.vmem %s0, %s290
      %p292 = pneg %p61
      %p293 = pneg %p58
      %s294 = smul.u32 16, %s24
      %p295 = scmp.lt.s32.totalorder %s294, 15
      %s296 = scalar_select %p295, %s294, 15
      %s297 = smul.addr %s296, 4
      %s298 = scalar_lea.vmem %s1, %s297
      %p299 = pneg %p87
      %p300 = pneg %p84
      %s301 = smul.u32 16, %s24
      %p302 = scmp.lt.s32.totalorder %s301, 15
      %s303 = scalar_select %p302, %s301, 15
      %s304 = smul.addr %s303, 4
      %s305 = scalar_lea.vmem %s2, %s304
      %p306 = pneg %p113
      %p307 = pneg %p110
      %p308 = pneg %p134
      %p309 = pneg %p131
      %p310 = pneg %p155
      %p311 = pneg %p152
      %p312 = scmp.lt.s32.totalorder %s22, 1
      %s313 = scalar_select %p312, %s22, 1
      %s314 = scalar_lea.vmem %s5, %s313
      %p315 = pneg %p181
      %p316 = pneg %p178
      %p317 = pneg %p209
      %p318 = pneg %p206
      %p319 = scmp.lt.s32.totalorder %s22, 1
      %s320 = scalar_select %p319, %s22, 1
      %p321 = scmp.lt.s32.totalorder %s23, 1
      %s322 = scalar_select %p321, %s23, 1
      %s323 = smul.addr %s322, 16
      %s324 = smul.addr %s320, 32
      %s325 = sadd.s32 %s323, %s324
      %s326 = smul.addr %s325, 8
      %s327 = scalar_lea.vmem %s6, %s326
      %p328 = scmp.lt.s32.totalorder %s22, 1
      %s329 = scalar_select %p328, %s22, 1
      %p330 = scmp.lt.s32.totalorder %s23, 1
      %s331 = scalar_select %p330, %s23, 1
      %p332 = scmp.lt.s32.totalorder %s24, 0
      %s333 = scalar_select %p332, %s24, 0
      %s334 = smul.addr %s331, 42
      %s335 = sadd.s32 %s333, %s334
      %s336 = smul.addr %s329, 84
      %s337 = sadd.s32 %s335, %s336
      %s338 = smul.addr %s337, 4
      %s339 = scalar_lea.vmem %s0, %s338
      %s340 = smul.u32 16, %s24
      %p341 = scmp.lt.s32.totalorder %s340, 15
      %s342 = scalar_select %p341, %s340, 15
      %s343 = smul.addr %s342, 4
      %s344 = scalar_lea.vmem %s1, %s343
      %s345 = smul.u32 16, %s24
      %s346 = smul.u32 16, %s24
      %p347 = scmp.lt.s32.totalorder %s346, 15
      %s348 = scalar_select %p347, %s346, 15
      %s349 = smul.addr %s348, 4
      %s350 = scalar_lea.vmem %s2, %s349
      %s351 = smul.u32 16, %s24
      %p352 = scmp.lt.s32.totalorder %s22, 1
      %s353 = scalar_select %p352, %s22, 1
      %s354 = scalar_lea.vmem %s5, %s353
      %p355 = scmp.lt.s32.totalorder %s22, 1
      %s356 = scalar_select %p355, %s22, 1
      %p357 = scmp.lt.s32.totalorder %s23, 1
      %s358 = scalar_select %p357, %s23, 1
      %s359 = smul.addr %s358, 16
      %s360 = smul.addr %s356, 32
      %s361 = sadd.s32 %s359, %s360
      %s362 = smul.addr %s361, 8
      %s363 = scalar_lea.vmem %s6, %s362
      %p365 = scmp.eq.s32.totalorder %s24, 0
      // Predicated region
      $region45: #{_lambda_.1} parent=43 // pred_check
        %p366 = pneg %p365
      $region46: #{_lambda_.1} parent=43 // pred_check_branch
        %368 = sbr.rel (%p366) target = $region48
      $region47: #{_lambda_.1} parent=43 // pred_region
        %369 = vst [vmem:[#allocation2] sm:$0xff] 0.0
        %370 = vst [vmem:[#allocation2 + $0x8] sm:$0xff] 0.0
        %371 = vst [vmem:[#allocation2 + $0x10] sm:$0xff] 0.0
        %372 = vst [vmem:[#allocation2 + $0x18] sm:$0xff] 0.0
        %373 = vst [vmem:[#allocation2 + $0x20] sm:$0xff] 0.0
        %374 = vst [vmem:[#allocation2 + $0x28] sm:$0xff] 0.0
        %375 = vst [vmem:[#allocation2 + $0x30] sm:$0xff] 0.0
        %376 = vst [vmem:[#allocation2 + $0x38] sm:$0xff] 0.0
        %377 = vst [vmem:[#allocation2 + $0x40] sm:$0xff] 0.0
        %378 = vst [vmem:[#allocation2 + $0x48] sm:$0xff] 0.0
        %379 = vst [vmem:[#allocation2 + $0x50] sm:$0xff] 0.0
        %380 = vst [vmem:[#allocation2 + $0x58] sm:$0xff] 0.0
        %381 = vst [vmem:[#allocation2 + $0x60] sm:$0xff] 0.0
        %382 = vst [vmem:[#allocation2 + $0x68] sm:$0xff] 0.0
        %383 = vst [vmem:[#allocation2 + $0x70] sm:$0xff] 0.0
        %384 = vst [vmem:[#allocation2 + $0x78] sm:$0xff] 0.0
        %385 = vst [vmem:[#allocation2 + $0x80] sm:$0xff] 0.0
        %386 = vst [vmem:[#allocation2 + $0x88] sm:$0xff] 0.0
        %387 = vst [vmem:[#allocation2 + $0x90] sm:$0xff] 0.0
        %388 = vst [vmem:[#allocation2 + $0x98] sm:$0xff] 0.0
        %389 = vst [vmem:[#allocation2 + $0xa0] sm:$0xff] 0.0
        %390 = vst [vmem:[#allocation2 + $0xa8] sm:$0xff] 0.0
        %391 = vst [vmem:[#allocation2 + $0xb0] sm:$0xff] 0.0
        %392 = vst [vmem:[#allocation2 + $0xb8] sm:$0xff] 0.0
        %393 = vst [vmem:[#allocation2 + $0xc0] sm:$0xff] 0.0
        %394 = vst [vmem:[#allocation2 + $0xc8] sm:$0xff] 0.0
        %395 = vst [vmem:[#allocation2 + $0xd0] sm:$0xff] 0.0
        %396 = vst [vmem:[#allocation2 + $0xd8] sm:$0xff] 0.0
        %397 = vst [vmem:[#allocation2 + $0xe0] sm:$0xff] 0.0
        %398 = vst [vmem:[#allocation2 + $0xe8] sm:$0xff] 0.0
        %399 = vst [vmem:[#allocation2 + $0xf0] sm:$0xff] 0.0
        %400 = vst [vmem:[#allocation2 + $0xf8] sm:$0xff] 0.0
        %401 = vst [vmem:[#allocation2 + $0x100] sm:$0xff] 0.0
        %402 = vst [vmem:[#allocation2 + $0x108] sm:$0xff] 0.0
        %403 = vst [vmem:[#allocation2 + $0x110] sm:$0xff] 0.0
        %404 = vst [vmem:[#allocation2 + $0x118] sm:$0xff] 0.0
        %405 = vst [vmem:[#allocation2 + $0x120] sm:$0xff] 0.0
        %406 = vst [vmem:[#allocation2 + $0x128] sm:$0xff] 0.0
        %407 = vst [vmem:[#allocation2 + $0x130] sm:$0xff] 0.0
        %408 = vst [vmem:[#allocation2 + $0x138] sm:$0xff] 0.0
        %409 = vst [vmem:[#allocation2 + $0x140] sm:$0xff] 0.0
        %410 = vst [vmem:[#allocation2 + $0x148] sm:$0xff] 0.0
        %411 = vst [vmem:[#allocation2 + $0x150] sm:$0xff] 0.0
        %412 = vst [vmem:[#allocation2 + $0x158] sm:$0xff] 0.0
        %413 = vst [vmem:[#allocation2 + $0x160] sm:$0xff] 0.0
        %414 = vst [vmem:[#allocation2 + $0x168] sm:$0xff] 0.0
        %415 = vst [vmem:[#allocation2 + $0x170] sm:$0xff] 0.0
        %416 = vst [vmem:[#allocation2 + $0x178] sm:$0xff] 0.0
      $region48: #{_lambda_.1} parent=43 // pred_fallthru
        _
      %v417 = vld [vmem:[#allocation2] sm:$0xff]
      %v418 = vld [vmem:[#allocation2 + $0x8] sm:$0xff]
      %v419 = vld [vmem:[#allocation2 + $0x10] sm:$0xff]
      %v420 = vld [vmem:[#allocation2 + $0x18] sm:$0xff]
      %v421 = vld [vmem:[#allocation2 + $0x20] sm:$0xff]
      %v422 = vld [vmem:[#allocation2 + $0x28] sm:$0xff]
      %v423 = vld [vmem:[#allocation2 + $0x30] sm:$0xff]
      %v424 = vld [vmem:[#allocation2 + $0x38] sm:$0xff]
      %v425 = vld [vmem:[#allocation2 + $0x40] sm:$0xff]
      %v426 = vld [vmem:[#allocation2 + $0x48] sm:$0xff]
      %v427 = vld [vmem:[#allocation2 + $0x50] sm:$0xff]
      %v428 = vld [vmem:[#allocation2 + $0x58] sm:$0xff]
      %v429 = vld [vmem:[#allocation2 + $0x60] sm:$0xff]
      %v430 = vld [vmem:[#allocation2 + $0x68] sm:$0xff]
      %v431 = vld [vmem:[#allocation2 + $0x70] sm:$0xff]
      %v432 = vld [vmem:[#allocation2 + $0x78] sm:$0xff]
      %s433 = scalar_lea.vmem %s339, 36
      %v434 = vld [vmem:[%s433] sm:$0xe]
      %v435 = vld [vmem:[%s433 + $0x4] sm:$0xf]
      %v436 = vld [vmem:[%s433 + $0x8] sm:$0x3]
      %v437 = vld [vmem:[%s433 + $0xc] sm:$0xe]
      %v438 = vld [vmem:[%s433 + $0x10] sm:$0xf]
      %v439 = vld [vmem:[%s433 + $0x14] sm:$0x3]
      %v440 = vld [vmem:[%s433 + $0x18] sm:$0xe]
      %v441 = vld [vmem:[%s433 + $0x1c] sm:$0xf]
      %v442 = vld [vmem:[%s433 + $0x20] sm:$0x3]
      %v443 = vld [vmem:[%s433 + $0x24] sm:$0xe]
      %v444 = vld [vmem:[%s433 + $0x28] sm:$0xf]
      %v445 = vld [vmem:[%s433 + $0x2c] sm:$0x3]
      %v446 = vld [vmem:[%s433 + $0x30] sm:$0xe]
      %v447 = vld [vmem:[%s433 + $0x34] sm:$0xf]
      %v448 = vld [vmem:[%s433 + $0x38] sm:$0x3]
      %v449 = vld [vmem:[%s433 + $0x3c] sm:$0xe]
      %v450 = vld [vmem:[%s433 + $0x40] sm:$0xf]
      %v451 = vld [vmem:[%s433 + $0x44] sm:$0x3]
      %v452 = vld [vmem:[%s433 + $0x48] sm:$0xe]
      %v453 = vld [vmem:[%s433 + $0x4c] sm:$0xf]
      %v454 = vld [vmem:[%s433 + $0x50] sm:$0x3]
      %v455 = vld [vmem:[%s433 + $0x54] sm:$0xe]
      %v456 = vld [vmem:[%s433 + $0x58] sm:$0xf]
      %v457 = vld [vmem:[%s433 + $0x5c] sm:$0x3]
      %vm458 = vsmask.f32 2304
      %vm459 = vsmask.f32 6416
      %vm460 = vmor %vm458, %vm459
      %v462 = vshrl.u32 %v434, 16
      %v464 = vrot.slane %v462, 5
      %v465 = vshll.u32 %v434, 16
      %v467 = vrot.slane %v465, 6
      %v468 = vor.u32 %v464, %v467
      %v469 = vrot.slane %v468, 4
      %v471 = vshrl.u32 %v435, 16
      %v473 = vrot.slane %v471, 5
      %v474 = vshll.u32 %v435, 16
      %v476 = vrot.slane %v474, 6
      %v477 = vor.u32 %v473, %v476
      %v478 = vsel %vm460, %v469, %v477
      %v479 = vrot.slane %v477, 4
      %v481 = vshrl.u32 %v436, 16
      %v483 = vrot.slane %v481, 5
      %v484 = vshll.u32 %v436, 16
      %v486 = vrot.slane %v484, 6
      %v487 = vor.u32 %v483, %v486
      %v488 = vsel %vm460, %v479, %v487
      %v490 = vshrl.u32 %v437, 16
      %v492 = vrot.slane %v490, 5
      %v493 = vshll.u32 %v437, 16
      %v495 = vrot.slane %v493, 6
      %v496 = vor.u32 %v492, %v495
      %v497 = vrot.slane %v496, 4
      %v499 = vshrl.u32 %v438, 16
      %v501 = vrot.slane %v499, 5
      %v502 = vshll.u32 %v438, 16
      %v504 = vrot.slane %v502, 6
      %v505 = vor.u32 %v501, %v504
      %v506 = vsel %vm460, %v497, %v505
      %v507 = vrot.slane %v505, 4
      %v509 = vshrl.u32 %v439, 16
      %v511 = vrot.slane %v509, 5
      %v512 = vshll.u32 %v439, 16
      %v514 = vrot.slane %v512, 6
      %v515 = vor.u32 %v511, %v514
      %v516 = vsel %vm460, %v507, %v515
      %v518 = vshrl.u32 %v440, 16
      %v520 = vrot.slane %v518, 5
      %v521 = vshll.u32 %v440, 16
      %v523 = vrot.slane %v521, 6
      %v524 = vor.u32 %v520, %v523
      %v525 = vrot.slane %v524, 4
      %v527 = vshrl.u32 %v441, 16
      %v529 = vrot.slane %v527, 5
      %v530 = vshll.u32 %v441, 16
      %v532 = vrot.slane %v530, 6
      %v533 = vor.u32 %v529, %v532
      %v534 = vsel %vm460, %v525, %v533
      %v535 = vrot.slane %v533, 4
      %v537 = vshrl.u32 %v442, 16
      %v539 = vrot.slane %v537, 5
      %v540 = vshll.u32 %v442, 16
      %v542 = vrot.slane %v540, 6
      %v543 = vor.u32 %v539, %v542
      %v544 = vsel %vm460, %v535, %v543
      %v546 = vshrl.u32 %v443, 16
      %v548 = vrot.slane %v546, 5
      %v549 = vshll.u32 %v443, 16
      %v551 = vrot.slane %v549, 6
      %v552 = vor.u32 %v548, %v551
      %v553 = vrot.slane %v552, 4
      %v555 = vshrl.u32 %v444, 16
      %v557 = vrot.slane %v555, 5
      %v558 = vshll.u32 %v444, 16
      %v560 = vrot.slane %v558, 6
      %v561 = vor.u32 %v557, %v560
      %v562 = vsel %vm460, %v553, %v561
      %v563 = vrot.slane %v561, 4
      %v565 = vshrl.u32 %v445, 16
      %v567 = vrot.slane %v565, 5
      %v568 = vshll.u32 %v445, 16
      %v570 = vrot.slane %v568, 6
      %v571 = vor.u32 %v567, %v570
      %v572 = vsel %vm460, %v563, %v571
      %v574 = vshrl.u32 %v446, 16
      %v576 = vrot.slane %v574, 5
      %v577 = vshll.u32 %v446, 16
      %v579 = vrot.slane %v577, 6
      %v580 = vor.u32 %v576, %v579
      %v581 = vrot.slane %v580, 4
      %v583 = vshrl.u32 %v447, 16
      %v585 = vrot.slane %v583, 5
      %v586 = vshll.u32 %v447, 16
      %v588 = vrot.slane %v586, 6
      %v589 = vor.u32 %v585, %v588
      %v590 = vsel %vm460, %v581, %v589
      %v591 = vrot.slane %v589, 4
      %v593 = vshrl.u32 %v448, 16
      %v595 = vrot.slane %v593, 5
      %v596 = vshll.u32 %v448, 16
      %v598 = vrot.slane %v596, 6
      %v599 = vor.u32 %v595, %v598
      %v600 = vsel %vm460, %v591, %v599
      %v602 = vshrl.u32 %v449, 16
      %v604 = vrot.slane %v602, 5
      %v605 = vshll.u32 %v449, 16
      %v607 = vrot.slane %v605, 6
      %v608 = vor.u32 %v604, %v607
      %v609 = vrot.slane %v608, 4
      %v611 = vshrl.u32 %v450, 16
      %v613 = vrot.slane %v611, 5
      %v614 = vshll.u32 %v450, 16
      %v616 = vrot.slane %v614, 6
      %v617 = vor.u32 %v613, %v616
      %v618 = vsel %vm460, %v609, %v617
      %v619 = vrot.slane %v617, 4
      %v621 = vshrl.u32 %v451, 16
      %v623 = vrot.slane %v621, 5
      %v624 = vshll.u32 %v451, 16
      %v626 = vrot.slane %v624, 6
      %v627 = vor.u32 %v623, %v626
      %v628 = vsel %vm460, %v619, %v627
      %v630 = vshrl.u32 %v452, 16
      %v632 = vrot.slane %v630, 5
      %v633 = vshll.u32 %v452, 16
      %v635 = vrot.slane %v633, 6
      %v636 = vor.u32 %v632, %v635
      %v637 = vrot.slane %v636, 4
      %v639 = vshrl.u32 %v453, 16
      %v641 = vrot.slane %v639, 5
      %v642 = vshll.u32 %v453, 16
      %v644 = vrot.slane %v642, 6
      %v645 = vor.u32 %v641, %v644
      %v646 = vsel %vm460, %v637, %v645
      %v647 = vrot.slane %v645, 4
      %v649 = vshrl.u32 %v454, 16
      %v651 = vrot.slane %v649, 5
      %v652 = vshll.u32 %v454, 16
      %v654 = vrot.slane %v652, 6
      %v655 = vor.u32 %v651, %v654
      %v656 = vsel %vm460, %v647, %v655
      %v658 = vshrl.u32 %v455, 16
      %v660 = vrot.slane %v658, 5
      %v661 = vshll.u32 %v455, 16
      %v663 = vrot.slane %v661, 6
      %v664 = vor.u32 %v660, %v663
      %v665 = vrot.slane %v664, 4
      %v667 = vshrl.u32 %v456, 16
      %v669 = vrot.slane %v667, 5
      %v670 = vshll.u32 %v456, 16
      %v672 = vrot.slane %v670, 6
      %v673 = vor.u32 %v669, %v672
      %v674 = vsel %vm460, %v665, %v673
      %v675 = vrot.slane %v673, 4
      %v677 = vshrl.u32 %v457, 16
      %v679 = vrot.slane %v677, 5
      %v680 = vshll.u32 %v457, 16
      %v682 = vrot.slane %v680, 6
      %v683 = vor.u32 %v679, %v682
      %v684 = vsel %vm460, %v675, %v683
      %v685 = vld [vmem:[%s344] sm:$0xf]
      %v686 = vld [vmem:[%s344 + $0x4] sm:$0xf]
      %v687 = vld [vmem:[%s344 + $0x8] sm:$0xf]
      %v688 = vld [vmem:[%s344 + $0xc] sm:$0xf]
      %v689 = vld [vmem:[%s344 + $0x10] sm:$0xf]
      %v690 = vld [vmem:[%s344 + $0x14] sm:$0xf]
      %v691 = vld [vmem:[%s344 + $0x18] sm:$0xf]
      %v692 = vld [vmem:[%s344 + $0x1c] sm:$0xf]
      %v693 = vld [vmem:[%s344 + $0x20] sm:$0xf]
      %v694 = vld [vmem:[%s344 + $0x24] sm:$0xf]
      %v695 = vld [vmem:[%s344 + $0x28] sm:$0xf]
      %v696 = vld [vmem:[%s344 + $0x2c] sm:$0xf]
      %v697 = vld [vmem:[%s344 + $0x30] sm:$0xf]
      %v698 = vld [vmem:[%s344 + $0x34] sm:$0xf]
      %v699 = vld [vmem:[%s344 + $0x38] sm:$0xf]
      %v700 = vld [vmem:[%s344 + $0x3c] sm:$0xf]
      %v701 = vunpack.c.l.b16 %v478
      %v702 = vunpack.c.l.b16 %v488
      %v703 = vunpack.c.l.b16 %v506
      %v704 = vunpack.c.l.b16 %v516
      %v705 = vunpack.c.l.b16 %v534
      %v706 = vunpack.c.l.b16 %v544
      %v707 = vunpack.c.l.b16 %v562
      %v708 = vunpack.c.l.b16 %v572
      %v709 = vunpack.c.l.b16 %v590
      %v710 = vunpack.c.l.b16 %v600
      %v711 = vunpack.c.l.b16 %v618
      %v712 = vunpack.c.l.b16 %v628
      %v713 = vunpack.c.l.b16 %v646
      %v714 = vunpack.c.l.b16 %v656
      %v715 = vunpack.c.l.b16 %v674
      %v716 = vunpack.c.l.b16 %v684
      %v717 = vpack.c.b16 %v702, %v701
      %v718 = vpack.c.b16 %v704, %v703
      %v719 = vpack.c.b16 %v706, %v705
      %v720 = vpack.c.b16 %v708, %v707
      %v721 = vpack.c.b16 %v710, %v709
      %v722 = vpack.c.b16 %v712, %v711
      %v723 = vpack.c.b16 %v714, %v713
      %v724 = vpack.c.b16 %v716, %v715
      %v749 = vunpack.c.l.b16 %v685
      %v750 = vunpack.c.l.b16 %v686
      %v751 = vunpack.c.l.b16 %v687
      %v752 = vunpack.c.l.b16 %v688
      %v753 = vunpack.c.l.b16 %v689
      %v754 = vunpack.c.l.b16 %v690
      %v755 = vunpack.c.l.b16 %v691
      %v756 = vunpack.c.l.b16 %v692
      %v757 = vunpack.c.l.b16 %v693
      %v758 = vunpack.c.l.b16 %v694
      %v759 = vunpack.c.l.b16 %v695
      %v760 = vunpack.c.l.b16 %v696
      %v761 = vunpack.c.l.b16 %v697
      %v762 = vunpack.c.l.b16 %v698
      %v763 = vunpack.c.l.b16 %v699
      %v764 = vunpack.c.l.b16 %v700
      %v765 = vpack.c.b16 %v750, %v749
      %v766 = vpack.c.b16 %v752, %v751
      %v767 = vpack.c.b16 %v754, %v753
      %v768 = vpack.c.b16 %v756, %v755
      %v769 = vpack.c.b16 %v758, %v757
      %v770 = vpack.c.b16 %v760, %v759
      %v771 = vpack.c.b16 %v762, %v761
      %v772 = vpack.c.b16 %v764, %v763
      %781 = vmatprep.subr.bf16.mxu0 0
      %782 = vmatpush1.bf16.msra.mxu0 %v772
      %783 = vmatprep.subr.bf16.mxu0 0
      %784 = vmatpush1.bf16.msra.mxu0 %v771
      %785 = vmatprep.subr.bf16.mxu0 0
      %786 = vmatpush1.bf16.msra.mxu0 %v770
      %787 = vmatprep.subr.bf16.mxu0 0
      %788 = vmatpush1.bf16.msra.mxu0 %v769
      %789 = vmatprep.subr.bf16.mxu0 0
      %790 = vmatpush1.bf16.msra.mxu0 %v768
      %791 = vmatprep.subr.bf16.mxu0 0
      %792 = vmatpush1.bf16.msra.mxu0 %v767
      %793 = vmatprep.subr.bf16.mxu0 0
      %794 = vmatpush1.bf16.msra.mxu0 %v766
      %795 = vmatprep.subr.bf16.mxu0 0
      %796 = vmatpush1.bf16.msra.mxu0 %v765
      %797 = vmatprep.subr.bf16.mxu0 0
      %798 = vmatpush2.bf16.msra.mxu0 0
      %799 = vmatprep.subr.bf16.mxu0 0
      %800 = vmatpush2.bf16.msra.mxu0 0
      %801 = vmatprep.subr.bf16.mxu0 0
      %802 = vmatpush2.bf16.msra.mxu0 0
      %803 = vmatprep.subr.bf16.mxu0 0
      %804 = vmatpush2.bf16.msra.mxu0 0
      %805 = vmatprep.subr.bf16.mxu0 0
      %806 = vmatpush2.bf16.msra.mxu0 0
      %807 = vmatprep.subr.bf16.mxu0 0
      %808 = vmatpush2.bf16.msra.mxu0 0
      %809 = vmatprep.subr.bf16.mxu0 0
      %810 = vmatpush2.bf16.msra.mxu0 0
      %811 = vmatprep.subr.bf16.mxu0 0
      %812 = vmatpush2.bf16.msra.mxu0 0
      %813 = vmatprep.mubr.bf16.mxu0 0
      %814 = vmatmul.mubr.bf16.gmra.mxu0 %v717
      %v815 = vpop.f32.mrf.mxu0
      %v816 = vadd.f32 0.0, %v815
      %v817 = vpop.f32.mrf.mxu0
      %v818 = vpop.f32.mrf.mxu0
      %v819 = vadd.f32 0.0, %v818
      %v820 = vpop.f32.mrf.mxu0
      %821 = vmatprep.mubr.bf16.mxu0 0
      %822 = vmatmul.mubr.bf16.gmra.mxu0 %v718
      %v823 = vpop.f32.mrf.mxu0
      %v824 = vadd.f32 0.0, %v823
      %v825 = vpop.f32.mrf.mxu0
      %v826 = vpop.f32.mrf.mxu0
      %v827 = vadd.f32 0.0, %v826
      %v828 = vpop.f32.mrf.mxu0
      %829 = vmatprep.mubr.bf16.mxu0 0
      %830 = vmatmul.mubr.bf16.gmra.mxu0 %v719
      %v831 = vpop.f32.mrf.mxu0
      %v832 = vadd.f32 0.0, %v831
      %v833 = vpop.f32.mrf.mxu0
      %v834 = vpop.f32.mrf.mxu0
      %v835 = vadd.f32 0.0, %v834
      %v836 = vpop.f32.mrf.mxu0
      %837 = vmatprep.mubr.bf16.mxu0 0
      %838 = vmatmul.mubr.bf16.gmra.mxu0 %v720
      %v839 = vpop.f32.mrf.mxu0
      %v840 = vadd.f32 0.0, %v839
      %v841 = vpop.f32.mrf.mxu0
      %v842 = vpop.f32.mrf.mxu0
      %v843 = vadd.f32 0.0, %v842
      %v844 = vpop.f32.mrf.mxu0
      %845 = vmatprep.mubr.bf16.mxu0 0
      %846 = vmatmul.mubr.bf16.gmra.mxu0 %v721
      %v847 = vpop.f32.mrf.mxu0
      %v848 = vadd.f32 0.0, %v847
      %v849 = vpop.f32.mrf.mxu0
      %v850 = vpop.f32.mrf.mxu0
      %v851 = vadd.f32 0.0, %v850
      %v852 = vpop.f32.mrf.mxu0
      %853 = vmatprep.mubr.bf16.mxu0 0
      %854 = vmatmul.mubr.bf16.gmra.mxu0 %v722
      %v855 = vpop.f32.mrf.mxu0
      %v856 = vadd.f32 0.0, %v855
      %v857 = vpop.f32.mrf.mxu0
      %v858 = vpop.f32.mrf.mxu0
      %v859 = vadd.f32 0.0, %v858
      %v860 = vpop.f32.mrf.mxu0
      %861 = vmatprep.mubr.bf16.mxu0 0
      %862 = vmatmul.mubr.bf16.gmra.mxu0 %v723
      %v863 = vpop.f32.mrf.mxu0
      %v864 = vadd.f32 0.0, %v863
      %v865 = vpop.f32.mrf.mxu0
      %v866 = vpop.f32.mrf.mxu0
      %v867 = vadd.f32 0.0, %v866
      %v868 = vpop.f32.mrf.mxu0
      %869 = vmatprep.mubr.bf16.mxu0 0
      %870 = vmatmul.mubr.bf16.gmra.mxu0 %v724
      %v871 = vpop.f32.mrf.mxu0
      %v872 = vadd.f32 0.0, %v871
      %v873 = vpop.f32.mrf.mxu0
      %v874 = vpop.f32.mrf.mxu0
      %v875 = vadd.f32 0.0, %v874
      %v876 = vpop.f32.mrf.mxu0
      %877 = vdwg.mxu0
      %v878 = vadd.f32 %v417, %v816
      %v879 = vadd.f32 %v418, %v819
      %v880 = vadd.f32 %v419, %v824
      %v881 = vadd.f32 %v420, %v827
      %v882 = vadd.f32 %v421, %v832
      %v883 = vadd.f32 %v422, %v835
      %v884 = vadd.f32 %v423, %v840
      %v885 = vadd.f32 %v424, %v843
      %v886 = vadd.f32 %v425, %v848
      %v887 = vadd.f32 %v426, %v851
      %v888 = vadd.f32 %v427, %v856
      %v889 = vadd.f32 %v428, %v859
      %v890 = vadd.f32 %v429, %v864
      %v891 = vadd.f32 %v430, %v867
      %v892 = vadd.f32 %v431, %v872
      %v893 = vadd.f32 %v432, %v875
      %894 = vst [vmem:[#allocation2] sm:$0xff] %v878
      %895 = vst [vmem:[#allocation2 + $0x8] sm:$0xff] %v879
      %896 = vst [vmem:[#allocation2 + $0x10] sm:$0xff] %v880
      %897 = vst [vmem:[#allocation2 + $0x18] sm:$0xff] %v881
      %898 = vst [vmem:[#allocation2 + $0x20] sm:$0xff] %v882
      %899 = vst [vmem:[#allocation2 + $0x28] sm:$0xff] %v883
      %900 = vst [vmem:[#allocation2 + $0x30] sm:$0xff] %v884
      %901 = vst [vmem:[#allocation2 + $0x38] sm:$0xff] %v885
      %902 = vst [vmem:[#allocation2 + $0x40] sm:$0xff] %v886
      %903 = vst [vmem:[#allocation2 + $0x48] sm:$0xff] %v887
      %904 = vst [vmem:[#allocation2 + $0x50] sm:$0xff] %v888
      %905 = vst [vmem:[#allocation2 + $0x58] sm:$0xff] %v889
      %906 = vst [vmem:[#allocation2 + $0x60] sm:$0xff] %v890
      %907 = vst [vmem:[#allocation2 + $0x68] sm:$0xff] %v891
      %908 = vst [vmem:[#allocation2 + $0x70] sm:$0xff] %v892
      %909 = vst [vmem:[#allocation2 + $0x78] sm:$0xff] %v893
      %s910 = scalar_lea.vmem %s339, 12
      %v911 = vld [vmem:[%s910] sm:$0xf]
      %v912 = vld [vmem:[%s910 + $0x4] sm:$0xf]
      %v913 = vld [vmem:[%s910 + $0x8] sm:$0x1]
      %v914 = vld [vmem:[%s910 + $0xc] sm:$0xf]
      %v915 = vld [vmem:[%s910 + $0x10] sm:$0xf]
      %v916 = vld [vmem:[%s910 + $0x14] sm:$0x1]
      %v917 = vld [vmem:[%s910 + $0x18] sm:$0xf]
      %v918 = vld [vmem:[%s910 + $0x1c] sm:$0xf]
      %v919 = vld [vmem:[%s910 + $0x20] sm:$0x1]
      %v920 = vld [vmem:[%s910 + $0x24] sm:$0xf]
      %v921 = vld [vmem:[%s910 + $0x28] sm:$0xf]
      %v922 = vld [vmem:[%s910 + $0x2c] sm:$0x1]
      %v923 = vld [vmem:[%s910 + $0x30] sm:$0xf]
      %v924 = vld [vmem:[%s910 + $0x34] sm:$0xf]
      %v925 = vld [vmem:[%s910 + $0x38] sm:$0x1]
      %v926 = vld [vmem:[%s910 + $0x3c] sm:$0xf]
      %v927 = vld [vmem:[%s910 + $0x40] sm:$0xf]
      %v928 = vld [vmem:[%s910 + $0x44] sm:$0x1]
      %v929 = vld [vmem:[%s910 + $0x48] sm:$0xf]
      %v930 = vld [vmem:[%s910 + $0x4c] sm:$0xf]
      %v931 = vld [vmem:[%s910 + $0x50] sm:$0x1]
      %v932 = vld [vmem:[%s910 + $0x54] sm:$0xf]
      %v933 = vld [vmem:[%s910 + $0x58] sm:$0xf]
      %v934 = vld [vmem:[%s910 + $0x5c] sm:$0x1]
      %vm935 = vsmask.f32 3328
      %vm936 = vsmask.f32 7440
      %vm937 = vmor %vm935, %vm936
      %v939 = vshrl.u32 %v911, 16
      %v941 = vrot.slane %v939, 4
      %v942 = vshll.u32 %v911, 16
      %v944 = vrot.slane %v942, 5
      %v945 = vor.u32 %v941, %v944
      %v946 = vrot.slane %v945, 4
      %v948 = vshll.u32 %v912, 16
      %v950 = vrot.slane %v948, 5
      %v951 = vsel %vm937, %v946, %v950
      %v952 = vshrl.u32 %v912, 16
      %v954 = vrot.slane %v952, 4
      %v955 = vor.u32 %v954, %v950
      %v956 = vrot.slane %v955, 4
      %v958 = vshll.u32 %v913, 16
      %v960 = vrot.slane %v958, 5
      %v961 = vsel %vm937, %v956, %v960
      %v963 = vshrl.u32 %v914, 16
      %v965 = vrot.slane %v963, 4
      %v966 = vshll.u32 %v914, 16
      %v968 = vrot.slane %v966, 5
      %v969 = vor.u32 %v965, %v968
      %v970 = vrot.slane %v969, 4
      %v972 = vshll.u32 %v915, 16
      %v974 = vrot.slane %v972, 5
      %v975 = vsel %vm937, %v970, %v974
      %v976 = vshrl.u32 %v915, 16
      %v978 = vrot.slane %v976, 4
      %v979 = vor.u32 %v978, %v974
      %v980 = vrot.slane %v979, 4
      %v982 = vshll.u32 %v916, 16
      %v984 = vrot.slane %v982, 5
      %v985 = vsel %vm937, %v980, %v984
      %v987 = vshrl.u32 %v917, 16
      %v989 = vrot.slane %v987, 4
      %v990 = vshll.u32 %v917, 16
      %v992 = vrot.slane %v990, 5
      %v993 = vor.u32 %v989, %v992
      %v994 = vrot.slane %v993, 4
      %v996 = vshll.u32 %v918, 16
      %v998 = vrot.slane %v996, 5
      %v999 = vsel %vm937, %v994, %v998
      %v1000 = vshrl.u32 %v918, 16
      %v1002 = vrot.slane %v1000, 4
      %v1003 = vor.u32 %v1002, %v998
      %v1004 = vrot.slane %v1003, 4
      %v1006 = vshll.u32 %v919, 16
      %v1008 = vrot.slane %v1006, 5
      %v1009 = vsel %vm937, %v1004, %v1008
      %v1011 = vshrl.u32 %v920, 16
      %v1013 = vrot.slane %v1011, 4
      %v1014 = vshll.u32 %v920, 16
      %v1016 = vrot.slane %v1014, 5
      %v1017 = vor.u32 %v1013, %v1016
      %v1018 = vrot.slane %v1017, 4
      %v1020 = vshll.u32 %v921, 16
      %v1022 = vrot.slane %v1020, 5
      %v1023 = vsel %vm937, %v1018, %v1022
      %v1024 = vshrl.u32 %v921, 16
      %v1026 = vrot.slane %v1024, 4
      %v1027 = vor.u32 %v1026, %v1022
      %v1028 = vrot.slane %v1027, 4
      %v1030 = vshll.u32 %v922, 16
      %v1032 = vrot.slane %v1030, 5
      %v1033 = vsel %vm937, %v1028, %v1032
      %v1035 = vshrl.u32 %v923, 16
      %v1037 = vrot.slane %v1035, 4
      %v1038 = vshll.u32 %v923, 16
      %v1040 = vrot.slane %v1038, 5
      %v1041 = vor.u32 %v1037, %v1040
      %v1042 = vrot.slane %v1041, 4
      %v1044 = vshll.u32 %v924, 16
      %v1046 = vrot.slane %v1044, 5
      %v1047 = vsel %vm937, %v1042, %v1046
      %v1048 = vshrl.u32 %v924, 16
      %v1050 = vrot.slane %v1048, 4
      %v1051 = vor.u32 %v1050, %v1046
      %v1052 = vrot.slane %v1051, 4
      %v1054 = vshll.u32 %v925, 16
      %v1056 = vrot.slane %v1054, 5
      %v1057 = vsel %vm937, %v1052, %v1056
      %v1059 = vshrl.u32 %v926, 16
      %v1061 = vrot.slane %v1059, 4
      %v1062 = vshll.u32 %v926, 16
      %v1064 = vrot.slane %v1062, 5
      %v1065 = vor.u32 %v1061, %v1064
      %v1066 = vrot.slane %v1065, 4
      %v1068 = vshll.u32 %v927, 16
      %v1070 = vrot.slane %v1068, 5
      %v1071 = vsel %vm937, %v1066, %v1070
      %v1072 = vshrl.u32 %v927, 16
      %v1074 = vrot.slane %v1072, 4
      %v1075 = vor.u32 %v1074, %v1070
      %v1076 = vrot.slane %v1075, 4
      %v1078 = vshll.u32 %v928, 16
      %v1080 = vrot.slane %v1078, 5
      %v1081 = vsel %vm937, %v1076, %v1080
      %v1083 = vshrl.u32 %v929, 16
      %v1085 = vrot.slane %v1083, 4
      %v1086 = vshll.u32 %v929, 16
      %v1088 = vrot.slane %v1086, 5
      %v1089 = vor.u32 %v1085, %v1088
      %v1090 = vrot.slane %v1089, 4
      %v1092 = vshll.u32 %v930, 16
      %v1094 = vrot.slane %v1092, 5
      %v1095 = vsel %vm937, %v1090, %v1094
      %v1096 = vshrl.u32 %v930, 16
      %v1098 = vrot.slane %v1096, 4
      %v1099 = vor.u32 %v1098, %v1094
      %v1100 = vrot.slane %v1099, 4
      %v1102 = vshll.u32 %v931, 16
      %v1104 = vrot.slane %v1102, 5
      %v1105 = vsel %vm937, %v1100, %v1104
      %v1107 = vshrl.u32 %v932, 16
      %v1109 = vrot.slane %v1107, 4
      %v1110 = vshll.u32 %v932, 16
      %v1112 = vrot.slane %v1110, 5
      %v1113 = vor.u32 %v1109, %v1112
      %v1114 = vrot.slane %v1113, 4
      %v1116 = vshll.u32 %v933, 16
      %v1118 = vrot.slane %v1116, 5
      %v1119 = vsel %vm937, %v1114, %v1118
      %v1120 = vshrl.u32 %v933, 16
      %v1122 = vrot.slane %v1120, 4
      %v1123 = vor.u32 %v1122, %v1118
      %v1124 = vrot.slane %v1123, 4
      %v1126 = vshll.u32 %v934, 16
      %v1128 = vrot.slane %v1126, 5
      %v1129 = vsel %vm937, %v1124, %v1128
      %v1130 = vld [vmem:[%s350] sm:$0xf]
      %v1131 = vld [vmem:[%s350 + $0x4] sm:$0xf]
      %v1132 = vld [vmem:[%s350 + $0x8] sm:$0xf]
      %v1133 = vld [vmem:[%s350 + $0xc] sm:$0xf]
      %v1134 = vld [vmem:[%s350 + $0x10] sm:$0xf]
      %v1135 = vld [vmem:[%s350 + $0x14] sm:$0xf]
      %v1136 = vld [vmem:[%s350 + $0x18] sm:$0xf]
      %v1137 = vld [vmem:[%s350 + $0x1c] sm:$0xf]
      %v1138 = vld [vmem:[%s350 + $0x20] sm:$0xf]
      %v1139 = vld [vmem:[%s350 + $0x24] sm:$0xf]
      %v1140 = vld [vmem:[%s350 + $0x28] sm:$0xf]
      %v1141 = vld [vmem:[%s350 + $0x2c] sm:$0xf]
      %v1142 = vld [vmem:[%s350 + $0x30] sm:$0xf]
      %v1143 = vld [vmem:[%s350 + $0x34] sm:$0xf]
      %v1144 = vld [vmem:[%s350 + $0x38] sm:$0xf]
      %v1145 = vld [vmem:[%s350 + $0x3c] sm:$0xf]
      %v1146 = vld [vmem:[%s910] sm:$0xe]
      %v1147 = vld [vmem:[%s910 + $0x8] sm:$0x3]
      %v1148 = vld [vmem:[%s910 + $0xc] sm:$0xe]
      %v1149 = vld [vmem:[%s910 + $0x14] sm:$0x3]
      %v1150 = vld [vmem:[%s910 + $0x18] sm:$0xe]
      %v1151 = vld [vmem:[%s910 + $0x20] sm:$0x3]
      %v1152 = vld [vmem:[%s910 + $0x24] sm:$0xe]
      %v1153 = vld [vmem:[%s910 + $0x2c] sm:$0x3]
      %v1154 = vld [vmem:[%s910 + $0x30] sm:$0xe]
      %v1155 = vld [vmem:[%s910 + $0x38] sm:$0x3]
      %v1156 = vld [vmem:[%s910 + $0x3c] sm:$0xe]
      %v1157 = vld [vmem:[%s910 + $0x44] sm:$0x3]
      %v1158 = vld [vmem:[%s910 + $0x48] sm:$0xe]
      %v1159 = vld [vmem:[%s910 + $0x50] sm:$0x3]
      %v1160 = vld [vmem:[%s910 + $0x54] sm:$0xe]
      %v1161 = vld [vmem:[%s910 + $0x5c] sm:$0x3]
      %v1163 = vshrl.u32 %v1146, 16
      %v1165 = vrot.slane %v1163, 5
      %v1166 = vshll.u32 %v1146, 16
      %v1168 = vrot.slane %v1166, 6
      %v1169 = vor.u32 %v1165, %v1168
      %v1170 = vrot.slane %v1169, 4
      %v1171 = vrot.slane %v952, 5
      %v1172 = vrot.slane %v948, 6
      %v1173 = vor.u32 %v1171, %v1172
      %v1174 = vsel %vm460, %v1170, %v1173
      %v1175 = vrot.slane %v1173, 4
      %v1177 = vshrl.u32 %v1147, 16
      %v1179 = vrot.slane %v1177, 5
      %v1180 = vshll.u32 %v1147, 16
      %v1182 = vrot.slane %v1180, 6
      %v1183 = vor.u32 %v1179, %v1182
      %v1184 = vsel %vm460, %v1175, %v1183
      %v1186 = vshrl.u32 %v1148, 16
      %v1188 = vrot.slane %v1186, 5
      %v1189 = vshll.u32 %v1148, 16
      %v1191 = vrot.slane %v1189, 6
      %v1192 = vor.u32 %v1188, %v1191
      %v1193 = vrot.slane %v1192, 4
      %v1194 = vrot.slane %v976, 5
      %v1195 = vrot.slane %v972, 6
      %v1196 = vor.u32 %v1194, %v1195
      %v1197 = vsel %vm460, %v1193, %v1196
      %v1198 = vrot.slane %v1196, 4
      %v1200 = vshrl.u32 %v1149, 16
      %v1202 = vrot.slane %v1200, 5
      %v1203 = vshll.u32 %v1149, 16
      %v1205 = vrot.slane %v1203, 6
      %v1206 = vor.u32 %v1202, %v1205
      %v1207 = vsel %vm460, %v1198, %v1206
      %v1209 = vshrl.u32 %v1150, 16
      %v1211 = vrot.slane %v1209, 5
      %v1212 = vshll.u32 %v1150, 16
      %v1214 = vrot.slane %v1212, 6
      %v1215 = vor.u32 %v1211, %v1214
      %v1216 = vrot.slane %v1215, 4
      %v1217 = vrot.slane %v1000, 5
      %v1218 = vrot.slane %v996, 6
      %v1219 = vor.u32 %v1217, %v1218
      %v1220 = vsel %vm460, %v1216, %v1219
      %v1221 = vrot.slane %v1219, 4
      %v1223 = vshrl.u32 %v1151, 16
      %v1225 = vrot.slane %v1223, 5
      %v1226 = vshll.u32 %v1151, 16
      %v1228 = vrot.slane %v1226, 6
      %v1229 = vor.u32 %v1225, %v1228
      %v1230 = vsel %vm460, %v1221, %v1229
      %v1232 = vshrl.u32 %v1152, 16
      %v1234 = vrot.slane %v1232, 5
      %v1235 = vshll.u32 %v1152, 16
      %v1237 = vrot.slane %v1235, 6
      %v1238 = vor.u32 %v1234, %v1237
      %v1239 = vrot.slane %v1238, 4
      %v1240 = vrot.slane %v1024, 5
      %v1241 = vrot.slane %v1020, 6
      %v1242 = vor.u32 %v1240, %v1241
      %v1243 = vsel %vm460, %v1239, %v1242
      %v1244 = vrot.slane %v1242, 4
      %v1246 = vshrl.u32 %v1153, 16
      %v1248 = vrot.slane %v1246, 5
      %v1249 = vshll.u32 %v1153, 16
      %v1251 = vrot.slane %v1249, 6
      %v1252 = vor.u32 %v1248, %v1251
      %v1253 = vsel %vm460, %v1244, %v1252
      %v1255 = vshrl.u32 %v1154, 16
      %v1257 = vrot.slane %v1255, 5
      %v1258 = vshll.u32 %v1154, 16
      %v1260 = vrot.slane %v1258, 6
      %v1261 = vor.u32 %v1257, %v1260
      %v1262 = vrot.slane %v1261, 4
      %v1263 = vrot.slane %v1048, 5
      %v1264 = vrot.slane %v1044, 6
      %v1265 = vor.u32 %v1263, %v1264
      %v1266 = vsel %vm460, %v1262, %v1265
      %v1267 = vrot.slane %v1265, 4
      %v1269 = vshrl.u32 %v1155, 16
      %v1271 = vrot.slane %v1269, 5
      %v1272 = vshll.u32 %v1155, 16
      %v1274 = vrot.slane %v1272, 6
      %v1275 = vor.u32 %v1271, %v1274
      %v1276 = vsel %vm460, %v1267, %v1275
      %v1278 = vshrl.u32 %v1156, 16
      %v1280 = vrot.slane %v1278, 5
      %v1281 = vshll.u32 %v1156, 16
      %v1283 = vrot.slane %v1281, 6
      %v1284 = vor.u32 %v1280, %v1283
      %v1285 = vrot.slane %v1284, 4
      %v1286 = vrot.slane %v1072, 5
      %v1287 = vrot.slane %v1068, 6
      %v1288 = vor.u32 %v1286, %v1287
      %v1289 = vsel %vm460, %v1285, %v1288
      %v1290 = vrot.slane %v1288, 4
      %v1292 = vshrl.u32 %v1157, 16
      %v1294 = vrot.slane %v1292, 5
      %v1295 = vshll.u32 %v1157, 16
      %v1297 = vrot.slane %v1295, 6
      %v1298 = vor.u32 %v1294, %v1297
      %v1299 = vsel %vm460, %v1290, %v1298
      %v1301 = vshrl.u32 %v1158, 16
      %v1303 = vrot.slane %v1301, 5
      %v1304 = vshll.u32 %v1158, 16
      %v1306 = vrot.slane %v1304, 6
      %v1307 = vor.u32 %v1303, %v1306
      %v1308 = vrot.slane %v1307, 4
      %v1309 = vrot.slane %v1096, 5
      %v1310 = vrot.slane %v1092, 6
      %v1311 = vor.u32 %v1309, %v1310
      %v1312 = vsel %vm460, %v1308, %v1311
      %v1313 = vrot.slane %v1311, 4
      %v1315 = vshrl.u32 %v1159, 16
      %v1317 = vrot.slane %v1315, 5
      %v1318 = vshll.u32 %v1159, 16
      %v1320 = vrot.slane %v1318, 6
      %v1321 = vor.u32 %v1317, %v1320
      %v1322 = vsel %vm460, %v1313, %v1321
      %v1324 = vshrl.u32 %v1160, 16
      %v1326 = vrot.slane %v1324, 5
      %v1327 = vshll.u32 %v1160, 16
      %v1329 = vrot.slane %v1327, 6
      %v1330 = vor.u32 %v1326, %v1329
      %v1331 = vrot.slane %v1330, 4
      %v1332 = vrot.slane %v1120, 5
      %v1333 = vrot.slane %v1116, 6
      %v1334 = vor.u32 %v1332, %v1333
      %v1335 = vsel %vm460, %v1331, %v1334
      %v1336 = vrot.slane %v1334, 4
      %v1338 = vshrl.u32 %v1161, 16
      %v1340 = vrot.slane %v1338, 5
      %v1341 = vshll.u32 %v1161, 16
      %v1343 = vrot.slane %v1341, 6
      %v1344 = vor.u32 %v1340, %v1343
      %v1345 = vsel %vm460, %v1336, %v1344
      %s1346 = scalar_lea.vmem %s350, 64
      %v1347 = vld [vmem:[%s1346] sm:$0xf]
      %v1348 = vld [vmem:[%s1346 + $0x4] sm:$0xf]
      %v1349 = vld [vmem:[%s1346 + $0x8] sm:$0xf]
      %v1350 = vld [vmem:[%s1346 + $0xc] sm:$0xf]
      %v1351 = vld [vmem:[%s1346 + $0x10] sm:$0xf]
      %v1352 = vld [vmem:[%s1346 + $0x14] sm:$0xf]
      %v1353 = vld [vmem:[%s1346 + $0x18] sm:$0xf]
      %v1354 = vld [vmem:[%s1346 + $0x1c] sm:$0xf]
      %v1355 = vld [vmem:[%s1346 + $0x20] sm:$0xf]
      %v1356 = vld [vmem:[%s1346 + $0x24] sm:$0xf]
      %v1357 = vld [vmem:[%s1346 + $0x28] sm:$0xf]
      %v1358 = vld [vmem:[%s1346 + $0x2c] sm:$0xf]
      %v1359 = vld [vmem:[%s1346 + $0x30] sm:$0xf]
      %v1360 = vld [vmem:[%s1346 + $0x34] sm:$0xf]
      %v1361 = vld [vmem:[%s1346 + $0x38] sm:$0xf]
      %v1362 = vld [vmem:[%s1346 + $0x3c] sm:$0xf]
      %v1363 = vunpack.c.l.b16 %v1174
      %v1364 = vunpack.c.l.b16 %v1184
      %v1365 = vunpack.c.l.b16 %v1197
      %v1366 = vunpack.c.l.b16 %v1207
      %v1367 = vunpack.c.l.b16 %v1220
      %v1368 = vunpack.c.l.b16 %v1230
      %v1369 = vunpack.c.l.b16 %v1243
      %v1370 = vunpack.c.l.b16 %v1253
      %v1371 = vunpack.c.l.b16 %v1266
      %v1372 = vunpack.c.l.b16 %v1276
      %v1373 = vunpack.c.l.b16 %v1289
      %v1374 = vunpack.c.l.b16 %v1299
      %v1375 = vunpack.c.l.b16 %v1312
      %v1376 = vunpack.c.l.b16 %v1322
      %v1377 = vunpack.c.l.b16 %v1335
      %v1378 = vunpack.c.l.b16 %v1345
      %v1379 = vpack.c.b16 %v1364, %v1363
      %v1380 = vpack.c.b16 %v1366, %v1365
      %v1381 = vpack.c.b16 %v1368, %v1367
      %v1382 = vpack.c.b16 %v1370, %v1369
      %v1383 = vpack.c.b16 %v1372, %v1371
      %v1384 = vpack.c.b16 %v1374, %v1373
      %v1385 = vpack.c.b16 %v1376, %v1375
      %v1386 = vpack.c.b16 %v1378, %v1377
      %v1411 = vunpack.c.l.b16 %v1347
      %v1412 = vunpack.c.l.b16 %v1348
      %v1413 = vunpack.c.l.b16 %v1349
      %v1414 = vunpack.c.l.b16 %v1350
      %v1415 = vunpack.c.l.b16 %v1351
      %v1416 = vunpack.c.l.b16 %v1352
      %v1417 = vunpack.c.l.b16 %v1353
      %v1418 = vunpack.c.l.b16 %v1354
      %v1419 = vunpack.c.l.b16 %v1355
      %v1420 = vunpack.c.l.b16 %v1356
      %v1421 = vunpack.c.l.b16 %v1357
      %v1422 = vunpack.c.l.b16 %v1358
      %v1423 = vunpack.c.l.b16 %v1359
      %v1424 = vunpack.c.l.b16 %v1360
      %v1425 = vunpack.c.l.b16 %v1361
      %v1426 = vunpack.c.l.b16 %v1362
      %v1427 = vpack.c.b16 %v1412, %v1411
      %v1428 = vpack.c.b16 %v1414, %v1413
      %v1429 = vpack.c.b16 %v1416, %v1415
      %v1430 = vpack.c.b16 %v1418, %v1417
      %v1431 = vpack.c.b16 %v1420, %v1419
      %v1432 = vpack.c.b16 %v1422, %v1421
      %v1433 = vpack.c.b16 %v1424, %v1423
      %v1434 = vpack.c.b16 %v1426, %v1425
      %1443 = vmatprep.subr.bf16.mxu0 0
      %1444 = vmatpush1.bf16.msra.mxu0 %v1434
      %1445 = vmatprep.subr.bf16.mxu0 0
      %1446 = vmatpush1.bf16.msra.mxu0 %v1433
      %1447 = vmatprep.subr.bf16.mxu0 0
      %1448 = vmatpush1.bf16.msra.mxu0 %v1432
      %1449 = vmatprep.subr.bf16.mxu0 0
      %1450 = vmatpush1.bf16.msra.mxu0 %v1431
      %1451 = vmatprep.subr.bf16.mxu0 0
      %1452 = vmatpush1.bf16.msra.mxu0 %v1430
      %1453 = vmatprep.subr.bf16.mxu0 0
      %1454 = vmatpush1.bf16.msra.mxu0 %v1429
      %1455 = vmatprep.subr.bf16.mxu0 0
      %1456 = vmatpush1.bf16.msra.mxu0 %v1428
      %1457 = vmatprep.subr.bf16.mxu0 0
      %1458 = vmatpush1.bf16.msra.mxu0 %v1427
      %1459 = vmatprep.subr.bf16.mxu0 0
      %1460 = vmatpush2.bf16.msra.mxu0 0
      %1461 = vmatprep.subr.bf16.mxu0 0
      %1462 = vmatpush2.bf16.msra.mxu0 0
      %1463 = vmatprep.subr.bf16.mxu0 0
      %1464 = vmatpush2.bf16.msra.mxu0 0
      %1465 = vmatprep.subr.bf16.mxu0 0
      %1466 = vmatpush2.bf16.msra.mxu0 0
      %1467 = vmatprep.subr.bf16.mxu0 0
      %1468 = vmatpush2.bf16.msra.mxu0 0
      %1469 = vmatprep.subr.bf16.mxu0 0
      %1470 = vmatpush2.bf16.msra.mxu0 0
      %1471 = vmatprep.subr.bf16.mxu0 0
      %1472 = vmatpush2.bf16.msra.mxu0 0
      %1473 = vmatprep.subr.bf16.mxu0 0
      %1474 = vmatpush2.bf16.msra.mxu0 0
      %1475 = vmatprep.mubr.bf16.mxu0 0
      %1476 = vmatmul.mubr.bf16.gmra.mxu0 %v1379
      %v1477 = vpop.f32.mrf.mxu0
      %v1478 = vadd.f32 0.0, %v1477
      %v1479 = vpop.f32.mrf.mxu0
      %v1480 = vpop.f32.mrf.mxu0
      %v1481 = vadd.f32 0.0, %v1480
      %v1482 = vpop.f32.mrf.mxu0
      %1483 = vmatprep.mubr.bf16.mxu0 0
      %1484 = vmatmul.mubr.bf16.gmra.mxu0 %v1380
      %v1485 = vpop.f32.mrf.mxu0
      %v1486 = vadd.f32 0.0, %v1485
      %v1487 = vpop.f32.mrf.mxu0
      %v1488 = vpop.f32.mrf.mxu0
      %v1489 = vadd.f32 0.0, %v1488
      %v1490 = vpop.f32.mrf.mxu0
      %1491 = vmatprep.mubr.bf16.mxu0 0
      %1492 = vmatmul.mubr.bf16.gmra.mxu0 %v1381
      %v1493 = vpop.f32.mrf.mxu0
      %v1494 = vadd.f32 0.0, %v1493
      %v1495 = vpop.f32.mrf.mxu0
      %v1496 = vpop.f32.mrf.mxu0
      %v1497 = vadd.f32 0.0, %v1496
      %v1498 = vpop.f32.mrf.mxu0
      %1499 = vmatprep.mubr.bf16.mxu0 0
      %1500 = vmatmul.mubr.bf16.gmra.mxu0 %v1382
      %v1501 = vpop.f32.mrf.mxu0
      %v1502 = vadd.f32 0.0, %v1501
      %v1503 = vpop.f32.mrf.mxu0
      %v1504 = vpop.f32.mrf.mxu0
      %v1505 = vadd.f32 0.0, %v1504
      %v1506 = vpop.f32.mrf.mxu0
      %1507 = vmatprep.mubr.bf16.mxu0 0
      %1508 = vmatmul.mubr.bf16.gmra.mxu0 %v1383
      %v1509 = vpop.f32.mrf.mxu0
      %v1510 = vadd.f32 0.0, %v1509
      %v1511 = vpop.f32.mrf.mxu0
      %v1512 = vpop.f32.mrf.mxu0
      %v1513 = vadd.f32 0.0, %v1512
      %v1514 = vpop.f32.mrf.mxu0
      %1515 = vmatprep.mubr.bf16.mxu0 0
      %1516 = vmatmul.mubr.bf16.gmra.mxu0 %v1384
      %v1517 = vpop.f32.mrf.mxu0
      %v1518 = vadd.f32 0.0, %v1517
      %v1519 = vpop.f32.mrf.mxu0
      %v1520 = vpop.f32.mrf.mxu0
      %v1521 = vadd.f32 0.0, %v1520
      %v1522 = vpop.f32.mrf.mxu0
      %1523 = vmatprep.mubr.bf16.mxu0 0
      %1524 = vmatmul.mubr.bf16.gmra.mxu0 %v1385
      %v1525 = vpop.f32.mrf.mxu0
      %v1526 = vadd.f32 0.0, %v1525
      %v1527 = vpop.f32.mrf.mxu0
      %v1528 = vpop.f32.mrf.mxu0
      %v1529 = vadd.f32 0.0, %v1528
      %v1530 = vpop.f32.mrf.mxu0
      %1531 = vmatprep.mubr.bf16.mxu0 0
      %1532 = vmatmul.mubr.bf16.gmra.mxu0 %v1386
      %v1533 = vpop.f32.mrf.mxu0
      %v1534 = vadd.f32 0.0, %v1533
      %v1535 = vpop.f32.mrf.mxu0
      %v1536 = vpop.f32.mrf.mxu0
      %v1537 = vadd.f32 0.0, %v1536
      %v1538 = vpop.f32.mrf.mxu0
      %1539 = vdwg.mxu0
      %v1540 = vunpack.c.l.b16 %v951
      %v1541 = vunpack.c.l.b16 %v961
      %v1542 = vunpack.c.l.b16 %v975
      %v1543 = vunpack.c.l.b16 %v985
      %v1544 = vunpack.c.l.b16 %v999
      %v1545 = vunpack.c.l.b16 %v1009
      %v1546 = vunpack.c.l.b16 %v1023
      %v1547 = vunpack.c.l.b16 %v1033
      %v1548 = vunpack.c.l.b16 %v1047
      %v1549 = vunpack.c.l.b16 %v1057
      %v1550 = vunpack.c.l.b16 %v1071
      %v1551 = vunpack.c.l.b16 %v1081
      %v1552 = vunpack.c.l.b16 %v1095
      %v1553 = vunpack.c.l.b16 %v1105
      %v1554 = vunpack.c.l.b16 %v1119
      %v1555 = vunpack.c.l.b16 %v1129
      %v1556 = vpack.c.b16 %v1541, %v1540
      %v1557 = vpack.c.b16 %v1543, %v1542
      %v1558 = vpack.c.b16 %v1545, %v1544
      %v1559 = vpack.c.b16 %v1547, %v1546
      %v1560 = vpack.c.b16 %v1549, %v1548
      %v1561 = vpack.c.b16 %v1551, %v1550
      %v1562 = vpack.c.b16 %v1553, %v1552
      %v1563 = vpack.c.b16 %v1555, %v1554
      %v1588 = vunpack.c.l.b16 %v1130
      %v1589 = vunpack.c.l.b16 %v1131
      %v1590 = vunpack.c.l.b16 %v1132
      %v1591 = vunpack.c.l.b16 %v1133
      %v1592 = vunpack.c.l.b16 %v1134
      %v1593 = vunpack.c.l.b16 %v1135
      %v1594 = vunpack.c.l.b16 %v1136
      %v1595 = vunpack.c.l.b16 %v1137
      %v1596 = vunpack.c.l.b16 %v1138
      %v1597 = vunpack.c.l.b16 %v1139
      %v1598 = vunpack.c.l.b16 %v1140
      %v1599 = vunpack.c.l.b16 %v1141
      %v1600 = vunpack.c.l.b16 %v1142
      %v1601 = vunpack.c.l.b16 %v1143
      %v1602 = vunpack.c.l.b16 %v1144
      %v1603 = vunpack.c.l.b16 %v1145
      %v1604 = vpack.c.b16 %v1589, %v1588
      %v1605 = vpack.c.b16 %v1591, %v1590
      %v1606 = vpack.c.b16 %v1593, %v1592
      %v1607 = vpack.c.b16 %v1595, %v1594
      %v1608 = vpack.c.b16 %v1597, %v1596
      %v1609 = vpack.c.b16 %v1599, %v1598
      %v1610 = vpack.c.b16 %v1601, %v1600
      %v1611 = vpack.c.b16 %v1603, %v1602
      %1620 = vmatprep.subr.bf16.mxu0 0
      %1621 = vmatpush1.bf16.msra.mxu0 %v1611
      %1622 = vmatprep.subr.bf16.mxu0 0
      %1623 = vmatpush1.bf16.msra.mxu0 %v1610
      %1624 = vmatprep.subr.bf16.mxu0 0
      %1625 = vmatpush1.bf16.msra.mxu0 %v1609
      %1626 = vmatprep.subr.bf16.mxu0 0
      %1627 = vmatpush1.bf16.msra.mxu0 %v1608
      %1628 = vmatprep.subr.bf16.mxu0 0
      %1629 = vmatpush1.bf16.msra.mxu0 %v1607
      %1630 = vmatprep.subr.bf16.mxu0 0
      %1631 = vmatpush1.bf16.msra.mxu0 %v1606
      %1632 = vmatprep.subr.bf16.mxu0 0
      %1633 = vmatpush1.bf16.msra.mxu0 %v1605
      %1634 = vmatprep.subr.bf16.mxu0 0
      %1635 = vmatpush1.bf16.msra.mxu0 %v1604
      %1636 = vmatprep.subr.bf16.mxu0 0
      %1637 = vmatpush2.bf16.msra.mxu0 0
      %1638 = vmatprep.subr.bf16.mxu0 0
      %1639 = vmatpush2.bf16.msra.mxu0 0
      %1640 = vmatprep.subr.bf16.mxu0 0
      %1641 = vmatpush2.bf16.msra.mxu0 0
      %1642 = vmatprep.subr.bf16.mxu0 0
      %1643 = vmatpush2.bf16.msra.mxu0 0
      %1644 = vmatprep.subr.bf16.mxu0 0
      %1645 = vmatpush2.bf16.msra.mxu0 0
      %1646 = vmatprep.subr.bf16.mxu0 0
      %1647 = vmatpush2.bf16.msra.mxu0 0
      %1648 = vmatprep.subr.bf16.mxu0 0
      %1649 = vmatpush2.bf16.msra.mxu0 0
      %1650 = vmatprep.subr.bf16.mxu0 0
      %1651 = vmatpush2.bf16.msra.mxu0 0
      %1652 = vmatprep.mubr.bf16.mxu0 0
      %1653 = vmatmul.mubr.bf16.gmra.mxu0 %v1556
      %v1654 = vpop.f32.mrf.mxu0
      %v1655 = vadd.f32 %v1478, %v1654
      %v1656 = vpop.f32.mrf.mxu0
      %v1657 = vpop.f32.mrf.mxu0
      %v1658 = vadd.f32 %v1481, %v1657
      %v1659 = vpop.f32.mrf.mxu0
      %1660 = vmatprep.mubr.bf16.mxu0 0
      %1661 = vmatmul.mubr.bf16.gmra.mxu0 %v1557
      %v1662 = vpop.f32.mrf.mxu0
      %v1663 = vadd.f32 %v1486, %v1662
      %v1664 = vpop.f32.mrf.mxu0
      %v1665 = vpop.f32.mrf.mxu0
      %v1666 = vadd.f32 %v1489, %v1665
      %v1667 = vpop.f32.mrf.mxu0
      %1668 = vmatprep.mubr.bf16.mxu0 0
      %1669 = vmatmul.mubr.bf16.gmra.mxu0 %v1558
      %v1670 = vpop.f32.mrf.mxu0
      %v1671 = vadd.f32 %v1494, %v1670
      %v1672 = vpop.f32.mrf.mxu0
      %v1673 = vpop.f32.mrf.mxu0
      %v1674 = vadd.f32 %v1497, %v1673
      %v1675 = vpop.f32.mrf.mxu0
      %1676 = vmatprep.mubr.bf16.mxu0 0
      %1677 = vmatmul.mubr.bf16.gmra.mxu0 %v1559
      %v1678 = vpop.f32.mrf.mxu0
      %v1679 = vadd.f32 %v1502, %v1678
      %v1680 = vpop.f32.mrf.mxu0
      %v1681 = vpop.f32.mrf.mxu0
      %v1682 = vadd.f32 %v1505, %v1681
      %v1683 = vpop.f32.mrf.mxu0
      %1684 = vmatprep.mubr.bf16.mxu0 0
      %1685 = vmatmul.mubr.bf16.gmra.mxu0 %v1560
      %v1686 = vpop.f32.mrf.mxu0
      %v1687 = vadd.f32 %v1510, %v1686
      %v1688 = vpop.f32.mrf.mxu0
      %v1689 = vpop.f32.mrf.mxu0
      %v1690 = vadd.f32 %v1513, %v1689
      %v1691 = vpop.f32.mrf.mxu0
      %1692 = vmatprep.mubr.bf16.mxu0 0
      %1693 = vmatmul.mubr.bf16.gmra.mxu0 %v1561
      %v1694 = vpop.f32.mrf.mxu0
      %v1695 = vadd.f32 %v1518, %v1694
      %v1696 = vpop.f32.mrf.mxu0
      %v1697 = vpop.f32.mrf.mxu0
      %v1698 = vadd.f32 %v1521, %v1697
      %v1699 = vpop.f32.mrf.mxu0
      %1700 = vmatprep.mubr.bf16.mxu0 0
      %1701 = vmatmul.mubr.bf16.gmra.mxu0 %v1562
      %v1702 = vpop.f32.mrf.mxu0
      %v1703 = vadd.f32 %v1526, %v1702
      %v1704 = vpop.f32.mrf.mxu0
      %v1705 = vpop.f32.mrf.mxu0
      %v1706 = vadd.f32 %v1529, %v1705
      %v1707 = vpop.f32.mrf.mxu0
      %1708 = vmatprep.mubr.bf16.mxu0 0
      %1709 = vmatmul.mubr.bf16.gmra.mxu0 %v1563
      %v1710 = vpop.f32.mrf.mxu0
      %v1711 = vadd.f32 %v1534, %v1710
      %v1712 = vpop.f32.mrf.mxu0
      %v1713 = vpop.f32.mrf.mxu0
      %v1714 = vadd.f32 %v1537, %v1713
      %v1715 = vpop.f32.mrf.mxu0
      %1716 = vdwg.mxu0
      %v1717 = vld [vmem:[%s910] sm:$0xc]
      %v1718 = vld [vmem:[%s910 + $0x8] sm:$0x7]
      %v1719 = vld [vmem:[%s910 + $0xc] sm:$0xc]
      %v1720 = vld [vmem:[%s910 + $0x14] sm:$0x7]
      %v1721 = vld [vmem:[%s910 + $0x18] sm:$0xc]
      %v1722 = vld [vmem:[%s910 + $0x20] sm:$0x7]
      %v1723 = vld [vmem:[%s910 + $0x24] sm:$0xc]
      %v1724 = vld [vmem:[%s910 + $0x2c] sm:$0x7]
      %v1725 = vld [vmem:[%s910 + $0x30] sm:$0xc]
      %v1726 = vld [vmem:[%s910 + $0x38] sm:$0x7]
      %v1727 = vld [vmem:[%s910 + $0x3c] sm:$0xc]
      %v1728 = vld [vmem:[%s910 + $0x44] sm:$0x7]
      %v1729 = vld [vmem:[%s910 + $0x48] sm:$0xc]
      %v1730 = vld [vmem:[%s910 + $0x50] sm:$0x7]
      %v1731 = vld [vmem:[%s910 + $0x54] sm:$0xc]
      %v1732 = vld [vmem:[%s910 + $0x5c] sm:$0x7]
      %vm1733 = vsmask.f32 1280
      %vm1734 = vsmask.f32 5392
      %vm1735 = vmor %vm1733, %vm1734
      %v1737 = vshrl.u32 %v1717, 16
      %v1739 = vrot.slane %v1737, 6
      %v1740 = vshll.u32 %v1717, 16
      %v1742 = vrot.slane %v1740, 7
      %v1743 = vor.u32 %v1739, %v1742
      %v1744 = vrot.slane %v1743, 4
      %v1745 = vrot.slane %v952, 6
      %v1746 = vrot.slane %v948, 7
      %v1747 = vor.u32 %v1745, %v1746
      %v1748 = vsel %vm1735, %v1744, %v1747
      %v1749 = vrot.slane %v1747, 4
      %v1751 = vshrl.u32 %v1718, 16
      %v1753 = vrot.slane %v1751, 6
      %v1754 = vshll.u32 %v1718, 16
      %v1756 = vrot.slane %v1754, 7
      %v1757 = vor.u32 %v1753, %v1756
      %v1758 = vsel %vm1735, %v1749, %v1757
      %v1760 = vshrl.u32 %v1719, 16
      %v1762 = vrot.slane %v1760, 6
      %v1763 = vshll.u32 %v1719, 16
      %v1765 = vrot.slane %v1763, 7
      %v1766 = vor.u32 %v1762, %v1765
      %v1767 = vrot.slane %v1766, 4
      %v1768 = vrot.slane %v976, 6
      %v1769 = vrot.slane %v972, 7
      %v1770 = vor.u32 %v1768, %v1769
      %v1771 = vsel %vm1735, %v1767, %v1770
      %v1772 = vrot.slane %v1770, 4
      %v1774 = vshrl.u32 %v1720, 16
      %v1776 = vrot.slane %v1774, 6
      %v1777 = vshll.u32 %v1720, 16
      %v1779 = vrot.slane %v1777, 7
      %v1780 = vor.u32 %v1776, %v1779
      %v1781 = vsel %vm1735, %v1772, %v1780
      %v1783 = vshrl.u32 %v1721, 16
      %v1785 = vrot.slane %v1783, 6
      %v1786 = vshll.u32 %v1721, 16
      %v1788 = vrot.slane %v1786, 7
      %v1789 = vor.u32 %v1785, %v1788
      %v1790 = vrot.slane %v1789, 4
      %v1791 = vrot.slane %v1000, 6
      %v1792 = vrot.slane %v996, 7
      %v1793 = vor.u32 %v1791, %v1792
      %v1794 = vsel %vm1735, %v1790, %v1793
      %v1795 = vrot.slane %v1793, 4
      %v1797 = vshrl.u32 %v1722, 16
      %v1799 = vrot.slane %v1797, 6
      %v1800 = vshll.u32 %v1722, 16
      %v1802 = vrot.slane %v1800, 7
      %v1803 = vor.u32 %v1799, %v1802
      %v1804 = vsel %vm1735, %v1795, %v1803
      %v1806 = vshrl.u32 %v1723, 16
      %v1808 = vrot.slane %v1806, 6
      %v1809 = vshll.u32 %v1723, 16
      %v1811 = vrot.slane %v1809, 7
      %v1812 = vor.u32 %v1808, %v1811
      %v1813 = vrot.slane %v1812, 4
      %v1814 = vrot.slane %v1024, 6
      %v1815 = vrot.slane %v1020, 7
      %v1816 = vor.u32 %v1814, %v1815
      %v1817 = vsel %vm1735, %v1813, %v1816
      %v1818 = vrot.slane %v1816, 4
      %v1820 = vshrl.u32 %v1724, 16
      %v1822 = vrot.slane %v1820, 6
      %v1823 = vshll.u32 %v1724, 16
      %v1825 = vrot.slane %v1823, 7
      %v1826 = vor.u32 %v1822, %v1825
      %v1827 = vsel %vm1735, %v1818, %v1826
      %v1829 = vshrl.u32 %v1725, 16
      %v1831 = vrot.slane %v1829, 6
      %v1832 = vshll.u32 %v1725, 16
      %v1834 = vrot.slane %v1832, 7
      %v1835 = vor.u32 %v1831, %v1834
      %v1836 = vrot.slane %v1835, 4
      %v1837 = vrot.slane %v1048, 6
      %v1838 = vrot.slane %v1044, 7
      %v1839 = vor.u32 %v1837, %v1838
      %v1840 = vsel %vm1735, %v1836, %v1839
      %v1841 = vrot.slane %v1839, 4
      %v1843 = vshrl.u32 %v1726, 16
      %v1845 = vrot.slane %v1843, 6
      %v1846 = vshll.u32 %v1726, 16
      %v1848 = vrot.slane %v1846, 7
      %v1849 = vor.u32 %v1845, %v1848
      %v1850 = vsel %vm1735, %v1841, %v1849
      %v1852 = vshrl.u32 %v1727, 16
      %v1854 = vrot.slane %v1852, 6
      %v1855 = vshll.u32 %v1727, 16
      %v1857 = vrot.slane %v1855, 7
      %v1858 = vor.u32 %v1854, %v1857
      %v1859 = vrot.slane %v1858, 4
      %v1860 = vrot.slane %v1072, 6
      %v1861 = vrot.slane %v1068, 7
      %v1862 = vor.u32 %v1860, %v1861
      %v1863 = vsel %vm1735, %v1859, %v1862
      %v1864 = vrot.slane %v1862, 4
      %v1866 = vshrl.u32 %v1728, 16
      %v1868 = vrot.slane %v1866, 6
      %v1869 = vshll.u32 %v1728, 16
      %v1871 = vrot.slane %v1869, 7
      %v1872 = vor.u32 %v1868, %v1871
      %v1873 = vsel %vm1735, %v1864, %v1872
      %v1875 = vshrl.u32 %v1729, 16
      %v1877 = vrot.slane %v1875, 6
      %v1878 = vshll.u32 %v1729, 16
      %v1880 = vrot.slane %v1878, 7
      %v1881 = vor.u32 %v1877, %v1880
      %v1882 = vrot.slane %v1881, 4
      %v1883 = vrot.slane %v1096, 6
      %v1884 = vrot.slane %v1092, 7
      %v1885 = vor.u32 %v1883, %v1884
      %v1886 = vsel %vm1735, %v1882, %v1885
      %v1887 = vrot.slane %v1885, 4
      %v1889 = vshrl.u32 %v1730, 16
      %v1891 = vrot.slane %v1889, 6
      %v1892 = vshll.u32 %v1730, 16
      %v1894 = vrot.slane %v1892, 7
      %v1895 = vor.u32 %v1891, %v1894
      %v1896 = vsel %vm1735, %v1887, %v1895
      %v1898 = vshrl.u32 %v1731, 16
      %v1900 = vrot.slane %v1898, 6
      %v1901 = vshll.u32 %v1731, 16
      %v1903 = vrot.slane %v1901, 7
      %v1904 = vor.u32 %v1900, %v1903
      %v1905 = vrot.slane %v1904, 4
      %v1906 = vrot.slane %v1120, 6
      %v1907 = vrot.slane %v1116, 7
      %v1908 = vor.u32 %v1906, %v1907
      %v1909 = vsel %vm1735, %v1905, %v1908
      %v1910 = vrot.slane %v1908, 4
      %v1912 = vshrl.u32 %v1732, 16
      %v1914 = vrot.slane %v1912, 6
      %v1915 = vshll.u32 %v1732, 16
      %v1917 = vrot.slane %v1915, 7
      %v1918 = vor.u32 %v1914, %v1917
      %v1919 = vsel %vm1735, %v1910, %v1918
      %s1920 = scalar_lea.vmem %s350, 128
      %v1921 = vld [vmem:[%s1920] sm:$0xf]
      %v1922 = vld [vmem:[%s1920 + $0x4] sm:$0xf]
      %v1923 = vld [vmem:[%s1920 + $0x8] sm:$0xf]
      %v1924 = vld [vmem:[%s1920 + $0xc] sm:$0xf]
      %v1925 = vld [vmem:[%s1920 + $0x10] sm:$0xf]
      %v1926 = vld [vmem:[%s1920 + $0x14] sm:$0xf]
      %v1927 = vld [vmem:[%s1920 + $0x18] sm:$0xf]
      %v1928 = vld [vmem:[%s1920 + $0x1c] sm:$0xf]
      %v1929 = vld [vmem:[%s1920 + $0x20] sm:$0xf]
      %v1930 = vld [vmem:[%s1920 + $0x24] sm:$0xf]
      %v1931 = vld [vmem:[%s1920 + $0x28] sm:$0xf]
      %v1932 = vld [vmem:[%s1920 + $0x2c] sm:$0xf]
      %v1933 = vld [vmem:[%s1920 + $0x30] sm:$0xf]
      %v1934 = vld [vmem:[%s1920 + $0x34] sm:$0xf]
      %v1935 = vld [vmem:[%s1920 + $0x38] sm:$0xf]
      %v1936 = vld [vmem:[%s1920 + $0x3c] sm:$0xf]
      %v1937 = vunpack.c.l.b16 %v1748
      %v1938 = vunpack.c.l.b16 %v1758
      %v1939 = vunpack.c.l.b16 %v1771
      %v1940 = vunpack.c.l.b16 %v1781
      %v1941 = vunpack.c.l.b16 %v1794
      %v1942 = vunpack.c.l.b16 %v1804
      %v1943 = vunpack.c.l.b16 %v1817
      %v1944 = vunpack.c.l.b16 %v1827
      %v1945 = vunpack.c.l.b16 %v1840
      %v1946 = vunpack.c.l.b16 %v1850
      %v1947 = vunpack.c.l.b16 %v1863
      %v1948 = vunpack.c.l.b16 %v1873
      %v1949 = vunpack.c.l.b16 %v1886
      %v1950 = vunpack.c.l.b16 %v1896
      %v1951 = vunpack.c.l.b16 %v1909
      %v1952 = vunpack.c.l.b16 %v1919
      %v1953 = vpack.c.b16 %v1938, %v1937
      %v1954 = vpack.c.b16 %v1940, %v1939
      %v1955 = vpack.c.b16 %v1942, %v1941
      %v1956 = vpack.c.b16 %v1944, %v1943
      %v1957 = vpack.c.b16 %v1946, %v1945
      %v1958 = vpack.c.b16 %v1948, %v1947
      %v1959 = vpack.c.b16 %v1950, %v1949
      %v1960 = vpack.c.b16 %v1952, %v1951
      %v1985 = vunpack.c.l.b16 %v1921
      %v1986 = vunpack.c.l.b16 %v1922
      %v1987 = vunpack.c.l.b16 %v1923
      %v1988 = vunpack.c.l.b16 %v1924
      %v1989 = vunpack.c.l.b16 %v1925
      %v1990 = vunpack.c.l.b16 %v1926
      %v1991 = vunpack.c.l.b16 %v1927
      %v1992 = vunpack.c.l.b16 %v1928
      %v1993 = vunpack.c.l.b16 %v1929
      %v1994 = vunpack.c.l.b16 %v1930
      %v1995 = vunpack.c.l.b16 %v1931
      %v1996 = vunpack.c.l.b16 %v1932
      %v1997 = vunpack.c.l.b16 %v1933
      %v1998 = vunpack.c.l.b16 %v1934
      %v1999 = vunpack.c.l.b16 %v1935
      %v2000 = vunpack.c.l.b16 %v1936
      %v2001 = vpack.c.b16 %v1986, %v1985
      %v2002 = vpack.c.b16 %v1988, %v1987
      %v2003 = vpack.c.b16 %v1990, %v1989
      %v2004 = vpack.c.b16 %v1992, %v1991
      %v2005 = vpack.c.b16 %v1994, %v1993
      %v2006 = vpack.c.b16 %v1996, %v1995
      %v2007 = vpack.c.b16 %v1998, %v1997
      %v2008 = vpack.c.b16 %v2000, %v1999
      %2017 = vmatprep.subr.bf16.mxu0 0
      %2018 = vmatpush1.bf16.msra.mxu0 %v2008
      %2019 = vmatprep.subr.bf16.mxu0 0
      %2020 = vmatpush1.bf16.msra.mxu0 %v2007
      %2021 = vmatprep.subr.bf16.mxu0 0
      %2022 = vmatpush1.bf16.msra.mxu0 %v2006
      %2023 = vmatprep.subr.bf16.mxu0 0
      %2024 = vmatpush1.bf16.msra.mxu0 %v2005
      %2025 = vmatprep.subr.bf16.mxu0 0
      %2026 = vmatpush1.bf16.msra.mxu0 %v2004
      %2027 = vmatprep.subr.bf16.mxu0 0
      %2028 = vmatpush1.bf16.msra.mxu0 %v2003
      %2029 = vmatprep.subr.bf16.mxu0 0
      %2030 = vmatpush1.bf16.msra.mxu0 %v2002
      %2031 = vmatprep.subr.bf16.mxu0 0
      %2032 = vmatpush1.bf16.msra.mxu0 %v2001
      %2033 = vmatprep.subr.bf16.mxu0 0
      %2034 = vmatpush2.bf16.msra.mxu0 0
      %2035 = vmatprep.subr.bf16.mxu0 0
      %2036 = vmatpush2.bf16.msra.mxu0 0
      %2037 = vmatprep.subr.bf16.mxu0 0
      %2038 = vmatpush2.bf16.msra.mxu0 0
      %2039 = vmatprep.subr.bf16.mxu0 0
      %2040 = vmatpush2.bf16.msra.mxu0 0
      %2041 = vmatprep.subr.bf16.mxu0 0
      %2042 = vmatpush2.bf16.msra.mxu0 0
      %2043 = vmatprep.subr.bf16.mxu0 0
      %2044 = vmatpush2.bf16.msra.mxu0 0
      %2045 = vmatprep.subr.bf16.mxu0 0
      %2046 = vmatpush2.bf16.msra.mxu0 0
      %2047 = vmatprep.subr.bf16.mxu0 0
      %2048 = vmatpush2.bf16.msra.mxu0 0
      %2049 = vmatprep.mubr.bf16.mxu0 0
      %2050 = vmatmul.mubr.bf16.gmra.mxu0 %v1953
      %v2051 = vpop.f32.mrf.mxu0
      %v2052 = vadd.f32 0.0, %v2051
      %v2053 = vpop.f32.mrf.mxu0
      %v2054 = vpop.f32.mrf.mxu0
      %v2055 = vadd.f32 0.0, %v2054
      %v2056 = vpop.f32.mrf.mxu0
      %2057 = vmatprep.mubr.bf16.mxu0 0
      %2058 = vmatmul.mubr.bf16.gmra.mxu0 %v1954
      %v2059 = vpop.f32.mrf.mxu0
      %v2060 = vadd.f32 0.0, %v2059
      %v2061 = vpop.f32.mrf.mxu0
      %v2062 = vpop.f32.mrf.mxu0
      %v2063 = vadd.f32 0.0, %v2062
      %v2064 = vpop.f32.mrf.mxu0
      %2065 = vmatprep.mubr.bf16.mxu0 0
      %2066 = vmatmul.mubr.bf16.gmra.mxu0 %v1955
      %v2067 = vpop.f32.mrf.mxu0
      %v2068 = vadd.f32 0.0, %v2067
      %v2069 = vpop.f32.mrf.mxu0
      %v2070 = vpop.f32.mrf.mxu0
      %v2071 = vadd.f32 0.0, %v2070
      %v2072 = vpop.f32.mrf.mxu0
      %2073 = vmatprep.mubr.bf16.mxu0 0
      %2074 = vmatmul.mubr.bf16.gmra.mxu0 %v1956
      %v2075 = vpop.f32.mrf.mxu0
      %v2076 = vadd.f32 0.0, %v2075
      %v2077 = vpop.f32.mrf.mxu0
      %v2078 = vpop.f32.mrf.mxu0
      %v2079 = vadd.f32 0.0, %v2078
      %v2080 = vpop.f32.mrf.mxu0
      %2081 = vmatprep.mubr.bf16.mxu0 0
      %2082 = vmatmul.mubr.bf16.gmra.mxu0 %v1957
      %v2083 = vpop.f32.mrf.mxu0
      %v2084 = vadd.f32 0.0, %v2083
      %v2085 = vpop.f32.mrf.mxu0
      %v2086 = vpop.f32.mrf.mxu0
      %v2087 = vadd.f32 0.0, %v2086
      %v2088 = vpop.f32.mrf.mxu0
      %2089 = vmatprep.mubr.bf16.mxu0 0
      %2090 = vmatmul.mubr.bf16.gmra.mxu0 %v1958
      %v2091 = vpop.f32.mrf.mxu0
      %v2092 = vadd.f32 0.0, %v2091
      %v2093 = vpop.f32.mrf.mxu0
      %v2094 = vpop.f32.mrf.mxu0
      %v2095 = vadd.f32 0.0, %v2094
      %v2096 = vpop.f32.mrf.mxu0
      %2097 = vmatprep.mubr.bf16.mxu0 0
      %2098 = vmatmul.mubr.bf16.gmra.mxu0 %v1959
      %v2099 = vpop.f32.mrf.mxu0
      %v2100 = vadd.f32 0.0, %v2099
      %v2101 = vpop.f32.mrf.mxu0
      %v2102 = vpop.f32.mrf.mxu0
      %v2103 = vadd.f32 0.0, %v2102
      %v2104 = vpop.f32.mrf.mxu0
      %2105 = vmatprep.mubr.bf16.mxu0 0
      %2106 = vmatmul.mubr.bf16.gmra.mxu0 %v1960
      %v2107 = vpop.f32.mrf.mxu0
      %v2108 = vadd.f32 0.0, %v2107
      %v2109 = vpop.f32.mrf.mxu0
      %v2110 = vpop.f32.mrf.mxu0
      %v2111 = vadd.f32 0.0, %v2110
      %v2112 = vpop.f32.mrf.mxu0
      %2113 = vdwg.mxu0
      %v2114 = vadd.f32 %v1655, %v2052
      %v2115 = vadd.f32 %v1658, %v2055
      %v2116 = vadd.f32 %v1663, %v2060
      %v2117 = vadd.f32 %v1666, %v2063
      %v2118 = vadd.f32 %v1671, %v2068
      %v2119 = vadd.f32 %v1674, %v2071
      %v2120 = vadd.f32 %v1679, %v2076
      %v2121 = vadd.f32 %v1682, %v2079
      %v2122 = vadd.f32 %v1687, %v2084
      %v2123 = vadd.f32 %v1690, %v2087
      %v2124 = vadd.f32 %v1695, %v2092
      %v2125 = vadd.f32 %v1698, %v2095
      %v2126 = vadd.f32 %v1703, %v2100
      %v2127 = vadd.f32 %v1706, %v2103
      %v2128 = vadd.f32 %v1711, %v2108
      %v2129 = vadd.f32 %v1714, %v2111
      %v2130 = vld [vmem:[%s433] sm:$0xf]
      %v2131 = vld [vmem:[%s433 + $0x4] sm:$0xf]
      %v2132 = vld [vmem:[%s433 + $0x8] sm:$0x1]
      %v2133 = vld [vmem:[%s433 + $0xc] sm:$0xf]
      %v2134 = vld [vmem:[%s433 + $0x10] sm:$0xf]
      %v2135 = vld [vmem:[%s433 + $0x14] sm:$0x1]
      %v2136 = vld [vmem:[%s433 + $0x18] sm:$0xf]
      %v2137 = vld [vmem:[%s433 + $0x1c] sm:$0xf]
      %v2138 = vld [vmem:[%s433 + $0x20] sm:$0x1]
      %v2139 = vld [vmem:[%s433 + $0x24] sm:$0xf]
      %v2140 = vld [vmem:[%s433 + $0x28] sm:$0xf]
      %v2141 = vld [vmem:[%s433 + $0x2c] sm:$0x1]
      %v2142 = vld [vmem:[%s433 + $0x30] sm:$0xf]
      %v2143 = vld [vmem:[%s433 + $0x34] sm:$0xf]
      %v2144 = vld [vmem:[%s433 + $0x38] sm:$0x1]
      %v2145 = vld [vmem:[%s433 + $0x3c] sm:$0xf]
      %v2146 = vld [vmem:[%s433 + $0x40] sm:$0xf]
      %v2147 = vld [vmem:[%s433 + $0x44] sm:$0x1]
      %v2148 = vld [vmem:[%s433 + $0x48] sm:$0xf]
      %v2149 = vld [vmem:[%s433 + $0x4c] sm:$0xf]
      %v2150 = vld [vmem:[%s433 + $0x50] sm:$0x1]
      %v2151 = vld [vmem:[%s433 + $0x54] sm:$0xf]
      %v2152 = vld [vmem:[%s433 + $0x58] sm:$0xf]
      %v2153 = vld [vmem:[%s433 + $0x5c] sm:$0x1]
      %v2155 = vshrl.u32 %v2130, 16
      %v2157 = vrot.slane %v2155, 4
      %v2158 = vshll.u32 %v2130, 16
      %v2160 = vrot.slane %v2158, 5
      %v2161 = vor.u32 %v2157, %v2160
      %v2162 = vrot.slane %v2161, 4
      %v2164 = vshll.u32 %v2131, 16
      %v2166 = vrot.slane %v2164, 5
      %v2167 = vsel %vm937, %v2162, %v2166
      %v2168 = vshrl.u32 %v2131, 16
      %v2170 = vrot.slane %v2168, 4
      %v2171 = vor.u32 %v2170, %v2166
      %v2172 = vrot.slane %v2171, 4
      %v2174 = vshll.u32 %v2132, 16
      %v2176 = vrot.slane %v2174, 5
      %v2177 = vsel %vm937, %v2172, %v2176
      %v2179 = vshrl.u32 %v2133, 16
      %v2181 = vrot.slane %v2179, 4
      %v2182 = vshll.u32 %v2133, 16
      %v2184 = vrot.slane %v2182, 5
      %v2185 = vor.u32 %v2181, %v2184
      %v2186 = vrot.slane %v2185, 4
      %v2188 = vshll.u32 %v2134, 16
      %v2190 = vrot.slane %v2188, 5
      %v2191 = vsel %vm937, %v2186, %v2190
      %v2192 = vshrl.u32 %v2134, 16
      %v2194 = vrot.slane %v2192, 4
      %v2195 = vor.u32 %v2194, %v2190
      %v2196 = vrot.slane %v2195, 4
      %v2198 = vshll.u32 %v2135, 16
      %v2200 = vrot.slane %v2198, 5
      %v2201 = vsel %vm937, %v2196, %v2200
      %v2203 = vshrl.u32 %v2136, 16
      %v2205 = vrot.slane %v2203, 4
      %v2206 = vshll.u32 %v2136, 16
      %v2208 = vrot.slane %v2206, 5
      %v2209 = vor.u32 %v2205, %v2208
      %v2210 = vrot.slane %v2209, 4
      %v2212 = vshll.u32 %v2137, 16
      %v2214 = vrot.slane %v2212, 5
      %v2215 = vsel %vm937, %v2210, %v2214
      %v2216 = vshrl.u32 %v2137, 16
      %v2218 = vrot.slane %v2216, 4
      %v2219 = vor.u32 %v2218, %v2214
      %v2220 = vrot.slane %v2219, 4
      %v2222 = vshll.u32 %v2138, 16
      %v2224 = vrot.slane %v2222, 5
      %v2225 = vsel %vm937, %v2220, %v2224
      %v2227 = vshrl.u32 %v2139, 16
      %v2229 = vrot.slane %v2227, 4
      %v2230 = vshll.u32 %v2139, 16
      %v2232 = vrot.slane %v2230, 5
      %v2233 = vor.u32 %v2229, %v2232
      %v2234 = vrot.slane %v2233, 4
      %v2236 = vshll.u32 %v2140, 16
      %v2238 = vrot.slane %v2236, 5
      %v2239 = vsel %vm937, %v2234, %v2238
      %v2240 = vshrl.u32 %v2140, 16
      %v2242 = vrot.slane %v2240, 4
      %v2243 = vor.u32 %v2242, %v2238
      %v2244 = vrot.slane %v2243, 4
      %v2246 = vshll.u32 %v2141, 16
      %v2248 = vrot.slane %v2246, 5
      %v2249 = vsel %vm937, %v2244, %v2248
      %v2251 = vshrl.u32 %v2142, 16
      %v2253 = vrot.slane %v2251, 4
      %v2254 = vshll.u32 %v2142, 16
      %v2256 = vrot.slane %v2254, 5
      %v2257 = vor.u32 %v2253, %v2256
      %v2258 = vrot.slane %v2257, 4
      %v2260 = vshll.u32 %v2143, 16
      %v2262 = vrot.slane %v2260, 5
      %v2263 = vsel %vm937, %v2258, %v2262
      %v2264 = vshrl.u32 %v2143, 16
      %v2266 = vrot.slane %v2264, 4
      %v2267 = vor.u32 %v2266, %v2262
      %v2268 = vrot.slane %v2267, 4
      %v2270 = vshll.u32 %v2144, 16
      %v2272 = vrot.slane %v2270, 5
      %v2273 = vsel %vm937, %v2268, %v2272
      %v2275 = vshrl.u32 %v2145, 16
      %v2277 = vrot.slane %v2275, 4
      %v2278 = vshll.u32 %v2145, 16
      %v2280 = vrot.slane %v2278, 5
      %v2281 = vor.u32 %v2277, %v2280
      %v2282 = vrot.slane %v2281, 4
      %v2284 = vshll.u32 %v2146, 16
      %v2286 = vrot.slane %v2284, 5
      %v2287 = vsel %vm937, %v2282, %v2286
      %v2288 = vshrl.u32 %v2146, 16
      %v2290 = vrot.slane %v2288, 4
      %v2291 = vor.u32 %v2290, %v2286
      %v2292 = vrot.slane %v2291, 4
      %v2294 = vshll.u32 %v2147, 16
      %v2296 = vrot.slane %v2294, 5
      %v2297 = vsel %vm937, %v2292, %v2296
      %v2299 = vshrl.u32 %v2148, 16
      %v2301 = vrot.slane %v2299, 4
      %v2302 = vshll.u32 %v2148, 16
      %v2304 = vrot.slane %v2302, 5
      %v2305 = vor.u32 %v2301, %v2304
      %v2306 = vrot.slane %v2305, 4
      %v2308 = vshll.u32 %v2149, 16
      %v2310 = vrot.slane %v2308, 5
      %v2311 = vsel %vm937, %v2306, %v2310
      %v2312 = vshrl.u32 %v2149, 16
      %v2314 = vrot.slane %v2312, 4
      %v2315 = vor.u32 %v2314, %v2310
      %v2316 = vrot.slane %v2315, 4
      %v2318 = vshll.u32 %v2150, 16
      %v2320 = vrot.slane %v2318, 5
      %v2321 = vsel %vm937, %v2316, %v2320
      %v2323 = vshrl.u32 %v2151, 16
      %v2325 = vrot.slane %v2323, 4
      %v2326 = vshll.u32 %v2151, 16
      %v2328 = vrot.slane %v2326, 5
      %v2329 = vor.u32 %v2325, %v2328
      %v2330 = vrot.slane %v2329, 4
      %v2332 = vshll.u32 %v2152, 16
      %v2334 = vrot.slane %v2332, 5
      %v2335 = vsel %vm937, %v2330, %v2334
      %v2336 = vshrl.u32 %v2152, 16
      %v2338 = vrot.slane %v2336, 4
      %v2339 = vor.u32 %v2338, %v2334
      %v2340 = vrot.slane %v2339, 4
      %v2342 = vshll.u32 %v2153, 16
      %v2344 = vrot.slane %v2342, 5
      %v2345 = vsel %vm937, %v2340, %v2344
      %s2346 = scalar_lea.vmem %s350, 192
      %v2347 = vld [vmem:[%s2346] sm:$0xf]
      %v2348 = vld [vmem:[%s2346 + $0x4] sm:$0xf]
      %v2349 = vld [vmem:[%s2346 + $0x8] sm:$0xf]
      %v2350 = vld [vmem:[%s2346 + $0xc] sm:$0xf]
      %v2351 = vld [vmem:[%s2346 + $0x10] sm:$0xf]
      %v2352 = vld [vmem:[%s2346 + $0x14] sm:$0xf]
      %v2353 = vld [vmem:[%s2346 + $0x18] sm:$0xf]
      %v2354 = vld [vmem:[%s2346 + $0x1c] sm:$0xf]
      %v2355 = vld [vmem:[%s2346 + $0x20] sm:$0xf]
      %v2356 = vld [vmem:[%s2346 + $0x24] sm:$0xf]
      %v2357 = vld [vmem:[%s2346 + $0x28] sm:$0xf]
      %v2358 = vld [vmem:[%s2346 + $0x2c] sm:$0xf]
      %v2359 = vld [vmem:[%s2346 + $0x30] sm:$0xf]
      %v2360 = vld [vmem:[%s2346 + $0x34] sm:$0xf]
      %v2361 = vld [vmem:[%s2346 + $0x38] sm:$0xf]
      %v2362 = vld [vmem:[%s2346 + $0x3c] sm:$0xf]
      %v2363 = vunpack.c.l.b16 %v2167
      %v2364 = vunpack.c.l.b16 %v2177
      %v2365 = vunpack.c.l.b16 %v2191
      %v2366 = vunpack.c.l.b16 %v2201
      %v2367 = vunpack.c.l.b16 %v2215
      %v2368 = vunpack.c.l.b16 %v2225
      %v2369 = vunpack.c.l.b16 %v2239
      %v2370 = vunpack.c.l.b16 %v2249
      %v2371 = vunpack.c.l.b16 %v2263
      %v2372 = vunpack.c.l.b16 %v2273
      %v2373 = vunpack.c.l.b16 %v2287
      %v2374 = vunpack.c.l.b16 %v2297
      %v2375 = vunpack.c.l.b16 %v2311
      %v2376 = vunpack.c.l.b16 %v2321
      %v2377 = vunpack.c.l.b16 %v2335
      %v2378 = vunpack.c.l.b16 %v2345
      %v2379 = vpack.c.b16 %v2364, %v2363
      %v2380 = vpack.c.b16 %v2366, %v2365
      %v2381 = vpack.c.b16 %v2368, %v2367
      %v2382 = vpack.c.b16 %v2370, %v2369
      %v2383 = vpack.c.b16 %v2372, %v2371
      %v2384 = vpack.c.b16 %v2374, %v2373
      %v2385 = vpack.c.b16 %v2376, %v2375
      %v2386 = vpack.c.b16 %v2378, %v2377
      %v2411 = vunpack.c.l.b16 %v2347
      %v2412 = vunpack.c.l.b16 %v2348
      %v2413 = vunpack.c.l.b16 %v2349
      %v2414 = vunpack.c.l.b16 %v2350
      %v2415 = vunpack.c.l.b16 %v2351
      %v2416 = vunpack.c.l.b16 %v2352
      %v2417 = vunpack.c.l.b16 %v2353
      %v2418 = vunpack.c.l.b16 %v2354
      %v2419 = vunpack.c.l.b16 %v2355
      %v2420 = vunpack.c.l.b16 %v2356
      %v2421 = vunpack.c.l.b16 %v2357
      %v2422 = vunpack.c.l.b16 %v2358
      %v2423 = vunpack.c.l.b16 %v2359
      %v2424 = vunpack.c.l.b16 %v2360
      %v2425 = vunpack.c.l.b16 %v2361
      %v2426 = vunpack.c.l.b16 %v2362
      %v2427 = vpack.c.b16 %v2412, %v2411
      %v2428 = vpack.c.b16 %v2414, %v2413
      %v2429 = vpack.c.b16 %v2416, %v2415
      %v2430 = vpack.c.b16 %v2418, %v2417
      %v2431 = vpack.c.b16 %v2420, %v2419
      %v2432 = vpack.c.b16 %v2422, %v2421
      %v2433 = vpack.c.b16 %v2424, %v2423
      %v2434 = vpack.c.b16 %v2426, %v2425
      %2443 = vmatprep.subr.bf16.mxu0 0
      %2444 = vmatpush1.bf16.msra.mxu0 %v2434
      %2445 = vmatprep.subr.bf16.mxu0 0
      %2446 = vmatpush1.bf16.msra.mxu0 %v2433
      %2447 = vmatprep.subr.bf16.mxu0 0
      %2448 = vmatpush1.bf16.msra.mxu0 %v2432
      %2449 = vmatprep.subr.bf16.mxu0 0
      %2450 = vmatpush1.bf16.msra.mxu0 %v2431
      %2451 = vmatprep.subr.bf16.mxu0 0
      %2452 = vmatpush1.bf16.msra.mxu0 %v2430
      %2453 = vmatprep.subr.bf16.mxu0 0
      %2454 = vmatpush1.bf16.msra.mxu0 %v2429
      %2455 = vmatprep.subr.bf16.mxu0 0
      %2456 = vmatpush1.bf16.msra.mxu0 %v2428
      %2457 = vmatprep.subr.bf16.mxu0 0
      %2458 = vmatpush1.bf16.msra.mxu0 %v2427
      %2459 = vmatprep.subr.bf16.mxu0 0
      %2460 = vmatpush2.bf16.msra.mxu0 0
      %2461 = vmatprep.subr.bf16.mxu0 0
      %2462 = vmatpush2.bf16.msra.mxu0 0
      %2463 = vmatprep.subr.bf16.mxu0 0
      %2464 = vmatpush2.bf16.msra.mxu0 0
      %2465 = vmatprep.subr.bf16.mxu0 0
      %2466 = vmatpush2.bf16.msra.mxu0 0
      %2467 = vmatprep.subr.bf16.mxu0 0
      %2468 = vmatpush2.bf16.msra.mxu0 0
      %2469 = vmatprep.subr.bf16.mxu0 0
      %2470 = vmatpush2.bf16.msra.mxu0 0
      %2471 = vmatprep.subr.bf16.mxu0 0
      %2472 = vmatpush2.bf16.msra.mxu0 0
      %2473 = vmatprep.subr.bf16.mxu0 0
      %2474 = vmatpush2.bf16.msra.mxu0 0
      %2475 = vmatprep.mubr.bf16.mxu0 0
      %2476 = vmatmul.mubr.bf16.gmra.mxu0 %v2379
      %v2477 = vpop.f32.mrf.mxu0
      %v2478 = vadd.f32 0.0, %v2477
      %v2479 = vpop.f32.mrf.mxu0
      %v2480 = vpop.f32.mrf.mxu0
      %v2481 = vadd.f32 0.0, %v2480
      %v2482 = vpop.f32.mrf.mxu0
      %2483 = vmatprep.mubr.bf16.mxu0 0
      %2484 = vmatmul.mubr.bf16.gmra.mxu0 %v2380
      %v2485 = vpop.f32.mrf.mxu0
      %v2486 = vadd.f32 0.0, %v2485
      %v2487 = vpop.f32.mrf.mxu0
      %v2488 = vpop.f32.mrf.mxu0
      %v2489 = vadd.f32 0.0, %v2488
      %v2490 = vpop.f32.mrf.mxu0
      %2491 = vmatprep.mubr.bf16.mxu0 0
      %2492 = vmatmul.mubr.bf16.gmra.mxu0 %v2381
      %v2493 = vpop.f32.mrf.mxu0
      %v2494 = vadd.f32 0.0, %v2493
      %v2495 = vpop.f32.mrf.mxu0
      %v2496 = vpop.f32.mrf.mxu0
      %v2497 = vadd.f32 0.0, %v2496
      %v2498 = vpop.f32.mrf.mxu0
      %2499 = vmatprep.mubr.bf16.mxu0 0
      %2500 = vmatmul.mubr.bf16.gmra.mxu0 %v2382
      %v2501 = vpop.f32.mrf.mxu0
      %v2502 = vadd.f32 0.0, %v2501
      %v2503 = vpop.f32.mrf.mxu0
      %v2504 = vpop.f32.mrf.mxu0
      %v2505 = vadd.f32 0.0, %v2504
      %v2506 = vpop.f32.mrf.mxu0
      %2507 = vmatprep.mubr.bf16.mxu0 0
      %2508 = vmatmul.mubr.bf16.gmra.mxu0 %v2383
      %v2509 = vpop.f32.mrf.mxu0
      %v2510 = vadd.f32 0.0, %v2509
      %v2511 = vpop.f32.mrf.mxu0
      %v2512 = vpop.f32.mrf.mxu0
      %v2513 = vadd.f32 0.0, %v2512
      %v2514 = vpop.f32.mrf.mxu0
      %2515 = vmatprep.mubr.bf16.mxu0 0
      %2516 = vmatmul.mubr.bf16.gmra.mxu0 %v2384
      %v2517 = vpop.f32.mrf.mxu0
      %v2518 = vadd.f32 0.0, %v2517
      %v2519 = vpop.f32.mrf.mxu0
      %v2520 = vpop.f32.mrf.mxu0
      %v2521 = vadd.f32 0.0, %v2520
      %v2522 = vpop.f32.mrf.mxu0
      %2523 = vmatprep.mubr.bf16.mxu0 0
      %2524 = vmatmul.mubr.bf16.gmra.mxu0 %v2385
      %v2525 = vpop.f32.mrf.mxu0
      %v2526 = vadd.f32 0.0, %v2525
      %v2527 = vpop.f32.mrf.mxu0
      %v2528 = vpop.f32.mrf.mxu0
      %v2529 = vadd.f32 0.0, %v2528
      %v2530 = vpop.f32.mrf.mxu0
      %2531 = vmatprep.mubr.bf16.mxu0 0
      %2532 = vmatmul.mubr.bf16.gmra.mxu0 %v2386
      %v2533 = vpop.f32.mrf.mxu0
      %v2534 = vadd.f32 0.0, %v2533
      %v2535 = vpop.f32.mrf.mxu0
      %v2536 = vpop.f32.mrf.mxu0
      %v2537 = vadd.f32 0.0, %v2536
      %v2538 = vpop.f32.mrf.mxu0
      %2539 = vdwg.mxu0
      %v2540 = vadd.f32 %v2114, %v2478
      %v2541 = vadd.f32 %v2115, %v2481
      %v2542 = vadd.f32 %v2116, %v2486
      %v2543 = vadd.f32 %v2117, %v2489
      %v2544 = vadd.f32 %v2118, %v2494
      %v2545 = vadd.f32 %v2119, %v2497
      %v2546 = vadd.f32 %v2120, %v2502
      %v2547 = vadd.f32 %v2121, %v2505
      %v2548 = vadd.f32 %v2122, %v2510
      %v2549 = vadd.f32 %v2123, %v2513
      %v2550 = vadd.f32 %v2124, %v2518
      %v2551 = vadd.f32 %v2125, %v2521
      %v2552 = vadd.f32 %v2126, %v2526
      %v2553 = vadd.f32 %v2127, %v2529
      %v2554 = vadd.f32 %v2128, %v2534
      %v2555 = vadd.f32 %v2129, %v2537
      %v2556 = vld [vmem:[%s433] sm:$0xe]
      %v2557 = vld [vmem:[%s433 + $0x8] sm:$0x3]
      %v2558 = vld [vmem:[%s433 + $0xc] sm:$0xe]
      %v2559 = vld [vmem:[%s433 + $0x14] sm:$0x3]
      %v2560 = vld [vmem:[%s433 + $0x18] sm:$0xe]
      %v2561 = vld [vmem:[%s433 + $0x20] sm:$0x3]
      %v2562 = vld [vmem:[%s433 + $0x24] sm:$0xe]
      %v2563 = vld [vmem:[%s433 + $0x2c] sm:$0x3]
      %v2564 = vld [vmem:[%s433 + $0x30] sm:$0xe]
      %v2565 = vld [vmem:[%s433 + $0x38] sm:$0x3]
      %v2566 = vld [vmem:[%s433 + $0x3c] sm:$0xe]
      %v2567 = vld [vmem:[%s433 + $0x44] sm:$0x3]
      %v2568 = vld [vmem:[%s433 + $0x48] sm:$0xe]
      %v2569 = vld [vmem:[%s433 + $0x50] sm:$0x3]
      %v2570 = vld [vmem:[%s433 + $0x54] sm:$0xe]
      %v2571 = vld [vmem:[%s433 + $0x5c] sm:$0x3]
      %v2573 = vshrl.u32 %v2556, 16
      %v2575 = vrot.slane %v2573, 5
      %v2576 = vshll.u32 %v2556, 16
      %v2578 = vrot.slane %v2576, 6
      %v2579 = vor.u32 %v2575, %v2578
      %v2580 = vrot.slane %v2579, 4
      %v2581 = vrot.slane %v2168, 5
      %v2582 = vrot.slane %v2164, 6
      %v2583 = vor.u32 %v2581, %v2582
      %v2584 = vsel %vm460, %v2580, %v2583
      %v2585 = vrot.slane %v2583, 4
      %v2587 = vshrl.u32 %v2557, 16
      %v2589 = vrot.slane %v2587, 5
      %v2590 = vshll.u32 %v2557, 16
      %v2592 = vrot.slane %v2590, 6
      %v2593 = vor.u32 %v2589, %v2592
      %v2594 = vsel %vm460, %v2585, %v2593
      %v2596 = vshrl.u32 %v2558, 16
      %v2598 = vrot.slane %v2596, 5
      %v2599 = vshll.u32 %v2558, 16
      %v2601 = vrot.slane %v2599, 6
      %v2602 = vor.u32 %v2598, %v2601
      %v2603 = vrot.slane %v2602, 4
      %v2604 = vrot.slane %v2192, 5
      %v2605 = vrot.slane %v2188, 6
      %v2606 = vor.u32 %v2604, %v2605
      %v2607 = vsel %vm460, %v2603, %v2606
      %v2608 = vrot.slane %v2606, 4
      %v2610 = vshrl.u32 %v2559, 16
      %v2612 = vrot.slane %v2610, 5
      %v2613 = vshll.u32 %v2559, 16
      %v2615 = vrot.slane %v2613, 6
      %v2616 = vor.u32 %v2612, %v2615
      %v2617 = vsel %vm460, %v2608, %v2616
      %v2619 = vshrl.u32 %v2560, 16
      %v2621 = vrot.slane %v2619, 5
      %v2622 = vshll.u32 %v2560, 16
      %v2624 = vrot.slane %v2622, 6
      %v2625 = vor.u32 %v2621, %v2624
      %v2626 = vrot.slane %v2625, 4
      %v2627 = vrot.slane %v2216, 5
      %v2628 = vrot.slane %v2212, 6
      %v2629 = vor.u32 %v2627, %v2628
      %v2630 = vsel %vm460, %v2626, %v2629
      %v2631 = vrot.slane %v2629, 4
      %v2633 = vshrl.u32 %v2561, 16
      %v2635 = vrot.slane %v2633, 5
      %v2636 = vshll.u32 %v2561, 16
      %v2638 = vrot.slane %v2636, 6
      %v2639 = vor.u32 %v2635, %v2638
      %v2640 = vsel %vm460, %v2631, %v2639
      %v2642 = vshrl.u32 %v2562, 16
      %v2644 = vrot.slane %v2642, 5
      %v2645 = vshll.u32 %v2562, 16
      %v2647 = vrot.slane %v2645, 6
      %v2648 = vor.u32 %v2644, %v2647
      %v2649 = vrot.slane %v2648, 4
      %v2650 = vrot.slane %v2240, 5
      %v2651 = vrot.slane %v2236, 6
      %v2652 = vor.u32 %v2650, %v2651
      %v2653 = vsel %vm460, %v2649, %v2652
      %v2654 = vrot.slane %v2652, 4
      %v2656 = vshrl.u32 %v2563, 16
      %v2658 = vrot.slane %v2656, 5
      %v2659 = vshll.u32 %v2563, 16
      %v2661 = vrot.slane %v2659, 6
      %v2662 = vor.u32 %v2658, %v2661
      %v2663 = vsel %vm460, %v2654, %v2662
      %v2665 = vshrl.u32 %v2564, 16
      %v2667 = vrot.slane %v2665, 5
      %v2668 = vshll.u32 %v2564, 16
      %v2670 = vrot.slane %v2668, 6
      %v2671 = vor.u32 %v2667, %v2670
      %v2672 = vrot.slane %v2671, 4
      %v2673 = vrot.slane %v2264, 5
      %v2674 = vrot.slane %v2260, 6
      %v2675 = vor.u32 %v2673, %v2674
      %v2676 = vsel %vm460, %v2672, %v2675
      %v2677 = vrot.slane %v2675, 4
      %v2679 = vshrl.u32 %v2565, 16
      %v2681 = vrot.slane %v2679, 5
      %v2682 = vshll.u32 %v2565, 16
      %v2684 = vrot.slane %v2682, 6
      %v2685 = vor.u32 %v2681, %v2684
      %v2686 = vsel %vm460, %v2677, %v2685
      %v2688 = vshrl.u32 %v2566, 16
      %v2690 = vrot.slane %v2688, 5
      %v2691 = vshll.u32 %v2566, 16
      %v2693 = vrot.slane %v2691, 6
      %v2694 = vor.u32 %v2690, %v2693
      %v2695 = vrot.slane %v2694, 4
      %v2696 = vrot.slane %v2288, 5
      %v2697 = vrot.slane %v2284, 6
      %v2698 = vor.u32 %v2696, %v2697
      %v2699 = vsel %vm460, %v2695, %v2698
      %v2700 = vrot.slane %v2698, 4
      %v2702 = vshrl.u32 %v2567, 16
      %v2704 = vrot.slane %v2702, 5
      %v2705 = vshll.u32 %v2567, 16
      %v2707 = vrot.slane %v2705, 6
      %v2708 = vor.u32 %v2704, %v2707
      %v2709 = vsel %vm460, %v2700, %v2708
      %v2711 = vshrl.u32 %v2568, 16
      %v2713 = vrot.slane %v2711, 5
      %v2714 = vshll.u32 %v2568, 16
      %v2716 = vrot.slane %v2714, 6
      %v2717 = vor.u32 %v2713, %v2716
      %v2718 = vrot.slane %v2717, 4
      %v2719 = vrot.slane %v2312, 5
      %v2720 = vrot.slane %v2308, 6
      %v2721 = vor.u32 %v2719, %v2720
      %v2722 = vsel %vm460, %v2718, %v2721
      %v2723 = vrot.slane %v2721, 4
      %v2725 = vshrl.u32 %v2569, 16
      %v2727 = vrot.slane %v2725, 5
      %v2728 = vshll.u32 %v2569, 16
      %v2730 = vrot.slane %v2728, 6
      %v2731 = vor.u32 %v2727, %v2730
      %v2732 = vsel %vm460, %v2723, %v2731
      %v2734 = vshrl.u32 %v2570, 16
      %v2736 = vrot.slane %v2734, 5
      %v2737 = vshll.u32 %v2570, 16
      %v2739 = vrot.slane %v2737, 6
      %v2740 = vor.u32 %v2736, %v2739
      %v2741 = vrot.slane %v2740, 4
      %v2742 = vrot.slane %v2336, 5
      %v2743 = vrot.slane %v2332, 6
      %v2744 = vor.u32 %v2742, %v2743
      %v2745 = vsel %vm460, %v2741, %v2744
      %v2746 = vrot.slane %v2744, 4
      %v2748 = vshrl.u32 %v2571, 16
      %v2750 = vrot.slane %v2748, 5
      %v2751 = vshll.u32 %v2571, 16
      %v2753 = vrot.slane %v2751, 6
      %v2754 = vor.u32 %v2750, %v2753
      %v2755 = vsel %vm460, %v2746, %v2754
      %s2756 = scalar_lea.vmem %s350, 256
      %v2757 = vld [vmem:[%s2756] sm:$0xf]
      %v2758 = vld [vmem:[%s2756 + $0x4] sm:$0xf]
      %v2759 = vld [vmem:[%s2756 + $0x8] sm:$0xf]
      %v2760 = vld [vmem:[%s2756 + $0xc] sm:$0xf]
      %v2761 = vld [vmem:[%s2756 + $0x10] sm:$0xf]
      %v2762 = vld [vmem:[%s2756 + $0x14] sm:$0xf]
      %v2763 = vld [vmem:[%s2756 + $0x18] sm:$0xf]
      %v2764 = vld [vmem:[%s2756 + $0x1c] sm:$0xf]
      %v2765 = vld [vmem:[%s2756 + $0x20] sm:$0xf]
      %v2766 = vld [vmem:[%s2756 + $0x24] sm:$0xf]
      %v2767 = vld [vmem:[%s2756 + $0x28] sm:$0xf]
      %v2768 = vld [vmem:[%s2756 + $0x2c] sm:$0xf]
      %v2769 = vld [vmem:[%s2756 + $0x30] sm:$0xf]
      %v2770 = vld [vmem:[%s2756 + $0x34] sm:$0xf]
      %v2771 = vld [vmem:[%s2756 + $0x38] sm:$0xf]
      %v2772 = vld [vmem:[%s2756 + $0x3c] sm:$0xf]
      %v2773 = vunpack.c.l.b16 %v2584
      %v2774 = vunpack.c.l.b16 %v2594
      %v2775 = vunpack.c.l.b16 %v2607
      %v2776 = vunpack.c.l.b16 %v2617
      %v2777 = vunpack.c.l.b16 %v2630
      %v2778 = vunpack.c.l.b16 %v2640
      %v2779 = vunpack.c.l.b16 %v2653
      %v2780 = vunpack.c.l.b16 %v2663
      %v2781 = vunpack.c.l.b16 %v2676
      %v2782 = vunpack.c.l.b16 %v2686
      %v2783 = vunpack.c.l.b16 %v2699
      %v2784 = vunpack.c.l.b16 %v2709
      %v2785 = vunpack.c.l.b16 %v2722
      %v2786 = vunpack.c.l.b16 %v2732
      %v2787 = vunpack.c.l.b16 %v2745
      %v2788 = vunpack.c.l.b16 %v2755
      %v2789 = vpack.c.b16 %v2774, %v2773
      %v2790 = vpack.c.b16 %v2776, %v2775
      %v2791 = vpack.c.b16 %v2778, %v2777
      %v2792 = vpack.c.b16 %v2780, %v2779
      %v2793 = vpack.c.b16 %v2782, %v2781
      %v2794 = vpack.c.b16 %v2784, %v2783
      %v2795 = vpack.c.b16 %v2786, %v2785
      %v2796 = vpack.c.b16 %v2788, %v2787
      %v2821 = vunpack.c.l.b16 %v2757
      %v2822 = vunpack.c.l.b16 %v2758
      %v2823 = vunpack.c.l.b16 %v2759
      %v2824 = vunpack.c.l.b16 %v2760
      %v2825 = vunpack.c.l.b16 %v2761
      %v2826 = vunpack.c.l.b16 %v2762
      %v2827 = vunpack.c.l.b16 %v2763
      %v2828 = vunpack.c.l.b16 %v2764
      %v2829 = vunpack.c.l.b16 %v2765
      %v2830 = vunpack.c.l.b16 %v2766
      %v2831 = vunpack.c.l.b16 %v2767
      %v2832 = vunpack.c.l.b16 %v2768
      %v2833 = vunpack.c.l.b16 %v2769
      %v2834 = vunpack.c.l.b16 %v2770
      %v2835 = vunpack.c.l.b16 %v2771
      %v2836 = vunpack.c.l.b16 %v2772
      %v2837 = vpack.c.b16 %v2822, %v2821
      %v2838 = vpack.c.b16 %v2824, %v2823
      %v2839 = vpack.c.b16 %v2826, %v2825
      %v2840 = vpack.c.b16 %v2828, %v2827
      %v2841 = vpack.c.b16 %v2830, %v2829
      %v2842 = vpack.c.b16 %v2832, %v2831
      %v2843 = vpack.c.b16 %v2834, %v2833
      %v2844 = vpack.c.b16 %v2836, %v2835
      %2853 = vmatprep.subr.bf16.mxu0 0
      %2854 = vmatpush1.bf16.msra.mxu0 %v2844
      %2855 = vmatprep.subr.bf16.mxu0 0
      %2856 = vmatpush1.bf16.msra.mxu0 %v2843
      %2857 = vmatprep.subr.bf16.mxu0 0
      %2858 = vmatpush1.bf16.msra.mxu0 %v2842
      %2859 = vmatprep.subr.bf16.mxu0 0
      %2860 = vmatpush1.bf16.msra.mxu0 %v2841
      %2861 = vmatprep.subr.bf16.mxu0 0
      %2862 = vmatpush1.bf16.msra.mxu0 %v2840
      %2863 = vmatprep.subr.bf16.mxu0 0
      %2864 = vmatpush1.bf16.msra.mxu0 %v2839
      %2865 = vmatprep.subr.bf16.mxu0 0
      %2866 = vmatpush1.bf16.msra.mxu0 %v2838
      %2867 = vmatprep.subr.bf16.mxu0 0
      %2868 = vmatpush1.bf16.msra.mxu0 %v2837
      %2869 = vmatprep.subr.bf16.mxu0 0
      %2870 = vmatpush2.bf16.msra.mxu0 0
      %2871 = vmatprep.subr.bf16.mxu0 0
      %2872 = vmatpush2.bf16.msra.mxu0 0
      %2873 = vmatprep.subr.bf16.mxu0 0
      %2874 = vmatpush2.bf16.msra.mxu0 0
      %2875 = vmatprep.subr.bf16.mxu0 0
      %2876 = vmatpush2.bf16.msra.mxu0 0
      %2877 = vmatprep.subr.bf16.mxu0 0
      %2878 = vmatpush2.bf16.msra.mxu0 0
      %2879 = vmatprep.subr.bf16.mxu0 0
      %2880 = vmatpush2.bf16.msra.mxu0 0
      %2881 = vmatprep.subr.bf16.mxu0 0
      %2882 = vmatpush2.bf16.msra.mxu0 0
      %2883 = vmatprep.subr.bf16.mxu0 0
      %2884 = vmatpush2.bf16.msra.mxu0 0
      %2885 = vmatprep.mubr.bf16.mxu0 0
      %2886 = vmatmul.mubr.bf16.gmra.mxu0 %v2789
      %v2887 = vpop.f32.mrf.mxu0
      %v2888 = vadd.f32 0.0, %v2887
      %v2889 = vpop.f32.mrf.mxu0
      %v2890 = vpop.f32.mrf.mxu0
      %v2891 = vadd.f32 0.0, %v2890
      %v2892 = vpop.f32.mrf.mxu0
      %2893 = vmatprep.mubr.bf16.mxu0 0
      %2894 = vmatmul.mubr.bf16.gmra.mxu0 %v2790
      %v2895 = vpop.f32.mrf.mxu0
      %v2896 = vadd.f32 0.0, %v2895
      %v2897 = vpop.f32.mrf.mxu0
      %v2898 = vpop.f32.mrf.mxu0
      %v2899 = vadd.f32 0.0, %v2898
      %v2900 = vpop.f32.mrf.mxu0
      %2901 = vmatprep.mubr.bf16.mxu0 0
      %2902 = vmatmul.mubr.bf16.gmra.mxu0 %v2791
      %v2903 = vpop.f32.mrf.mxu0
      %v2904 = vadd.f32 0.0, %v2903
      %v2905 = vpop.f32.mrf.mxu0
      %v2906 = vpop.f32.mrf.mxu0
      %v2907 = vadd.f32 0.0, %v2906
      %v2908 = vpop.f32.mrf.mxu0
      %2909 = vmatprep.mubr.bf16.mxu0 0
      %2910 = vmatmul.mubr.bf16.gmra.mxu0 %v2792
      %v2911 = vpop.f32.mrf.mxu0
      %v2912 = vadd.f32 0.0, %v2911
      %v2913 = vpop.f32.mrf.mxu0
      %v2914 = vpop.f32.mrf.mxu0
      %v2915 = vadd.f32 0.0, %v2914
      %v2916 = vpop.f32.mrf.mxu0
      %2917 = vmatprep.mubr.bf16.mxu0 0
      %2918 = vmatmul.mubr.bf16.gmra.mxu0 %v2793
      %v2919 = vpop.f32.mrf.mxu0
      %v2920 = vadd.f32 0.0, %v2919
      %v2921 = vpop.f32.mrf.mxu0
      %v2922 = vpop.f32.mrf.mxu0
      %v2923 = vadd.f32 0.0, %v2922
      %v2924 = vpop.f32.mrf.mxu0
      %2925 = vmatprep.mubr.bf16.mxu0 0
      %2926 = vmatmul.mubr.bf16.gmra.mxu0 %v2794
      %v2927 = vpop.f32.mrf.mxu0
      %v2928 = vadd.f32 0.0, %v2927
      %v2929 = vpop.f32.mrf.mxu0
      %v2930 = vpop.f32.mrf.mxu0
      %v2931 = vadd.f32 0.0, %v2930
      %v2932 = vpop.f32.mrf.mxu0
      %2933 = vmatprep.mubr.bf16.mxu0 0
      %2934 = vmatmul.mubr.bf16.gmra.mxu0 %v2795
      %v2935 = vpop.f32.mrf.mxu0
      %v2936 = vadd.f32 0.0, %v2935
      %v2937 = vpop.f32.mrf.mxu0
      %v2938 = vpop.f32.mrf.mxu0
      %v2939 = vadd.f32 0.0, %v2938
      %v2940 = vpop.f32.mrf.mxu0
      %2941 = vmatprep.mubr.bf16.mxu0 0
      %2942 = vmatmul.mubr.bf16.gmra.mxu0 %v2796
      %v2943 = vpop.f32.mrf.mxu0
      %v2944 = vadd.f32 0.0, %v2943
      %v2945 = vpop.f32.mrf.mxu0
      %v2946 = vpop.f32.mrf.mxu0
      %v2947 = vadd.f32 0.0, %v2946
      %v2948 = vpop.f32.mrf.mxu0
      %2949 = vdwg.mxu0
      %v2950 = vadd.f32 %v2540, %v2888
      %v2951 = vadd.f32 %v2541, %v2891
      %v2952 = vadd.f32 %v2542, %v2896
      %v2953 = vadd.f32 %v2543, %v2899
      %v2954 = vadd.f32 %v2544, %v2904
      %v2955 = vadd.f32 %v2545, %v2907
      %v2956 = vadd.f32 %v2546, %v2912
      %v2957 = vadd.f32 %v2547, %v2915
      %v2958 = vadd.f32 %v2548, %v2920
      %v2959 = vadd.f32 %v2549, %v2923
      %v2960 = vadd.f32 %v2550, %v2928
      %v2961 = vadd.f32 %v2551, %v2931
      %v2962 = vadd.f32 %v2552, %v2936
      %v2963 = vadd.f32 %v2553, %v2939
      %v2964 = vadd.f32 %v2554, %v2944
      %v2965 = vadd.f32 %v2555, %v2947
      %v2966 = vld [vmem:[%s433] sm:$0xc]
      %v2967 = vld [vmem:[%s433 + $0x8] sm:$0x7]
      %v2968 = vld [vmem:[%s433 + $0xc] sm:$0xc]
      %v2969 = vld [vmem:[%s433 + $0x14] sm:$0x7]
      %v2970 = vld [vmem:[%s433 + $0x18] sm:$0xc]
      %v2971 = vld [vmem:[%s433 + $0x20] sm:$0x7]
      %v2972 = vld [vmem:[%s433 + $0x24] sm:$0xc]
      %v2973 = vld [vmem:[%s433 + $0x2c] sm:$0x7]
      %v2974 = vld [vmem:[%s433 + $0x30] sm:$0xc]
      %v2975 = vld [vmem:[%s433 + $0x38] sm:$0x7]
      %v2976 = vld [vmem:[%s433 + $0x3c] sm:$0xc]
      %v2977 = vld [vmem:[%s433 + $0x44] sm:$0x7]
      %v2978 = vld [vmem:[%s433 + $0x48] sm:$0xc]
      %v2979 = vld [vmem:[%s433 + $0x50] sm:$0x7]
      %v2980 = vld [vmem:[%s433 + $0x54] sm:$0xc]
      %v2981 = vld [vmem:[%s433 + $0x5c] sm:$0x7]
      %v2983 = vshrl.u32 %v2966, 16
      %v2985 = vrot.slane %v2983, 6
      %v2986 = vshll.u32 %v2966, 16
      %v2988 = vrot.slane %v2986, 7
      %v2989 = vor.u32 %v2985, %v2988
      %v2990 = vrot.slane %v2989, 4
      %v2991 = vrot.slane %v2168, 6
      %v2992 = vrot.slane %v2164, 7
      %v2993 = vor.u32 %v2991, %v2992
      %v2994 = vsel %vm1735, %v2990, %v2993
      %v2995 = vrot.slane %v2993, 4
      %v2997 = vshrl.u32 %v2967, 16
      %v2999 = vrot.slane %v2997, 6
      %v3000 = vshll.u32 %v2967, 16
      %v3002 = vrot.slane %v3000, 7
      %v3003 = vor.u32 %v2999, %v3002
      %v3004 = vsel %vm1735, %v2995, %v3003
      %v3006 = vshrl.u32 %v2968, 16
      %v3008 = vrot.slane %v3006, 6
      %v3009 = vshll.u32 %v2968, 16
      %v3011 = vrot.slane %v3009, 7
      %v3012 = vor.u32 %v3008, %v3011
      %v3013 = vrot.slane %v3012, 4
      %v3014 = vrot.slane %v2192, 6
      %v3015 = vrot.slane %v2188, 7
      %v3016 = vor.u32 %v3014, %v3015
      %v3017 = vsel %vm1735, %v3013, %v3016
      %v3018 = vrot.slane %v3016, 4
      %v3020 = vshrl.u32 %v2969, 16
      %v3022 = vrot.slane %v3020, 6
      %v3023 = vshll.u32 %v2969, 16
      %v3025 = vrot.slane %v3023, 7
      %v3026 = vor.u32 %v3022, %v3025
      %v3027 = vsel %vm1735, %v3018, %v3026
      %v3029 = vshrl.u32 %v2970, 16
      %v3031 = vrot.slane %v3029, 6
      %v3032 = vshll.u32 %v2970, 16
      %v3034 = vrot.slane %v3032, 7
      %v3035 = vor.u32 %v3031, %v3034
      %v3036 = vrot.slane %v3035, 4
      %v3037 = vrot.slane %v2216, 6
      %v3038 = vrot.slane %v2212, 7
      %v3039 = vor.u32 %v3037, %v3038
      %v3040 = vsel %vm1735, %v3036, %v3039
      %v3041 = vrot.slane %v3039, 4
      %v3043 = vshrl.u32 %v2971, 16
      %v3045 = vrot.slane %v3043, 6
      %v3046 = vshll.u32 %v2971, 16
      %v3048 = vrot.slane %v3046, 7
      %v3049 = vor.u32 %v3045, %v3048
      %v3050 = vsel %vm1735, %v3041, %v3049
      %v3052 = vshrl.u32 %v2972, 16
      %v3054 = vrot.slane %v3052, 6
      %v3055 = vshll.u32 %v2972, 16
      %v3057 = vrot.slane %v3055, 7
      %v3058 = vor.u32 %v3054, %v3057
      %v3059 = vrot.slane %v3058, 4
      %v3060 = vrot.slane %v2240, 6
      %v3061 = vrot.slane %v2236, 7
      %v3062 = vor.u32 %v3060, %v3061
      %v3063 = vsel %vm1735, %v3059, %v3062
      %v3064 = vrot.slane %v3062, 4
      %v3066 = vshrl.u32 %v2973, 16
      %v3068 = vrot.slane %v3066, 6
      %v3069 = vshll.u32 %v2973, 16
      %v3071 = vrot.slane %v3069, 7
      %v3072 = vor.u32 %v3068, %v3071
      %v3073 = vsel %vm1735, %v3064, %v3072
      %v3075 = vshrl.u32 %v2974, 16
      %v3077 = vrot.slane %v3075, 6
      %v3078 = vshll.u32 %v2974, 16
      %v3080 = vrot.slane %v3078, 7
      %v3081 = vor.u32 %v3077, %v3080
      %v3082 = vrot.slane %v3081, 4
      %v3083 = vrot.slane %v2264, 6
      %v3084 = vrot.slane %v2260, 7
      %v3085 = vor.u32 %v3083, %v3084
      %v3086 = vsel %vm1735, %v3082, %v3085
      %v3087 = vrot.slane %v3085, 4
      %v3089 = vshrl.u32 %v2975, 16
      %v3091 = vrot.slane %v3089, 6
      %v3092 = vshll.u32 %v2975, 16
      %v3094 = vrot.slane %v3092, 7
      %v3095 = vor.u32 %v3091, %v3094
      %v3096 = vsel %vm1735, %v3087, %v3095
      %v3098 = vshrl.u32 %v2976, 16
      %v3100 = vrot.slane %v3098, 6
      %v3101 = vshll.u32 %v2976, 16
      %v3103 = vrot.slane %v3101, 7
      %v3104 = vor.u32 %v3100, %v3103
      %v3105 = vrot.slane %v3104, 4
      %v3106 = vrot.slane %v2288, 6
      %v3107 = vrot.slane %v2284, 7
      %v3108 = vor.u32 %v3106, %v3107
      %v3109 = vsel %vm1735, %v3105, %v3108
      %v3110 = vrot.slane %v3108, 4
      %v3112 = vshrl.u32 %v2977, 16
      %v3114 = vrot.slane %v3112, 6
      %v3115 = vshll.u32 %v2977, 16
      %v3117 = vrot.slane %v3115, 7
      %v3118 = vor.u32 %v3114, %v3117
      %v3119 = vsel %vm1735, %v3110, %v3118
      %v3121 = vshrl.u32 %v2978, 16
      %v3123 = vrot.slane %v3121, 6
      %v3124 = vshll.u32 %v2978, 16
      %v3126 = vrot.slane %v3124, 7
      %v3127 = vor.u32 %v3123, %v3126
      %v3128 = vrot.slane %v3127, 4
      %v3129 = vrot.slane %v2312, 6
      %v3130 = vrot.slane %v2308, 7
      %v3131 = vor.u32 %v3129, %v3130
      %v3132 = vsel %vm1735, %v3128, %v3131
      %v3133 = vrot.slane %v3131, 4
      %v3135 = vshrl.u32 %v2979, 16
      %v3137 = vrot.slane %v3135, 6
      %v3138 = vshll.u32 %v2979, 16
      %v3140 = vrot.slane %v3138, 7
      %v3141 = vor.u32 %v3137, %v3140
      %v3142 = vsel %vm1735, %v3133, %v3141
      %v3144 = vshrl.u32 %v2980, 16
      %v3146 = vrot.slane %v3144, 6
      %v3147 = vshll.u32 %v2980, 16
      %v3149 = vrot.slane %v3147, 7
      %v3150 = vor.u32 %v3146, %v3149
      %v3151 = vrot.slane %v3150, 4
      %v3152 = vrot.slane %v2336, 6
      %v3153 = vrot.slane %v2332, 7
      %v3154 = vor.u32 %v3152, %v3153
      %v3155 = vsel %vm1735, %v3151, %v3154
      %v3156 = vrot.slane %v3154, 4
      %v3158 = vshrl.u32 %v2981, 16
      %v3160 = vrot.slane %v3158, 6
      %v3161 = vshll.u32 %v2981, 16
      %v3163 = vrot.slane %v3161, 7
      %v3164 = vor.u32 %v3160, %v3163
      %v3165 = vsel %vm1735, %v3156, %v3164
      %s3166 = scalar_lea.vmem %s350, 320
      %v3167 = vld [vmem:[%s3166] sm:$0xf]
      %v3168 = vld [vmem:[%s3166 + $0x4] sm:$0xf]
      %v3169 = vld [vmem:[%s3166 + $0x8] sm:$0xf]
      %v3170 = vld [vmem:[%s3166 + $0xc] sm:$0xf]
      %v3171 = vld [vmem:[%s3166 + $0x10] sm:$0xf]
      %v3172 = vld [vmem:[%s3166 + $0x14] sm:$0xf]
      %v3173 = vld [vmem:[%s3166 + $0x18] sm:$0xf]
      %v3174 = vld [vmem:[%s3166 + $0x1c] sm:$0xf]
      %v3175 = vld [vmem:[%s3166 + $0x20] sm:$0xf]
      %v3176 = vld [vmem:[%s3166 + $0x24] sm:$0xf]
      %v3177 = vld [vmem:[%s3166 + $0x28] sm:$0xf]
      %v3178 = vld [vmem:[%s3166 + $0x2c] sm:$0xf]
      %v3179 = vld [vmem:[%s3166 + $0x30] sm:$0xf]
      %v3180 = vld [vmem:[%s3166 + $0x34] sm:$0xf]
      %v3181 = vld [vmem:[%s3166 + $0x38] sm:$0xf]
      %v3182 = vld [vmem:[%s3166 + $0x3c] sm:$0xf]
      %v3183 = vunpack.c.l.b16 %v2994
      %v3184 = vunpack.c.l.b16 %v3004
      %v3185 = vunpack.c.l.b16 %v3017
      %v3186 = vunpack.c.l.b16 %v3027
      %v3187 = vunpack.c.l.b16 %v3040
      %v3188 = vunpack.c.l.b16 %v3050
      %v3189 = vunpack.c.l.b16 %v3063
      %v3190 = vunpack.c.l.b16 %v3073
      %v3191 = vunpack.c.l.b16 %v3086
      %v3192 = vunpack.c.l.b16 %v3096
      %v3193 = vunpack.c.l.b16 %v3109
      %v3194 = vunpack.c.l.b16 %v3119
      %v3195 = vunpack.c.l.b16 %v3132
      %v3196 = vunpack.c.l.b16 %v3142
      %v3197 = vunpack.c.l.b16 %v3155
      %v3198 = vunpack.c.l.b16 %v3165
      %v3199 = vpack.c.b16 %v3184, %v3183
      %v3200 = vpack.c.b16 %v3186, %v3185
      %v3201 = vpack.c.b16 %v3188, %v3187
      %v3202 = vpack.c.b16 %v3190, %v3189
      %v3203 = vpack.c.b16 %v3192, %v3191
      %v3204 = vpack.c.b16 %v3194, %v3193
      %v3205 = vpack.c.b16 %v3196, %v3195
      %v3206 = vpack.c.b16 %v3198, %v3197
      %v3231 = vunpack.c.l.b16 %v3167
      %v3232 = vunpack.c.l.b16 %v3168
      %v3233 = vunpack.c.l.b16 %v3169
      %v3234 = vunpack.c.l.b16 %v3170
      %v3235 = vunpack.c.l.b16 %v3171
      %v3236 = vunpack.c.l.b16 %v3172
      %v3237 = vunpack.c.l.b16 %v3173
      %v3238 = vunpack.c.l.b16 %v3174
      %v3239 = vunpack.c.l.b16 %v3175
      %v3240 = vunpack.c.l.b16 %v3176
      %v3241 = vunpack.c.l.b16 %v3177
      %v3242 = vunpack.c.l.b16 %v3178
      %v3243 = vunpack.c.l.b16 %v3179
      %v3244 = vunpack.c.l.b16 %v3180
      %v3245 = vunpack.c.l.b16 %v3181
      %v3246 = vunpack.c.l.b16 %v3182
      %v3247 = vpack.c.b16 %v3232, %v3231
      %v3248 = vpack.c.b16 %v3234, %v3233
      %v3249 = vpack.c.b16 %v3236, %v3235
      %v3250 = vpack.c.b16 %v3238, %v3237
      %v3251 = vpack.c.b16 %v3240, %v3239
      %v3252 = vpack.c.b16 %v3242, %v3241
      %v3253 = vpack.c.b16 %v3244, %v3243
      %v3254 = vpack.c.b16 %v3246, %v3245
      %3263 = vmatprep.subr.bf16.mxu0 0
      %3264 = vmatpush1.bf16.msra.mxu0 %v3254
      %3265 = vmatprep.subr.bf16.mxu0 0
      %3266 = vmatpush1.bf16.msra.mxu0 %v3253
      %3267 = vmatprep.subr.bf16.mxu0 0
      %3268 = vmatpush1.bf16.msra.mxu0 %v3252
      %3269 = vmatprep.subr.bf16.mxu0 0
      %3270 = vmatpush1.bf16.msra.mxu0 %v3251
      %3271 = vmatprep.subr.bf16.mxu0 0
      %3272 = vmatpush1.bf16.msra.mxu0 %v3250
      %3273 = vmatprep.subr.bf16.mxu0 0
      %3274 = vmatpush1.bf16.msra.mxu0 %v3249
      %3275 = vmatprep.subr.bf16.mxu0 0
      %3276 = vmatpush1.bf16.msra.mxu0 %v3248
      %3277 = vmatprep.subr.bf16.mxu0 0
      %3278 = vmatpush1.bf16.msra.mxu0 %v3247
      %3279 = vmatprep.subr.bf16.mxu0 0
      %3280 = vmatpush2.bf16.msra.mxu0 0
      %3281 = vmatprep.subr.bf16.mxu0 0
      %3282 = vmatpush2.bf16.msra.mxu0 0
      %3283 = vmatprep.subr.bf16.mxu0 0
      %3284 = vmatpush2.bf16.msra.mxu0 0
      %3285 = vmatprep.subr.bf16.mxu0 0
      %3286 = vmatpush2.bf16.msra.mxu0 0
      %3287 = vmatprep.subr.bf16.mxu0 0
      %3288 = vmatpush2.bf16.msra.mxu0 0
      %3289 = vmatprep.subr.bf16.mxu0 0
      %3290 = vmatpush2.bf16.msra.mxu0 0
      %3291 = vmatprep.subr.bf16.mxu0 0
      %3292 = vmatpush2.bf16.msra.mxu0 0
      %3293 = vmatprep.subr.bf16.mxu0 0
      %3294 = vmatpush2.bf16.msra.mxu0 0
      %3295 = vmatprep.mubr.bf16.mxu0 0
      %3296 = vmatmul.mubr.bf16.gmra.mxu0 %v3199
      %v3297 = vpop.f32.mrf.mxu0
      %v3298 = vadd.f32 0.0, %v3297
      %v3299 = vpop.f32.mrf.mxu0
      %v3300 = vpop.f32.mrf.mxu0
      %v3301 = vadd.f32 0.0, %v3300
      %v3302 = vpop.f32.mrf.mxu0
      %3303 = vmatprep.mubr.bf16.mxu0 0
      %3304 = vmatmul.mubr.bf16.gmra.mxu0 %v3200
      %v3305 = vpop.f32.mrf.mxu0
      %v3306 = vadd.f32 0.0, %v3305
      %v3307 = vpop.f32.mrf.mxu0
      %v3308 = vpop.f32.mrf.mxu0
      %v3309 = vadd.f32 0.0, %v3308
      %v3310 = vpop.f32.mrf.mxu0
      %3311 = vmatprep.mubr.bf16.mxu0 0
      %3312 = vmatmul.mubr.bf16.gmra.mxu0 %v3201
      %v3313 = vpop.f32.mrf.mxu0
      %v3314 = vadd.f32 0.0, %v3313
      %v3315 = vpop.f32.mrf.mxu0
      %v3316 = vpop.f32.mrf.mxu0
      %v3317 = vadd.f32 0.0, %v3316
      %v3318 = vpop.f32.mrf.mxu0
      %3319 = vmatprep.mubr.bf16.mxu0 0
      %3320 = vmatmul.mubr.bf16.gmra.mxu0 %v3202
      %v3321 = vpop.f32.mrf.mxu0
      %v3322 = vadd.f32 0.0, %v3321
      %v3323 = vpop.f32.mrf.mxu0
      %v3324 = vpop.f32.mrf.mxu0
      %v3325 = vadd.f32 0.0, %v3324
      %v3326 = vpop.f32.mrf.mxu0
      %3327 = vmatprep.mubr.bf16.mxu0 0
      %3328 = vmatmul.mubr.bf16.gmra.mxu0 %v3203
      %v3329 = vpop.f32.mrf.mxu0
      %v3330 = vadd.f32 0.0, %v3329
      %v3331 = vpop.f32.mrf.mxu0
      %v3332 = vpop.f32.mrf.mxu0
      %v3333 = vadd.f32 0.0, %v3332
      %v3334 = vpop.f32.mrf.mxu0
      %3335 = vmatprep.mubr.bf16.mxu0 0
      %3336 = vmatmul.mubr.bf16.gmra.mxu0 %v3204
      %v3337 = vpop.f32.mrf.mxu0
      %v3338 = vadd.f32 0.0, %v3337
      %v3339 = vpop.f32.mrf.mxu0
      %v3340 = vpop.f32.mrf.mxu0
      %v3341 = vadd.f32 0.0, %v3340
      %v3342 = vpop.f32.mrf.mxu0
      %3343 = vmatprep.mubr.bf16.mxu0 0
      %3344 = vmatmul.mubr.bf16.gmra.mxu0 %v3205
      %v3345 = vpop.f32.mrf.mxu0
      %v3346 = vadd.f32 0.0, %v3345
      %v3347 = vpop.f32.mrf.mxu0
      %v3348 = vpop.f32.mrf.mxu0
      %v3349 = vadd.f32 0.0, %v3348
      %v3350 = vpop.f32.mrf.mxu0
      %3351 = vmatprep.mubr.bf16.mxu0 0
      %3352 = vmatmul.mubr.bf16.gmra.mxu0 %v3206
      %v3353 = vpop.f32.mrf.mxu0
      %v3354 = vadd.f32 0.0, %v3353
      %v3355 = vpop.f32.mrf.mxu0
      %v3356 = vpop.f32.mrf.mxu0
      %v3357 = vadd.f32 0.0, %v3356
      %v3358 = vpop.f32.mrf.mxu0
      %3359 = vdwg.mxu0
      %v3360 = vadd.f32 %v2950, %v3298
      %v3361 = vadd.f32 %v2951, %v3301
      %v3362 = vadd.f32 %v2952, %v3306
      %v3363 = vadd.f32 %v2953, %v3309
      %v3364 = vadd.f32 %v2954, %v3314
      %v3365 = vadd.f32 %v2955, %v3317
      %v3366 = vadd.f32 %v2956, %v3322
      %v3367 = vadd.f32 %v2957, %v3325
      %v3368 = vadd.f32 %v2958, %v3330
      %v3369 = vadd.f32 %v2959, %v3333
      %v3370 = vadd.f32 %v2960, %v3338
      %v3371 = vadd.f32 %v2961, %v3341
      %v3372 = vadd.f32 %v2962, %v3346
      %v3373 = vadd.f32 %v2963, %v3349
      %v3374 = vadd.f32 %v2964, %v3354
      %v3375 = vadd.f32 %v2965, %v3357
      %s3376 = scalar_lea.vmem %s339, 60
      %v3377 = vld [vmem:[%s3376] sm:$0xf]
      %v3378 = vld [vmem:[%s3376 + $0x4] sm:$0xf]
      %v3379 = vld [vmem:[%s3376 + $0x8] sm:$0x1]
      %v3380 = vld [vmem:[%s3376 + $0xc] sm:$0xf]
      %v3381 = vld [vmem:[%s3376 + $0x10] sm:$0xf]
      %v3382 = vld [vmem:[%s3376 + $0x14] sm:$0x1]
      %v3383 = vld [vmem:[%s3376 + $0x18] sm:$0xf]
      %v3384 = vld [vmem:[%s3376 + $0x1c] sm:$0xf]
      %v3385 = vld [vmem:[%s3376 + $0x20] sm:$0x1]
      %v3386 = vld [vmem:[%s3376 + $0x24] sm:$0xf]
      %v3387 = vld [vmem:[%s3376 + $0x28] sm:$0xf]
      %v3388 = vld [vmem:[%s3376 + $0x2c] sm:$0x1]
      %v3389 = vld [vmem:[%s3376 + $0x30] sm:$0xf]
      %v3390 = vld [vmem:[%s3376 + $0x34] sm:$0xf]
      %v3391 = vld [vmem:[%s3376 + $0x38] sm:$0x1]
      %v3392 = vld [vmem:[%s3376 + $0x3c] sm:$0xf]
      %v3393 = vld [vmem:[%s3376 + $0x40] sm:$0xf]
      %v3394 = vld [vmem:[%s3376 + $0x44] sm:$0x1]
      %v3395 = vld [vmem:[%s3376 + $0x48] sm:$0xf]
      %v3396 = vld [vmem:[%s3376 + $0x4c] sm:$0xf]
      %v3397 = vld [vmem:[%s3376 + $0x50] sm:$0x1]
      %v3398 = vld [vmem:[%s3376 + $0x54] sm:$0xf]
      %v3399 = vld [vmem:[%s3376 + $0x58] sm:$0xf]
      %v3400 = vld [vmem:[%s3376 + $0x5c] sm:$0x1]
      %v3402 = vshrl.u32 %v3377, 16
      %v3404 = vrot.slane %v3402, 4
      %v3405 = vshll.u32 %v3377, 16
      %v3407 = vrot.slane %v3405, 5
      %v3408 = vor.u32 %v3404, %v3407
      %v3409 = vrot.slane %v3408, 4
      %v3411 = vshll.u32 %v3378, 16
      %v3413 = vrot.slane %v3411, 5
      %v3414 = vsel %vm937, %v3409, %v3413
      %v3415 = vshrl.u32 %v3378, 16
      %v3417 = vrot.slane %v3415, 4
      %v3418 = vor.u32 %v3417, %v3413
      %v3419 = vrot.slane %v3418, 4
      %v3421 = vshll.u32 %v3379, 16
      %v3423 = vrot.slane %v3421, 5
      %v3424 = vsel %vm937, %v3419, %v3423
      %v3426 = vshrl.u32 %v3380, 16
      %v3428 = vrot.slane %v3426, 4
      %v3429 = vshll.u32 %v3380, 16
      %v3431 = vrot.slane %v3429, 5
      %v3432 = vor.u32 %v3428, %v3431
      %v3433 = vrot.slane %v3432, 4
      %v3435 = vshll.u32 %v3381, 16
      %v3437 = vrot.slane %v3435, 5
      %v3438 = vsel %vm937, %v3433, %v3437
      %v3439 = vshrl.u32 %v3381, 16
      %v3441 = vrot.slane %v3439, 4
      %v3442 = vor.u32 %v3441, %v3437
      %v3443 = vrot.slane %v3442, 4
      %v3445 = vshll.u32 %v3382, 16
      %v3447 = vrot.slane %v3445, 5
      %v3448 = vsel %vm937, %v3443, %v3447
      %v3450 = vshrl.u32 %v3383, 16
      %v3452 = vrot.slane %v3450, 4
      %v3453 = vshll.u32 %v3383, 16
      %v3455 = vrot.slane %v3453, 5
      %v3456 = vor.u32 %v3452, %v3455
      %v3457 = vrot.slane %v3456, 4
      %v3459 = vshll.u32 %v3384, 16
      %v3461 = vrot.slane %v3459, 5
      %v3462 = vsel %vm937, %v3457, %v3461
      %v3463 = vshrl.u32 %v3384, 16
      %v3465 = vrot.slane %v3463, 4
      %v3466 = vor.u32 %v3465, %v3461
      %v3467 = vrot.slane %v3466, 4
      %v3469 = vshll.u32 %v3385, 16
      %v3471 = vrot.slane %v3469, 5
      %v3472 = vsel %vm937, %v3467, %v3471
      %v3474 = vshrl.u32 %v3386, 16
      %v3476 = vrot.slane %v3474, 4
      %v3477 = vshll.u32 %v3386, 16
      %v3479 = vrot.slane %v3477, 5
      %v3480 = vor.u32 %v3476, %v3479
      %v3481 = vrot.slane %v3480, 4
      %v3483 = vshll.u32 %v3387, 16
      %v3485 = vrot.slane %v3483, 5
      %v3486 = vsel %vm937, %v3481, %v3485
      %v3487 = vshrl.u32 %v3387, 16
      %v3489 = vrot.slane %v3487, 4
      %v3490 = vor.u32 %v3489, %v3485
      %v3491 = vrot.slane %v3490, 4
      %v3493 = vshll.u32 %v3388, 16
      %v3495 = vrot.slane %v3493, 5
      %v3496 = vsel %vm937, %v3491, %v3495
      %v3498 = vshrl.u32 %v3389, 16
      %v3500 = vrot.slane %v3498, 4
      %v3501 = vshll.u32 %v3389, 16
      %v3503 = vrot.slane %v3501, 5
      %v3504 = vor.u32 %v3500, %v3503
      %v3505 = vrot.slane %v3504, 4
      %v3507 = vshll.u32 %v3390, 16
      %v3509 = vrot.slane %v3507, 5
      %v3510 = vsel %vm937, %v3505, %v3509
      %v3511 = vshrl.u32 %v3390, 16
      %v3513 = vrot.slane %v3511, 4
      %v3514 = vor.u32 %v3513, %v3509
      %v3515 = vrot.slane %v3514, 4
      %v3517 = vshll.u32 %v3391, 16
      %v3519 = vrot.slane %v3517, 5
      %v3520 = vsel %vm937, %v3515, %v3519
      %v3522 = vshrl.u32 %v3392, 16
      %v3524 = vrot.slane %v3522, 4
      %v3525 = vshll.u32 %v3392, 16
      %v3527 = vrot.slane %v3525, 5
      %v3528 = vor.u32 %v3524, %v3527
      %v3529 = vrot.slane %v3528, 4
      %v3531 = vshll.u32 %v3393, 16
      %v3533 = vrot.slane %v3531, 5
      %v3534 = vsel %vm937, %v3529, %v3533
      %v3535 = vshrl.u32 %v3393, 16
      %v3537 = vrot.slane %v3535, 4
      %v3538 = vor.u32 %v3537, %v3533
      %v3539 = vrot.slane %v3538, 4
      %v3541 = vshll.u32 %v3394, 16
      %v3543 = vrot.slane %v3541, 5
      %v3544 = vsel %vm937, %v3539, %v3543
      %v3546 = vshrl.u32 %v3395, 16
      %v3548 = vrot.slane %v3546, 4
      %v3549 = vshll.u32 %v3395, 16
      %v3551 = vrot.slane %v3549, 5
      %v3552 = vor.u32 %v3548, %v3551
      %v3553 = vrot.slane %v3552, 4
      %v3555 = vshll.u32 %v3396, 16
      %v3557 = vrot.slane %v3555, 5
      %v3558 = vsel %vm937, %v3553, %v3557
      %v3559 = vshrl.u32 %v3396, 16
      %v3561 = vrot.slane %v3559, 4
      %v3562 = vor.u32 %v3561, %v3557
      %v3563 = vrot.slane %v3562, 4
      %v3565 = vshll.u32 %v3397, 16
      %v3567 = vrot.slane %v3565, 5
      %v3568 = vsel %vm937, %v3563, %v3567
      %v3570 = vshrl.u32 %v3398, 16
      %v3572 = vrot.slane %v3570, 4
      %v3573 = vshll.u32 %v3398, 16
      %v3575 = vrot.slane %v3573, 5
      %v3576 = vor.u32 %v3572, %v3575
      %v3577 = vrot.slane %v3576, 4
      %v3579 = vshll.u32 %v3399, 16
      %v3581 = vrot.slane %v3579, 5
      %v3582 = vsel %vm937, %v3577, %v3581
      %v3583 = vshrl.u32 %v3399, 16
      %v3585 = vrot.slane %v3583, 4
      %v3586 = vor.u32 %v3585, %v3581
      %v3587 = vrot.slane %v3586, 4
      %v3589 = vshll.u32 %v3400, 16
      %v3591 = vrot.slane %v3589, 5
      %v3592 = vsel %vm937, %v3587, %v3591
      %s3593 = scalar_lea.vmem %s350, 384
      %v3594 = vld [vmem:[%s3593] sm:$0xf]
      %v3595 = vld [vmem:[%s3593 + $0x4] sm:$0xf]
      %v3596 = vld [vmem:[%s3593 + $0x8] sm:$0xf]
      %v3597 = vld [vmem:[%s3593 + $0xc] sm:$0xf]
      %v3598 = vld [vmem:[%s3593 + $0x10] sm:$0xf]
      %v3599 = vld [vmem:[%s3593 + $0x14] sm:$0xf]
      %v3600 = vld [vmem:[%s3593 + $0x18] sm:$0xf]
      %v3601 = vld [vmem:[%s3593 + $0x1c] sm:$0xf]
      %v3602 = vld [vmem:[%s3593 + $0x20] sm:$0xf]
      %v3603 = vld [vmem:[%s3593 + $0x24] sm:$0xf]
      %v3604 = vld [vmem:[%s3593 + $0x28] sm:$0xf]
      %v3605 = vld [vmem:[%s3593 + $0x2c] sm:$0xf]
      %v3606 = vld [vmem:[%s3593 + $0x30] sm:$0xf]
      %v3607 = vld [vmem:[%s3593 + $0x34] sm:$0xf]
      %v3608 = vld [vmem:[%s3593 + $0x38] sm:$0xf]
      %v3609 = vld [vmem:[%s3593 + $0x3c] sm:$0xf]
      %v3610 = vunpack.c.l.b16 %v3414
      %v3611 = vunpack.c.l.b16 %v3424
      %v3612 = vunpack.c.l.b16 %v3438
      %v3613 = vunpack.c.l.b16 %v3448
      %v3614 = vunpack.c.l.b16 %v3462
      %v3615 = vunpack.c.l.b16 %v3472
      %v3616 = vunpack.c.l.b16 %v3486
      %v3617 = vunpack.c.l.b16 %v3496
      %v3618 = vunpack.c.l.b16 %v3510
      %v3619 = vunpack.c.l.b16 %v3520
      %v3620 = vunpack.c.l.b16 %v3534
      %v3621 = vunpack.c.l.b16 %v3544
      %v3622 = vunpack.c.l.b16 %v3558
      %v3623 = vunpack.c.l.b16 %v3568
      %v3624 = vunpack.c.l.b16 %v3582
      %v3625 = vunpack.c.l.b16 %v3592
      %v3626 = vpack.c.b16 %v3611, %v3610
      %v3627 = vpack.c.b16 %v3613, %v3612
      %v3628 = vpack.c.b16 %v3615, %v3614
      %v3629 = vpack.c.b16 %v3617, %v3616
      %v3630 = vpack.c.b16 %v3619, %v3618
      %v3631 = vpack.c.b16 %v3621, %v3620
      %v3632 = vpack.c.b16 %v3623, %v3622
      %v3633 = vpack.c.b16 %v3625, %v3624
      %v3658 = vunpack.c.l.b16 %v3594
      %v3659 = vunpack.c.l.b16 %v3595
      %v3660 = vunpack.c.l.b16 %v3596
      %v3661 = vunpack.c.l.b16 %v3597
      %v3662 = vunpack.c.l.b16 %v3598
      %v3663 = vunpack.c.l.b16 %v3599
      %v3664 = vunpack.c.l.b16 %v3600
      %v3665 = vunpack.c.l.b16 %v3601
      %v3666 = vunpack.c.l.b16 %v3602
      %v3667 = vunpack.c.l.b16 %v3603
      %v3668 = vunpack.c.l.b16 %v3604
      %v3669 = vunpack.c.l.b16 %v3605
      %v3670 = vunpack.c.l.b16 %v3606
      %v3671 = vunpack.c.l.b16 %v3607
      %v3672 = vunpack.c.l.b16 %v3608
      %v3673 = vunpack.c.l.b16 %v3609
      %v3674 = vpack.c.b16 %v3659, %v3658
      %v3675 = vpack.c.b16 %v3661, %v3660
      %v3676 = vpack.c.b16 %v3663, %v3662
      %v3677 = vpack.c.b16 %v3665, %v3664
      %v3678 = vpack.c.b16 %v3667, %v3666
      %v3679 = vpack.c.b16 %v3669, %v3668
      %v3680 = vpack.c.b16 %v3671, %v3670
      %v3681 = vpack.c.b16 %v3673, %v3672
      %3690 = vmatprep.subr.bf16.mxu0 0
      %3691 = vmatpush1.bf16.msra.mxu0 %v3681
      %3692 = vmatprep.subr.bf16.mxu0 0
      %3693 = vmatpush1.bf16.msra.mxu0 %v3680
      %3694 = vmatprep.subr.bf16.mxu0 0
      %3695 = vmatpush1.bf16.msra.mxu0 %v3679
      %3696 = vmatprep.subr.bf16.mxu0 0
      %3697 = vmatpush1.bf16.msra.mxu0 %v3678
      %3698 = vmatprep.subr.bf16.mxu0 0
      %3699 = vmatpush1.bf16.msra.mxu0 %v3677
      %3700 = vmatprep.subr.bf16.mxu0 0
      %3701 = vmatpush1.bf16.msra.mxu0 %v3676
      %3702 = vmatprep.subr.bf16.mxu0 0
      %3703 = vmatpush1.bf16.msra.mxu0 %v3675
      %3704 = vmatprep.subr.bf16.mxu0 0
      %3705 = vmatpush1.bf16.msra.mxu0 %v3674
      %3706 = vmatprep.subr.bf16.mxu0 0
      %3707 = vmatpush2.bf16.msra.mxu0 0
      %3708 = vmatprep.subr.bf16.mxu0 0
      %3709 = vmatpush2.bf16.msra.mxu0 0
      %3710 = vmatprep.subr.bf16.mxu0 0
      %3711 = vmatpush2.bf16.msra.mxu0 0
      %3712 = vmatprep.subr.bf16.mxu0 0
      %3713 = vmatpush2.bf16.msra.mxu0 0
      %3714 = vmatprep.subr.bf16.mxu0 0
      %3715 = vmatpush2.bf16.msra.mxu0 0
      %3716 = vmatprep.subr.bf16.mxu0 0
      %3717 = vmatpush2.bf16.msra.mxu0 0
      %3718 = vmatprep.subr.bf16.mxu0 0
      %3719 = vmatpush2.bf16.msra.mxu0 0
      %3720 = vmatprep.subr.bf16.mxu0 0
      %3721 = vmatpush2.bf16.msra.mxu0 0
      %3722 = vmatprep.mubr.bf16.mxu0 0
      %3723 = vmatmul.mubr.bf16.gmra.mxu0 %v3626
      %v3724 = vpop.f32.mrf.mxu0
      %v3725 = vadd.f32 0.0, %v3724
      %v3726 = vpop.f32.mrf.mxu0
      %v3727 = vpop.f32.mrf.mxu0
      %v3728 = vadd.f32 0.0, %v3727
      %v3729 = vpop.f32.mrf.mxu0
      %3730 = vmatprep.mubr.bf16.mxu0 0
      %3731 = vmatmul.mubr.bf16.gmra.mxu0 %v3627
      %v3732 = vpop.f32.mrf.mxu0
      %v3733 = vadd.f32 0.0, %v3732
      %v3734 = vpop.f32.mrf.mxu0
      %v3735 = vpop.f32.mrf.mxu0
      %v3736 = vadd.f32 0.0, %v3735
      %v3737 = vpop.f32.mrf.mxu0
      %3738 = vmatprep.mubr.bf16.mxu0 0
      %3739 = vmatmul.mubr.bf16.gmra.mxu0 %v3628
      %v3740 = vpop.f32.mrf.mxu0
      %v3741 = vadd.f32 0.0, %v3740
      %v3742 = vpop.f32.mrf.mxu0
      %v3743 = vpop.f32.mrf.mxu0
      %v3744 = vadd.f32 0.0, %v3743
      %v3745 = vpop.f32.mrf.mxu0
      %3746 = vmatprep.mubr.bf16.mxu0 0
      %3747 = vmatmul.mubr.bf16.gmra.mxu0 %v3629
      %v3748 = vpop.f32.mrf.mxu0
      %v3749 = vadd.f32 0.0, %v3748
      %v3750 = vpop.f32.mrf.mxu0
      %v3751 = vpop.f32.mrf.mxu0
      %v3752 = vadd.f32 0.0, %v3751
      %v3753 = vpop.f32.mrf.mxu0
      %3754 = vmatprep.mubr.bf16.mxu0 0
      %3755 = vmatmul.mubr.bf16.gmra.mxu0 %v3630
      %v3756 = vpop.f32.mrf.mxu0
      %v3757 = vadd.f32 0.0, %v3756
      %v3758 = vpop.f32.mrf.mxu0
      %v3759 = vpop.f32.mrf.mxu0
      %v3760 = vadd.f32 0.0, %v3759
      %v3761 = vpop.f32.mrf.mxu0
      %3762 = vmatprep.mubr.bf16.mxu0 0
      %3763 = vmatmul.mubr.bf16.gmra.mxu0 %v3631
      %v3764 = vpop.f32.mrf.mxu0
      %v3765 = vadd.f32 0.0, %v3764
      %v3766 = vpop.f32.mrf.mxu0
      %v3767 = vpop.f32.mrf.mxu0
      %v3768 = vadd.f32 0.0, %v3767
      %v3769 = vpop.f32.mrf.mxu0
      %3770 = vmatprep.mubr.bf16.mxu0 0
      %3771 = vmatmul.mubr.bf16.gmra.mxu0 %v3632
      %v3772 = vpop.f32.mrf.mxu0
      %v3773 = vadd.f32 0.0, %v3772
      %v3774 = vpop.f32.mrf.mxu0
      %v3775 = vpop.f32.mrf.mxu0
      %v3776 = vadd.f32 0.0, %v3775
      %v3777 = vpop.f32.mrf.mxu0
      %3778 = vmatprep.mubr.bf16.mxu0 0
      %3779 = vmatmul.mubr.bf16.gmra.mxu0 %v3633
      %v3780 = vpop.f32.mrf.mxu0
      %v3781 = vadd.f32 0.0, %v3780
      %v3782 = vpop.f32.mrf.mxu0
      %v3783 = vpop.f32.mrf.mxu0
      %v3784 = vadd.f32 0.0, %v3783
      %v3785 = vpop.f32.mrf.mxu0
      %3786 = vdwg.mxu0
      %v3787 = vadd.f32 %v3360, %v3725
      %v3788 = vadd.f32 %v3361, %v3728
      %v3789 = vadd.f32 %v3362, %v3733
      %v3790 = vadd.f32 %v3363, %v3736
      %v3791 = vadd.f32 %v3364, %v3741
      %v3792 = vadd.f32 %v3365, %v3744
      %v3793 = vadd.f32 %v3366, %v3749
      %v3794 = vadd.f32 %v3367, %v3752
      %v3795 = vadd.f32 %v3368, %v3757
      %v3796 = vadd.f32 %v3369, %v3760
      %v3797 = vadd.f32 %v3370, %v3765
      %v3798 = vadd.f32 %v3371, %v3768
      %v3799 = vadd.f32 %v3372, %v3773
      %v3800 = vadd.f32 %v3373, %v3776
      %v3801 = vadd.f32 %v3374, %v3781
      %v3802 = vadd.f32 %v3375, %v3784
      %v3803 = vld [vmem:[%s3376] sm:$0xe]
      %v3804 = vld [vmem:[%s3376 + $0x8] sm:$0x3]
      %v3805 = vld [vmem:[%s3376 + $0xc] sm:$0xe]
      %v3806 = vld [vmem:[%s3376 + $0x14] sm:$0x3]
      %v3807 = vld [vmem:[%s3376 + $0x18] sm:$0xe]
      %v3808 = vld [vmem:[%s3376 + $0x20] sm:$0x3]
      %v3809 = vld [vmem:[%s3376 + $0x24] sm:$0xe]
      %v3810 = vld [vmem:[%s3376 + $0x2c] sm:$0x3]
      %v3811 = vld [vmem:[%s3376 + $0x30] sm:$0xe]
      %v3812 = vld [vmem:[%s3376 + $0x38] sm:$0x3]
      %v3813 = vld [vmem:[%s3376 + $0x3c] sm:$0xe]
      %v3814 = vld [vmem:[%s3376 + $0x44] sm:$0x3]
      %v3815 = vld [vmem:[%s3376 + $0x48] sm:$0xe]
      %v3816 = vld [vmem:[%s3376 + $0x50] sm:$0x3]
      %v3817 = vld [vmem:[%s3376 + $0x54] sm:$0xe]
      %v3818 = vld [vmem:[%s3376 + $0x5c] sm:$0x3]
      %v3820 = vshrl.u32 %v3803, 16
      %v3822 = vrot.slane %v3820, 5
      %v3823 = vshll.u32 %v3803, 16
      %v3825 = vrot.slane %v3823, 6
      %v3826 = vor.u32 %v3822, %v3825
      %v3827 = vrot.slane %v3826, 4
      %v3828 = vrot.slane %v3415, 5
      %v3829 = vrot.slane %v3411, 6
      %v3830 = vor.u32 %v3828, %v3829
      %v3831 = vsel %vm460, %v3827, %v3830
      %v3832 = vrot.slane %v3830, 4
      %v3834 = vshrl.u32 %v3804, 16
      %v3836 = vrot.slane %v3834, 5
      %v3837 = vshll.u32 %v3804, 16
      %v3839 = vrot.slane %v3837, 6
      %v3840 = vor.u32 %v3836, %v3839
      %v3841 = vsel %vm460, %v3832, %v3840
      %v3843 = vshrl.u32 %v3805, 16
      %v3845 = vrot.slane %v3843, 5
      %v3846 = vshll.u32 %v3805, 16
      %v3848 = vrot.slane %v3846, 6
      %v3849 = vor.u32 %v3845, %v3848
      %v3850 = vrot.slane %v3849, 4
      %v3851 = vrot.slane %v3439, 5
      %v3852 = vrot.slane %v3435, 6
      %v3853 = vor.u32 %v3851, %v3852
      %v3854 = vsel %vm460, %v3850, %v3853
      %v3855 = vrot.slane %v3853, 4
      %v3857 = vshrl.u32 %v3806, 16
      %v3859 = vrot.slane %v3857, 5
      %v3860 = vshll.u32 %v3806, 16
      %v3862 = vrot.slane %v3860, 6
      %v3863 = vor.u32 %v3859, %v3862
      %v3864 = vsel %vm460, %v3855, %v3863
      %v3866 = vshrl.u32 %v3807, 16
      %v3868 = vrot.slane %v3866, 5
      %v3869 = vshll.u32 %v3807, 16
      %v3871 = vrot.slane %v3869, 6
      %v3872 = vor.u32 %v3868, %v3871
      %v3873 = vrot.slane %v3872, 4
      %v3874 = vrot.slane %v3463, 5
      %v3875 = vrot.slane %v3459, 6
      %v3876 = vor.u32 %v3874, %v3875
      %v3877 = vsel %vm460, %v3873, %v3876
      %v3878 = vrot.slane %v3876, 4
      %v3880 = vshrl.u32 %v3808, 16
      %v3882 = vrot.slane %v3880, 5
      %v3883 = vshll.u32 %v3808, 16
      %v3885 = vrot.slane %v3883, 6
      %v3886 = vor.u32 %v3882, %v3885
      %v3887 = vsel %vm460, %v3878, %v3886
      %v3889 = vshrl.u32 %v3809, 16
      %v3891 = vrot.slane %v3889, 5
      %v3892 = vshll.u32 %v3809, 16
      %v3894 = vrot.slane %v3892, 6
      %v3895 = vor.u32 %v3891, %v3894
      %v3896 = vrot.slane %v3895, 4
      %v3897 = vrot.slane %v3487, 5
      %v3898 = vrot.slane %v3483, 6
      %v3899 = vor.u32 %v3897, %v3898
      %v3900 = vsel %vm460, %v3896, %v3899
      %v3901 = vrot.slane %v3899, 4
      %v3903 = vshrl.u32 %v3810, 16
      %v3905 = vrot.slane %v3903, 5
      %v3906 = vshll.u32 %v3810, 16
      %v3908 = vrot.slane %v3906, 6
      %v3909 = vor.u32 %v3905, %v3908
      %v3910 = vsel %vm460, %v3901, %v3909
      %v3912 = vshrl.u32 %v3811, 16
      %v3914 = vrot.slane %v3912, 5
      %v3915 = vshll.u32 %v3811, 16
      %v3917 = vrot.slane %v3915, 6
      %v3918 = vor.u32 %v3914, %v3917
      %v3919 = vrot.slane %v3918, 4
      %v3920 = vrot.slane %v3511, 5
      %v3921 = vrot.slane %v3507, 6
      %v3922 = vor.u32 %v3920, %v3921
      %v3923 = vsel %vm460, %v3919, %v3922
      %v3924 = vrot.slane %v3922, 4
      %v3926 = vshrl.u32 %v3812, 16
      %v3928 = vrot.slane %v3926, 5
      %v3929 = vshll.u32 %v3812, 16
      %v3931 = vrot.slane %v3929, 6
      %v3932 = vor.u32 %v3928, %v3931
      %v3933 = vsel %vm460, %v3924, %v3932
      %v3935 = vshrl.u32 %v3813, 16
      %v3937 = vrot.slane %v3935, 5
      %v3938 = vshll.u32 %v3813, 16
      %v3940 = vrot.slane %v3938, 6
      %v3941 = vor.u32 %v3937, %v3940
      %v3942 = vrot.slane %v3941, 4
      %v3943 = vrot.slane %v3535, 5
      %v3944 = vrot.slane %v3531, 6
      %v3945 = vor.u32 %v3943, %v3944
      %v3946 = vsel %vm460, %v3942, %v3945
      %v3947 = vrot.slane %v3945, 4
      %v3949 = vshrl.u32 %v3814, 16
      %v3951 = vrot.slane %v3949, 5
      %v3952 = vshll.u32 %v3814, 16
      %v3954 = vrot.slane %v3952, 6
      %v3955 = vor.u32 %v3951, %v3954
      %v3956 = vsel %vm460, %v3947, %v3955
      %v3958 = vshrl.u32 %v3815, 16
      %v3960 = vrot.slane %v3958, 5
      %v3961 = vshll.u32 %v3815, 16
      %v3963 = vrot.slane %v3961, 6
      %v3964 = vor.u32 %v3960, %v3963
      %v3965 = vrot.slane %v3964, 4
      %v3966 = vrot.slane %v3559, 5
      %v3967 = vrot.slane %v3555, 6
      %v3968 = vor.u32 %v3966, %v3967
      %v3969 = vsel %vm460, %v3965, %v3968
      %v3970 = vrot.slane %v3968, 4
      %v3972 = vshrl.u32 %v3816, 16
      %v3974 = vrot.slane %v3972, 5
      %v3975 = vshll.u32 %v3816, 16
      %v3977 = vrot.slane %v3975, 6
      %v3978 = vor.u32 %v3974, %v3977
      %v3979 = vsel %vm460, %v3970, %v3978
      %v3981 = vshrl.u32 %v3817, 16
      %v3983 = vrot.slane %v3981, 5
      %v3984 = vshll.u32 %v3817, 16
      %v3986 = vrot.slane %v3984, 6
      %v3987 = vor.u32 %v3983, %v3986
      %v3988 = vrot.slane %v3987, 4
      %v3989 = vrot.slane %v3583, 5
      %v3990 = vrot.slane %v3579, 6
      %v3991 = vor.u32 %v3989, %v3990
      %v3992 = vsel %vm460, %v3988, %v3991
      %v3993 = vrot.slane %v3991, 4
      %v3995 = vshrl.u32 %v3818, 16
      %v3997 = vrot.slane %v3995, 5
      %v3998 = vshll.u32 %v3818, 16
      %v4000 = vrot.slane %v3998, 6
      %v4001 = vor.u32 %v3997, %v4000
      %v4002 = vsel %vm460, %v3993, %v4001
      %s4003 = scalar_lea.vmem %s350, 448
      %v4004 = vld [vmem:[%s4003] sm:$0xf]
      %v4005 = vld [vmem:[%s4003 + $0x4] sm:$0xf]
      %v4006 = vld [vmem:[%s4003 + $0x8] sm:$0xf]
      %v4007 = vld [vmem:[%s4003 + $0xc] sm:$0xf]
      %v4008 = vld [vmem:[%s4003 + $0x10] sm:$0xf]
      %v4009 = vld [vmem:[%s4003 + $0x14] sm:$0xf]
      %v4010 = vld [vmem:[%s4003 + $0x18] sm:$0xf]
      %v4011 = vld [vmem:[%s4003 + $0x1c] sm:$0xf]
      %v4012 = vld [vmem:[%s4003 + $0x20] sm:$0xf]
      %v4013 = vld [vmem:[%s4003 + $0x24] sm:$0xf]
      %v4014 = vld [vmem:[%s4003 + $0x28] sm:$0xf]
      %v4015 = vld [vmem:[%s4003 + $0x2c] sm:$0xf]
      %v4016 = vld [vmem:[%s4003 + $0x30] sm:$0xf]
      %v4017 = vld [vmem:[%s4003 + $0x34] sm:$0xf]
      %v4018 = vld [vmem:[%s4003 + $0x38] sm:$0xf]
      %v4019 = vld [vmem:[%s4003 + $0x3c] sm:$0xf]
      %v4020 = vunpack.c.l.b16 %v3831
      %v4021 = vunpack.c.l.b16 %v3841
      %v4022 = vunpack.c.l.b16 %v3854
      %v4023 = vunpack.c.l.b16 %v3864
      %v4024 = vunpack.c.l.b16 %v3877
      %v4025 = vunpack.c.l.b16 %v3887
      %v4026 = vunpack.c.l.b16 %v3900
      %v4027 = vunpack.c.l.b16 %v3910
      %v4028 = vunpack.c.l.b16 %v3923
      %v4029 = vunpack.c.l.b16 %v3933
      %v4030 = vunpack.c.l.b16 %v3946
      %v4031 = vunpack.c.l.b16 %v3956
      %v4032 = vunpack.c.l.b16 %v3969
      %v4033 = vunpack.c.l.b16 %v3979
      %v4034 = vunpack.c.l.b16 %v3992
      %v4035 = vunpack.c.l.b16 %v4002
      %v4036 = vpack.c.b16 %v4021, %v4020
      %v4037 = vpack.c.b16 %v4023, %v4022
      %v4038 = vpack.c.b16 %v4025, %v4024
      %v4039 = vpack.c.b16 %v4027, %v4026
      %v4040 = vpack.c.b16 %v4029, %v4028
      %v4041 = vpack.c.b16 %v4031, %v4030
      %v4042 = vpack.c.b16 %v4033, %v4032
      %v4043 = vpack.c.b16 %v4035, %v4034
      %v4068 = vunpack.c.l.b16 %v4004
      %v4069 = vunpack.c.l.b16 %v4005
      %v4070 = vunpack.c.l.b16 %v4006
      %v4071 = vunpack.c.l.b16 %v4007
      %v4072 = vunpack.c.l.b16 %v4008
      %v4073 = vunpack.c.l.b16 %v4009
      %v4074 = vunpack.c.l.b16 %v4010
      %v4075 = vunpack.c.l.b16 %v4011
      %v4076 = vunpack.c.l.b16 %v4012
      %v4077 = vunpack.c.l.b16 %v4013
      %v4078 = vunpack.c.l.b16 %v4014
      %v4079 = vunpack.c.l.b16 %v4015
      %v4080 = vunpack.c.l.b16 %v4016
      %v4081 = vunpack.c.l.b16 %v4017
      %v4082 = vunpack.c.l.b16 %v4018
      %v4083 = vunpack.c.l.b16 %v4019
      %v4084 = vpack.c.b16 %v4069, %v4068
      %v4085 = vpack.c.b16 %v4071, %v4070
      %v4086 = vpack.c.b16 %v4073, %v4072
      %v4087 = vpack.c.b16 %v4075, %v4074
      %v4088 = vpack.c.b16 %v4077, %v4076
      %v4089 = vpack.c.b16 %v4079, %v4078
      %v4090 = vpack.c.b16 %v4081, %v4080
      %v4091 = vpack.c.b16 %v4083, %v4082
      %4100 = vmatprep.subr.bf16.mxu0 0
      %4101 = vmatpush1.bf16.msra.mxu0 %v4091
      %4102 = vmatprep.subr.bf16.mxu0 0
      %4103 = vmatpush1.bf16.msra.mxu0 %v4090
      %4104 = vmatprep.subr.bf16.mxu0 0
      %4105 = vmatpush1.bf16.msra.mxu0 %v4089
      %4106 = vmatprep.subr.bf16.mxu0 0
      %4107 = vmatpush1.bf16.msra.mxu0 %v4088
      %4108 = vmatprep.subr.bf16.mxu0 0
      %4109 = vmatpush1.bf16.msra.mxu0 %v4087
      %4110 = vmatprep.subr.bf16.mxu0 0
      %4111 = vmatpush1.bf16.msra.mxu0 %v4086
      %4112 = vmatprep.subr.bf16.mxu0 0
      %4113 = vmatpush1.bf16.msra.mxu0 %v4085
      %4114 = vmatprep.subr.bf16.mxu0 0
      %4115 = vmatpush1.bf16.msra.mxu0 %v4084
      %4116 = vmatprep.subr.bf16.mxu0 0
      %4117 = vmatpush2.bf16.msra.mxu0 0
      %4118 = vmatprep.subr.bf16.mxu0 0
      %4119 = vmatpush2.bf16.msra.mxu0 0
      %4120 = vmatprep.subr.bf16.mxu0 0
      %4121 = vmatpush2.bf16.msra.mxu0 0
      %4122 = vmatprep.subr.bf16.mxu0 0
      %4123 = vmatpush2.bf16.msra.mxu0 0
      %4124 = vmatprep.subr.bf16.mxu0 0
      %4125 = vmatpush2.bf16.msra.mxu0 0
      %4126 = vmatprep.subr.bf16.mxu0 0
      %4127 = vmatpush2.bf16.msra.mxu0 0
      %4128 = vmatprep.subr.bf16.mxu0 0
      %4129 = vmatpush2.bf16.msra.mxu0 0
      %4130 = vmatprep.subr.bf16.mxu0 0
      %4131 = vmatpush2.bf16.msra.mxu0 0
      %4132 = vmatprep.mubr.bf16.mxu0 0
      %4133 = vmatmul.mubr.bf16.gmra.mxu0 %v4036
      %v4134 = vpop.f32.mrf.mxu0
      %v4135 = vadd.f32 0.0, %v4134
      %v4136 = vpop.f32.mrf.mxu0
      %v4137 = vpop.f32.mrf.mxu0
      %v4138 = vadd.f32 0.0, %v4137
      %v4139 = vpop.f32.mrf.mxu0
      %4140 = vmatprep.mubr.bf16.mxu0 0
      %4141 = vmatmul.mubr.bf16.gmra.mxu0 %v4037
      %v4142 = vpop.f32.mrf.mxu0
      %v4143 = vadd.f32 0.0, %v4142
      %v4144 = vpop.f32.mrf.mxu0
      %v4145 = vpop.f32.mrf.mxu0
      %v4146 = vadd.f32 0.0, %v4145
      %v4147 = vpop.f32.mrf.mxu0
      %4148 = vmatprep.mubr.bf16.mxu0 0
      %4149 = vmatmul.mubr.bf16.gmra.mxu0 %v4038
      %v4150 = vpop.f32.mrf.mxu0
      %v4151 = vadd.f32 0.0, %v4150
      %v4152 = vpop.f32.mrf.mxu0
      %v4153 = vpop.f32.mrf.mxu0
      %v4154 = vadd.f32 0.0, %v4153
      %v4155 = vpop.f32.mrf.mxu0
      %4156 = vmatprep.mubr.bf16.mxu0 0
      %4157 = vmatmul.mubr.bf16.gmra.mxu0 %v4039
      %v4158 = vpop.f32.mrf.mxu0
      %v4159 = vadd.f32 0.0, %v4158
      %v4160 = vpop.f32.mrf.mxu0
      %v4161 = vpop.f32.mrf.mxu0
      %v4162 = vadd.f32 0.0, %v4161
      %v4163 = vpop.f32.mrf.mxu0
      %4164 = vmatprep.mubr.bf16.mxu0 0
      %4165 = vmatmul.mubr.bf16.gmra.mxu0 %v4040
      %v4166 = vpop.f32.mrf.mxu0
      %v4167 = vadd.f32 0.0, %v4166
      %v4168 = vpop.f32.mrf.mxu0
      %v4169 = vpop.f32.mrf.mxu0
      %v4170 = vadd.f32 0.0, %v4169
      %v4171 = vpop.f32.mrf.mxu0
      %4172 = vmatprep.mubr.bf16.mxu0 0
      %4173 = vmatmul.mubr.bf16.gmra.mxu0 %v4041
      %v4174 = vpop.f32.mrf.mxu0
      %v4175 = vadd.f32 0.0, %v4174
      %v4176 = vpop.f32.mrf.mxu0
      %v4177 = vpop.f32.mrf.mxu0
      %v4178 = vadd.f32 0.0, %v4177
      %v4179 = vpop.f32.mrf.mxu0
      %4180 = vmatprep.mubr.bf16.mxu0 0
      %4181 = vmatmul.mubr.bf16.gmra.mxu0 %v4042
      %v4182 = vpop.f32.mrf.mxu0
      %v4183 = vadd.f32 0.0, %v4182
      %v4184 = vpop.f32.mrf.mxu0
      %v4185 = vpop.f32.mrf.mxu0
      %v4186 = vadd.f32 0.0, %v4185
      %v4187 = vpop.f32.mrf.mxu0
      %4188 = vmatprep.mubr.bf16.mxu0 0
      %4189 = vmatmul.mubr.bf16.gmra.mxu0 %v4043
      %v4190 = vpop.f32.mrf.mxu0
      %v4191 = vadd.f32 0.0, %v4190
      %v4192 = vpop.f32.mrf.mxu0
      %v4193 = vpop.f32.mrf.mxu0
      %v4194 = vadd.f32 0.0, %v4193
      %v4195 = vpop.f32.mrf.mxu0
      %4196 = vdwg.mxu0
      %v4197 = vadd.f32 %v3787, %v4135
      %v4198 = vadd.f32 %v3788, %v4138
      %v4199 = vadd.f32 %v3789, %v4143
      %v4200 = vadd.f32 %v3790, %v4146
      %v4201 = vadd.f32 %v3791, %v4151
      %v4202 = vadd.f32 %v3792, %v4154
      %v4203 = vadd.f32 %v3793, %v4159
      %v4204 = vadd.f32 %v3794, %v4162
      %v4205 = vadd.f32 %v3795, %v4167
      %v4206 = vadd.f32 %v3796, %v4170
      %v4207 = vadd.f32 %v3797, %v4175
      %v4208 = vadd.f32 %v3798, %v4178
      %v4209 = vadd.f32 %v3799, %v4183
      %v4210 = vadd.f32 %v3800, %v4186
      %v4211 = vadd.f32 %v3801, %v4191
      %v4212 = vadd.f32 %v3802, %v4194
      %v4213 = vld [vmem:[%s3376] sm:$0xc]
      %v4214 = vld [vmem:[%s3376 + $0x8] sm:$0x7]
      %v4215 = vld [vmem:[%s3376 + $0xc] sm:$0xc]
      %v4216 = vld [vmem:[%s3376 + $0x14] sm:$0x7]
      %v4217 = vld [vmem:[%s3376 + $0x18] sm:$0xc]
      %v4218 = vld [vmem:[%s3376 + $0x20] sm:$0x7]
      %v4219 = vld [vmem:[%s3376 + $0x24] sm:$0xc]
      %v4220 = vld [vmem:[%s3376 + $0x2c] sm:$0x7]
      %v4221 = vld [vmem:[%s3376 + $0x30] sm:$0xc]
      %v4222 = vld [vmem:[%s3376 + $0x38] sm:$0x7]
      %v4223 = vld [vmem:[%s3376 + $0x3c] sm:$0xc]
      %v4224 = vld [vmem:[%s3376 + $0x44] sm:$0x7]
      %v4225 = vld [vmem:[%s3376 + $0x48] sm:$0xc]
      %v4226 = vld [vmem:[%s3376 + $0x50] sm:$0x7]
      %v4227 = vld [vmem:[%s3376 + $0x54] sm:$0xc]
      %v4228 = vld [vmem:[%s3376 + $0x5c] sm:$0x7]
      %v4230 = vshrl.u32 %v4213, 16
      %v4232 = vrot.slane %v4230, 6
      %v4233 = vshll.u32 %v4213, 16
      %v4235 = vrot.slane %v4233, 7
      %v4236 = vor.u32 %v4232, %v4235
      %v4237 = vrot.slane %v4236, 4
      %v4238 = vrot.slane %v3415, 6
      %v4239 = vrot.slane %v3411, 7
      %v4240 = vor.u32 %v4238, %v4239
      %v4241 = vsel %vm1735, %v4237, %v4240
      %v4242 = vrot.slane %v4240, 4
      %v4244 = vshrl.u32 %v4214, 16
      %v4246 = vrot.slane %v4244, 6
      %v4247 = vshll.u32 %v4214, 16
      %v4249 = vrot.slane %v4247, 7
      %v4250 = vor.u32 %v4246, %v4249
      %v4251 = vsel %vm1735, %v4242, %v4250
      %v4253 = vshrl.u32 %v4215, 16
      %v4255 = vrot.slane %v4253, 6
      %v4256 = vshll.u32 %v4215, 16
      %v4258 = vrot.slane %v4256, 7
      %v4259 = vor.u32 %v4255, %v4258
      %v4260 = vrot.slane %v4259, 4
      %v4261 = vrot.slane %v3439, 6
      %v4262 = vrot.slane %v3435, 7
      %v4263 = vor.u32 %v4261, %v4262
      %v4264 = vsel %vm1735, %v4260, %v4263
      %v4265 = vrot.slane %v4263, 4
      %v4267 = vshrl.u32 %v4216, 16
      %v4269 = vrot.slane %v4267, 6
      %v4270 = vshll.u32 %v4216, 16
      %v4272 = vrot.slane %v4270, 7
      %v4273 = vor.u32 %v4269, %v4272
      %v4274 = vsel %vm1735, %v4265, %v4273
      %v4276 = vshrl.u32 %v4217, 16
      %v4278 = vrot.slane %v4276, 6
      %v4279 = vshll.u32 %v4217, 16
      %v4281 = vrot.slane %v4279, 7
      %v4282 = vor.u32 %v4278, %v4281
      %v4283 = vrot.slane %v4282, 4
      %v4284 = vrot.slane %v3463, 6
      %v4285 = vrot.slane %v3459, 7
      %v4286 = vor.u32 %v4284, %v4285
      %v4287 = vsel %vm1735, %v4283, %v4286
      %v4288 = vrot.slane %v4286, 4
      %v4290 = vshrl.u32 %v4218, 16
      %v4292 = vrot.slane %v4290, 6
      %v4293 = vshll.u32 %v4218, 16
      %v4295 = vrot.slane %v4293, 7
      %v4296 = vor.u32 %v4292, %v4295
      %v4297 = vsel %vm1735, %v4288, %v4296
      %v4299 = vshrl.u32 %v4219, 16
      %v4301 = vrot.slane %v4299, 6
      %v4302 = vshll.u32 %v4219, 16
      %v4304 = vrot.slane %v4302, 7
      %v4305 = vor.u32 %v4301, %v4304
      %v4306 = vrot.slane %v4305, 4
      %v4307 = vrot.slane %v3487, 6
      %v4308 = vrot.slane %v3483, 7
      %v4309 = vor.u32 %v4307, %v4308
      %v4310 = vsel %vm1735, %v4306, %v4309
      %v4311 = vrot.slane %v4309, 4
      %v4313 = vshrl.u32 %v4220, 16
      %v4315 = vrot.slane %v4313, 6
      %v4316 = vshll.u32 %v4220, 16
      %v4318 = vrot.slane %v4316, 7
      %v4319 = vor.u32 %v4315, %v4318
      %v4320 = vsel %vm1735, %v4311, %v4319
      %v4322 = vshrl.u32 %v4221, 16
      %v4324 = vrot.slane %v4322, 6
      %v4325 = vshll.u32 %v4221, 16
      %v4327 = vrot.slane %v4325, 7
      %v4328 = vor.u32 %v4324, %v4327
      %v4329 = vrot.slane %v4328, 4
      %v4330 = vrot.slane %v3511, 6
      %v4331 = vrot.slane %v3507, 7
      %v4332 = vor.u32 %v4330, %v4331
      %v4333 = vsel %vm1735, %v4329, %v4332
      %v4334 = vrot.slane %v4332, 4
      %v4336 = vshrl.u32 %v4222, 16
      %v4338 = vrot.slane %v4336, 6
      %v4339 = vshll.u32 %v4222, 16
      %v4341 = vrot.slane %v4339, 7
      %v4342 = vor.u32 %v4338, %v4341
      %v4343 = vsel %vm1735, %v4334, %v4342
      %v4345 = vshrl.u32 %v4223, 16
      %v4347 = vrot.slane %v4345, 6
      %v4348 = vshll.u32 %v4223, 16
      %v4350 = vrot.slane %v4348, 7
      %v4351 = vor.u32 %v4347, %v4350
      %v4352 = vrot.slane %v4351, 4
      %v4353 = vrot.slane %v3535, 6
      %v4354 = vrot.slane %v3531, 7
      %v4355 = vor.u32 %v4353, %v4354
      %v4356 = vsel %vm1735, %v4352, %v4355
      %v4357 = vrot.slane %v4355, 4
      %v4359 = vshrl.u32 %v4224, 16
      %v4361 = vrot.slane %v4359, 6
      %v4362 = vshll.u32 %v4224, 16
      %v4364 = vrot.slane %v4362, 7
      %v4365 = vor.u32 %v4361, %v4364
      %v4366 = vsel %vm1735, %v4357, %v4365
      %v4368 = vshrl.u32 %v4225, 16
      %v4370 = vrot.slane %v4368, 6
      %v4371 = vshll.u32 %v4225, 16
      %v4373 = vrot.slane %v4371, 7
      %v4374 = vor.u32 %v4370, %v4373
      %v4375 = vrot.slane %v4374, 4
      %v4376 = vrot.slane %v3559, 6
      %v4377 = vrot.slane %v3555, 7
      %v4378 = vor.u32 %v4376, %v4377
      %v4379 = vsel %vm1735, %v4375, %v4378
      %v4380 = vrot.slane %v4378, 4
      %v4382 = vshrl.u32 %v4226, 16
      %v4384 = vrot.slane %v4382, 6
      %v4385 = vshll.u32 %v4226, 16
      %v4387 = vrot.slane %v4385, 7
      %v4388 = vor.u32 %v4384, %v4387
      %v4389 = vsel %vm1735, %v4380, %v4388
      %v4391 = vshrl.u32 %v4227, 16
      %v4393 = vrot.slane %v4391, 6
      %v4394 = vshll.u32 %v4227, 16
      %v4396 = vrot.slane %v4394, 7
      %v4397 = vor.u32 %v4393, %v4396
      %v4398 = vrot.slane %v4397, 4
      %v4399 = vrot.slane %v3583, 6
      %v4400 = vrot.slane %v3579, 7
      %v4401 = vor.u32 %v4399, %v4400
      %v4402 = vsel %vm1735, %v4398, %v4401
      %v4403 = vrot.slane %v4401, 4
      %v4405 = vshrl.u32 %v4228, 16
      %v4407 = vrot.slane %v4405, 6
      %v4408 = vshll.u32 %v4228, 16
      %v4410 = vrot.slane %v4408, 7
      %v4411 = vor.u32 %v4407, %v4410
      %v4412 = vsel %vm1735, %v4403, %v4411
      %s4413 = scalar_lea.vmem %s350, 512
      %v4414 = vld [vmem:[%s4413] sm:$0xf]
      %v4415 = vld [vmem:[%s4413 + $0x4] sm:$0xf]
      %v4416 = vld [vmem:[%s4413 + $0x8] sm:$0xf]
      %v4417 = vld [vmem:[%s4413 + $0xc] sm:$0xf]
      %v4418 = vld [vmem:[%s4413 + $0x10] sm:$0xf]
      %v4419 = vld [vmem:[%s4413 + $0x14] sm:$0xf]
      %v4420 = vld [vmem:[%s4413 + $0x18] sm:$0xf]
      %v4421 = vld [vmem:[%s4413 + $0x1c] sm:$0xf]
      %v4422 = vld [vmem:[%s4413 + $0x20] sm:$0xf]
      %v4423 = vld [vmem:[%s4413 + $0x24] sm:$0xf]
      %v4424 = vld [vmem:[%s4413 + $0x28] sm:$0xf]
      %v4425 = vld [vmem:[%s4413 + $0x2c] sm:$0xf]
      %v4426 = vld [vmem:[%s4413 + $0x30] sm:$0xf]
      %v4427 = vld [vmem:[%s4413 + $0x34] sm:$0xf]
      %v4428 = vld [vmem:[%s4413 + $0x38] sm:$0xf]
      %v4429 = vld [vmem:[%s4413 + $0x3c] sm:$0xf]
      %v4430 = vunpack.c.l.b16 %v4241
      %v4431 = vunpack.c.l.b16 %v4251
      %v4432 = vunpack.c.l.b16 %v4264
      %v4433 = vunpack.c.l.b16 %v4274
      %v4434 = vunpack.c.l.b16 %v4287
      %v4435 = vunpack.c.l.b16 %v4297
      %v4436 = vunpack.c.l.b16 %v4310
      %v4437 = vunpack.c.l.b16 %v4320
      %v4438 = vunpack.c.l.b16 %v4333
      %v4439 = vunpack.c.l.b16 %v4343
      %v4440 = vunpack.c.l.b16 %v4356
      %v4441 = vunpack.c.l.b16 %v4366
      %v4442 = vunpack.c.l.b16 %v4379
      %v4443 = vunpack.c.l.b16 %v4389
      %v4444 = vunpack.c.l.b16 %v4402
      %v4445 = vunpack.c.l.b16 %v4412
      %v4446 = vpack.c.b16 %v4431, %v4430
      %v4447 = vpack.c.b16 %v4433, %v4432
      %v4448 = vpack.c.b16 %v4435, %v4434
      %v4449 = vpack.c.b16 %v4437, %v4436
      %v4450 = vpack.c.b16 %v4439, %v4438
      %v4451 = vpack.c.b16 %v4441, %v4440
      %v4452 = vpack.c.b16 %v4443, %v4442
      %v4453 = vpack.c.b16 %v4445, %v4444
      %v4478 = vunpack.c.l.b16 %v4414
      %v4479 = vunpack.c.l.b16 %v4415
      %v4480 = vunpack.c.l.b16 %v4416
      %v4481 = vunpack.c.l.b16 %v4417
      %v4482 = vunpack.c.l.b16 %v4418
      %v4483 = vunpack.c.l.b16 %v4419
      %v4484 = vunpack.c.l.b16 %v4420
      %v4485 = vunpack.c.l.b16 %v4421
      %v4486 = vunpack.c.l.b16 %v4422
      %v4487 = vunpack.c.l.b16 %v4423
      %v4488 = vunpack.c.l.b16 %v4424
      %v4489 = vunpack.c.l.b16 %v4425
      %v4490 = vunpack.c.l.b16 %v4426
      %v4491 = vunpack.c.l.b16 %v4427
      %v4492 = vunpack.c.l.b16 %v4428
      %v4493 = vunpack.c.l.b16 %v4429
      %v4494 = vpack.c.b16 %v4479, %v4478
      %v4495 = vpack.c.b16 %v4481, %v4480
      %v4496 = vpack.c.b16 %v4483, %v4482
      %v4497 = vpack.c.b16 %v4485, %v4484
      %v4498 = vpack.c.b16 %v4487, %v4486
      %v4499 = vpack.c.b16 %v4489, %v4488
      %v4500 = vpack.c.b16 %v4491, %v4490
      %v4501 = vpack.c.b16 %v4493, %v4492
      %4510 = vmatprep.subr.bf16.mxu0 0
      %4511 = vmatpush1.bf16.msra.mxu0 %v4501
      %4512 = vmatprep.subr.bf16.mxu0 0
      %4513 = vmatpush1.bf16.msra.mxu0 %v4500
      %4514 = vmatprep.subr.bf16.mxu0 0
      %4515 = vmatpush1.bf16.msra.mxu0 %v4499
      %4516 = vmatprep.subr.bf16.mxu0 0
      %4517 = vmatpush1.bf16.msra.mxu0 %v4498
      %4518 = vmatprep.subr.bf16.mxu0 0
      %4519 = vmatpush1.bf16.msra.mxu0 %v4497
      %4520 = vmatprep.subr.bf16.mxu0 0
      %4521 = vmatpush1.bf16.msra.mxu0 %v4496
      %4522 = vmatprep.subr.bf16.mxu0 0
      %4523 = vmatpush1.bf16.msra.mxu0 %v4495
      %4524 = vmatprep.subr.bf16.mxu0 0
      %4525 = vmatpush1.bf16.msra.mxu0 %v4494
      %4526 = vmatprep.subr.bf16.mxu0 0
      %4527 = vmatpush2.bf16.msra.mxu0 0
      %4528 = vmatprep.subr.bf16.mxu0 0
      %4529 = vmatpush2.bf16.msra.mxu0 0
      %4530 = vmatprep.subr.bf16.mxu0 0
      %4531 = vmatpush2.bf16.msra.mxu0 0
      %4532 = vmatprep.subr.bf16.mxu0 0
      %4533 = vmatpush2.bf16.msra.mxu0 0
      %4534 = vmatprep.subr.bf16.mxu0 0
      %4535 = vmatpush2.bf16.msra.mxu0 0
      %4536 = vmatprep.subr.bf16.mxu0 0
      %4537 = vmatpush2.bf16.msra.mxu0 0
      %4538 = vmatprep.subr.bf16.mxu0 0
      %4539 = vmatpush2.bf16.msra.mxu0 0
      %4540 = vmatprep.subr.bf16.mxu0 0
      %4541 = vmatpush2.bf16.msra.mxu0 0
      %4542 = vmatprep.mubr.bf16.mxu0 0
      %4543 = vmatmul.mubr.bf16.gmra.mxu0 %v4446
      %v4544 = vpop.f32.mrf.mxu0
      %v4545 = vadd.f32 0.0, %v4544
      %v4546 = vpop.f32.mrf.mxu0
      %v4547 = vpop.f32.mrf.mxu0
      %v4548 = vadd.f32 0.0, %v4547
      %v4549 = vpop.f32.mrf.mxu0
      %4550 = vmatprep.mubr.bf16.mxu0 0
      %4551 = vmatmul.mubr.bf16.gmra.mxu0 %v4447
      %v4552 = vpop.f32.mrf.mxu0
      %v4553 = vadd.f32 0.0, %v4552
      %v4554 = vpop.f32.mrf.mxu0
      %v4555 = vpop.f32.mrf.mxu0
      %v4556 = vadd.f32 0.0, %v4555
      %v4557 = vpop.f32.mrf.mxu0
      %4558 = vmatprep.mubr.bf16.mxu0 0
      %4559 = vmatmul.mubr.bf16.gmra.mxu0 %v4448
      %v4560 = vpop.f32.mrf.mxu0
      %v4561 = vadd.f32 0.0, %v4560
      %v4562 = vpop.f32.mrf.mxu0
      %v4563 = vpop.f32.mrf.mxu0
      %v4564 = vadd.f32 0.0, %v4563
      %v4565 = vpop.f32.mrf.mxu0
      %4566 = vmatprep.mubr.bf16.mxu0 0
      %4567 = vmatmul.mubr.bf16.gmra.mxu0 %v4449
      %v4568 = vpop.f32.mrf.mxu0
      %v4569 = vadd.f32 0.0, %v4568
      %v4570 = vpop.f32.mrf.mxu0
      %v4571 = vpop.f32.mrf.mxu0
      %v4572 = vadd.f32 0.0, %v4571
      %v4573 = vpop.f32.mrf.mxu0
      %4574 = vmatprep.mubr.bf16.mxu0 0
      %4575 = vmatmul.mubr.bf16.gmra.mxu0 %v4450
      %v4576 = vpop.f32.mrf.mxu0
      %v4577 = vadd.f32 0.0, %v4576
      %v4578 = vpop.f32.mrf.mxu0
      %v4579 = vpop.f32.mrf.mxu0
      %v4580 = vadd.f32 0.0, %v4579
      %v4581 = vpop.f32.mrf.mxu0
      %4582 = vmatprep.mubr.bf16.mxu0 0
      %4583 = vmatmul.mubr.bf16.gmra.mxu0 %v4451
      %v4584 = vpop.f32.mrf.mxu0
      %v4585 = vadd.f32 0.0, %v4584
      %v4586 = vpop.f32.mrf.mxu0
      %v4587 = vpop.f32.mrf.mxu0
      %v4588 = vadd.f32 0.0, %v4587
      %v4589 = vpop.f32.mrf.mxu0
      %4590 = vmatprep.mubr.bf16.mxu0 0
      %4591 = vmatmul.mubr.bf16.gmra.mxu0 %v4452
      %v4592 = vpop.f32.mrf.mxu0
      %v4593 = vadd.f32 0.0, %v4592
      %v4594 = vpop.f32.mrf.mxu0
      %v4595 = vpop.f32.mrf.mxu0
      %v4596 = vadd.f32 0.0, %v4595
      %v4597 = vpop.f32.mrf.mxu0
      %4598 = vmatprep.mubr.bf16.mxu0 0
      %4599 = vmatmul.mubr.bf16.gmra.mxu0 %v4453
      %v4600 = vpop.f32.mrf.mxu0
      %v4601 = vadd.f32 0.0, %v4600
      %v4602 = vpop.f32.mrf.mxu0
      %v4603 = vpop.f32.mrf.mxu0
      %v4604 = vadd.f32 0.0, %v4603
      %v4605 = vpop.f32.mrf.mxu0
      %4606 = vdwg.mxu0
      %v4607 = vadd.f32 %v4197, %v4545
      %v4608 = vadd.f32 %v4198, %v4548
      %v4609 = vadd.f32 %v4199, %v4553
      %v4610 = vadd.f32 %v4200, %v4556
      %v4611 = vadd.f32 %v4201, %v4561
      %v4612 = vadd.f32 %v4202, %v4564
      %v4613 = vadd.f32 %v4203, %v4569
      %v4614 = vadd.f32 %v4204, %v4572
      %v4615 = vadd.f32 %v4205, %v4577
      %v4616 = vadd.f32 %v4206, %v4580
      %v4617 = vadd.f32 %v4207, %v4585
      %v4618 = vadd.f32 %v4208, %v4588
      %v4619 = vadd.f32 %v4209, %v4593
      %v4620 = vadd.f32 %v4210, %v4596
      %v4621 = vadd.f32 %v4211, %v4601
      %v4622 = vadd.f32 %v4212, %v4604
      %s4623 = scalar_lea.vmem [#allocation2], 128
      %v4624 = vld [vmem:[%s4623] sm:$0xff]
      %v4625 = vld [vmem:[%s4623 + $0x8] sm:$0xff]
      %v4626 = vld [vmem:[%s4623 + $0x10] sm:$0xff]
      %v4627 = vld [vmem:[%s4623 + $0x18] sm:$0xff]
      %v4628 = vld [vmem:[%s4623 + $0x20] sm:$0xff]
      %v4629 = vld [vmem:[%s4623 + $0x28] sm:$0xff]
      %v4630 = vld [vmem:[%s4623 + $0x30] sm:$0xff]
      %v4631 = vld [vmem:[%s4623 + $0x38] sm:$0xff]
      %v4632 = vld [vmem:[%s4623 + $0x40] sm:$0xff]
      %v4633 = vld [vmem:[%s4623 + $0x48] sm:$0xff]
      %v4634 = vld [vmem:[%s4623 + $0x50] sm:$0xff]
      %v4635 = vld [vmem:[%s4623 + $0x58] sm:$0xff]
      %v4636 = vld [vmem:[%s4623 + $0x60] sm:$0xff]
      %v4637 = vld [vmem:[%s4623 + $0x68] sm:$0xff]
      %v4638 = vld [vmem:[%s4623 + $0x70] sm:$0xff]
      %v4639 = vld [vmem:[%s4623 + $0x78] sm:$0xff]
      %v4640 = vadd.f32 %v4624, %v4607
      %v4641 = vadd.f32 %v4625, %v4608
      %v4642 = vadd.f32 %v4626, %v4609
      %v4643 = vadd.f32 %v4627, %v4610
      %v4644 = vadd.f32 %v4628, %v4611
      %v4645 = vadd.f32 %v4629, %v4612
      %v4646 = vadd.f32 %v4630, %v4613
      %v4647 = vadd.f32 %v4631, %v4614
      %v4648 = vadd.f32 %v4632, %v4615
      %v4649 = vadd.f32 %v4633, %v4616
      %v4650 = vadd.f32 %v4634, %v4617
      %v4651 = vadd.f32 %v4635, %v4618
      %v4652 = vadd.f32 %v4636, %v4619
      %v4653 = vadd.f32 %v4637, %v4620
      %v4654 = vadd.f32 %v4638, %v4621
      %v4655 = vadd.f32 %v4639, %v4622
      %4656 = vst [vmem:[%s4623] sm:$0xff] %v4640
      %4657 = vst [vmem:[%s4623 + $0x8] sm:$0xff] %v4641
      %4658 = vst [vmem:[%s4623 + $0x10] sm:$0xff] %v4642
      %4659 = vst [vmem:[%s4623 + $0x18] sm:$0xff] %v4643
      %4660 = vst [vmem:[%s4623 + $0x20] sm:$0xff] %v4644
      %4661 = vst [vmem:[%s4623 + $0x28] sm:$0xff] %v4645
      %4662 = vst [vmem:[%s4623 + $0x30] sm:$0xff] %v4646
      %4663 = vst [vmem:[%s4623 + $0x38] sm:$0xff] %v4647
      %4664 = vst [vmem:[%s4623 + $0x40] sm:$0xff] %v4648
      %4665 = vst [vmem:[%s4623 + $0x48] sm:$0xff] %v4649
      %4666 = vst [vmem:[%s4623 + $0x50] sm:$0xff] %v4650
      %4667 = vst [vmem:[%s4623 + $0x58] sm:$0xff] %v4651
      %4668 = vst [vmem:[%s4623 + $0x60] sm:$0xff] %v4652
      %4669 = vst [vmem:[%s4623 + $0x68] sm:$0xff] %v4653
      %4670 = vst [vmem:[%s4623 + $0x70] sm:$0xff] %v4654
      %4671 = vst [vmem:[%s4623 + $0x78] sm:$0xff] %v4655
      %v4672 = vld [vmem:[%s339] sm:$0xf]
      %v4673 = vld [vmem:[%s339 + $0x4] sm:$0xf]
      %v4674 = vld [vmem:[%s339 + $0xc] sm:$0xf]
      %v4675 = vld [vmem:[%s339 + $0x10] sm:$0xf]
      %v4676 = vld [vmem:[%s339 + $0x18] sm:$0xf]
      %v4677 = vld [vmem:[%s339 + $0x1c] sm:$0xf]
      %v4678 = vld [vmem:[%s339 + $0x24] sm:$0xf]
      %v4679 = vld [vmem:[%s339 + $0x28] sm:$0xf]
      %v4680 = vld [vmem:[%s339 + $0x30] sm:$0xf]
      %v4681 = vld [vmem:[%s339 + $0x34] sm:$0xf]
      %v4682 = vld [vmem:[%s339 + $0x3c] sm:$0xf]
      %v4683 = vld [vmem:[%s339 + $0x40] sm:$0xf]
      %v4684 = vld [vmem:[%s339 + $0x48] sm:$0xf]
      %v4685 = vld [vmem:[%s339 + $0x4c] sm:$0xf]
      %v4686 = vld [vmem:[%s339 + $0x54] sm:$0xf]
      %v4687 = vld [vmem:[%s339 + $0x58] sm:$0xf]
      %s4688 = scalar_lea.vmem %s350, 576
      %v4689 = vld [vmem:[%s4688] sm:$0xf]
      %v4690 = vld [vmem:[%s4688 + $0x4] sm:$0xf]
      %v4691 = vld [vmem:[%s4688 + $0x8] sm:$0xf]
      %v4692 = vld [vmem:[%s4688 + $0xc] sm:$0xf]
      %v4693 = vld [vmem:[%s4688 + $0x10] sm:$0xf]
      %v4694 = vld [vmem:[%s4688 + $0x14] sm:$0xf]
      %v4695 = vld [vmem:[%s4688 + $0x18] sm:$0xf]
      %v4696 = vld [vmem:[%s4688 + $0x1c] sm:$0xf]
      %v4697 = vld [vmem:[%s4688 + $0x20] sm:$0xf]
      %v4698 = vld [vmem:[%s4688 + $0x24] sm:$0xf]
      %v4699 = vld [vmem:[%s4688 + $0x28] sm:$0xf]
      %v4700 = vld [vmem:[%s4688 + $0x2c] sm:$0xf]
      %v4701 = vld [vmem:[%s4688 + $0x30] sm:$0xf]
      %v4702 = vld [vmem:[%s4688 + $0x34] sm:$0xf]
      %v4703 = vld [vmem:[%s4688 + $0x38] sm:$0xf]
      %v4704 = vld [vmem:[%s4688 + $0x3c] sm:$0xf]
      %v4705 = vld [vmem:[%s339] sm:$0xe]
      %v4706 = vld [vmem:[%s339 + $0x8] sm:$0x3]
      %v4707 = vld [vmem:[%s339 + $0xc] sm:$0xe]
      %v4708 = vld [vmem:[%s339 + $0x14] sm:$0x3]
      %v4709 = vld [vmem:[%s339 + $0x18] sm:$0xe]
      %v4710 = vld [vmem:[%s339 + $0x20] sm:$0x3]
      %v4711 = vld [vmem:[%s339 + $0x24] sm:$0xe]
      %v4712 = vld [vmem:[%s339 + $0x2c] sm:$0x3]
      %v4713 = vld [vmem:[%s339 + $0x30] sm:$0xe]
      %v4714 = vld [vmem:[%s339 + $0x38] sm:$0x3]
      %v4715 = vld [vmem:[%s339 + $0x3c] sm:$0xe]
      %v4716 = vld [vmem:[%s339 + $0x44] sm:$0x3]
      %v4717 = vld [vmem:[%s339 + $0x48] sm:$0xe]
      %v4718 = vld [vmem:[%s339 + $0x50] sm:$0x3]
      %v4719 = vld [vmem:[%s339 + $0x54] sm:$0xe]
      %v4720 = vld [vmem:[%s339 + $0x5c] sm:$0x3]
      %v4722 = vshrl.u32 %v4705, 16
      %v4724 = vrot.slane %v4722, 5
      %v4725 = vshll.u32 %v4705, 16
      %v4727 = vrot.slane %v4725, 6
      %v4728 = vor.u32 %v4724, %v4727
      %v4729 = vrot.slane %v4728, 4
      %v4731 = vshrl.u32 %v4673, 16
      %v4733 = vrot.slane %v4731, 5
      %v4734 = vshll.u32 %v4673, 16
      %v4736 = vrot.slane %v4734, 6
      %v4737 = vor.u32 %v4733, %v4736
      %v4738 = vsel %vm460, %v4729, %v4737
      %v4739 = vrot.slane %v4737, 4
      %v4741 = vshrl.u32 %v4706, 16
      %v4743 = vrot.slane %v4741, 5
      %v4744 = vshll.u32 %v4706, 16
      %v4746 = vrot.slane %v4744, 6
      %v4747 = vor.u32 %v4743, %v4746
      %v4748 = vsel %vm460, %v4739, %v4747
      %v4750 = vshrl.u32 %v4707, 16
      %v4752 = vrot.slane %v4750, 5
      %v4753 = vshll.u32 %v4707, 16
      %v4755 = vrot.slane %v4753, 6
      %v4756 = vor.u32 %v4752, %v4755
      %v4757 = vrot.slane %v4756, 4
      %v4759 = vshrl.u32 %v4675, 16
      %v4761 = vrot.slane %v4759, 5
      %v4762 = vshll.u32 %v4675, 16
      %v4764 = vrot.slane %v4762, 6
      %v4765 = vor.u32 %v4761, %v4764
      %v4766 = vsel %vm460, %v4757, %v4765
      %v4767 = vrot.slane %v4765, 4
      %v4769 = vshrl.u32 %v4708, 16
      %v4771 = vrot.slane %v4769, 5
      %v4772 = vshll.u32 %v4708, 16
      %v4774 = vrot.slane %v4772, 6
      %v4775 = vor.u32 %v4771, %v4774
      %v4776 = vsel %vm460, %v4767, %v4775
      %v4778 = vshrl.u32 %v4709, 16
      %v4780 = vrot.slane %v4778, 5
      %v4781 = vshll.u32 %v4709, 16
      %v4783 = vrot.slane %v4781, 6
      %v4784 = vor.u32 %v4780, %v4783
      %v4785 = vrot.slane %v4784, 4
      %v4787 = vshrl.u32 %v4677, 16
      %v4789 = vrot.slane %v4787, 5
      %v4790 = vshll.u32 %v4677, 16
      %v4792 = vrot.slane %v4790, 6
      %v4793 = vor.u32 %v4789, %v4792
      %v4794 = vsel %vm460, %v4785, %v4793
      %v4795 = vrot.slane %v4793, 4
      %v4797 = vshrl.u32 %v4710, 16
      %v4799 = vrot.slane %v4797, 5
      %v4800 = vshll.u32 %v4710, 16
      %v4802 = vrot.slane %v4800, 6
      %v4803 = vor.u32 %v4799, %v4802
      %v4804 = vsel %vm460, %v4795, %v4803
      %v4806 = vshrl.u32 %v4711, 16
      %v4808 = vrot.slane %v4806, 5
      %v4809 = vshll.u32 %v4711, 16
      %v4811 = vrot.slane %v4809, 6
      %v4812 = vor.u32 %v4808, %v4811
      %v4813 = vrot.slane %v4812, 4
      %v4815 = vshrl.u32 %v4679, 16
      %v4817 = vrot.slane %v4815, 5
      %v4818 = vshll.u32 %v4679, 16
      %v4820 = vrot.slane %v4818, 6
      %v4821 = vor.u32 %v4817, %v4820
      %v4822 = vsel %vm460, %v4813, %v4821
      %v4823 = vrot.slane %v4821, 4
      %v4825 = vshrl.u32 %v4712, 16
      %v4827 = vrot.slane %v4825, 5
      %v4828 = vshll.u32 %v4712, 16
      %v4830 = vrot.slane %v4828, 6
      %v4831 = vor.u32 %v4827, %v4830
      %v4832 = vsel %vm460, %v4823, %v4831
      %v4834 = vshrl.u32 %v4713, 16
      %v4836 = vrot.slane %v4834, 5
      %v4837 = vshll.u32 %v4713, 16
      %v4839 = vrot.slane %v4837, 6
      %v4840 = vor.u32 %v4836, %v4839
      %v4841 = vrot.slane %v4840, 4
      %v4843 = vshrl.u32 %v4681, 16
      %v4845 = vrot.slane %v4843, 5
      %v4846 = vshll.u32 %v4681, 16
      %v4848 = vrot.slane %v4846, 6
      %v4849 = vor.u32 %v4845, %v4848
      %v4850 = vsel %vm460, %v4841, %v4849
      %v4851 = vrot.slane %v4849, 4
      %v4853 = vshrl.u32 %v4714, 16
      %v4855 = vrot.slane %v4853, 5
      %v4856 = vshll.u32 %v4714, 16
      %v4858 = vrot.slane %v4856, 6
      %v4859 = vor.u32 %v4855, %v4858
      %v4860 = vsel %vm460, %v4851, %v4859
      %v4862 = vshrl.u32 %v4715, 16
      %v4864 = vrot.slane %v4862, 5
      %v4865 = vshll.u32 %v4715, 16
      %v4867 = vrot.slane %v4865, 6
      %v4868 = vor.u32 %v4864, %v4867
      %v4869 = vrot.slane %v4868, 4
      %v4871 = vshrl.u32 %v4683, 16
      %v4873 = vrot.slane %v4871, 5
      %v4874 = vshll.u32 %v4683, 16
      %v4876 = vrot.slane %v4874, 6
      %v4877 = vor.u32 %v4873, %v4876
      %v4878 = vsel %vm460, %v4869, %v4877
      %v4879 = vrot.slane %v4877, 4
      %v4881 = vshrl.u32 %v4716, 16
      %v4883 = vrot.slane %v4881, 5
      %v4884 = vshll.u32 %v4716, 16
      %v4886 = vrot.slane %v4884, 6
      %v4887 = vor.u32 %v4883, %v4886
      %v4888 = vsel %vm460, %v4879, %v4887
      %v4890 = vshrl.u32 %v4717, 16
      %v4892 = vrot.slane %v4890, 5
      %v4893 = vshll.u32 %v4717, 16
      %v4895 = vrot.slane %v4893, 6
      %v4896 = vor.u32 %v4892, %v4895
      %v4897 = vrot.slane %v4896, 4
      %v4899 = vshrl.u32 %v4685, 16
      %v4901 = vrot.slane %v4899, 5
      %v4902 = vshll.u32 %v4685, 16
      %v4904 = vrot.slane %v4902, 6
      %v4905 = vor.u32 %v4901, %v4904
      %v4906 = vsel %vm460, %v4897, %v4905
      %v4907 = vrot.slane %v4905, 4
      %v4909 = vshrl.u32 %v4718, 16
      %v4911 = vrot.slane %v4909, 5
      %v4912 = vshll.u32 %v4718, 16
      %v4914 = vrot.slane %v4912, 6
      %v4915 = vor.u32 %v4911, %v4914
      %v4916 = vsel %vm460, %v4907, %v4915
      %v4918 = vshrl.u32 %v4719, 16
      %v4920 = vrot.slane %v4918, 5
      %v4921 = vshll.u32 %v4719, 16
      %v4923 = vrot.slane %v4921, 6
      %v4924 = vor.u32 %v4920, %v4923
      %v4925 = vrot.slane %v4924, 4
      %v4927 = vshrl.u32 %v4687, 16
      %v4929 = vrot.slane %v4927, 5
      %v4930 = vshll.u32 %v4687, 16
      %v4932 = vrot.slane %v4930, 6
      %v4933 = vor.u32 %v4929, %v4932
      %v4934 = vsel %vm460, %v4925, %v4933
      %v4935 = vrot.slane %v4933, 4
      %v4937 = vshrl.u32 %v4720, 16
      %v4939 = vrot.slane %v4937, 5
      %v4940 = vshll.u32 %v4720, 16
      %v4942 = vrot.slane %v4940, 6
      %v4943 = vor.u32 %v4939, %v4942
      %v4944 = vsel %vm460, %v4935, %v4943
      %s4945 = scalar_lea.vmem %s350, 640
      %v4946 = vld [vmem:[%s4945] sm:$0xf]
      %v4947 = vld [vmem:[%s4945 + $0x4] sm:$0xf]
      %v4948 = vld [vmem:[%s4945 + $0x8] sm:$0xf]
      %v4949 = vld [vmem:[%s4945 + $0xc] sm:$0xf]
      %v4950 = vld [vmem:[%s4945 + $0x10] sm:$0xf]
      %v4951 = vld [vmem:[%s4945 + $0x14] sm:$0xf]
      %v4952 = vld [vmem:[%s4945 + $0x18] sm:$0xf]
      %v4953 = vld [vmem:[%s4945 + $0x1c] sm:$0xf]
      %v4954 = vld [vmem:[%s4945 + $0x20] sm:$0xf]
      %v4955 = vld [vmem:[%s4945 + $0x24] sm:$0xf]
      %v4956 = vld [vmem:[%s4945 + $0x28] sm:$0xf]
      %v4957 = vld [vmem:[%s4945 + $0x2c] sm:$0xf]
      %v4958 = vld [vmem:[%s4945 + $0x30] sm:$0xf]
      %v4959 = vld [vmem:[%s4945 + $0x34] sm:$0xf]
      %v4960 = vld [vmem:[%s4945 + $0x38] sm:$0xf]
      %v4961 = vld [vmem:[%s4945 + $0x3c] sm:$0xf]
      %v4962 = vunpack.c.l.b16 %v4738
      %v4963 = vunpack.c.l.b16 %v4748
      %v4964 = vunpack.c.l.b16 %v4766
      %v4965 = vunpack.c.l.b16 %v4776
      %v4966 = vunpack.c.l.b16 %v4794
      %v4967 = vunpack.c.l.b16 %v4804
      %v4968 = vunpack.c.l.b16 %v4822
      %v4969 = vunpack.c.l.b16 %v4832
      %v4970 = vunpack.c.l.b16 %v4850
      %v4971 = vunpack.c.l.b16 %v4860
      %v4972 = vunpack.c.l.b16 %v4878
      %v4973 = vunpack.c.l.b16 %v4888
      %v4974 = vunpack.c.l.b16 %v4906
      %v4975 = vunpack.c.l.b16 %v4916
      %v4976 = vunpack.c.l.b16 %v4934
      %v4977 = vunpack.c.l.b16 %v4944
      %v4978 = vpack.c.b16 %v4963, %v4962
      %v4979 = vpack.c.b16 %v4965, %v4964
      %v4980 = vpack.c.b16 %v4967, %v4966
      %v4981 = vpack.c.b16 %v4969, %v4968
      %v4982 = vpack.c.b16 %v4971, %v4970
      %v4983 = vpack.c.b16 %v4973, %v4972
      %v4984 = vpack.c.b16 %v4975, %v4974
      %v4985 = vpack.c.b16 %v4977, %v4976
      %v5010 = vunpack.c.l.b16 %v4946
      %v5011 = vunpack.c.l.b16 %v4947
      %v5012 = vunpack.c.l.b16 %v4948
      %v5013 = vunpack.c.l.b16 %v4949
      %v5014 = vunpack.c.l.b16 %v4950
      %v5015 = vunpack.c.l.b16 %v4951
      %v5016 = vunpack.c.l.b16 %v4952
      %v5017 = vunpack.c.l.b16 %v4953
      %v5018 = vunpack.c.l.b16 %v4954
      %v5019 = vunpack.c.l.b16 %v4955
      %v5020 = vunpack.c.l.b16 %v4956
      %v5021 = vunpack.c.l.b16 %v4957
      %v5022 = vunpack.c.l.b16 %v4958
      %v5023 = vunpack.c.l.b16 %v4959
      %v5024 = vunpack.c.l.b16 %v4960
      %v5025 = vunpack.c.l.b16 %v4961
      %v5026 = vpack.c.b16 %v5011, %v5010
      %v5027 = vpack.c.b16 %v5013, %v5012
      %v5028 = vpack.c.b16 %v5015, %v5014
      %v5029 = vpack.c.b16 %v5017, %v5016
      %v5030 = vpack.c.b16 %v5019, %v5018
      %v5031 = vpack.c.b16 %v5021, %v5020
      %v5032 = vpack.c.b16 %v5023, %v5022
      %v5033 = vpack.c.b16 %v5025, %v5024
      %5042 = vmatprep.subr.bf16.mxu0 0
      %5043 = vmatpush1.bf16.msra.mxu0 %v5033
      %5044 = vmatprep.subr.bf16.mxu0 0
      %5045 = vmatpush1.bf16.msra.mxu0 %v5032
      %5046 = vmatprep.subr.bf16.mxu0 0
      %5047 = vmatpush1.bf16.msra.mxu0 %v5031
      %5048 = vmatprep.subr.bf16.mxu0 0
      %5049 = vmatpush1.bf16.msra.mxu0 %v5030
      %5050 = vmatprep.subr.bf16.mxu0 0
      %5051 = vmatpush1.bf16.msra.mxu0 %v5029
      %5052 = vmatprep.subr.bf16.mxu0 0
      %5053 = vmatpush1.bf16.msra.mxu0 %v5028
      %5054 = vmatprep.subr.bf16.mxu0 0
      %5055 = vmatpush1.bf16.msra.mxu0 %v5027
      %5056 = vmatprep.subr.bf16.mxu0 0
      %5057 = vmatpush1.bf16.msra.mxu0 %v5026
      %5058 = vmatprep.subr.bf16.mxu0 0
      %5059 = vmatpush2.bf16.msra.mxu0 0
      %5060 = vmatprep.subr.bf16.mxu0 0
      %5061 = vmatpush2.bf16.msra.mxu0 0
      %5062 = vmatprep.subr.bf16.mxu0 0
      %5063 = vmatpush2.bf16.msra.mxu0 0
      %5064 = vmatprep.subr.bf16.mxu0 0
      %5065 = vmatpush2.bf16.msra.mxu0 0
      %5066 = vmatprep.subr.bf16.mxu0 0
      %5067 = vmatpush2.bf16.msra.mxu0 0
      %5068 = vmatprep.subr.bf16.mxu0 0
      %5069 = vmatpush2.bf16.msra.mxu0 0
      %5070 = vmatprep.subr.bf16.mxu0 0
      %5071 = vmatpush2.bf16.msra.mxu0 0
      %5072 = vmatprep.subr.bf16.mxu0 0
      %5073 = vmatpush2.bf16.msra.mxu0 0
      %5074 = vmatprep.mubr.bf16.mxu0 0
      %5075 = vmatmul.mubr.bf16.gmra.mxu0 %v4978
      %v5076 = vpop.f32.mrf.mxu0
      %v5077 = vadd.f32 0.0, %v5076
      %v5078 = vpop.f32.mrf.mxu0
      %v5079 = vpop.f32.mrf.mxu0
      %v5080 = vadd.f32 0.0, %v5079
      %v5081 = vpop.f32.mrf.mxu0
      %5082 = vmatprep.mubr.bf16.mxu0 0
      %5083 = vmatmul.mubr.bf16.gmra.mxu0 %v4979
      %v5084 = vpop.f32.mrf.mxu0
      %v5085 = vadd.f32 0.0, %v5084
      %v5086 = vpop.f32.mrf.mxu0
      %v5087 = vpop.f32.mrf.mxu0
      %v5088 = vadd.f32 0.0, %v5087
      %v5089 = vpop.f32.mrf.mxu0
      %5090 = vmatprep.mubr.bf16.mxu0 0
      %5091 = vmatmul.mubr.bf16.gmra.mxu0 %v4980
      %v5092 = vpop.f32.mrf.mxu0
      %v5093 = vadd.f32 0.0, %v5092
      %v5094 = vpop.f32.mrf.mxu0
      %v5095 = vpop.f32.mrf.mxu0
      %v5096 = vadd.f32 0.0, %v5095
      %v5097 = vpop.f32.mrf.mxu0
      %5098 = vmatprep.mubr.bf16.mxu0 0
      %5099 = vmatmul.mubr.bf16.gmra.mxu0 %v4981
      %v5100 = vpop.f32.mrf.mxu0
      %v5101 = vadd.f32 0.0, %v5100
      %v5102 = vpop.f32.mrf.mxu0
      %v5103 = vpop.f32.mrf.mxu0
      %v5104 = vadd.f32 0.0, %v5103
      %v5105 = vpop.f32.mrf.mxu0
      %5106 = vmatprep.mubr.bf16.mxu0 0
      %5107 = vmatmul.mubr.bf16.gmra.mxu0 %v4982
      %v5108 = vpop.f32.mrf.mxu0
      %v5109 = vadd.f32 0.0, %v5108
      %v5110 = vpop.f32.mrf.mxu0
      %v5111 = vpop.f32.mrf.mxu0
      %v5112 = vadd.f32 0.0, %v5111
      %v5113 = vpop.f32.mrf.mxu0
      %5114 = vmatprep.mubr.bf16.mxu0 0
      %5115 = vmatmul.mubr.bf16.gmra.mxu0 %v4983
      %v5116 = vpop.f32.mrf.mxu0
      %v5117 = vadd.f32 0.0, %v5116
      %v5118 = vpop.f32.mrf.mxu0
      %v5119 = vpop.f32.mrf.mxu0
      %v5120 = vadd.f32 0.0, %v5119
      %v5121 = vpop.f32.mrf.mxu0
      %5122 = vmatprep.mubr.bf16.mxu0 0
      %5123 = vmatmul.mubr.bf16.gmra.mxu0 %v4984
      %v5124 = vpop.f32.mrf.mxu0
      %v5125 = vadd.f32 0.0, %v5124
      %v5126 = vpop.f32.mrf.mxu0
      %v5127 = vpop.f32.mrf.mxu0
      %v5128 = vadd.f32 0.0, %v5127
      %v5129 = vpop.f32.mrf.mxu0
      %5130 = vmatprep.mubr.bf16.mxu0 0
      %5131 = vmatmul.mubr.bf16.gmra.mxu0 %v4985
      %v5132 = vpop.f32.mrf.mxu0
      %v5133 = vadd.f32 0.0, %v5132
      %v5134 = vpop.f32.mrf.mxu0
      %v5135 = vpop.f32.mrf.mxu0
      %v5136 = vadd.f32 0.0, %v5135
      %v5137 = vpop.f32.mrf.mxu0
      %5138 = vdwg.mxu0
      %v5155 = vunpack.c.l.b16 %v4672
      %v5156 = vunpack.c.l.b16 %v4673
      %v5157 = vunpack.c.l.b16 %v4674
      %v5158 = vunpack.c.l.b16 %v4675
      %v5159 = vunpack.c.l.b16 %v4676
      %v5160 = vunpack.c.l.b16 %v4677
      %v5161 = vunpack.c.l.b16 %v4678
      %v5162 = vunpack.c.l.b16 %v4679
      %v5163 = vunpack.c.l.b16 %v4680
      %v5164 = vunpack.c.l.b16 %v4681
      %v5165 = vunpack.c.l.b16 %v4682
      %v5166 = vunpack.c.l.b16 %v4683
      %v5167 = vunpack.c.l.b16 %v4684
      %v5168 = vunpack.c.l.b16 %v4685
      %v5169 = vunpack.c.l.b16 %v4686
      %v5170 = vunpack.c.l.b16 %v4687
      %v5171 = vpack.c.b16 %v5156, %v5155
      %v5172 = vpack.c.b16 %v5158, %v5157
      %v5173 = vpack.c.b16 %v5160, %v5159
      %v5174 = vpack.c.b16 %v5162, %v5161
      %v5175 = vpack.c.b16 %v5164, %v5163
      %v5176 = vpack.c.b16 %v5166, %v5165
      %v5177 = vpack.c.b16 %v5168, %v5167
      %v5178 = vpack.c.b16 %v5170, %v5169
      %v5203 = vunpack.c.l.b16 %v4689
      %v5204 = vunpack.c.l.b16 %v4690
      %v5205 = vunpack.c.l.b16 %v4691
      %v5206 = vunpack.c.l.b16 %v4692
      %v5207 = vunpack.c.l.b16 %v4693
      %v5208 = vunpack.c.l.b16 %v4694
      %v5209 = vunpack.c.l.b16 %v4695
      %v5210 = vunpack.c.l.b16 %v4696
      %v5211 = vunpack.c.l.b16 %v4697
      %v5212 = vunpack.c.l.b16 %v4698
      %v5213 = vunpack.c.l.b16 %v4699
      %v5214 = vunpack.c.l.b16 %v4700
      %v5215 = vunpack.c.l.b16 %v4701
      %v5216 = vunpack.c.l.b16 %v4702
      %v5217 = vunpack.c.l.b16 %v4703
      %v5218 = vunpack.c.l.b16 %v4704
      %v5219 = vpack.c.b16 %v5204, %v5203
      %v5220 = vpack.c.b16 %v5206, %v5205
      %v5221 = vpack.c.b16 %v5208, %v5207
      %v5222 = vpack.c.b16 %v5210, %v5209
      %v5223 = vpack.c.b16 %v5212, %v5211
      %v5224 = vpack.c.b16 %v5214, %v5213
      %v5225 = vpack.c.b16 %v5216, %v5215
      %v5226 = vpack.c.b16 %v5218, %v5217
      %5235 = vmatprep.subr.bf16.mxu0 0
      %5236 = vmatpush1.bf16.msra.mxu0 %v5226
      %5237 = vmatprep.subr.bf16.mxu0 0
      %5238 = vmatpush1.bf16.msra.mxu0 %v5225
      %5239 = vmatprep.subr.bf16.mxu0 0
      %5240 = vmatpush1.bf16.msra.mxu0 %v5224
      %5241 = vmatprep.subr.bf16.mxu0 0
      %5242 = vmatpush1.bf16.msra.mxu0 %v5223
      %5243 = vmatprep.subr.bf16.mxu0 0
      %5244 = vmatpush1.bf16.msra.mxu0 %v5222
      %5245 = vmatprep.subr.bf16.mxu0 0
      %5246 = vmatpush1.bf16.msra.mxu0 %v5221
      %5247 = vmatprep.subr.bf16.mxu0 0
      %5248 = vmatpush1.bf16.msra.mxu0 %v5220
      %5249 = vmatprep.subr.bf16.mxu0 0
      %5250 = vmatpush1.bf16.msra.mxu0 %v5219
      %5251 = vmatprep.subr.bf16.mxu0 0
      %5252 = vmatpush2.bf16.msra.mxu0 0
      %5253 = vmatprep.subr.bf16.mxu0 0
      %5254 = vmatpush2.bf16.msra.mxu0 0
      %5255 = vmatprep.subr.bf16.mxu0 0
      %5256 = vmatpush2.bf16.msra.mxu0 0
      %5257 = vmatprep.subr.bf16.mxu0 0
      %5258 = vmatpush2.bf16.msra.mxu0 0
      %5259 = vmatprep.subr.bf16.mxu0 0
      %5260 = vmatpush2.bf16.msra.mxu0 0
      %5261 = vmatprep.subr.bf16.mxu0 0
      %5262 = vmatpush2.bf16.msra.mxu0 0
      %5263 = vmatprep.subr.bf16.mxu0 0
      %5264 = vmatpush2.bf16.msra.mxu0 0
      %5265 = vmatprep.subr.bf16.mxu0 0
      %5266 = vmatpush2.bf16.msra.mxu0 0
      %5267 = vmatprep.mubr.bf16.mxu0 0
      %5268 = vmatmul.mubr.bf16.gmra.mxu0 %v5171
      %v5269 = vpop.f32.mrf.mxu0
      %v5270 = vadd.f32 %v5077, %v5269
      %v5271 = vpop.f32.mrf.mxu0
      %v5272 = vpop.f32.mrf.mxu0
      %v5273 = vadd.f32 %v5080, %v5272
      %v5274 = vpop.f32.mrf.mxu0
      %5275 = vmatprep.mubr.bf16.mxu0 0
      %5276 = vmatmul.mubr.bf16.gmra.mxu0 %v5172
      %v5277 = vpop.f32.mrf.mxu0
      %v5278 = vadd.f32 %v5085, %v5277
      %v5279 = vpop.f32.mrf.mxu0
      %v5280 = vpop.f32.mrf.mxu0
      %v5281 = vadd.f32 %v5088, %v5280
      %v5282 = vpop.f32.mrf.mxu0
      %5283 = vmatprep.mubr.bf16.mxu0 0
      %5284 = vmatmul.mubr.bf16.gmra.mxu0 %v5173
      %v5285 = vpop.f32.mrf.mxu0
      %v5286 = vadd.f32 %v5093, %v5285
      %v5287 = vpop.f32.mrf.mxu0
      %v5288 = vpop.f32.mrf.mxu0
      %v5289 = vadd.f32 %v5096, %v5288
      %v5290 = vpop.f32.mrf.mxu0
      %5291 = vmatprep.mubr.bf16.mxu0 0
      %5292 = vmatmul.mubr.bf16.gmra.mxu0 %v5174
      %v5293 = vpop.f32.mrf.mxu0
      %v5294 = vadd.f32 %v5101, %v5293
      %v5295 = vpop.f32.mrf.mxu0
      %v5296 = vpop.f32.mrf.mxu0
      %v5297 = vadd.f32 %v5104, %v5296
      %v5298 = vpop.f32.mrf.mxu0
      %5299 = vmatprep.mubr.bf16.mxu0 0
      %5300 = vmatmul.mubr.bf16.gmra.mxu0 %v5175
      %v5301 = vpop.f32.mrf.mxu0
      %v5302 = vadd.f32 %v5109, %v5301
      %v5303 = vpop.f32.mrf.mxu0
      %v5304 = vpop.f32.mrf.mxu0
      %v5305 = vadd.f32 %v5112, %v5304
      %v5306 = vpop.f32.mrf.mxu0
      %5307 = vmatprep.mubr.bf16.mxu0 0
      %5308 = vmatmul.mubr.bf16.gmra.mxu0 %v5176
      %v5309 = vpop.f32.mrf.mxu0
      %v5310 = vadd.f32 %v5117, %v5309
      %v5311 = vpop.f32.mrf.mxu0
      %v5312 = vpop.f32.mrf.mxu0
      %v5313 = vadd.f32 %v5120, %v5312
      %v5314 = vpop.f32.mrf.mxu0
      %5315 = vmatprep.mubr.bf16.mxu0 0
      %5316 = vmatmul.mubr.bf16.gmra.mxu0 %v5177
      %v5317 = vpop.f32.mrf.mxu0
      %v5318 = vadd.f32 %v5125, %v5317
      %v5319 = vpop.f32.mrf.mxu0
      %v5320 = vpop.f32.mrf.mxu0
      %v5321 = vadd.f32 %v5128, %v5320
      %v5322 = vpop.f32.mrf.mxu0
      %5323 = vmatprep.mubr.bf16.mxu0 0
      %5324 = vmatmul.mubr.bf16.gmra.mxu0 %v5178
      %v5325 = vpop.f32.mrf.mxu0
      %v5326 = vadd.f32 %v5133, %v5325
      %v5327 = vpop.f32.mrf.mxu0
      %v5328 = vpop.f32.mrf.mxu0
      %v5329 = vadd.f32 %v5136, %v5328
      %v5330 = vpop.f32.mrf.mxu0
      %5331 = vdwg.mxu0
      %v5332 = vld [vmem:[%s339] sm:$0x8]
      %v5333 = vld [vmem:[%s339 + $0x8] sm:$0x7]
      %v5334 = vld [vmem:[%s339 + $0xc] sm:$0x8]
      %v5335 = vld [vmem:[%s339 + $0x14] sm:$0x7]
      %v5336 = vld [vmem:[%s339 + $0x18] sm:$0x8]
      %v5337 = vld [vmem:[%s339 + $0x20] sm:$0x7]
      %v5338 = vld [vmem:[%s339 + $0x24] sm:$0x8]
      %v5339 = vld [vmem:[%s339 + $0x2c] sm:$0x7]
      %v5340 = vld [vmem:[%s339 + $0x30] sm:$0x8]
      %v5341 = vld [vmem:[%s339 + $0x38] sm:$0x7]
      %v5342 = vld [vmem:[%s339 + $0x3c] sm:$0x8]
      %v5343 = vld [vmem:[%s339 + $0x44] sm:$0x7]
      %v5344 = vld [vmem:[%s339 + $0x48] sm:$0x8]
      %v5345 = vld [vmem:[%s339 + $0x50] sm:$0x7]
      %v5346 = vld [vmem:[%s339 + $0x54] sm:$0x8]
      %v5347 = vld [vmem:[%s339 + $0x5c] sm:$0x7]
      %vm5364 = vcmask 1040384
      %vm5365 = vcmask 1044484
      %vm5366 = vmor %vm5364, %vm5365
      %v5367 = vrot.slane %v5332, 7
      %v5368 = vrot.slane %v5367, 4
      %v5369 = vrot.slane %v4673, 7
      %v5370 = vsel %vm5366, %v5368, %v5369
      %v5371 = vrot.slane %v5369, 4
      %v5372 = vrot.slane %v5333, 7
      %v5373 = vsel %vm5366, %v5371, %v5372
      %v5374 = vrot.slane %v5334, 7
      %v5375 = vrot.slane %v5374, 4
      %v5376 = vrot.slane %v4675, 7
      %v5377 = vsel %vm5366, %v5375, %v5376
      %v5378 = vrot.slane %v5376, 4
      %v5379 = vrot.slane %v5335, 7
      %v5380 = vsel %vm5366, %v5378, %v5379
      %v5381 = vrot.slane %v5336, 7
      %v5382 = vrot.slane %v5381, 4
      %v5383 = vrot.slane %v4677, 7
      %v5384 = vsel %vm5366, %v5382, %v5383
      %v5385 = vrot.slane %v5383, 4
      %v5386 = vrot.slane %v5337, 7
      %v5387 = vsel %vm5366, %v5385, %v5386
      %v5388 = vrot.slane %v5338, 7
      %v5389 = vrot.slane %v5388, 4
      %v5390 = vrot.slane %v4679, 7
      %v5391 = vsel %vm5366, %v5389, %v5390
      %v5392 = vrot.slane %v5390, 4
      %v5393 = vrot.slane %v5339, 7
      %v5394 = vsel %vm5366, %v5392, %v5393
      %v5395 = vrot.slane %v5340, 7
      %v5396 = vrot.slane %v5395, 4
      %v5397 = vrot.slane %v4681, 7
      %v5398 = vsel %vm5366, %v5396, %v5397
      %v5399 = vrot.slane %v5397, 4
      %v5400 = vrot.slane %v5341, 7
      %v5401 = vsel %vm5366, %v5399, %v5400
      %v5402 = vrot.slane %v5342, 7
      %v5403 = vrot.slane %v5402, 4
      %v5404 = vrot.slane %v4683, 7
      %v5405 = vsel %vm5366, %v5403, %v5404
      %v5406 = vrot.slane %v5404, 4
      %v5407 = vrot.slane %v5343, 7
      %v5408 = vsel %vm5366, %v5406, %v5407
      %v5409 = vrot.slane %v5344, 7
      %v5410 = vrot.slane %v5409, 4
      %v5411 = vrot.slane %v4685, 7
      %v5412 = vsel %vm5366, %v5410, %v5411
      %v5413 = vrot.slane %v5411, 4
      %v5414 = vrot.slane %v5345, 7
      %v5415 = vsel %vm5366, %v5413, %v5414
      %v5416 = vrot.slane %v5346, 7
      %v5417 = vrot.slane %v5416, 4
      %v5418 = vrot.slane %v4687, 7
      %v5419 = vsel %vm5366, %v5417, %v5418
      %v5420 = vrot.slane %v5418, 4
      %v5421 = vrot.slane %v5347, 7
      %v5422 = vsel %vm5366, %v5420, %v5421
      %s5423 = scalar_lea.vmem %s350, 704
      %v5424 = vld [vmem:[%s5423] sm:$0xf]
      %v5425 = vld [vmem:[%s5423 + $0x4] sm:$0xf]
      %v5426 = vld [vmem:[%s5423 + $0x8] sm:$0xf]
      %v5427 = vld [vmem:[%s5423 + $0xc] sm:$0xf]
      %v5428 = vld [vmem:[%s5423 + $0x10] sm:$0xf]
      %v5429 = vld [vmem:[%s5423 + $0x14] sm:$0xf]
      %v5430 = vld [vmem:[%s5423 + $0x18] sm:$0xf]
      %v5431 = vld [vmem:[%s5423 + $0x1c] sm:$0xf]
      %v5432 = vld [vmem:[%s5423 + $0x20] sm:$0xf]
      %v5433 = vld [vmem:[%s5423 + $0x24] sm:$0xf]
      %v5434 = vld [vmem:[%s5423 + $0x28] sm:$0xf]
      %v5435 = vld [vmem:[%s5423 + $0x2c] sm:$0xf]
      %v5436 = vld [vmem:[%s5423 + $0x30] sm:$0xf]
      %v5437 = vld [vmem:[%s5423 + $0x34] sm:$0xf]
      %v5438 = vld [vmem:[%s5423 + $0x38] sm:$0xf]
      %v5439 = vld [vmem:[%s5423 + $0x3c] sm:$0xf]
      %v5440 = vunpack.c.l.b16 %v5370
      %v5441 = vunpack.c.l.b16 %v5373
      %v5442 = vunpack.c.l.b16 %v5377
      %v5443 = vunpack.c.l.b16 %v5380
      %v5444 = vunpack.c.l.b16 %v5384
      %v5445 = vunpack.c.l.b16 %v5387
      %v5446 = vunpack.c.l.b16 %v5391
      %v5447 = vunpack.c.l.b16 %v5394
      %v5448 = vunpack.c.l.b16 %v5398
      %v5449 = vunpack.c.l.b16 %v5401
      %v5450 = vunpack.c.l.b16 %v5405
      %v5451 = vunpack.c.l.b16 %v5408
      %v5452 = vunpack.c.l.b16 %v5412
      %v5453 = vunpack.c.l.b16 %v5415
      %v5454 = vunpack.c.l.b16 %v5419
      %v5455 = vunpack.c.l.b16 %v5422
      %v5456 = vpack.c.b16 %v5441, %v5440
      %v5457 = vpack.c.b16 %v5443, %v5442
      %v5458 = vpack.c.b16 %v5445, %v5444
      %v5459 = vpack.c.b16 %v5447, %v5446
      %v5460 = vpack.c.b16 %v5449, %v5448
      %v5461 = vpack.c.b16 %v5451, %v5450
      %v5462 = vpack.c.b16 %v5453, %v5452
      %v5463 = vpack.c.b16 %v5455, %v5454
      %v5488 = vunpack.c.l.b16 %v5424
      %v5489 = vunpack.c.l.b16 %v5425
      %v5490 = vunpack.c.l.b16 %v5426
      %v5491 = vunpack.c.l.b16 %v5427
      %v5492 = vunpack.c.l.b16 %v5428
      %v5493 = vunpack.c.l.b16 %v5429
      %v5494 = vunpack.c.l.b16 %v5430
      %v5495 = vunpack.c.l.b16 %v5431
      %v5496 = vunpack.c.l.b16 %v5432
      %v5497 = vunpack.c.l.b16 %v5433
      %v5498 = vunpack.c.l.b16 %v5434
      %v5499 = vunpack.c.l.b16 %v5435
      %v5500 = vunpack.c.l.b16 %v5436
      %v5501 = vunpack.c.l.b16 %v5437
      %v5502 = vunpack.c.l.b16 %v5438
      %v5503 = vunpack.c.l.b16 %v5439
      %v5504 = vpack.c.b16 %v5489, %v5488
      %v5505 = vpack.c.b16 %v5491, %v5490
      %v5506 = vpack.c.b16 %v5493, %v5492
      %v5507 = vpack.c.b16 %v5495, %v5494
      %v5508 = vpack.c.b16 %v5497, %v5496
      %v5509 = vpack.c.b16 %v5499, %v5498
      %v5510 = vpack.c.b16 %v5501, %v5500
      %v5511 = vpack.c.b16 %v5503, %v5502
      %5520 = vmatprep.subr.bf16.mxu0 0
      %5521 = vmatpush1.bf16.msra.mxu0 %v5511
      %5522 = vmatprep.subr.bf16.mxu0 0
      %5523 = vmatpush1.bf16.msra.mxu0 %v5510
      %5524 = vmatprep.subr.bf16.mxu0 0
      %5525 = vmatpush1.bf16.msra.mxu0 %v5509
      %5526 = vmatprep.subr.bf16.mxu0 0
      %5527 = vmatpush1.bf16.msra.mxu0 %v5508
      %5528 = vmatprep.subr.bf16.mxu0 0
      %5529 = vmatpush1.bf16.msra.mxu0 %v5507
      %5530 = vmatprep.subr.bf16.mxu0 0
      %5531 = vmatpush1.bf16.msra.mxu0 %v5506
      %5532 = vmatprep.subr.bf16.mxu0 0
      %5533 = vmatpush1.bf16.msra.mxu0 %v5505
      %5534 = vmatprep.subr.bf16.mxu0 0
      %5535 = vmatpush1.bf16.msra.mxu0 %v5504
      %5536 = vmatprep.subr.bf16.mxu0 0
      %5537 = vmatpush2.bf16.msra.mxu0 0
      %5538 = vmatprep.subr.bf16.mxu0 0
      %5539 = vmatpush2.bf16.msra.mxu0 0
      %5540 = vmatprep.subr.bf16.mxu0 0
      %5541 = vmatpush2.bf16.msra.mxu0 0
      %5542 = vmatprep.subr.bf16.mxu0 0
      %5543 = vmatpush2.bf16.msra.mxu0 0
      %5544 = vmatprep.subr.bf16.mxu0 0
      %5545 = vmatpush2.bf16.msra.mxu0 0
      %5546 = vmatprep.subr.bf16.mxu0 0
      %5547 = vmatpush2.bf16.msra.mxu0 0
      %5548 = vmatprep.subr.bf16.mxu0 0
      %5549 = vmatpush2.bf16.msra.mxu0 0
      %5550 = vmatprep.subr.bf16.mxu0 0
      %5551 = vmatpush2.bf16.msra.mxu0 0
      %5552 = vmatprep.mubr.bf16.mxu0 0
      %5553 = vmatmul.mubr.bf16.gmra.mxu0 %v5456
      %v5554 = vpop.f32.mrf.mxu0
      %v5555 = vadd.f32 0.0, %v5554
      %v5556 = vpop.f32.mrf.mxu0
      %v5557 = vpop.f32.mrf.mxu0
      %v5558 = vadd.f32 0.0, %v5557
      %v5559 = vpop.f32.mrf.mxu0
      %5560 = vmatprep.mubr.bf16.mxu0 0
      %5561 = vmatmul.mubr.bf16.gmra.mxu0 %v5457
      %v5562 = vpop.f32.mrf.mxu0
      %v5563 = vadd.f32 0.0, %v5562
      %v5564 = vpop.f32.mrf.mxu0
      %v5565 = vpop.f32.mrf.mxu0
      %v5566 = vadd.f32 0.0, %v5565
      %v5567 = vpop.f32.mrf.mxu0
      %5568 = vmatprep.mubr.bf16.mxu0 0
      %5569 = vmatmul.mubr.bf16.gmra.mxu0 %v5458
      %v5570 = vpop.f32.mrf.mxu0
      %v5571 = vadd.f32 0.0, %v5570
      %v5572 = vpop.f32.mrf.mxu0
      %v5573 = vpop.f32.mrf.mxu0
      %v5574 = vadd.f32 0.0, %v5573
      %v5575 = vpop.f32.mrf.mxu0
      %5576 = vmatprep.mubr.bf16.mxu0 0
      %5577 = vmatmul.mubr.bf16.gmra.mxu0 %v5459
      %v5578 = vpop.f32.mrf.mxu0
      %v5579 = vadd.f32 0.0, %v5578
      %v5580 = vpop.f32.mrf.mxu0
      %v5581 = vpop.f32.mrf.mxu0
      %v5582 = vadd.f32 0.0, %v5581
      %v5583 = vpop.f32.mrf.mxu0
      %5584 = vmatprep.mubr.bf16.mxu0 0
      %5585 = vmatmul.mubr.bf16.gmra.mxu0 %v5460
      %v5586 = vpop.f32.mrf.mxu0
      %v5587 = vadd.f32 0.0, %v5586
      %v5588 = vpop.f32.mrf.mxu0
      %v5589 = vpop.f32.mrf.mxu0
      %v5590 = vadd.f32 0.0, %v5589
      %v5591 = vpop.f32.mrf.mxu0
      %5592 = vmatprep.mubr.bf16.mxu0 0
      %5593 = vmatmul.mubr.bf16.gmra.mxu0 %v5461
      %v5594 = vpop.f32.mrf.mxu0
      %v5595 = vadd.f32 0.0, %v5594
      %v5596 = vpop.f32.mrf.mxu0
      %v5597 = vpop.f32.mrf.mxu0
      %v5598 = vadd.f32 0.0, %v5597
      %v5599 = vpop.f32.mrf.mxu0
      %5600 = vmatprep.mubr.bf16.mxu0 0
      %5601 = vmatmul.mubr.bf16.gmra.mxu0 %v5462
      %v5602 = vpop.f32.mrf.mxu0
      %v5603 = vadd.f32 0.0, %v5602
      %v5604 = vpop.f32.mrf.mxu0
      %v5605 = vpop.f32.mrf.mxu0
      %v5606 = vadd.f32 0.0, %v5605
      %v5607 = vpop.f32.mrf.mxu0
      %5608 = vmatprep.mubr.bf16.mxu0 0
      %5609 = vmatmul.mubr.bf16.gmra.mxu0 %v5463
      %v5610 = vpop.f32.mrf.mxu0
      %v5611 = vadd.f32 0.0, %v5610
      %v5612 = vpop.f32.mrf.mxu0
      %v5613 = vpop.f32.mrf.mxu0
      %v5614 = vadd.f32 0.0, %v5613
      %v5615 = vpop.f32.mrf.mxu0
      %5616 = vdwg.mxu0
      %v5617 = vadd.f32 %v5270, %v5555
      %v5618 = vadd.f32 %v5273, %v5558
      %v5619 = vadd.f32 %v5278, %v5563
      %v5620 = vadd.f32 %v5281, %v5566
      %v5621 = vadd.f32 %v5286, %v5571
      %v5622 = vadd.f32 %v5289, %v5574
      %v5623 = vadd.f32 %v5294, %v5579
      %v5624 = vadd.f32 %v5297, %v5582
      %v5625 = vadd.f32 %v5302, %v5587
      %v5626 = vadd.f32 %v5305, %v5590
      %v5627 = vadd.f32 %v5310, %v5595
      %v5628 = vadd.f32 %v5313, %v5598
      %v5629 = vadd.f32 %v5318, %v5603
      %v5630 = vadd.f32 %v5321, %v5606
      %v5631 = vadd.f32 %v5326, %v5611
      %v5632 = vadd.f32 %v5329, %v5614
      %v5633 = vld [vmem:[%s433] sm:$0xf]
      %v5634 = vld [vmem:[%s433 + $0x4] sm:$0xf]
      %v5635 = vld [vmem:[%s433 + $0xc] sm:$0xf]
      %v5636 = vld [vmem:[%s433 + $0x10] sm:$0xf]
      %v5637 = vld [vmem:[%s433 + $0x18] sm:$0xf]
      %v5638 = vld [vmem:[%s433 + $0x1c] sm:$0xf]
      %v5639 = vld [vmem:[%s433 + $0x24] sm:$0xf]
      %v5640 = vld [vmem:[%s433 + $0x28] sm:$0xf]
      %v5641 = vld [vmem:[%s433 + $0x30] sm:$0xf]
      %v5642 = vld [vmem:[%s433 + $0x34] sm:$0xf]
      %v5643 = vld [vmem:[%s433 + $0x3c] sm:$0xf]
      %v5644 = vld [vmem:[%s433 + $0x40] sm:$0xf]
      %v5645 = vld [vmem:[%s433 + $0x48] sm:$0xf]
      %v5646 = vld [vmem:[%s433 + $0x4c] sm:$0xf]
      %v5647 = vld [vmem:[%s433 + $0x54] sm:$0xf]
      %v5648 = vld [vmem:[%s433 + $0x58] sm:$0xf]
      %s5649 = scalar_lea.vmem %s350, 768
      %v5650 = vld [vmem:[%s5649] sm:$0xf]
      %v5651 = vld [vmem:[%s5649 + $0x4] sm:$0xf]
      %v5652 = vld [vmem:[%s5649 + $0x8] sm:$0xf]
      %v5653 = vld [vmem:[%s5649 + $0xc] sm:$0xf]
      %v5654 = vld [vmem:[%s5649 + $0x10] sm:$0xf]
      %v5655 = vld [vmem:[%s5649 + $0x14] sm:$0xf]
      %v5656 = vld [vmem:[%s5649 + $0x18] sm:$0xf]
      %v5657 = vld [vmem:[%s5649 + $0x1c] sm:$0xf]
      %v5658 = vld [vmem:[%s5649 + $0x20] sm:$0xf]
      %v5659 = vld [vmem:[%s5649 + $0x24] sm:$0xf]
      %v5660 = vld [vmem:[%s5649 + $0x28] sm:$0xf]
      %v5661 = vld [vmem:[%s5649 + $0x2c] sm:$0xf]
      %v5662 = vld [vmem:[%s5649 + $0x30] sm:$0xf]
      %v5663 = vld [vmem:[%s5649 + $0x34] sm:$0xf]
      %v5664 = vld [vmem:[%s5649 + $0x38] sm:$0xf]
      %v5665 = vld [vmem:[%s5649 + $0x3c] sm:$0xf]
      %v5682 = vunpack.c.l.b16 %v5633
      %v5683 = vunpack.c.l.b16 %v5634
      %v5684 = vunpack.c.l.b16 %v5635
      %v5685 = vunpack.c.l.b16 %v5636
      %v5686 = vunpack.c.l.b16 %v5637
      %v5687 = vunpack.c.l.b16 %v5638
      %v5688 = vunpack.c.l.b16 %v5639
      %v5689 = vunpack.c.l.b16 %v5640
      %v5690 = vunpack.c.l.b16 %v5641
      %v5691 = vunpack.c.l.b16 %v5642
      %v5692 = vunpack.c.l.b16 %v5643
      %v5693 = vunpack.c.l.b16 %v5644
      %v5694 = vunpack.c.l.b16 %v5645
      %v5695 = vunpack.c.l.b16 %v5646
      %v5696 = vunpack.c.l.b16 %v5647
      %v5697 = vunpack.c.l.b16 %v5648
      %v5698 = vpack.c.b16 %v5683, %v5682
      %v5699 = vpack.c.b16 %v5685, %v5684
      %v5700 = vpack.c.b16 %v5687, %v5686
      %v5701 = vpack.c.b16 %v5689, %v5688
      %v5702 = vpack.c.b16 %v5691, %v5690
      %v5703 = vpack.c.b16 %v5693, %v5692
      %v5704 = vpack.c.b16 %v5695, %v5694
      %v5705 = vpack.c.b16 %v5697, %v5696
      %v5730 = vunpack.c.l.b16 %v5650
      %v5731 = vunpack.c.l.b16 %v5651
      %v5732 = vunpack.c.l.b16 %v5652
      %v5733 = vunpack.c.l.b16 %v5653
      %v5734 = vunpack.c.l.b16 %v5654
      %v5735 = vunpack.c.l.b16 %v5655
      %v5736 = vunpack.c.l.b16 %v5656
      %v5737 = vunpack.c.l.b16 %v5657
      %v5738 = vunpack.c.l.b16 %v5658
      %v5739 = vunpack.c.l.b16 %v5659
      %v5740 = vunpack.c.l.b16 %v5660
      %v5741 = vunpack.c.l.b16 %v5661
      %v5742 = vunpack.c.l.b16 %v5662
      %v5743 = vunpack.c.l.b16 %v5663
      %v5744 = vunpack.c.l.b16 %v5664
      %v5745 = vunpack.c.l.b16 %v5665
      %v5746 = vpack.c.b16 %v5731, %v5730
      %v5747 = vpack.c.b16 %v5733, %v5732
      %v5748 = vpack.c.b16 %v5735, %v5734
      %v5749 = vpack.c.b16 %v5737, %v5736
      %v5750 = vpack.c.b16 %v5739, %v5738
      %v5751 = vpack.c.b16 %v5741, %v5740
      %v5752 = vpack.c.b16 %v5743, %v5742
      %v5753 = vpack.c.b16 %v5745, %v5744
      %5762 = vmatprep.subr.bf16.mxu0 0
      %5763 = vmatpush1.bf16.msra.mxu0 %v5753
      %5764 = vmatprep.subr.bf16.mxu0 0
      %5765 = vmatpush1.bf16.msra.mxu0 %v5752
      %5766 = vmatprep.subr.bf16.mxu0 0
      %5767 = vmatpush1.bf16.msra.mxu0 %v5751
      %5768 = vmatprep.subr.bf16.mxu0 0
      %5769 = vmatpush1.bf16.msra.mxu0 %v5750
      %5770 = vmatprep.subr.bf16.mxu0 0
      %5771 = vmatpush1.bf16.msra.mxu0 %v5749
      %5772 = vmatprep.subr.bf16.mxu0 0
      %5773 = vmatpush1.bf16.msra.mxu0 %v5748
      %5774 = vmatprep.subr.bf16.mxu0 0
      %5775 = vmatpush1.bf16.msra.mxu0 %v5747
      %5776 = vmatprep.subr.bf16.mxu0 0
      %5777 = vmatpush1.bf16.msra.mxu0 %v5746
      %5778 = vmatprep.subr.bf16.mxu0 0
      %5779 = vmatpush2.bf16.msra.mxu0 0
      %5780 = vmatprep.subr.bf16.mxu0 0
      %5781 = vmatpush2.bf16.msra.mxu0 0
      %5782 = vmatprep.subr.bf16.mxu0 0
      %5783 = vmatpush2.bf16.msra.mxu0 0
      %5784 = vmatprep.subr.bf16.mxu0 0
      %5785 = vmatpush2.bf16.msra.mxu0 0
      %5786 = vmatprep.subr.bf16.mxu0 0
      %5787 = vmatpush2.bf16.msra.mxu0 0
      %5788 = vmatprep.subr.bf16.mxu0 0
      %5789 = vmatpush2.bf16.msra.mxu0 0
      %5790 = vmatprep.subr.bf16.mxu0 0
      %5791 = vmatpush2.bf16.msra.mxu0 0
      %5792 = vmatprep.subr.bf16.mxu0 0
      %5793 = vmatpush2.bf16.msra.mxu0 0
      %5794 = vmatprep.mubr.bf16.mxu0 0
      %5795 = vmatmul.mubr.bf16.gmra.mxu0 %v5698
      %v5796 = vpop.f32.mrf.mxu0
      %v5797 = vadd.f32 0.0, %v5796
      %v5798 = vpop.f32.mrf.mxu0
      %v5799 = vpop.f32.mrf.mxu0
      %v5800 = vadd.f32 0.0, %v5799
      %v5801 = vpop.f32.mrf.mxu0
      %5802 = vmatprep.mubr.bf16.mxu0 0
      %5803 = vmatmul.mubr.bf16.gmra.mxu0 %v5699
      %v5804 = vpop.f32.mrf.mxu0
      %v5805 = vadd.f32 0.0, %v5804
      %v5806 = vpop.f32.mrf.mxu0
      %v5807 = vpop.f32.mrf.mxu0
      %v5808 = vadd.f32 0.0, %v5807
      %v5809 = vpop.f32.mrf.mxu0
      %5810 = vmatprep.mubr.bf16.mxu0 0
      %5811 = vmatmul.mubr.bf16.gmra.mxu0 %v5700
      %v5812 = vpop.f32.mrf.mxu0
      %v5813 = vadd.f32 0.0, %v5812
      %v5814 = vpop.f32.mrf.mxu0
      %v5815 = vpop.f32.mrf.mxu0
      %v5816 = vadd.f32 0.0, %v5815
      %v5817 = vpop.f32.mrf.mxu0
      %5818 = vmatprep.mubr.bf16.mxu0 0
      %5819 = vmatmul.mubr.bf16.gmra.mxu0 %v5701
      %v5820 = vpop.f32.mrf.mxu0
      %v5821 = vadd.f32 0.0, %v5820
      %v5822 = vpop.f32.mrf.mxu0
      %v5823 = vpop.f32.mrf.mxu0
      %v5824 = vadd.f32 0.0, %v5823
      %v5825 = vpop.f32.mrf.mxu0
      %5826 = vmatprep.mubr.bf16.mxu0 0
      %5827 = vmatmul.mubr.bf16.gmra.mxu0 %v5702
      %v5828 = vpop.f32.mrf.mxu0
      %v5829 = vadd.f32 0.0, %v5828
      %v5830 = vpop.f32.mrf.mxu0
      %v5831 = vpop.f32.mrf.mxu0
      %v5832 = vadd.f32 0.0, %v5831
      %v5833 = vpop.f32.mrf.mxu0
      %5834 = vmatprep.mubr.bf16.mxu0 0
      %5835 = vmatmul.mubr.bf16.gmra.mxu0 %v5703
      %v5836 = vpop.f32.mrf.mxu0
      %v5837 = vadd.f32 0.0, %v5836
      %v5838 = vpop.f32.mrf.mxu0
      %v5839 = vpop.f32.mrf.mxu0
      %v5840 = vadd.f32 0.0, %v5839
      %v5841 = vpop.f32.mrf.mxu0
      %5842 = vmatprep.mubr.bf16.mxu0 0
      %5843 = vmatmul.mubr.bf16.gmra.mxu0 %v5704
      %v5844 = vpop.f32.mrf.mxu0
      %v5845 = vadd.f32 0.0, %v5844
      %v5846 = vpop.f32.mrf.mxu0
      %v5847 = vpop.f32.mrf.mxu0
      %v5848 = vadd.f32 0.0, %v5847
      %v5849 = vpop.f32.mrf.mxu0
      %5850 = vmatprep.mubr.bf16.mxu0 0
      %5851 = vmatmul.mubr.bf16.gmra.mxu0 %v5705
      %v5852 = vpop.f32.mrf.mxu0
      %v5853 = vadd.f32 0.0, %v5852
      %v5854 = vpop.f32.mrf.mxu0
      %v5855 = vpop.f32.mrf.mxu0
      %v5856 = vadd.f32 0.0, %v5855
      %v5857 = vpop.f32.mrf.mxu0
      %5858 = vdwg.mxu0
      %v5859 = vadd.f32 %v5617, %v5797
      %v5860 = vadd.f32 %v5618, %v5800
      %v5861 = vadd.f32 %v5619, %v5805
      %v5862 = vadd.f32 %v5620, %v5808
      %v5863 = vadd.f32 %v5621, %v5813
      %v5864 = vadd.f32 %v5622, %v5816
      %v5865 = vadd.f32 %v5623, %v5821
      %v5866 = vadd.f32 %v5624, %v5824
      %v5867 = vadd.f32 %v5625, %v5829
      %v5868 = vadd.f32 %v5626, %v5832
      %v5869 = vadd.f32 %v5627, %v5837
      %v5870 = vadd.f32 %v5628, %v5840
      %v5871 = vadd.f32 %v5629, %v5845
      %v5872 = vadd.f32 %v5630, %v5848
      %v5873 = vadd.f32 %v5631, %v5853
      %v5874 = vadd.f32 %v5632, %v5856
      %v5875 = vld [vmem:[%s433] sm:$0xe]
      %v5876 = vld [vmem:[%s433 + $0x4] sm:$0xf]
      %v5877 = vld [vmem:[%s433 + $0x8] sm:$0x3]
      %v5878 = vld [vmem:[%s433 + $0xc] sm:$0xe]
      %v5879 = vld [vmem:[%s433 + $0x10] sm:$0xf]
      %v5880 = vld [vmem:[%s433 + $0x14] sm:$0x3]
      %v5881 = vld [vmem:[%s433 + $0x18] sm:$0xe]
      %v5882 = vld [vmem:[%s433 + $0x1c] sm:$0xf]
      %v5883 = vld [vmem:[%s433 + $0x20] sm:$0x3]
      %v5884 = vld [vmem:[%s433 + $0x24] sm:$0xe]
      %v5885 = vld [vmem:[%s433 + $0x28] sm:$0xf]
      %v5886 = vld [vmem:[%s433 + $0x2c] sm:$0x3]
      %v5887 = vld [vmem:[%s433 + $0x30] sm:$0xe]
      %v5888 = vld [vmem:[%s433 + $0x34] sm:$0xf]
      %v5889 = vld [vmem:[%s433 + $0x38] sm:$0x3]
      %v5890 = vld [vmem:[%s433 + $0x3c] sm:$0xe]
      %v5891 = vld [vmem:[%s433 + $0x40] sm:$0xf]
      %v5892 = vld [vmem:[%s433 + $0x44] sm:$0x3]
      %v5893 = vld [vmem:[%s433 + $0x48] sm:$0xe]
      %v5894 = vld [vmem:[%s433 + $0x4c] sm:$0xf]
      %v5895 = vld [vmem:[%s433 + $0x50] sm:$0x3]
      %v5896 = vld [vmem:[%s433 + $0x54] sm:$0xe]
      %v5897 = vld [vmem:[%s433 + $0x58] sm:$0xf]
      %v5898 = vld [vmem:[%s433 + $0x5c] sm:$0x3]
      %v5900 = vshrl.u32 %v5875, 16
      %v5902 = vrot.slane %v5900, 5
      %v5903 = vshll.u32 %v5875, 16
      %v5905 = vrot.slane %v5903, 6
      %v5906 = vor.u32 %v5902, %v5905
      %v5907 = vrot.slane %v5906, 4
      %v5909 = vshrl.u32 %v5876, 16
      %v5911 = vrot.slane %v5909, 5
      %v5912 = vshll.u32 %v5876, 16
      %v5914 = vrot.slane %v5912, 6
      %v5915 = vor.u32 %v5911, %v5914
      %v5916 = vsel %vm460, %v5907, %v5915
      %v5917 = vrot.slane %v5915, 4
      %v5919 = vshrl.u32 %v5877, 16
      %v5921 = vrot.slane %v5919, 5
      %v5922 = vshll.u32 %v5877, 16
      %v5924 = vrot.slane %v5922, 6
      %v5925 = vor.u32 %v5921, %v5924
      %v5926 = vsel %vm460, %v5917, %v5925
      %v5928 = vshrl.u32 %v5878, 16
      %v5930 = vrot.slane %v5928, 5
      %v5931 = vshll.u32 %v5878, 16
      %v5933 = vrot.slane %v5931, 6
      %v5934 = vor.u32 %v5930, %v5933
      %v5935 = vrot.slane %v5934, 4
      %v5937 = vshrl.u32 %v5879, 16
      %v5939 = vrot.slane %v5937, 5
      %v5940 = vshll.u32 %v5879, 16
      %v5942 = vrot.slane %v5940, 6
      %v5943 = vor.u32 %v5939, %v5942
      %v5944 = vsel %vm460, %v5935, %v5943
      %v5945 = vrot.slane %v5943, 4
      %v5947 = vshrl.u32 %v5880, 16
      %v5949 = vrot.slane %v5947, 5
      %v5950 = vshll.u32 %v5880, 16
      %v5952 = vrot.slane %v5950, 6
      %v5953 = vor.u32 %v5949, %v5952
      %v5954 = vsel %vm460, %v5945, %v5953
      %v5956 = vshrl.u32 %v5881, 16
      %v5958 = vrot.slane %v5956, 5
      %v5959 = vshll.u32 %v5881, 16
      %v5961 = vrot.slane %v5959, 6
      %v5962 = vor.u32 %v5958, %v5961
      %v5963 = vrot.slane %v5962, 4
      %v5965 = vshrl.u32 %v5882, 16
      %v5967 = vrot.slane %v5965, 5
      %v5968 = vshll.u32 %v5882, 16
      %v5970 = vrot.slane %v5968, 6
      %v5971 = vor.u32 %v5967, %v5970
      %v5972 = vsel %vm460, %v5963, %v5971
      %v5973 = vrot.slane %v5971, 4
      %v5975 = vshrl.u32 %v5883, 16
      %v5977 = vrot.slane %v5975, 5
      %v5978 = vshll.u32 %v5883, 16
      %v5980 = vrot.slane %v5978, 6
      %v5981 = vor.u32 %v5977, %v5980
      %v5982 = vsel %vm460, %v5973, %v5981
      %v5984 = vshrl.u32 %v5884, 16
      %v5986 = vrot.slane %v5984, 5
      %v5987 = vshll.u32 %v5884, 16
      %v5989 = vrot.slane %v5987, 6
      %v5990 = vor.u32 %v5986, %v5989
      %v5991 = vrot.slane %v5990, 4
      %v5993 = vshrl.u32 %v5885, 16
      %v5995 = vrot.slane %v5993, 5
      %v5996 = vshll.u32 %v5885, 16
      %v5998 = vrot.slane %v5996, 6
      %v5999 = vor.u32 %v5995, %v5998
      %v6000 = vsel %vm460, %v5991, %v5999
      %v6001 = vrot.slane %v5999, 4
      %v6003 = vshrl.u32 %v5886, 16
      %v6005 = vrot.slane %v6003, 5
      %v6006 = vshll.u32 %v5886, 16
      %v6008 = vrot.slane %v6006, 6
      %v6009 = vor.u32 %v6005, %v6008
      %v6010 = vsel %vm460, %v6001, %v6009
      %v6012 = vshrl.u32 %v5887, 16
      %v6014 = vrot.slane %v6012, 5
      %v6015 = vshll.u32 %v5887, 16
      %v6017 = vrot.slane %v6015, 6
      %v6018 = vor.u32 %v6014, %v6017
      %v6019 = vrot.slane %v6018, 4
      %v6021 = vshrl.u32 %v5888, 16
      %v6023 = vrot.slane %v6021, 5
      %v6024 = vshll.u32 %v5888, 16
      %v6026 = vrot.slane %v6024, 6
      %v6027 = vor.u32 %v6023, %v6026
      %v6028 = vsel %vm460, %v6019, %v6027
      %v6029 = vrot.slane %v6027, 4
      %v6031 = vshrl.u32 %v5889, 16
      %v6033 = vrot.slane %v6031, 5
      %v6034 = vshll.u32 %v5889, 16
      %v6036 = vrot.slane %v6034, 6
      %v6037 = vor.u32 %v6033, %v6036
      %v6038 = vsel %vm460, %v6029, %v6037
      %v6040 = vshrl.u32 %v5890, 16
      %v6042 = vrot.slane %v6040, 5
      %v6043 = vshll.u32 %v5890, 16
      %v6045 = vrot.slane %v6043, 6
      %v6046 = vor.u32 %v6042, %v6045
      %v6047 = vrot.slane %v6046, 4
      %v6049 = vshrl.u32 %v5891, 16
      %v6051 = vrot.slane %v6049, 5
      %v6052 = vshll.u32 %v5891, 16
      %v6054 = vrot.slane %v6052, 6
      %v6055 = vor.u32 %v6051, %v6054
      %v6056 = vsel %vm460, %v6047, %v6055
      %v6057 = vrot.slane %v6055, 4
      %v6059 = vshrl.u32 %v5892, 16
      %v6061 = vrot.slane %v6059, 5
      %v6062 = vshll.u32 %v5892, 16
      %v6064 = vrot.slane %v6062, 6
      %v6065 = vor.u32 %v6061, %v6064
      %v6066 = vsel %vm460, %v6057, %v6065
      %v6068 = vshrl.u32 %v5893, 16
      %v6070 = vrot.slane %v6068, 5
      %v6071 = vshll.u32 %v5893, 16
      %v6073 = vrot.slane %v6071, 6
      %v6074 = vor.u32 %v6070, %v6073
      %v6075 = vrot.slane %v6074, 4
      %v6077 = vshrl.u32 %v5894, 16
      %v6079 = vrot.slane %v6077, 5
      %v6080 = vshll.u32 %v5894, 16
      %v6082 = vrot.slane %v6080, 6
      %v6083 = vor.u32 %v6079, %v6082
      %v6084 = vsel %vm460, %v6075, %v6083
      %v6085 = vrot.slane %v6083, 4
      %v6087 = vshrl.u32 %v5895, 16
      %v6089 = vrot.slane %v6087, 5
      %v6090 = vshll.u32 %v5895, 16
      %v6092 = vrot.slane %v6090, 6
      %v6093 = vor.u32 %v6089, %v6092
      %v6094 = vsel %vm460, %v6085, %v6093
      %v6096 = vshrl.u32 %v5896, 16
      %v6098 = vrot.slane %v6096, 5
      %v6099 = vshll.u32 %v5896, 16
      %v6101 = vrot.slane %v6099, 6
      %v6102 = vor.u32 %v6098, %v6101
      %v6103 = vrot.slane %v6102, 4
      %v6105 = vshrl.u32 %v5897, 16
      %v6107 = vrot.slane %v6105, 5
      %v6108 = vshll.u32 %v5897, 16
      %v6110 = vrot.slane %v6108, 6
      %v6111 = vor.u32 %v6107, %v6110
      %v6112 = vsel %vm460, %v6103, %v6111
      %v6113 = vrot.slane %v6111, 4
      %v6115 = vshrl.u32 %v5898, 16
      %v6117 = vrot.slane %v6115, 5
      %v6118 = vshll.u32 %v5898, 16
      %v6120 = vrot.slane %v6118, 6
      %v6121 = vor.u32 %v6117, %v6120
      %v6122 = vsel %vm460, %v6113, %v6121
      %s6123 = scalar_lea.vmem %s350, 832
      %v6124 = vld [vmem:[%s6123] sm:$0xf]
      %v6125 = vld [vmem:[%s6123 + $0x4] sm:$0xf]
      %v6126 = vld [vmem:[%s6123 + $0x8] sm:$0xf]
      %v6127 = vld [vmem:[%s6123 + $0xc] sm:$0xf]
      %v6128 = vld [vmem:[%s6123 + $0x10] sm:$0xf]
      %v6129 = vld [vmem:[%s6123 + $0x14] sm:$0xf]
      %v6130 = vld [vmem:[%s6123 + $0x18] sm:$0xf]
      %v6131 = vld [vmem:[%s6123 + $0x1c] sm:$0xf]
      %v6132 = vld [vmem:[%s6123 + $0x20] sm:$0xf]
      %v6133 = vld [vmem:[%s6123 + $0x24] sm:$0xf]
      %v6134 = vld [vmem:[%s6123 + $0x28] sm:$0xf]
      %v6135 = vld [vmem:[%s6123 + $0x2c] sm:$0xf]
      %v6136 = vld [vmem:[%s6123 + $0x30] sm:$0xf]
      %v6137 = vld [vmem:[%s6123 + $0x34] sm:$0xf]
      %v6138 = vld [vmem:[%s6123 + $0x38] sm:$0xf]
      %v6139 = vld [vmem:[%s6123 + $0x3c] sm:$0xf]
      %v6140 = vunpack.c.l.b16 %v5916
      %v6141 = vunpack.c.l.b16 %v5926
      %v6142 = vunpack.c.l.b16 %v5944
      %v6143 = vunpack.c.l.b16 %v5954
      %v6144 = vunpack.c.l.b16 %v5972
      %v6145 = vunpack.c.l.b16 %v5982
      %v6146 = vunpack.c.l.b16 %v6000
      %v6147 = vunpack.c.l.b16 %v6010
      %v6148 = vunpack.c.l.b16 %v6028
      %v6149 = vunpack.c.l.b16 %v6038
      %v6150 = vunpack.c.l.b16 %v6056
      %v6151 = vunpack.c.l.b16 %v6066
      %v6152 = vunpack.c.l.b16 %v6084
      %v6153 = vunpack.c.l.b16 %v6094
      %v6154 = vunpack.c.l.b16 %v6112
      %v6155 = vunpack.c.l.b16 %v6122
      %v6156 = vpack.c.b16 %v6141, %v6140
      %v6157 = vpack.c.b16 %v6143, %v6142
      %v6158 = vpack.c.b16 %v6145, %v6144
      %v6159 = vpack.c.b16 %v6147, %v6146
      %v6160 = vpack.c.b16 %v6149, %v6148
      %v6161 = vpack.c.b16 %v6151, %v6150
      %v6162 = vpack.c.b16 %v6153, %v6152
      %v6163 = vpack.c.b16 %v6155, %v6154
      %v6188 = vunpack.c.l.b16 %v6124
      %v6189 = vunpack.c.l.b16 %v6125
      %v6190 = vunpack.c.l.b16 %v6126
      %v6191 = vunpack.c.l.b16 %v6127
      %v6192 = vunpack.c.l.b16 %v6128
      %v6193 = vunpack.c.l.b16 %v6129
      %v6194 = vunpack.c.l.b16 %v6130
      %v6195 = vunpack.c.l.b16 %v6131
      %v6196 = vunpack.c.l.b16 %v6132
      %v6197 = vunpack.c.l.b16 %v6133
      %v6198 = vunpack.c.l.b16 %v6134
      %v6199 = vunpack.c.l.b16 %v6135
      %v6200 = vunpack.c.l.b16 %v6136
      %v6201 = vunpack.c.l.b16 %v6137
      %v6202 = vunpack.c.l.b16 %v6138
      %v6203 = vunpack.c.l.b16 %v6139
      %v6204 = vpack.c.b16 %v6189, %v6188
      %v6205 = vpack.c.b16 %v6191, %v6190
      %v6206 = vpack.c.b16 %v6193, %v6192
      %v6207 = vpack.c.b16 %v6195, %v6194
      %v6208 = vpack.c.b16 %v6197, %v6196
      %v6209 = vpack.c.b16 %v6199, %v6198
      %v6210 = vpack.c.b16 %v6201, %v6200
      %v6211 = vpack.c.b16 %v6203, %v6202
      %6220 = vmatprep.subr.bf16.mxu0 0
      %6221 = vmatpush1.bf16.msra.mxu0 %v6211
      %6222 = vmatprep.subr.bf16.mxu0 0
      %6223 = vmatpush1.bf16.msra.mxu0 %v6210
      %6224 = vmatprep.subr.bf16.mxu0 0
      %6225 = vmatpush1.bf16.msra.mxu0 %v6209
      %6226 = vmatprep.subr.bf16.mxu0 0
      %6227 = vmatpush1.bf16.msra.mxu0 %v6208
      %6228 = vmatprep.subr.bf16.mxu0 0
      %6229 = vmatpush1.bf16.msra.mxu0 %v6207
      %6230 = vmatprep.subr.bf16.mxu0 0
      %6231 = vmatpush1.bf16.msra.mxu0 %v6206
      %6232 = vmatprep.subr.bf16.mxu0 0
      %6233 = vmatpush1.bf16.msra.mxu0 %v6205
      %6234 = vmatprep.subr.bf16.mxu0 0
      %6235 = vmatpush1.bf16.msra.mxu0 %v6204
      %6236 = vmatprep.subr.bf16.mxu0 0
      %6237 = vmatpush2.bf16.msra.mxu0 0
      %6238 = vmatprep.subr.bf16.mxu0 0
      %6239 = vmatpush2.bf16.msra.mxu0 0
      %6240 = vmatprep.subr.bf16.mxu0 0
      %6241 = vmatpush2.bf16.msra.mxu0 0
      %6242 = vmatprep.subr.bf16.mxu0 0
      %6243 = vmatpush2.bf16.msra.mxu0 0
      %6244 = vmatprep.subr.bf16.mxu0 0
      %6245 = vmatpush2.bf16.msra.mxu0 0
      %6246 = vmatprep.subr.bf16.mxu0 0
      %6247 = vmatpush2.bf16.msra.mxu0 0
      %6248 = vmatprep.subr.bf16.mxu0 0
      %6249 = vmatpush2.bf16.msra.mxu0 0
      %6250 = vmatprep.subr.bf16.mxu0 0
      %6251 = vmatpush2.bf16.msra.mxu0 0
      %6252 = vmatprep.mubr.bf16.mxu0 0
      %6253 = vmatmul.mubr.bf16.gmra.mxu0 %v6156
      %v6254 = vpop.f32.mrf.mxu0
      %v6255 = vadd.f32 0.0, %v6254
      %v6256 = vpop.f32.mrf.mxu0
      %v6257 = vpop.f32.mrf.mxu0
      %v6258 = vadd.f32 0.0, %v6257
      %v6259 = vpop.f32.mrf.mxu0
      %6260 = vmatprep.mubr.bf16.mxu0 0
      %6261 = vmatmul.mubr.bf16.gmra.mxu0 %v6157
      %v6262 = vpop.f32.mrf.mxu0
      %v6263 = vadd.f32 0.0, %v6262
      %v6264 = vpop.f32.mrf.mxu0
      %v6265 = vpop.f32.mrf.mxu0
      %v6266 = vadd.f32 0.0, %v6265
      %v6267 = vpop.f32.mrf.mxu0
      %6268 = vmatprep.mubr.bf16.mxu0 0
      %6269 = vmatmul.mubr.bf16.gmra.mxu0 %v6158
      %v6270 = vpop.f32.mrf.mxu0
      %v6271 = vadd.f32 0.0, %v6270
      %v6272 = vpop.f32.mrf.mxu0
      %v6273 = vpop.f32.mrf.mxu0
      %v6274 = vadd.f32 0.0, %v6273
      %v6275 = vpop.f32.mrf.mxu0
      %6276 = vmatprep.mubr.bf16.mxu0 0
      %6277 = vmatmul.mubr.bf16.gmra.mxu0 %v6159
      %v6278 = vpop.f32.mrf.mxu0
      %v6279 = vadd.f32 0.0, %v6278
      %v6280 = vpop.f32.mrf.mxu0
      %v6281 = vpop.f32.mrf.mxu0
      %v6282 = vadd.f32 0.0, %v6281
      %v6283 = vpop.f32.mrf.mxu0
      %6284 = vmatprep.mubr.bf16.mxu0 0
      %6285 = vmatmul.mubr.bf16.gmra.mxu0 %v6160
      %v6286 = vpop.f32.mrf.mxu0
      %v6287 = vadd.f32 0.0, %v6286
      %v6288 = vpop.f32.mrf.mxu0
      %v6289 = vpop.f32.mrf.mxu0
      %v6290 = vadd.f32 0.0, %v6289
      %v6291 = vpop.f32.mrf.mxu0
      %6292 = vmatprep.mubr.bf16.mxu0 0
      %6293 = vmatmul.mubr.bf16.gmra.mxu0 %v6161
      %v6294 = vpop.f32.mrf.mxu0
      %v6295 = vadd.f32 0.0, %v6294
      %v6296 = vpop.f32.mrf.mxu0
      %v6297 = vpop.f32.mrf.mxu0
      %v6298 = vadd.f32 0.0, %v6297
      %v6299 = vpop.f32.mrf.mxu0
      %6300 = vmatprep.mubr.bf16.mxu0 0
      %6301 = vmatmul.mubr.bf16.gmra.mxu0 %v6162
      %v6302 = vpop.f32.mrf.mxu0
      %v6303 = vadd.f32 0.0, %v6302
      %v6304 = vpop.f32.mrf.mxu0
      %v6305 = vpop.f32.mrf.mxu0
      %v6306 = vadd.f32 0.0, %v6305
      %v6307 = vpop.f32.mrf.mxu0
      %6308 = vmatprep.mubr.bf16.mxu0 0
      %6309 = vmatmul.mubr.bf16.gmra.mxu0 %v6163
      %v6310 = vpop.f32.mrf.mxu0
      %v6311 = vadd.f32 0.0, %v6310
      %v6312 = vpop.f32.mrf.mxu0
      %v6313 = vpop.f32.mrf.mxu0
      %v6314 = vadd.f32 0.0, %v6313
      %v6315 = vpop.f32.mrf.mxu0
      %6316 = vdwg.mxu0
      %v6317 = vadd.f32 %v5859, %v6255
      %v6318 = vadd.f32 %v5860, %v6258
      %v6319 = vadd.f32 %v5861, %v6263
      %v6320 = vadd.f32 %v5862, %v6266
      %v6321 = vadd.f32 %v5863, %v6271
      %v6322 = vadd.f32 %v5864, %v6274
      %v6323 = vadd.f32 %v5865, %v6279
      %v6324 = vadd.f32 %v5866, %v6282
      %v6325 = vadd.f32 %v5867, %v6287
      %v6326 = vadd.f32 %v5868, %v6290
      %v6327 = vadd.f32 %v5869, %v6295
      %v6328 = vadd.f32 %v5870, %v6298
      %v6329 = vadd.f32 %v5871, %v6303
      %v6330 = vadd.f32 %v5872, %v6306
      %v6331 = vadd.f32 %v5873, %v6311
      %v6332 = vadd.f32 %v5874, %v6314
      %v6333 = vld [vmem:[%s433] sm:$0x8]
      %v6334 = vld [vmem:[%s433 + $0x8] sm:$0x7]
      %v6335 = vld [vmem:[%s433 + $0xc] sm:$0x8]
      %v6336 = vld [vmem:[%s433 + $0x14] sm:$0x7]
      %v6337 = vld [vmem:[%s433 + $0x18] sm:$0x8]
      %v6338 = vld [vmem:[%s433 + $0x20] sm:$0x7]
      %v6339 = vld [vmem:[%s433 + $0x24] sm:$0x8]
      %v6340 = vld [vmem:[%s433 + $0x2c] sm:$0x7]
      %v6341 = vld [vmem:[%s433 + $0x30] sm:$0x8]
      %v6342 = vld [vmem:[%s433 + $0x38] sm:$0x7]
      %v6343 = vld [vmem:[%s433 + $0x3c] sm:$0x8]
      %v6344 = vld [vmem:[%s433 + $0x44] sm:$0x7]
      %v6345 = vld [vmem:[%s433 + $0x48] sm:$0x8]
      %v6346 = vld [vmem:[%s433 + $0x50] sm:$0x7]
      %v6347 = vld [vmem:[%s433 + $0x54] sm:$0x8]
      %v6348 = vld [vmem:[%s433 + $0x5c] sm:$0x7]
      %v6373 = vrot.slane %v6333, 7
      %v6374 = vrot.slane %v6373, 4
      %v6375 = vrot.slane %v5876, 7
      %v6376 = vsel %vm5366, %v6374, %v6375
      %v6377 = vrot.slane %v6375, 4
      %v6378 = vrot.slane %v6334, 7
      %v6379 = vsel %vm5366, %v6377, %v6378
      %v6380 = vrot.slane %v6335, 7
      %v6381 = vrot.slane %v6380, 4
      %v6382 = vrot.slane %v5879, 7
      %v6383 = vsel %vm5366, %v6381, %v6382
      %v6384 = vrot.slane %v6382, 4
      %v6385 = vrot.slane %v6336, 7
      %v6386 = vsel %vm5366, %v6384, %v6385
      %v6387 = vrot.slane %v6337, 7
      %v6388 = vrot.slane %v6387, 4
      %v6389 = vrot.slane %v5882, 7
      %v6390 = vsel %vm5366, %v6388, %v6389
      %v6391 = vrot.slane %v6389, 4
      %v6392 = vrot.slane %v6338, 7
      %v6393 = vsel %vm5366, %v6391, %v6392
      %v6394 = vrot.slane %v6339, 7
      %v6395 = vrot.slane %v6394, 4
      %v6396 = vrot.slane %v5885, 7
      %v6397 = vsel %vm5366, %v6395, %v6396
      %v6398 = vrot.slane %v6396, 4
      %v6399 = vrot.slane %v6340, 7
      %v6400 = vsel %vm5366, %v6398, %v6399
      %v6401 = vrot.slane %v6341, 7
      %v6402 = vrot.slane %v6401, 4
      %v6403 = vrot.slane %v5888, 7
      %v6404 = vsel %vm5366, %v6402, %v6403
      %v6405 = vrot.slane %v6403, 4
      %v6406 = vrot.slane %v6342, 7
      %v6407 = vsel %vm5366, %v6405, %v6406
      %v6408 = vrot.slane %v6343, 7
      %v6409 = vrot.slane %v6408, 4
      %v6410 = vrot.slane %v5891, 7
      %v6411 = vsel %vm5366, %v6409, %v6410
      %v6412 = vrot.slane %v6410, 4
      %v6413 = vrot.slane %v6344, 7
      %v6414 = vsel %vm5366, %v6412, %v6413
      %v6415 = vrot.slane %v6345, 7
      %v6416 = vrot.slane %v6415, 4
      %v6417 = vrot.slane %v5894, 7
      %v6418 = vsel %vm5366, %v6416, %v6417
      %v6419 = vrot.slane %v6417, 4
      %v6420 = vrot.slane %v6346, 7
      %v6421 = vsel %vm5366, %v6419, %v6420
      %v6422 = vrot.slane %v6347, 7
      %v6423 = vrot.slane %v6422, 4
      %v6424 = vrot.slane %v5897, 7
      %v6425 = vsel %vm5366, %v6423, %v6424
      %v6426 = vrot.slane %v6424, 4
      %v6427 = vrot.slane %v6348, 7
      %v6428 = vsel %vm5366, %v6426, %v6427
      %s6429 = scalar_lea.vmem %s350, 896
      %v6430 = vld [vmem:[%s6429] sm:$0xf]
      %v6431 = vld [vmem:[%s6429 + $0x4] sm:$0xf]
      %v6432 = vld [vmem:[%s6429 + $0x8] sm:$0xf]
      %v6433 = vld [vmem:[%s6429 + $0xc] sm:$0xf]
      %v6434 = vld [vmem:[%s6429 + $0x10] sm:$0xf]
      %v6435 = vld [vmem:[%s6429 + $0x14] sm:$0xf]
      %v6436 = vld [vmem:[%s6429 + $0x18] sm:$0xf]
      %v6437 = vld [vmem:[%s6429 + $0x1c] sm:$0xf]
      %v6438 = vld [vmem:[%s6429 + $0x20] sm:$0xf]
      %v6439 = vld [vmem:[%s6429 + $0x24] sm:$0xf]
      %v6440 = vld [vmem:[%s6429 + $0x28] sm:$0xf]
      %v6441 = vld [vmem:[%s6429 + $0x2c] sm:$0xf]
      %v6442 = vld [vmem:[%s6429 + $0x30] sm:$0xf]
      %v6443 = vld [vmem:[%s6429 + $0x34] sm:$0xf]
      %v6444 = vld [vmem:[%s6429 + $0x38] sm:$0xf]
      %v6445 = vld [vmem:[%s6429 + $0x3c] sm:$0xf]
      %v6446 = vunpack.c.l.b16 %v6376
      %v6447 = vunpack.c.l.b16 %v6379
      %v6448 = vunpack.c.l.b16 %v6383
      %v6449 = vunpack.c.l.b16 %v6386
      %v6450 = vunpack.c.l.b16 %v6390
      %v6451 = vunpack.c.l.b16 %v6393
      %v6452 = vunpack.c.l.b16 %v6397
      %v6453 = vunpack.c.l.b16 %v6400
      %v6454 = vunpack.c.l.b16 %v6404
      %v6455 = vunpack.c.l.b16 %v6407
      %v6456 = vunpack.c.l.b16 %v6411
      %v6457 = vunpack.c.l.b16 %v6414
      %v6458 = vunpack.c.l.b16 %v6418
      %v6459 = vunpack.c.l.b16 %v6421
      %v6460 = vunpack.c.l.b16 %v6425
      %v6461 = vunpack.c.l.b16 %v6428
      %v6462 = vpack.c.b16 %v6447, %v6446
      %v6463 = vpack.c.b16 %v6449, %v6448
      %v6464 = vpack.c.b16 %v6451, %v6450
      %v6465 = vpack.c.b16 %v6453, %v6452
      %v6466 = vpack.c.b16 %v6455, %v6454
      %v6467 = vpack.c.b16 %v6457, %v6456
      %v6468 = vpack.c.b16 %v6459, %v6458
      %v6469 = vpack.c.b16 %v6461, %v6460
      %v6494 = vunpack.c.l.b16 %v6430
      %v6495 = vunpack.c.l.b16 %v6431
      %v6496 = vunpack.c.l.b16 %v6432
      %v6497 = vunpack.c.l.b16 %v6433
      %v6498 = vunpack.c.l.b16 %v6434
      %v6499 = vunpack.c.l.b16 %v6435
      %v6500 = vunpack.c.l.b16 %v6436
      %v6501 = vunpack.c.l.b16 %v6437
      %v6502 = vunpack.c.l.b16 %v6438
      %v6503 = vunpack.c.l.b16 %v6439
      %v6504 = vunpack.c.l.b16 %v6440
      %v6505 = vunpack.c.l.b16 %v6441
      %v6506 = vunpack.c.l.b16 %v6442
      %v6507 = vunpack.c.l.b16 %v6443
      %v6508 = vunpack.c.l.b16 %v6444
      %v6509 = vunpack.c.l.b16 %v6445
      %v6510 = vpack.c.b16 %v6495, %v6494
      %v6511 = vpack.c.b16 %v6497, %v6496
      %v6512 = vpack.c.b16 %v6499, %v6498
      %v6513 = vpack.c.b16 %v6501, %v6500
      %v6514 = vpack.c.b16 %v6503, %v6502
      %v6515 = vpack.c.b16 %v6505, %v6504
      %v6516 = vpack.c.b16 %v6507, %v6506
      %v6517 = vpack.c.b16 %v6509, %v6508
      %6526 = vmatprep.subr.bf16.mxu0 0
      %6527 = vmatpush1.bf16.msra.mxu0 %v6517
      %6528 = vmatprep.subr.bf16.mxu0 0
      %6529 = vmatpush1.bf16.msra.mxu0 %v6516
      %6530 = vmatprep.subr.bf16.mxu0 0
      %6531 = vmatpush1.bf16.msra.mxu0 %v6515
      %6532 = vmatprep.subr.bf16.mxu0 0
      %6533 = vmatpush1.bf16.msra.mxu0 %v6514
      %6534 = vmatprep.subr.bf16.mxu0 0
      %6535 = vmatpush1.bf16.msra.mxu0 %v6513
      %6536 = vmatprep.subr.bf16.mxu0 0
      %6537 = vmatpush1.bf16.msra.mxu0 %v6512
      %6538 = vmatprep.subr.bf16.mxu0 0
      %6539 = vmatpush1.bf16.msra.mxu0 %v6511
      %6540 = vmatprep.subr.bf16.mxu0 0
      %6541 = vmatpush1.bf16.msra.mxu0 %v6510
      %6542 = vmatprep.subr.bf16.mxu0 0
      %6543 = vmatpush2.bf16.msra.mxu0 0
      %6544 = vmatprep.subr.bf16.mxu0 0
      %6545 = vmatpush2.bf16.msra.mxu0 0
      %6546 = vmatprep.subr.bf16.mxu0 0
      %6547 = vmatpush2.bf16.msra.mxu0 0
      %6548 = vmatprep.subr.bf16.mxu0 0
      %6549 = vmatpush2.bf16.msra.mxu0 0
      %6550 = vmatprep.subr.bf16.mxu0 0
      %6551 = vmatpush2.bf16.msra.mxu0 0
      %6552 = vmatprep.subr.bf16.mxu0 0
      %6553 = vmatpush2.bf16.msra.mxu0 0
      %6554 = vmatprep.subr.bf16.mxu0 0
      %6555 = vmatpush2.bf16.msra.mxu0 0
      %6556 = vmatprep.subr.bf16.mxu0 0
      %6557 = vmatpush2.bf16.msra.mxu0 0
      %6558 = vmatprep.mubr.bf16.mxu0 0
      %6559 = vmatmul.mubr.bf16.gmra.mxu0 %v6462
      %v6560 = vpop.f32.mrf.mxu0
      %v6561 = vadd.f32 0.0, %v6560
      %v6562 = vpop.f32.mrf.mxu0
      %v6563 = vpop.f32.mrf.mxu0
      %v6564 = vadd.f32 0.0, %v6563
      %v6565 = vpop.f32.mrf.mxu0
      %6566 = vmatprep.mubr.bf16.mxu0 0
      %6567 = vmatmul.mubr.bf16.gmra.mxu0 %v6463
      %v6568 = vpop.f32.mrf.mxu0
      %v6569 = vadd.f32 0.0, %v6568
      %v6570 = vpop.f32.mrf.mxu0
      %v6571 = vpop.f32.mrf.mxu0
      %v6572 = vadd.f32 0.0, %v6571
      %v6573 = vpop.f32.mrf.mxu0
      %6574 = vmatprep.mubr.bf16.mxu0 0
      %6575 = vmatmul.mubr.bf16.gmra.mxu0 %v6464
      %v6576 = vpop.f32.mrf.mxu0
      %v6577 = vadd.f32 0.0, %v6576
      %v6578 = vpop.f32.mrf.mxu0
      %v6579 = vpop.f32.mrf.mxu0
      %v6580 = vadd.f32 0.0, %v6579
      %v6581 = vpop.f32.mrf.mxu0
      %6582 = vmatprep.mubr.bf16.mxu0 0
      %6583 = vmatmul.mubr.bf16.gmra.mxu0 %v6465
      %v6584 = vpop.f32.mrf.mxu0
      %v6585 = vadd.f32 0.0, %v6584
      %v6586 = vpop.f32.mrf.mxu0
      %v6587 = vpop.f32.mrf.mxu0
      %v6588 = vadd.f32 0.0, %v6587
      %v6589 = vpop.f32.mrf.mxu0
      %6590 = vmatprep.mubr.bf16.mxu0 0
      %6591 = vmatmul.mubr.bf16.gmra.mxu0 %v6466
      %v6592 = vpop.f32.mrf.mxu0
      %v6593 = vadd.f32 0.0, %v6592
      %v6594 = vpop.f32.mrf.mxu0
      %v6595 = vpop.f32.mrf.mxu0
      %v6596 = vadd.f32 0.0, %v6595
      %v6597 = vpop.f32.mrf.mxu0
      %6598 = vmatprep.mubr.bf16.mxu0 0
      %6599 = vmatmul.mubr.bf16.gmra.mxu0 %v6467
      %v6600 = vpop.f32.mrf.mxu0
      %v6601 = vadd.f32 0.0, %v6600
      %v6602 = vpop.f32.mrf.mxu0
      %v6603 = vpop.f32.mrf.mxu0
      %v6604 = vadd.f32 0.0, %v6603
      %v6605 = vpop.f32.mrf.mxu0
      %6606 = vmatprep.mubr.bf16.mxu0 0
      %6607 = vmatmul.mubr.bf16.gmra.mxu0 %v6468
      %v6608 = vpop.f32.mrf.mxu0
      %v6609 = vadd.f32 0.0, %v6608
      %v6610 = vpop.f32.mrf.mxu0
      %v6611 = vpop.f32.mrf.mxu0
      %v6612 = vadd.f32 0.0, %v6611
      %v6613 = vpop.f32.mrf.mxu0
      %6614 = vmatprep.mubr.bf16.mxu0 0
      %6615 = vmatmul.mubr.bf16.gmra.mxu0 %v6469
      %v6616 = vpop.f32.mrf.mxu0
      %v6617 = vadd.f32 0.0, %v6616
      %v6618 = vpop.f32.mrf.mxu0
      %v6619 = vpop.f32.mrf.mxu0
      %v6620 = vadd.f32 0.0, %v6619
      %v6621 = vpop.f32.mrf.mxu0
      %6622 = vdwg.mxu0
      %v6623 = vadd.f32 %v6317, %v6561
      %v6624 = vadd.f32 %v6318, %v6564
      %v6625 = vadd.f32 %v6319, %v6569
      %v6626 = vadd.f32 %v6320, %v6572
      %v6627 = vadd.f32 %v6321, %v6577
      %v6628 = vadd.f32 %v6322, %v6580
      %v6629 = vadd.f32 %v6323, %v6585
      %v6630 = vadd.f32 %v6324, %v6588
      %v6631 = vadd.f32 %v6325, %v6593
      %v6632 = vadd.f32 %v6326, %v6596
      %v6633 = vadd.f32 %v6327, %v6601
      %v6634 = vadd.f32 %v6328, %v6604
      %v6635 = vadd.f32 %v6329, %v6609
      %v6636 = vadd.f32 %v6330, %v6612
      %v6637 = vadd.f32 %v6331, %v6617
      %v6638 = vadd.f32 %v6332, %v6620
      %s6639 = scalar_lea.vmem %s339, 72
      %v6640 = vld [vmem:[%s6639] sm:$0xf]
      %v6641 = vld [vmem:[%s6639 + $0x4] sm:$0xf]
      %v6642 = vld [vmem:[%s6639 + $0xc] sm:$0xf]
      %v6643 = vld [vmem:[%s6639 + $0x10] sm:$0xf]
      %v6644 = vld [vmem:[%s6639 + $0x18] sm:$0xf]
      %v6645 = vld [vmem:[%s6639 + $0x1c] sm:$0xf]
      %v6646 = vld [vmem:[%s6639 + $0x24] sm:$0xf]
      %v6647 = vld [vmem:[%s6639 + $0x28] sm:$0xf]
      %v6648 = vld [vmem:[%s6639 + $0x30] sm:$0xf]
      %v6649 = vld [vmem:[%s6639 + $0x34] sm:$0xf]
      %v6650 = vld [vmem:[%s6639 + $0x3c] sm:$0xf]
      %v6651 = vld [vmem:[%s6639 + $0x40] sm:$0xf]
      %v6652 = vld [vmem:[%s6639 + $0x48] sm:$0xf]
      %v6653 = vld [vmem:[%s6639 + $0x4c] sm:$0xf]
      %v6654 = vld [vmem:[%s6639 + $0x54] sm:$0xf]
      %v6655 = vld [vmem:[%s6639 + $0x58] sm:$0xf]
      %s6656 = scalar_lea.vmem %s350, 960
      %v6657 = vld [vmem:[%s6656] sm:$0xf]
      %v6658 = vld [vmem:[%s6656 + $0x4] sm:$0xf]
      %v6659 = vld [vmem:[%s6656 + $0x8] sm:$0xf]
      %v6660 = vld [vmem:[%s6656 + $0xc] sm:$0xf]
      %v6661 = vld [vmem:[%s6656 + $0x10] sm:$0xf]
      %v6662 = vld [vmem:[%s6656 + $0x14] sm:$0xf]
      %v6663 = vld [vmem:[%s6656 + $0x18] sm:$0xf]
      %v6664 = vld [vmem:[%s6656 + $0x1c] sm:$0xf]
      %v6665 = vld [vmem:[%s6656 + $0x20] sm:$0xf]
      %v6666 = vld [vmem:[%s6656 + $0x24] sm:$0xf]
      %v6667 = vld [vmem:[%s6656 + $0x28] sm:$0xf]
      %v6668 = vld [vmem:[%s6656 + $0x2c] sm:$0xf]
      %v6669 = vld [vmem:[%s6656 + $0x30] sm:$0xf]
      %v6670 = vld [vmem:[%s6656 + $0x34] sm:$0xf]
      %v6671 = vld [vmem:[%s6656 + $0x38] sm:$0xf]
      %v6672 = vld [vmem:[%s6656 + $0x3c] sm:$0xf]
      %v6689 = vunpack.c.l.b16 %v6640
      %v6690 = vunpack.c.l.b16 %v6641
      %v6691 = vunpack.c.l.b16 %v6642
      %v6692 = vunpack.c.l.b16 %v6643
      %v6693 = vunpack.c.l.b16 %v6644
      %v6694 = vunpack.c.l.b16 %v6645
      %v6695 = vunpack.c.l.b16 %v6646
      %v6696 = vunpack.c.l.b16 %v6647
      %v6697 = vunpack.c.l.b16 %v6648
      %v6698 = vunpack.c.l.b16 %v6649
      %v6699 = vunpack.c.l.b16 %v6650
      %v6700 = vunpack.c.l.b16 %v6651
      %v6701 = vunpack.c.l.b16 %v6652
      %v6702 = vunpack.c.l.b16 %v6653
      %v6703 = vunpack.c.l.b16 %v6654
      %v6704 = vunpack.c.l.b16 %v6655
      %v6705 = vpack.c.b16 %v6690, %v6689
      %v6706 = vpack.c.b16 %v6692, %v6691
      %v6707 = vpack.c.b16 %v6694, %v6693
      %v6708 = vpack.c.b16 %v6696, %v6695
      %v6709 = vpack.c.b16 %v6698, %v6697
      %v6710 = vpack.c.b16 %v6700, %v6699
      %v6711 = vpack.c.b16 %v6702, %v6701
      %v6712 = vpack.c.b16 %v6704, %v6703
      %v6737 = vunpack.c.l.b16 %v6657
      %v6738 = vunpack.c.l.b16 %v6658
      %v6739 = vunpack.c.l.b16 %v6659
      %v6740 = vunpack.c.l.b16 %v6660
      %v6741 = vunpack.c.l.b16 %v6661
      %v6742 = vunpack.c.l.b16 %v6662
      %v6743 = vunpack.c.l.b16 %v6663
      %v6744 = vunpack.c.l.b16 %v6664
      %v6745 = vunpack.c.l.b16 %v6665
      %v6746 = vunpack.c.l.b16 %v6666
      %v6747 = vunpack.c.l.b16 %v6667
      %v6748 = vunpack.c.l.b16 %v6668
      %v6749 = vunpack.c.l.b16 %v6669
      %v6750 = vunpack.c.l.b16 %v6670
      %v6751 = vunpack.c.l.b16 %v6671
      %v6752 = vunpack.c.l.b16 %v6672
      %v6753 = vpack.c.b16 %v6738, %v6737
      %v6754 = vpack.c.b16 %v6740, %v6739
      %v6755 = vpack.c.b16 %v6742, %v6741
      %v6756 = vpack.c.b16 %v6744, %v6743
      %v6757 = vpack.c.b16 %v6746, %v6745
      %v6758 = vpack.c.b16 %v6748, %v6747
      %v6759 = vpack.c.b16 %v6750, %v6749
      %v6760 = vpack.c.b16 %v6752, %v6751
      %6769 = vmatprep.subr.bf16.mxu0 0
      %6770 = vmatpush1.bf16.msra.mxu0 %v6760
      %6771 = vmatprep.subr.bf16.mxu0 0
      %6772 = vmatpush1.bf16.msra.mxu0 %v6759
      %6773 = vmatprep.subr.bf16.mxu0 0
      %6774 = vmatpush1.bf16.msra.mxu0 %v6758
      %6775 = vmatprep.subr.bf16.mxu0 0
      %6776 = vmatpush1.bf16.msra.mxu0 %v6757
      %6777 = vmatprep.subr.bf16.mxu0 0
      %6778 = vmatpush1.bf16.msra.mxu0 %v6756
      %6779 = vmatprep.subr.bf16.mxu0 0
      %6780 = vmatpush1.bf16.msra.mxu0 %v6755
      %6781 = vmatprep.subr.bf16.mxu0 0
      %6782 = vmatpush1.bf16.msra.mxu0 %v6754
      %6783 = vmatprep.subr.bf16.mxu0 0
      %6784 = vmatpush1.bf16.msra.mxu0 %v6753
      %6785 = vmatprep.subr.bf16.mxu0 0
      %6786 = vmatpush2.bf16.msra.mxu0 0
      %6787 = vmatprep.subr.bf16.mxu0 0
      %6788 = vmatpush2.bf16.msra.mxu0 0
      %6789 = vmatprep.subr.bf16.mxu0 0
      %6790 = vmatpush2.bf16.msra.mxu0 0
      %6791 = vmatprep.subr.bf16.mxu0 0
      %6792 = vmatpush2.bf16.msra.mxu0 0
      %6793 = vmatprep.subr.bf16.mxu0 0
      %6794 = vmatpush2.bf16.msra.mxu0 0
      %6795 = vmatprep.subr.bf16.mxu0 0
      %6796 = vmatpush2.bf16.msra.mxu0 0
      %6797 = vmatprep.subr.bf16.mxu0 0
      %6798 = vmatpush2.bf16.msra.mxu0 0
      %6799 = vmatprep.subr.bf16.mxu0 0
      %6800 = vmatpush2.bf16.msra.mxu0 0
      %6801 = vmatprep.mubr.bf16.mxu0 0
      %6802 = vmatmul.mubr.bf16.gmra.mxu0 %v6705
      %v6803 = vpop.f32.mrf.mxu0
      %v6804 = vadd.f32 0.0, %v6803
      %v6805 = vpop.f32.mrf.mxu0
      %v6806 = vpop.f32.mrf.mxu0
      %v6807 = vadd.f32 0.0, %v6806
      %v6808 = vpop.f32.mrf.mxu0
      %6809 = vmatprep.mubr.bf16.mxu0 0
      %6810 = vmatmul.mubr.bf16.gmra.mxu0 %v6706
      %v6811 = vpop.f32.mrf.mxu0
      %v6812 = vadd.f32 0.0, %v6811
      %v6813 = vpop.f32.mrf.mxu0
      %v6814 = vpop.f32.mrf.mxu0
      %v6815 = vadd.f32 0.0, %v6814
      %v6816 = vpop.f32.mrf.mxu0
      %6817 = vmatprep.mubr.bf16.mxu0 0
      %6818 = vmatmul.mubr.bf16.gmra.mxu0 %v6707
      %v6819 = vpop.f32.mrf.mxu0
      %v6820 = vadd.f32 0.0, %v6819
      %v6821 = vpop.f32.mrf.mxu0
      %v6822 = vpop.f32.mrf.mxu0
      %v6823 = vadd.f32 0.0, %v6822
      %v6824 = vpop.f32.mrf.mxu0
      %6825 = vmatprep.mubr.bf16.mxu0 0
      %6826 = vmatmul.mubr.bf16.gmra.mxu0 %v6708
      %v6827 = vpop.f32.mrf.mxu0
      %v6828 = vadd.f32 0.0, %v6827
      %v6829 = vpop.f32.mrf.mxu0
      %v6830 = vpop.f32.mrf.mxu0
      %v6831 = vadd.f32 0.0, %v6830
      %v6832 = vpop.f32.mrf.mxu0
      %6833 = vmatprep.mubr.bf16.mxu0 0
      %6834 = vmatmul.mubr.bf16.gmra.mxu0 %v6709
      %v6835 = vpop.f32.mrf.mxu0
      %v6836 = vadd.f32 0.0, %v6835
      %v6837 = vpop.f32.mrf.mxu0
      %v6838 = vpop.f32.mrf.mxu0
      %v6839 = vadd.f32 0.0, %v6838
      %v6840 = vpop.f32.mrf.mxu0
      %6841 = vmatprep.mubr.bf16.mxu0 0
      %6842 = vmatmul.mubr.bf16.gmra.mxu0 %v6710
      %v6843 = vpop.f32.mrf.mxu0
      %v6844 = vadd.f32 0.0, %v6843
      %v6845 = vpop.f32.mrf.mxu0
      %v6846 = vpop.f32.mrf.mxu0
      %v6847 = vadd.f32 0.0, %v6846
      %v6848 = vpop.f32.mrf.mxu0
      %6849 = vmatprep.mubr.bf16.mxu0 0
      %6850 = vmatmul.mubr.bf16.gmra.mxu0 %v6711
      %v6851 = vpop.f32.mrf.mxu0
      %v6852 = vadd.f32 0.0, %v6851
      %v6853 = vpop.f32.mrf.mxu0
      %v6854 = vpop.f32.mrf.mxu0
      %v6855 = vadd.f32 0.0, %v6854
      %v6856 = vpop.f32.mrf.mxu0
      %6857 = vmatprep.mubr.bf16.mxu0 0
      %6858 = vmatmul.mubr.bf16.gmra.mxu0 %v6712
      %v6859 = vpop.f32.mrf.mxu0
      %v6860 = vadd.f32 0.0, %v6859
      %v6861 = vpop.f32.mrf.mxu0
      %v6862 = vpop.f32.mrf.mxu0
      %v6863 = vadd.f32 0.0, %v6862
      %v6864 = vpop.f32.mrf.mxu0
      %6865 = vdwg.mxu0
      %v6866 = vadd.f32 %v6623, %v6804
      %v6867 = vadd.f32 %v6624, %v6807
      %v6868 = vadd.f32 %v6625, %v6812
      %v6869 = vadd.f32 %v6626, %v6815
      %v6870 = vadd.f32 %v6627, %v6820
      %v6871 = vadd.f32 %v6628, %v6823
      %v6872 = vadd.f32 %v6629, %v6828
      %v6873 = vadd.f32 %v6630, %v6831
      %v6874 = vadd.f32 %v6631, %v6836
      %v6875 = vadd.f32 %v6632, %v6839
      %v6876 = vadd.f32 %v6633, %v6844
      %v6877 = vadd.f32 %v6634, %v6847
      %v6878 = vadd.f32 %v6635, %v6852
      %v6879 = vadd.f32 %v6636, %v6855
      %v6880 = vadd.f32 %v6637, %v6860
      %v6881 = vadd.f32 %v6638, %v6863
      %v6882 = vld [vmem:[%s6639] sm:$0xe]
      %v6883 = vld [vmem:[%s6639 + $0x4] sm:$0xf]
      %v6884 = vld [vmem:[%s6639 + $0x8] sm:$0x3]
      %v6885 = vld [vmem:[%s6639 + $0xc] sm:$0xe]
      %v6886 = vld [vmem:[%s6639 + $0x10] sm:$0xf]
      %v6887 = vld [vmem:[%s6639 + $0x14] sm:$0x3]
      %v6888 = vld [vmem:[%s6639 + $0x18] sm:$0xe]
      %v6889 = vld [vmem:[%s6639 + $0x1c] sm:$0xf]
      %v6890 = vld [vmem:[%s6639 + $0x20] sm:$0x3]
      %v6891 = vld [vmem:[%s6639 + $0x24] sm:$0xe]
      %v6892 = vld [vmem:[%s6639 + $0x28] sm:$0xf]
      %v6893 = vld [vmem:[%s6639 + $0x2c] sm:$0x3]
      %v6894 = vld [vmem:[%s6639 + $0x30] sm:$0xe]
      %v6895 = vld [vmem:[%s6639 + $0x34] sm:$0xf]
      %v6896 = vld [vmem:[%s6639 + $0x38] sm:$0x3]
      %v6897 = vld [vmem:[%s6639 + $0x3c] sm:$0xe]
      %v6898 = vld [vmem:[%s6639 + $0x40] sm:$0xf]
      %v6899 = vld [vmem:[%s6639 + $0x44] sm:$0x3]
      %v6900 = vld [vmem:[%s6639 + $0x48] sm:$0xe]
      %v6901 = vld [vmem:[%s6639 + $0x4c] sm:$0xf]
      %v6902 = vld [vmem:[%s6639 + $0x50] sm:$0x3]
      %v6903 = vld [vmem:[%s6639 + $0x54] sm:$0xe]
      %v6904 = vld [vmem:[%s6639 + $0x58] sm:$0xf]
      %v6905 = vld [vmem:[%s6639 + $0x5c] sm:$0x3]
      %v6907 = vshrl.u32 %v6882, 16
      %v6909 = vrot.slane %v6907, 5
      %v6910 = vshll.u32 %v6882, 16
      %v6912 = vrot.slane %v6910, 6
      %v6913 = vor.u32 %v6909, %v6912
      %v6914 = vrot.slane %v6913, 4
      %v6916 = vshrl.u32 %v6883, 16
      %v6918 = vrot.slane %v6916, 5
      %v6919 = vshll.u32 %v6883, 16
      %v6921 = vrot.slane %v6919, 6
      %v6922 = vor.u32 %v6918, %v6921
      %v6923 = vsel %vm460, %v6914, %v6922
      %v6924 = vrot.slane %v6922, 4
      %v6926 = vshrl.u32 %v6884, 16
      %v6928 = vrot.slane %v6926, 5
      %v6929 = vshll.u32 %v6884, 16
      %v6931 = vrot.slane %v6929, 6
      %v6932 = vor.u32 %v6928, %v6931
      %v6933 = vsel %vm460, %v6924, %v6932
      %v6935 = vshrl.u32 %v6885, 16
      %v6937 = vrot.slane %v6935, 5
      %v6938 = vshll.u32 %v6885, 16
      %v6940 = vrot.slane %v6938, 6
      %v6941 = vor.u32 %v6937, %v6940
      %v6942 = vrot.slane %v6941, 4
      %v6944 = vshrl.u32 %v6886, 16
      %v6946 = vrot.slane %v6944, 5
      %v6947 = vshll.u32 %v6886, 16
      %v6949 = vrot.slane %v6947, 6
      %v6950 = vor.u32 %v6946, %v6949
      %v6951 = vsel %vm460, %v6942, %v6950
      %v6952 = vrot.slane %v6950, 4
      %v6954 = vshrl.u32 %v6887, 16
      %v6956 = vrot.slane %v6954, 5
      %v6957 = vshll.u32 %v6887, 16
      %v6959 = vrot.slane %v6957, 6
      %v6960 = vor.u32 %v6956, %v6959
      %v6961 = vsel %vm460, %v6952, %v6960
      %v6963 = vshrl.u32 %v6888, 16
      %v6965 = vrot.slane %v6963, 5
      %v6966 = vshll.u32 %v6888, 16
      %v6968 = vrot.slane %v6966, 6
      %v6969 = vor.u32 %v6965, %v6968
      %v6970 = vrot.slane %v6969, 4
      %v6972 = vshrl.u32 %v6889, 16
      %v6974 = vrot.slane %v6972, 5
      %v6975 = vshll.u32 %v6889, 16
      %v6977 = vrot.slane %v6975, 6
      %v6978 = vor.u32 %v6974, %v6977
      %v6979 = vsel %vm460, %v6970, %v6978
      %v6980 = vrot.slane %v6978, 4
      %v6982 = vshrl.u32 %v6890, 16
      %v6984 = vrot.slane %v6982, 5
      %v6985 = vshll.u32 %v6890, 16
      %v6987 = vrot.slane %v6985, 6
      %v6988 = vor.u32 %v6984, %v6987
      %v6989 = vsel %vm460, %v6980, %v6988
      %v6991 = vshrl.u32 %v6891, 16
      %v6993 = vrot.slane %v6991, 5
      %v6994 = vshll.u32 %v6891, 16
      %v6996 = vrot.slane %v6994, 6
      %v6997 = vor.u32 %v6993, %v6996
      %v6998 = vrot.slane %v6997, 4
      %v7000 = vshrl.u32 %v6892, 16
      %v7002 = vrot.slane %v7000, 5
      %v7003 = vshll.u32 %v6892, 16
      %v7005 = vrot.slane %v7003, 6
      %v7006 = vor.u32 %v7002, %v7005
      %v7007 = vsel %vm460, %v6998, %v7006
      %v7008 = vrot.slane %v7006, 4
      %v7010 = vshrl.u32 %v6893, 16
      %v7012 = vrot.slane %v7010, 5
      %v7013 = vshll.u32 %v6893, 16
      %v7015 = vrot.slane %v7013, 6
      %v7016 = vor.u32 %v7012, %v7015
      %v7017 = vsel %vm460, %v7008, %v7016
      %v7019 = vshrl.u32 %v6894, 16
      %v7021 = vrot.slane %v7019, 5
      %v7022 = vshll.u32 %v6894, 16
      %v7024 = vrot.slane %v7022, 6
      %v7025 = vor.u32 %v7021, %v7024
      %v7026 = vrot.slane %v7025, 4
      %v7028 = vshrl.u32 %v6895, 16
      %v7030 = vrot.slane %v7028, 5
      %v7031 = vshll.u32 %v6895, 16
      %v7033 = vrot.slane %v7031, 6
      %v7034 = vor.u32 %v7030, %v7033
      %v7035 = vsel %vm460, %v7026, %v7034
      %v7036 = vrot.slane %v7034, 4
      %v7038 = vshrl.u32 %v6896, 16
      %v7040 = vrot.slane %v7038, 5
      %v7041 = vshll.u32 %v6896, 16
      %v7043 = vrot.slane %v7041, 6
      %v7044 = vor.u32 %v7040, %v7043
      %v7045 = vsel %vm460, %v7036, %v7044
      %v7047 = vshrl.u32 %v6897, 16
      %v7049 = vrot.slane %v7047, 5
      %v7050 = vshll.u32 %v6897, 16
      %v7052 = vrot.slane %v7050, 6
      %v7053 = vor.u32 %v7049, %v7052
      %v7054 = vrot.slane %v7053, 4
      %v7056 = vshrl.u32 %v6898, 16
      %v7058 = vrot.slane %v7056, 5
      %v7059 = vshll.u32 %v6898, 16
      %v7061 = vrot.slane %v7059, 6
      %v7062 = vor.u32 %v7058, %v7061
      %v7063 = vsel %vm460, %v7054, %v7062
      %v7064 = vrot.slane %v7062, 4
      %v7066 = vshrl.u32 %v6899, 16
      %v7068 = vrot.slane %v7066, 5
      %v7069 = vshll.u32 %v6899, 16
      %v7071 = vrot.slane %v7069, 6
      %v7072 = vor.u32 %v7068, %v7071
      %v7073 = vsel %vm460, %v7064, %v7072
      %v7075 = vshrl.u32 %v6900, 16
      %v7077 = vrot.slane %v7075, 5
      %v7078 = vshll.u32 %v6900, 16
      %v7080 = vrot.slane %v7078, 6
      %v7081 = vor.u32 %v7077, %v7080
      %v7082 = vrot.slane %v7081, 4
      %v7084 = vshrl.u32 %v6901, 16
      %v7086 = vrot.slane %v7084, 5
      %v7087 = vshll.u32 %v6901, 16
      %v7089 = vrot.slane %v7087, 6
      %v7090 = vor.u32 %v7086, %v7089
      %v7091 = vsel %vm460, %v7082, %v7090
      %v7092 = vrot.slane %v7090, 4
      %v7094 = vshrl.u32 %v6902, 16
      %v7096 = vrot.slane %v7094, 5
      %v7097 = vshll.u32 %v6902, 16
      %v7099 = vrot.slane %v7097, 6
      %v7100 = vor.u32 %v7096, %v7099
      %v7101 = vsel %vm460, %v7092, %v7100
      %v7103 = vshrl.u32 %v6903, 16
      %v7105 = vrot.slane %v7103, 5
      %v7106 = vshll.u32 %v6903, 16
      %v7108 = vrot.slane %v7106, 6
      %v7109 = vor.u32 %v7105, %v7108
      %v7110 = vrot.slane %v7109, 4
      %v7112 = vshrl.u32 %v6904, 16
      %v7114 = vrot.slane %v7112, 5
      %v7115 = vshll.u32 %v6904, 16
      %v7117 = vrot.slane %v7115, 6
      %v7118 = vor.u32 %v7114, %v7117
      %v7119 = vsel %vm460, %v7110, %v7118
      %v7120 = vrot.slane %v7118, 4
      %v7122 = vshrl.u32 %v6905, 16
      %v7124 = vrot.slane %v7122, 5
      %v7125 = vshll.u32 %v6905, 16
      %v7127 = vrot.slane %v7125, 6
      %v7128 = vor.u32 %v7124, %v7127
      %v7129 = vsel %vm460, %v7120, %v7128
      %s7130 = scalar_lea.vmem %s350, 1024
      %v7131 = vld [vmem:[%s7130] sm:$0xf]
      %v7132 = vld [vmem:[%s7130 + $0x4] sm:$0xf]
      %v7133 = vld [vmem:[%s7130 + $0x8] sm:$0xf]
      %v7134 = vld [vmem:[%s7130 + $0xc] sm:$0xf]
      %v7135 = vld [vmem:[%s7130 + $0x10] sm:$0xf]
      %v7136 = vld [vmem:[%s7130 + $0x14] sm:$0xf]
      %v7137 = vld [vmem:[%s7130 + $0x18] sm:$0xf]
      %v7138 = vld [vmem:[%s7130 + $0x1c] sm:$0xf]
      %v7139 = vld [vmem:[%s7130 + $0x20] sm:$0xf]
      %v7140 = vld [vmem:[%s7130 + $0x24] sm:$0xf]
      %v7141 = vld [vmem:[%s7130 + $0x28] sm:$0xf]
      %v7142 = vld [vmem:[%s7130 + $0x2c] sm:$0xf]
      %v7143 = vld [vmem:[%s7130 + $0x30] sm:$0xf]
      %v7144 = vld [vmem:[%s7130 + $0x34] sm:$0xf]
      %v7145 = vld [vmem:[%s7130 + $0x38] sm:$0xf]
      %v7146 = vld [vmem:[%s7130 + $0x3c] sm:$0xf]
      %v7147 = vunpack.c.l.b16 %v6923
      %v7148 = vunpack.c.l.b16 %v6933
      %v7149 = vunpack.c.l.b16 %v6951
      %v7150 = vunpack.c.l.b16 %v6961
      %v7151 = vunpack.c.l.b16 %v6979
      %v7152 = vunpack.c.l.b16 %v6989
      %v7153 = vunpack.c.l.b16 %v7007
      %v7154 = vunpack.c.l.b16 %v7017
      %v7155 = vunpack.c.l.b16 %v7035
      %v7156 = vunpack.c.l.b16 %v7045
      %v7157 = vunpack.c.l.b16 %v7063
      %v7158 = vunpack.c.l.b16 %v7073
      %v7159 = vunpack.c.l.b16 %v7091
      %v7160 = vunpack.c.l.b16 %v7101
      %v7161 = vunpack.c.l.b16 %v7119
      %v7162 = vunpack.c.l.b16 %v7129
      %v7163 = vpack.c.b16 %v7148, %v7147
      %v7164 = vpack.c.b16 %v7150, %v7149
      %v7165 = vpack.c.b16 %v7152, %v7151
      %v7166 = vpack.c.b16 %v7154, %v7153
      %v7167 = vpack.c.b16 %v7156, %v7155
      %v7168 = vpack.c.b16 %v7158, %v7157
      %v7169 = vpack.c.b16 %v7160, %v7159
      %v7170 = vpack.c.b16 %v7162, %v7161
      %v7195 = vunpack.c.l.b16 %v7131
      %v7196 = vunpack.c.l.b16 %v7132
      %v7197 = vunpack.c.l.b16 %v7133
      %v7198 = vunpack.c.l.b16 %v7134
      %v7199 = vunpack.c.l.b16 %v7135
      %v7200 = vunpack.c.l.b16 %v7136
      %v7201 = vunpack.c.l.b16 %v7137
      %v7202 = vunpack.c.l.b16 %v7138
      %v7203 = vunpack.c.l.b16 %v7139
      %v7204 = vunpack.c.l.b16 %v7140
      %v7205 = vunpack.c.l.b16 %v7141
      %v7206 = vunpack.c.l.b16 %v7142
      %v7207 = vunpack.c.l.b16 %v7143
      %v7208 = vunpack.c.l.b16 %v7144
      %v7209 = vunpack.c.l.b16 %v7145
      %v7210 = vunpack.c.l.b16 %v7146
      %v7211 = vpack.c.b16 %v7196, %v7195
      %v7212 = vpack.c.b16 %v7198, %v7197
      %v7213 = vpack.c.b16 %v7200, %v7199
      %v7214 = vpack.c.b16 %v7202, %v7201
      %v7215 = vpack.c.b16 %v7204, %v7203
      %v7216 = vpack.c.b16 %v7206, %v7205
      %v7217 = vpack.c.b16 %v7208, %v7207
      %v7218 = vpack.c.b16 %v7210, %v7209
      %7227 = vmatprep.subr.bf16.mxu0 0
      %7228 = vmatpush1.bf16.msra.mxu0 %v7218
      %7229 = vmatprep.subr.bf16.mxu0 0
      %7230 = vmatpush1.bf16.msra.mxu0 %v7217
      %7231 = vmatprep.subr.bf16.mxu0 0
      %7232 = vmatpush1.bf16.msra.mxu0 %v7216
      %7233 = vmatprep.subr.bf16.mxu0 0
      %7234 = vmatpush1.bf16.msra.mxu0 %v7215
      %7235 = vmatprep.subr.bf16.mxu0 0
      %7236 = vmatpush1.bf16.msra.mxu0 %v7214
      %7237 = vmatprep.subr.bf16.mxu0 0
      %7238 = vmatpush1.bf16.msra.mxu0 %v7213
      %7239 = vmatprep.subr.bf16.mxu0 0
      %7240 = vmatpush1.bf16.msra.mxu0 %v7212
      %7241 = vmatprep.subr.bf16.mxu0 0
      %7242 = vmatpush1.bf16.msra.mxu0 %v7211
      %7243 = vmatprep.subr.bf16.mxu0 0
      %7244 = vmatpush2.bf16.msra.mxu0 0
      %7245 = vmatprep.subr.bf16.mxu0 0
      %7246 = vmatpush2.bf16.msra.mxu0 0
      %7247 = vmatprep.subr.bf16.mxu0 0
      %7248 = vmatpush2.bf16.msra.mxu0 0
      %7249 = vmatprep.subr.bf16.mxu0 0
      %7250 = vmatpush2.bf16.msra.mxu0 0
      %7251 = vmatprep.subr.bf16.mxu0 0
      %7252 = vmatpush2.bf16.msra.mxu0 0
      %7253 = vmatprep.subr.bf16.mxu0 0
      %7254 = vmatpush2.bf16.msra.mxu0 0
      %7255 = vmatprep.subr.bf16.mxu0 0
      %7256 = vmatpush2.bf16.msra.mxu0 0
      %7257 = vmatprep.subr.bf16.mxu0 0
      %7258 = vmatpush2.bf16.msra.mxu0 0
      %7259 = vmatprep.mubr.bf16.mxu0 0
      %7260 = vmatmul.mubr.bf16.gmra.mxu0 %v7163
      %v7261 = vpop.f32.mrf.mxu0
      %v7262 = vadd.f32 0.0, %v7261
      %v7263 = vpop.f32.mrf.mxu0
      %v7264 = vpop.f32.mrf.mxu0
      %v7265 = vadd.f32 0.0, %v7264
      %v7266 = vpop.f32.mrf.mxu0
      %7267 = vmatprep.mubr.bf16.mxu0 0
      %7268 = vmatmul.mubr.bf16.gmra.mxu0 %v7164
      %v7269 = vpop.f32.mrf.mxu0
      %v7270 = vadd.f32 0.0, %v7269
      %v7271 = vpop.f32.mrf.mxu0
      %v7272 = vpop.f32.mrf.mxu0
      %v7273 = vadd.f32 0.0, %v7272
      %v7274 = vpop.f32.mrf.mxu0
      %7275 = vmatprep.mubr.bf16.mxu0 0
      %7276 = vmatmul.mubr.bf16.gmra.mxu0 %v7165
      %v7277 = vpop.f32.mrf.mxu0
      %v7278 = vadd.f32 0.0, %v7277
      %v7279 = vpop.f32.mrf.mxu0
      %v7280 = vpop.f32.mrf.mxu0
      %v7281 = vadd.f32 0.0, %v7280
      %v7282 = vpop.f32.mrf.mxu0
      %7283 = vmatprep.mubr.bf16.mxu0 0
      %7284 = vmatmul.mubr.bf16.gmra.mxu0 %v7166
      %v7285 = vpop.f32.mrf.mxu0
      %v7286 = vadd.f32 0.0, %v7285
      %v7287 = vpop.f32.mrf.mxu0
      %v7288 = vpop.f32.mrf.mxu0
      %v7289 = vadd.f32 0.0, %v7288
      %v7290 = vpop.f32.mrf.mxu0
      %7291 = vmatprep.mubr.bf16.mxu0 0
      %7292 = vmatmul.mubr.bf16.gmra.mxu0 %v7167
      %v7293 = vpop.f32.mrf.mxu0
      %v7294 = vadd.f32 0.0, %v7293
      %v7295 = vpop.f32.mrf.mxu0
      %v7296 = vpop.f32.mrf.mxu0
      %v7297 = vadd.f32 0.0, %v7296
      %v7298 = vpop.f32.mrf.mxu0
      %7299 = vmatprep.mubr.bf16.mxu0 0
      %7300 = vmatmul.mubr.bf16.gmra.mxu0 %v7168
      %v7301 = vpop.f32.mrf.mxu0
      %v7302 = vadd.f32 0.0, %v7301
      %v7303 = vpop.f32.mrf.mxu0
      %v7304 = vpop.f32.mrf.mxu0
      %v7305 = vadd.f32 0.0, %v7304
      %v7306 = vpop.f32.mrf.mxu0
      %7307 = vmatprep.mubr.bf16.mxu0 0
      %7308 = vmatmul.mubr.bf16.gmra.mxu0 %v7169
      %v7309 = vpop.f32.mrf.mxu0
      %v7310 = vadd.f32 0.0, %v7309
      %v7311 = vpop.f32.mrf.mxu0
      %v7312 = vpop.f32.mrf.mxu0
      %v7313 = vadd.f32 0.0, %v7312
      %v7314 = vpop.f32.mrf.mxu0
      %7315 = vmatprep.mubr.bf16.mxu0 0
      %7316 = vmatmul.mubr.bf16.gmra.mxu0 %v7170
      %v7317 = vpop.f32.mrf.mxu0
      %v7318 = vadd.f32 0.0, %v7317
      %v7319 = vpop.f32.mrf.mxu0
      %v7320 = vpop.f32.mrf.mxu0
      %v7321 = vadd.f32 0.0, %v7320
      %v7322 = vpop.f32.mrf.mxu0
      %7323 = vdwg.mxu0
      %v7324 = vadd.f32 %v6866, %v7262
      %v7325 = vadd.f32 %v6867, %v7265
      %v7326 = vadd.f32 %v6868, %v7270
      %v7327 = vadd.f32 %v6869, %v7273
      %v7328 = vadd.f32 %v6870, %v7278
      %v7329 = vadd.f32 %v6871, %v7281
      %v7330 = vadd.f32 %v6872, %v7286
      %v7331 = vadd.f32 %v6873, %v7289
      %v7332 = vadd.f32 %v6874, %v7294
      %v7333 = vadd.f32 %v6875, %v7297
      %v7334 = vadd.f32 %v6876, %v7302
      %v7335 = vadd.f32 %v6877, %v7305
      %v7336 = vadd.f32 %v6878, %v7310
      %v7337 = vadd.f32 %v6879, %v7313
      %v7338 = vadd.f32 %v6880, %v7318
      %v7339 = vadd.f32 %v6881, %v7321
      %v7340 = vld [vmem:[%s6639] sm:$0x8]
      %v7341 = vld [vmem:[%s6639 + $0x8] sm:$0x7]
      %v7342 = vld [vmem:[%s6639 + $0xc] sm:$0x8]
      %v7343 = vld [vmem:[%s6639 + $0x14] sm:$0x7]
      %v7344 = vld [vmem:[%s6639 + $0x18] sm:$0x8]
      %v7345 = vld [vmem:[%s6639 + $0x20] sm:$0x7]
      %v7346 = vld [vmem:[%s6639 + $0x24] sm:$0x8]
      %v7347 = vld [vmem:[%s6639 + $0x2c] sm:$0x7]
      %v7348 = vld [vmem:[%s6639 + $0x30] sm:$0x8]
      %v7349 = vld [vmem:[%s6639 + $0x38] sm:$0x7]
      %v7350 = vld [vmem:[%s6639 + $0x3c] sm:$0x8]
      %v7351 = vld [vmem:[%s6639 + $0x44] sm:$0x7]
      %v7352 = vld [vmem:[%s6639 + $0x48] sm:$0x8]
      %v7353 = vld [vmem:[%s6639 + $0x50] sm:$0x7]
      %v7354 = vld [vmem:[%s6639 + $0x54] sm:$0x8]
      %v7355 = vld [vmem:[%s6639 + $0x5c] sm:$0x7]
      %v7380 = vrot.slane %v7340, 7
      %v7381 = vrot.slane %v7380, 4
      %v7382 = vrot.slane %v6883, 7
      %v7383 = vsel %vm5366, %v7381, %v7382
      %v7384 = vrot.slane %v7382, 4
      %v7385 = vrot.slane %v7341, 7
      %v7386 = vsel %vm5366, %v7384, %v7385
      %v7387 = vrot.slane %v7342, 7
      %v7388 = vrot.slane %v7387, 4
      %v7389 = vrot.slane %v6886, 7
      %v7390 = vsel %vm5366, %v7388, %v7389
      %v7391 = vrot.slane %v7389, 4
      %v7392 = vrot.slane %v7343, 7
      %v7393 = vsel %vm5366, %v7391, %v7392
      %v7394 = vrot.slane %v7344, 7
      %v7395 = vrot.slane %v7394, 4
      %v7396 = vrot.slane %v6889, 7
      %v7397 = vsel %vm5366, %v7395, %v7396
      %v7398 = vrot.slane %v7396, 4
      %v7399 = vrot.slane %v7345, 7
      %v7400 = vsel %vm5366, %v7398, %v7399
      %v7401 = vrot.slane %v7346, 7
      %v7402 = vrot.slane %v7401, 4
      %v7403 = vrot.slane %v6892, 7
      %v7404 = vsel %vm5366, %v7402, %v7403
      %v7405 = vrot.slane %v7403, 4
      %v7406 = vrot.slane %v7347, 7
      %v7407 = vsel %vm5366, %v7405, %v7406
      %v7408 = vrot.slane %v7348, 7
      %v7409 = vrot.slane %v7408, 4
      %v7410 = vrot.slane %v6895, 7
      %v7411 = vsel %vm5366, %v7409, %v7410
      %v7412 = vrot.slane %v7410, 4
      %v7413 = vrot.slane %v7349, 7
      %v7414 = vsel %vm5366, %v7412, %v7413
      %v7415 = vrot.slane %v7350, 7
      %v7416 = vrot.slane %v7415, 4
      %v7417 = vrot.slane %v6898, 7
      %v7418 = vsel %vm5366, %v7416, %v7417
      %v7419 = vrot.slane %v7417, 4
      %v7420 = vrot.slane %v7351, 7
      %v7421 = vsel %vm5366, %v7419, %v7420
      %v7422 = vrot.slane %v7352, 7
      %v7423 = vrot.slane %v7422, 4
      %v7424 = vrot.slane %v6901, 7
      %v7425 = vsel %vm5366, %v7423, %v7424
      %v7426 = vrot.slane %v7424, 4
      %v7427 = vrot.slane %v7353, 7
      %v7428 = vsel %vm5366, %v7426, %v7427
      %v7429 = vrot.slane %v7354, 7
      %v7430 = vrot.slane %v7429, 4
      %v7431 = vrot.slane %v6904, 7
      %v7432 = vsel %vm5366, %v7430, %v7431
      %v7433 = vrot.slane %v7431, 4
      %v7434 = vrot.slane %v7355, 7
      %v7435 = vsel %vm5366, %v7433, %v7434
      %s7436 = scalar_lea.vmem %s350, 1088
      %v7437 = vld [vmem:[%s7436] sm:$0xf]
      %v7438 = vld [vmem:[%s7436 + $0x4] sm:$0xf]
      %v7439 = vld [vmem:[%s7436 + $0x8] sm:$0xf]
      %v7440 = vld [vmem:[%s7436 + $0xc] sm:$0xf]
      %v7441 = vld [vmem:[%s7436 + $0x10] sm:$0xf]
      %v7442 = vld [vmem:[%s7436 + $0x14] sm:$0xf]
      %v7443 = vld [vmem:[%s7436 + $0x18] sm:$0xf]
      %v7444 = vld [vmem:[%s7436 + $0x1c] sm:$0xf]
      %v7445 = vld [vmem:[%s7436 + $0x20] sm:$0xf]
      %v7446 = vld [vmem:[%s7436 + $0x24] sm:$0xf]
      %v7447 = vld [vmem:[%s7436 + $0x28] sm:$0xf]
      %v7448 = vld [vmem:[%s7436 + $0x2c] sm:$0xf]
      %v7449 = vld [vmem:[%s7436 + $0x30] sm:$0xf]
      %v7450 = vld [vmem:[%s7436 + $0x34] sm:$0xf]
      %v7451 = vld [vmem:[%s7436 + $0x38] sm:$0xf]
      %v7452 = vld [vmem:[%s7436 + $0x3c] sm:$0xf]
      %v7453 = vunpack.c.l.b16 %v7383
      %v7454 = vunpack.c.l.b16 %v7386
      %v7455 = vunpack.c.l.b16 %v7390
      %v7456 = vunpack.c.l.b16 %v7393
      %v7457 = vunpack.c.l.b16 %v7397
      %v7458 = vunpack.c.l.b16 %v7400
      %v7459 = vunpack.c.l.b16 %v7404
      %v7460 = vunpack.c.l.b16 %v7407
      %v7461 = vunpack.c.l.b16 %v7411
      %v7462 = vunpack.c.l.b16 %v7414
      %v7463 = vunpack.c.l.b16 %v7418
      %v7464 = vunpack.c.l.b16 %v7421
      %v7465 = vunpack.c.l.b16 %v7425
      %v7466 = vunpack.c.l.b16 %v7428
      %v7467 = vunpack.c.l.b16 %v7432
      %v7468 = vunpack.c.l.b16 %v7435
      %v7469 = vpack.c.b16 %v7454, %v7453
      %v7470 = vpack.c.b16 %v7456, %v7455
      %v7471 = vpack.c.b16 %v7458, %v7457
      %v7472 = vpack.c.b16 %v7460, %v7459
      %v7473 = vpack.c.b16 %v7462, %v7461
      %v7474 = vpack.c.b16 %v7464, %v7463
      %v7475 = vpack.c.b16 %v7466, %v7465
      %v7476 = vpack.c.b16 %v7468, %v7467
      %v7501 = vunpack.c.l.b16 %v7437
      %v7502 = vunpack.c.l.b16 %v7438
      %v7503 = vunpack.c.l.b16 %v7439
      %v7504 = vunpack.c.l.b16 %v7440
      %v7505 = vunpack.c.l.b16 %v7441
      %v7506 = vunpack.c.l.b16 %v7442
      %v7507 = vunpack.c.l.b16 %v7443
      %v7508 = vunpack.c.l.b16 %v7444
      %v7509 = vunpack.c.l.b16 %v7445
      %v7510 = vunpack.c.l.b16 %v7446
      %v7511 = vunpack.c.l.b16 %v7447
      %v7512 = vunpack.c.l.b16 %v7448
      %v7513 = vunpack.c.l.b16 %v7449
      %v7514 = vunpack.c.l.b16 %v7450
      %v7515 = vunpack.c.l.b16 %v7451
      %v7516 = vunpack.c.l.b16 %v7452
      %v7517 = vpack.c.b16 %v7502, %v7501
      %v7518 = vpack.c.b16 %v7504, %v7503
      %v7519 = vpack.c.b16 %v7506, %v7505
      %v7520 = vpack.c.b16 %v7508, %v7507
      %v7521 = vpack.c.b16 %v7510, %v7509
      %v7522 = vpack.c.b16 %v7512, %v7511
      %v7523 = vpack.c.b16 %v7514, %v7513
      %v7524 = vpack.c.b16 %v7516, %v7515
      %7533 = vmatprep.subr.bf16.mxu0 0
      %7534 = vmatpush1.bf16.msra.mxu0 %v7524
      %7535 = vmatprep.subr.bf16.mxu0 0
      %7536 = vmatpush1.bf16.msra.mxu0 %v7523
      %7537 = vmatprep.subr.bf16.mxu0 0
      %7538 = vmatpush1.bf16.msra.mxu0 %v7522
      %7539 = vmatprep.subr.bf16.mxu0 0
      %7540 = vmatpush1.bf16.msra.mxu0 %v7521
      %7541 = vmatprep.subr.bf16.mxu0 0
      %7542 = vmatpush1.bf16.msra.mxu0 %v7520
      %7543 = vmatprep.subr.bf16.mxu0 0
      %7544 = vmatpush1.bf16.msra.mxu0 %v7519
      %7545 = vmatprep.subr.bf16.mxu0 0
      %7546 = vmatpush1.bf16.msra.mxu0 %v7518
      %7547 = vmatprep.subr.bf16.mxu0 0
      %7548 = vmatpush1.bf16.msra.mxu0 %v7517
      %7549 = vmatprep.subr.bf16.mxu0 0
      %7550 = vmatpush2.bf16.msra.mxu0 0
      %7551 = vmatprep.subr.bf16.mxu0 0
      %7552 = vmatpush2.bf16.msra.mxu0 0
      %7553 = vmatprep.subr.bf16.mxu0 0
      %7554 = vmatpush2.bf16.msra.mxu0 0
      %7555 = vmatprep.subr.bf16.mxu0 0
      %7556 = vmatpush2.bf16.msra.mxu0 0
      %7557 = vmatprep.subr.bf16.mxu0 0
      %7558 = vmatpush2.bf16.msra.mxu0 0
      %7559 = vmatprep.subr.bf16.mxu0 0
      %7560 = vmatpush2.bf16.msra.mxu0 0
      %7561 = vmatprep.subr.bf16.mxu0 0
      %7562 = vmatpush2.bf16.msra.mxu0 0
      %7563 = vmatprep.subr.bf16.mxu0 0
      %7564 = vmatpush2.bf16.msra.mxu0 0
      %7565 = vmatprep.mubr.bf16.mxu0 0
      %7566 = vmatmul.mubr.bf16.gmra.mxu0 %v7469
      %v7567 = vpop.f32.mrf.mxu0
      %v7568 = vadd.f32 0.0, %v7567
      %v7569 = vpop.f32.mrf.mxu0
      %v7570 = vpop.f32.mrf.mxu0
      %v7571 = vadd.f32 0.0, %v7570
      %v7572 = vpop.f32.mrf.mxu0
      %7573 = vmatprep.mubr.bf16.mxu0 0
      %7574 = vmatmul.mubr.bf16.gmra.mxu0 %v7470
      %v7575 = vpop.f32.mrf.mxu0
      %v7576 = vadd.f32 0.0, %v7575
      %v7577 = vpop.f32.mrf.mxu0
      %v7578 = vpop.f32.mrf.mxu0
      %v7579 = vadd.f32 0.0, %v7578
      %v7580 = vpop.f32.mrf.mxu0
      %7581 = vmatprep.mubr.bf16.mxu0 0
      %7582 = vmatmul.mubr.bf16.gmra.mxu0 %v7471
      %v7583 = vpop.f32.mrf.mxu0
      %v7584 = vadd.f32 0.0, %v7583
      %v7585 = vpop.f32.mrf.mxu0
      %v7586 = vpop.f32.mrf.mxu0
      %v7587 = vadd.f32 0.0, %v7586
      %v7588 = vpop.f32.mrf.mxu0
      %7589 = vmatprep.mubr.bf16.mxu0 0
      %7590 = vmatmul.mubr.bf16.gmra.mxu0 %v7472
      %v7591 = vpop.f32.mrf.mxu0
      %v7592 = vadd.f32 0.0, %v7591
      %v7593 = vpop.f32.mrf.mxu0
      %v7594 = vpop.f32.mrf.mxu0
      %v7595 = vadd.f32 0.0, %v7594
      %v7596 = vpop.f32.mrf.mxu0
      %7597 = vmatprep.mubr.bf16.mxu0 0
      %7598 = vmatmul.mubr.bf16.gmra.mxu0 %v7473
      %v7599 = vpop.f32.mrf.mxu0
      %v7600 = vadd.f32 0.0, %v7599
      %v7601 = vpop.f32.mrf.mxu0
      %v7602 = vpop.f32.mrf.mxu0
      %v7603 = vadd.f32 0.0, %v7602
      %v7604 = vpop.f32.mrf.mxu0
      %7605 = vmatprep.mubr.bf16.mxu0 0
      %7606 = vmatmul.mubr.bf16.gmra.mxu0 %v7474
      %v7607 = vpop.f32.mrf.mxu0
      %v7608 = vadd.f32 0.0, %v7607
      %v7609 = vpop.f32.mrf.mxu0
      %v7610 = vpop.f32.mrf.mxu0
      %v7611 = vadd.f32 0.0, %v7610
      %v7612 = vpop.f32.mrf.mxu0
      %7613 = vmatprep.mubr.bf16.mxu0 0
      %7614 = vmatmul.mubr.bf16.gmra.mxu0 %v7475
      %v7615 = vpop.f32.mrf.mxu0
      %v7616 = vadd.f32 0.0, %v7615
      %v7617 = vpop.f32.mrf.mxu0
      %v7618 = vpop.f32.mrf.mxu0
      %v7619 = vadd.f32 0.0, %v7618
      %v7620 = vpop.f32.mrf.mxu0
      %7621 = vmatprep.mubr.bf16.mxu0 0
      %7622 = vmatmul.mubr.bf16.gmra.mxu0 %v7476
      %v7623 = vpop.f32.mrf.mxu0
      %v7624 = vadd.f32 0.0, %v7623
      %v7625 = vpop.f32.mrf.mxu0
      %v7626 = vpop.f32.mrf.mxu0
      %v7627 = vadd.f32 0.0, %v7626
      %v7628 = vpop.f32.mrf.mxu0
      %7629 = vdwg.mxu0
      %v7630 = vadd.f32 %v7324, %v7568
      %v7631 = vadd.f32 %v7325, %v7571
      %v7632 = vadd.f32 %v7326, %v7576
      %v7633 = vadd.f32 %v7327, %v7579
      %v7634 = vadd.f32 %v7328, %v7584
      %v7635 = vadd.f32 %v7329, %v7587
      %v7636 = vadd.f32 %v7330, %v7592
      %v7637 = vadd.f32 %v7331, %v7595
      %v7638 = vadd.f32 %v7332, %v7600
      %v7639 = vadd.f32 %v7333, %v7603
      %v7640 = vadd.f32 %v7334, %v7608
      %v7641 = vadd.f32 %v7335, %v7611
      %v7642 = vadd.f32 %v7336, %v7616
      %v7643 = vadd.f32 %v7337, %v7619
      %v7644 = vadd.f32 %v7338, %v7624
      %v7645 = vadd.f32 %v7339, %v7627
      %s7646 = scalar_lea.vmem [#allocation2], 256
      %v7647 = vld [vmem:[%s7646] sm:$0xff]
      %v7648 = vld [vmem:[%s7646 + $0x8] sm:$0xff]
      %v7649 = vld [vmem:[%s7646 + $0x10] sm:$0xff]
      %v7650 = vld [vmem:[%s7646 + $0x18] sm:$0xff]
      %v7651 = vld [vmem:[%s7646 + $0x20] sm:$0xff]
      %v7652 = vld [vmem:[%s7646 + $0x28] sm:$0xff]
      %v7653 = vld [vmem:[%s7646 + $0x30] sm:$0xff]
      %v7654 = vld [vmem:[%s7646 + $0x38] sm:$0xff]
      %v7655 = vld [vmem:[%s7646 + $0x40] sm:$0xff]
      %v7656 = vld [vmem:[%s7646 + $0x48] sm:$0xff]
      %v7657 = vld [vmem:[%s7646 + $0x50] sm:$0xff]
      %v7658 = vld [vmem:[%s7646 + $0x58] sm:$0xff]
      %v7659 = vld [vmem:[%s7646 + $0x60] sm:$0xff]
      %v7660 = vld [vmem:[%s7646 + $0x68] sm:$0xff]
      %v7661 = vld [vmem:[%s7646 + $0x70] sm:$0xff]
      %v7662 = vld [vmem:[%s7646 + $0x78] sm:$0xff]
      %v7663 = vadd.f32 %v7647, %v7630
      %v7664 = vadd.f32 %v7648, %v7631
      %v7665 = vadd.f32 %v7649, %v7632
      %v7666 = vadd.f32 %v7650, %v7633
      %v7667 = vadd.f32 %v7651, %v7634
      %v7668 = vadd.f32 %v7652, %v7635
      %v7669 = vadd.f32 %v7653, %v7636
      %v7670 = vadd.f32 %v7654, %v7637
      %v7671 = vadd.f32 %v7655, %v7638
      %v7672 = vadd.f32 %v7656, %v7639
      %v7673 = vadd.f32 %v7657, %v7640
      %v7674 = vadd.f32 %v7658, %v7641
      %v7675 = vadd.f32 %v7659, %v7642
      %v7676 = vadd.f32 %v7660, %v7643
      %v7677 = vadd.f32 %v7661, %v7644
      %v7678 = vadd.f32 %v7662, %v7645
      %7679 = vst [vmem:[%s7646] sm:$0xff] %v7663
      %7680 = vst [vmem:[%s7646 + $0x8] sm:$0xff] %v7664
      %7681 = vst [vmem:[%s7646 + $0x10] sm:$0xff] %v7665
      %7682 = vst [vmem:[%s7646 + $0x18] sm:$0xff] %v7666
      %7683 = vst [vmem:[%s7646 + $0x20] sm:$0xff] %v7667
      %7684 = vst [vmem:[%s7646 + $0x28] sm:$0xff] %v7668
      %7685 = vst [vmem:[%s7646 + $0x30] sm:$0xff] %v7669
      %7686 = vst [vmem:[%s7646 + $0x38] sm:$0xff] %v7670
      %7687 = vst [vmem:[%s7646 + $0x40] sm:$0xff] %v7671
      %7688 = vst [vmem:[%s7646 + $0x48] sm:$0xff] %v7672
      %7689 = vst [vmem:[%s7646 + $0x50] sm:$0xff] %v7673
      %7690 = vst [vmem:[%s7646 + $0x58] sm:$0xff] %v7674
      %7691 = vst [vmem:[%s7646 + $0x60] sm:$0xff] %v7675
      %7692 = vst [vmem:[%s7646 + $0x68] sm:$0xff] %v7676
      %7693 = vst [vmem:[%s7646 + $0x70] sm:$0xff] %v7677
      %7694 = vst [vmem:[%s7646 + $0x78] sm:$0xff] %v7678
      // Predicated region
      $region49: #{_lambda_.1} parent=43 // pred_check
        %p7695 = pneg %p365
      $region50: #{_lambda_.1} parent=43 // pred_check_branch
        %7697 = sbr.rel (%p7695) target = $region52
      $region51: #{_lambda_.1} parent=43 // pred_region
        %v7698 = vld [vmem:[#allocation2] sm:$0xff]
        %v7699 = vld [vmem:[#allocation2 + $0x8] sm:$0xff]
        %v7700 = vld [vmem:[#allocation2 + $0x10] sm:$0xff]
        %v7701 = vld [vmem:[#allocation2 + $0x18] sm:$0xff]
        %v7702 = vld [vmem:[#allocation2 + $0x20] sm:$0xff]
        %v7703 = vld [vmem:[#allocation2 + $0x28] sm:$0xff]
        %v7704 = vld [vmem:[#allocation2 + $0x30] sm:$0xff]
        %v7705 = vld [vmem:[#allocation2 + $0x38] sm:$0xff]
        %v7706 = vld [vmem:[#allocation2 + $0x40] sm:$0xff]
        %v7707 = vld [vmem:[#allocation2 + $0x48] sm:$0xff]
        %v7708 = vld [vmem:[#allocation2 + $0x50] sm:$0xff]
        %v7709 = vld [vmem:[#allocation2 + $0x58] sm:$0xff]
        %v7710 = vld [vmem:[#allocation2 + $0x60] sm:$0xff]
        %v7711 = vld [vmem:[#allocation2 + $0x68] sm:$0xff]
        %v7712 = vld [vmem:[#allocation2 + $0x70] sm:$0xff]
        %v7713 = vld [vmem:[#allocation2 + $0x78] sm:$0xff]
        %v7714 = vld [vmem:[%s3] sm:$0x1]
        %v7716 = vlaneseq
        %v7717 = vshrl.u32 %v7716, 7
        %v7718 = vsub.s32 0, %v7717
        %v7719 = vrot.slane %v7714, %v7718
        %v7721 = vadd.f32 %v7698, %v7719
        %v7722 = vadd.f32 %v7699, %v7719
        %v7723 = vadd.f32 %v7700, %v7719
        %v7724 = vadd.f32 %v7701, %v7719
        %v7725 = vadd.f32 %v7702, %v7719
        %v7726 = vadd.f32 %v7703, %v7719
        %v7727 = vadd.f32 %v7704, %v7719
        %v7728 = vadd.f32 %v7705, %v7719
        %v7729 = vadd.f32 %v7706, %v7719
        %v7730 = vadd.f32 %v7707, %v7719
        %v7731 = vadd.f32 %v7708, %v7719
        %v7732 = vadd.f32 %v7709, %v7719
        %v7733 = vadd.f32 %v7710, %v7719
        %v7734 = vadd.f32 %v7711, %v7719
        %v7735 = vadd.f32 %v7712, %v7719
        %v7736 = vadd.f32 %v7713, %v7719
        %v7737 = vmax.f32 %v7721, 0.0
        %v7738 = vmax.f32 %v7722, 0.0
        %v7739 = vmax.f32 %v7723, 0.0
        %v7740 = vmax.f32 %v7724, 0.0
        %v7741 = vmax.f32 %v7725, 0.0
        %v7742 = vmax.f32 %v7726, 0.0
        %v7743 = vmax.f32 %v7727, 0.0
        %v7744 = vmax.f32 %v7728, 0.0
        %v7745 = vmax.f32 %v7729, 0.0
        %v7746 = vmax.f32 %v7730, 0.0
        %v7747 = vmax.f32 %v7731, 0.0
        %v7748 = vmax.f32 %v7732, 0.0
        %v7749 = vmax.f32 %v7733, 0.0
        %v7750 = vmax.f32 %v7734, 0.0
        %v7751 = vmax.f32 %v7735, 0.0
        %v7752 = vmax.f32 %v7736, 0.0
        %v7753 = vpack.c.bf16 %v7738, %v7737
        %v7754 = vpack.c.bf16 %v7740, %v7739
        %v7755 = vpack.c.bf16 %v7742, %v7741
        %v7756 = vpack.c.bf16 %v7744, %v7743
        %v7757 = vpack.c.bf16 %v7746, %v7745
        %v7758 = vpack.c.bf16 %v7748, %v7747
        %v7759 = vpack.c.bf16 %v7750, %v7749
        %v7760 = vpack.c.bf16 %v7752, %v7751
        %v7761 = vld [vmem:[%s4] sm:$0xf]
        %v7762 = vld [vmem:[%s4 + $0x4] sm:$0xf]
        %v7763 = vld [vmem:[%s4 + $0x8] sm:$0xf]
        %v7764 = vld [vmem:[%s4 + $0xc] sm:$0xf]
        %v7765 = vld [vmem:[%s4 + $0x10] sm:$0xf]
        %v7766 = vld [vmem:[%s4 + $0x14] sm:$0xf]
        %v7767 = vld [vmem:[%s4 + $0x18] sm:$0xf]
        %v7768 = vld [vmem:[%s4 + $0x1c] sm:$0xf]
        %v7769 = vld [vmem:[%s4 + $0x20] sm:$0xf]
        %v7770 = vld [vmem:[%s4 + $0x24] sm:$0xf]
        %v7771 = vld [vmem:[%s4 + $0x28] sm:$0xf]
        %v7772 = vld [vmem:[%s4 + $0x2c] sm:$0xf]
        %v7773 = vld [vmem:[%s4 + $0x30] sm:$0xf]
        %v7774 = vld [vmem:[%s4 + $0x34] sm:$0xf]
        %v7775 = vld [vmem:[%s4 + $0x38] sm:$0xf]
        %v7776 = vld [vmem:[%s4 + $0x3c] sm:$0xf]
        %v7777 = vld [vmem:[%s4623] sm:$0xff]
        %v7778 = vld [vmem:[%s4623 + $0x8] sm:$0xff]
        %v7779 = vld [vmem:[%s4623 + $0x10] sm:$0xff]
        %v7780 = vld [vmem:[%s4623 + $0x18] sm:$0xff]
        %v7781 = vld [vmem:[%s4623 + $0x20] sm:$0xff]
        %v7782 = vld [vmem:[%s4623 + $0x28] sm:$0xff]
        %v7783 = vld [vmem:[%s4623 + $0x30] sm:$0xff]
        %v7784 = vld [vmem:[%s4623 + $0x38] sm:$0xff]
        %v7785 = vld [vmem:[%s4623 + $0x40] sm:$0xff]
        %v7786 = vld [vmem:[%s4623 + $0x48] sm:$0xff]
        %v7787 = vld [vmem:[%s4623 + $0x50] sm:$0xff]
        %v7788 = vld [vmem:[%s4623 + $0x58] sm:$0xff]
        %v7789 = vld [vmem:[%s4623 + $0x60] sm:$0xff]
        %v7790 = vld [vmem:[%s4623 + $0x68] sm:$0xff]
        %v7791 = vld [vmem:[%s4623 + $0x70] sm:$0xff]
        %v7792 = vld [vmem:[%s4623 + $0x78] sm:$0xff]
        %s7793 = scalar_lea.vmem %s3, 1
        %v7794 = vld [vmem:[%s7793] sm:$0x1]
        %v7796 = vlaneseq
        %v7797 = vshrl.u32 %v7796, 7
        %v7798 = vsub.s32 0, %v7797
        %v7799 = vrot.slane %v7794, %v7798
        %v7801 = vadd.f32 %v7777, %v7799
        %v7802 = vadd.f32 %v7778, %v7799
        %v7803 = vadd.f32 %v7779, %v7799
        %v7804 = vadd.f32 %v7780, %v7799
        %v7805 = vadd.f32 %v7781, %v7799
        %v7806 = vadd.f32 %v7782, %v7799
        %v7807 = vadd.f32 %v7783, %v7799
        %v7808 = vadd.f32 %v7784, %v7799
        %v7809 = vadd.f32 %v7785, %v7799
        %v7810 = vadd.f32 %v7786, %v7799
        %v7811 = vadd.f32 %v7787, %v7799
        %v7812 = vadd.f32 %v7788, %v7799
        %v7813 = vadd.f32 %v7789, %v7799
        %v7814 = vadd.f32 %v7790, %v7799
        %v7815 = vadd.f32 %v7791, %v7799
        %v7816 = vadd.f32 %v7792, %v7799
        %v7817 = vmax.f32 %v7801, 0.0
        %v7818 = vmax.f32 %v7802, 0.0
        %v7819 = vmax.f32 %v7803, 0.0
        %v7820 = vmax.f32 %v7804, 0.0
        %v7821 = vmax.f32 %v7805, 0.0
        %v7822 = vmax.f32 %v7806, 0.0
        %v7823 = vmax.f32 %v7807, 0.0
        %v7824 = vmax.f32 %v7808, 0.0
        %v7825 = vmax.f32 %v7809, 0.0
        %v7826 = vmax.f32 %v7810, 0.0
        %v7827 = vmax.f32 %v7811, 0.0
        %v7828 = vmax.f32 %v7812, 0.0
        %v7829 = vmax.f32 %v7813, 0.0
        %v7830 = vmax.f32 %v7814, 0.0
        %v7831 = vmax.f32 %v7815, 0.0
        %v7832 = vmax.f32 %v7816, 0.0
        %v7833 = vpack.c.bf16 %v7818, %v7817
        %v7834 = vpack.c.bf16 %v7820, %v7819
        %v7835 = vpack.c.bf16 %v7822, %v7821
        %v7836 = vpack.c.bf16 %v7824, %v7823
        %v7837 = vpack.c.bf16 %v7826, %v7825
        %v7838 = vpack.c.bf16 %v7828, %v7827
        %v7839 = vpack.c.bf16 %v7830, %v7829
        %v7840 = vpack.c.bf16 %v7832, %v7831
        %s7841 = scalar_lea.vmem %s4, 64
        %v7842 = vld [vmem:[%s7841] sm:$0xf]
        %v7843 = vld [vmem:[%s7841 + $0x4] sm:$0xf]
        %v7844 = vld [vmem:[%s7841 + $0x8] sm:$0xf]
        %v7845 = vld [vmem:[%s7841 + $0xc] sm:$0xf]
        %v7846 = vld [vmem:[%s7841 + $0x10] sm:$0xf]
        %v7847 = vld [vmem:[%s7841 + $0x14] sm:$0xf]
        %v7848 = vld [vmem:[%s7841 + $0x18] sm:$0xf]
        %v7849 = vld [vmem:[%s7841 + $0x1c] sm:$0xf]
        %v7850 = vld [vmem:[%s7841 + $0x20] sm:$0xf]
        %v7851 = vld [vmem:[%s7841 + $0x24] sm:$0xf]
        %v7852 = vld [vmem:[%s7841 + $0x28] sm:$0xf]
        %v7853 = vld [vmem:[%s7841 + $0x2c] sm:$0xf]
        %v7854 = vld [vmem:[%s7841 + $0x30] sm:$0xf]
        %v7855 = vld [vmem:[%s7841 + $0x34] sm:$0xf]
        %v7856 = vld [vmem:[%s7841 + $0x38] sm:$0xf]
        %v7857 = vld [vmem:[%s7841 + $0x3c] sm:$0xf]
        %v7874 = vunpack.c.l.b16 %v7842
        %v7875 = vunpack.c.l.b16 %v7843
        %v7876 = vunpack.c.l.b16 %v7844
        %v7877 = vunpack.c.l.b16 %v7845
        %v7878 = vunpack.c.l.b16 %v7846
        %v7879 = vunpack.c.l.b16 %v7847
        %v7880 = vunpack.c.l.b16 %v7848
        %v7881 = vunpack.c.l.b16 %v7849
        %v7882 = vunpack.c.l.b16 %v7850
        %v7883 = vunpack.c.l.b16 %v7851
        %v7884 = vunpack.c.l.b16 %v7852
        %v7885 = vunpack.c.l.b16 %v7853
        %v7886 = vunpack.c.l.b16 %v7854
        %v7887 = vunpack.c.l.b16 %v7855
        %v7888 = vunpack.c.l.b16 %v7856
        %v7889 = vunpack.c.l.b16 %v7857
        %v7890 = vpack.c.b16 %v7875, %v7874
        %v7891 = vpack.c.b16 %v7877, %v7876
        %v7892 = vpack.c.b16 %v7879, %v7878
        %v7893 = vpack.c.b16 %v7881, %v7880
        %v7894 = vpack.c.b16 %v7883, %v7882
        %v7895 = vpack.c.b16 %v7885, %v7884
        %v7896 = vpack.c.b16 %v7887, %v7886
        %v7897 = vpack.c.b16 %v7889, %v7888
        %7906 = vmatprep.subr.bf16.mxu0 0
        %7907 = vmatpush1.bf16.msra.mxu0 %v7897
        %7908 = vmatprep.subr.bf16.mxu0 0
        %7909 = vmatpush1.bf16.msra.mxu0 %v7896
        %7910 = vmatprep.subr.bf16.mxu0 0
        %7911 = vmatpush1.bf16.msra.mxu0 %v7895
        %7912 = vmatprep.subr.bf16.mxu0 0
        %7913 = vmatpush1.bf16.msra.mxu0 %v7894
        %7914 = vmatprep.subr.bf16.mxu0 0
        %7915 = vmatpush1.bf16.msra.mxu0 %v7893
        %7916 = vmatprep.subr.bf16.mxu0 0
        %7917 = vmatpush1.bf16.msra.mxu0 %v7892
        %7918 = vmatprep.subr.bf16.mxu0 0
        %7919 = vmatpush1.bf16.msra.mxu0 %v7891
        %7920 = vmatprep.subr.bf16.mxu0 0
        %7921 = vmatpush1.bf16.msra.mxu0 %v7890
        %7922 = vmatprep.subr.bf16.mxu0 0
        %7923 = vmatpush2.bf16.msra.mxu0 0
        %7924 = vmatprep.subr.bf16.mxu0 0
        %7925 = vmatpush2.bf16.msra.mxu0 0
        %7926 = vmatprep.subr.bf16.mxu0 0
        %7927 = vmatpush2.bf16.msra.mxu0 0
        %7928 = vmatprep.subr.bf16.mxu0 0
        %7929 = vmatpush2.bf16.msra.mxu0 0
        %7930 = vmatprep.subr.bf16.mxu0 0
        %7931 = vmatpush2.bf16.msra.mxu0 0
        %7932 = vmatprep.subr.bf16.mxu0 0
        %7933 = vmatpush2.bf16.msra.mxu0 0
        %7934 = vmatprep.subr.bf16.mxu0 0
        %7935 = vmatpush2.bf16.msra.mxu0 0
        %7936 = vmatprep.subr.bf16.mxu0 0
        %7937 = vmatpush2.bf16.msra.mxu0 0
        %7938 = vmatprep.mubr.bf16.mxu0 0
        %7939 = vmatmul.mubr.bf16.gmra.mxu0 %v7833
        %v7940 = vpop.f32.mrf.mxu0
        %v7941 = vadd.f32 0.0, %v7940
        %v7942 = vpop.f32.mrf.mxu0
        %v7943 = vpop.f32.mrf.mxu0
        %v7944 = vadd.f32 0.0, %v7943
        %v7945 = vpop.f32.mrf.mxu0
        %7946 = vmatprep.mubr.bf16.mxu0 0
        %7947 = vmatmul.mubr.bf16.gmra.mxu0 %v7834
        %v7948 = vpop.f32.mrf.mxu0
        %v7949 = vadd.f32 0.0, %v7948
        %v7950 = vpop.f32.mrf.mxu0
        %v7951 = vpop.f32.mrf.mxu0
        %v7952 = vadd.f32 0.0, %v7951
        %v7953 = vpop.f32.mrf.mxu0
        %7954 = vmatprep.mubr.bf16.mxu0 0
        %7955 = vmatmul.mubr.bf16.gmra.mxu0 %v7835
        %v7956 = vpop.f32.mrf.mxu0
        %v7957 = vadd.f32 0.0, %v7956
        %v7958 = vpop.f32.mrf.mxu0
        %v7959 = vpop.f32.mrf.mxu0
        %v7960 = vadd.f32 0.0, %v7959
        %v7961 = vpop.f32.mrf.mxu0
        %7962 = vmatprep.mubr.bf16.mxu0 0
        %7963 = vmatmul.mubr.bf16.gmra.mxu0 %v7836
        %v7964 = vpop.f32.mrf.mxu0
        %v7965 = vadd.f32 0.0, %v7964
        %v7966 = vpop.f32.mrf.mxu0
        %v7967 = vpop.f32.mrf.mxu0
        %v7968 = vadd.f32 0.0, %v7967
        %v7969 = vpop.f32.mrf.mxu0
        %7970 = vmatprep.mubr.bf16.mxu0 0
        %7971 = vmatmul.mubr.bf16.gmra.mxu0 %v7837
        %v7972 = vpop.f32.mrf.mxu0
        %v7973 = vadd.f32 0.0, %v7972
        %v7974 = vpop.f32.mrf.mxu0
        %v7975 = vpop.f32.mrf.mxu0
        %v7976 = vadd.f32 0.0, %v7975
        %v7977 = vpop.f32.mrf.mxu0
        %7978 = vmatprep.mubr.bf16.mxu0 0
        %7979 = vmatmul.mubr.bf16.gmra.mxu0 %v7838
        %v7980 = vpop.f32.mrf.mxu0
        %v7981 = vadd.f32 0.0, %v7980
        %v7982 = vpop.f32.mrf.mxu0
        %v7983 = vpop.f32.mrf.mxu0
        %v7984 = vadd.f32 0.0, %v7983
        %v7985 = vpop.f32.mrf.mxu0
        %7986 = vmatprep.mubr.bf16.mxu0 0
        %7987 = vmatmul.mubr.bf16.gmra.mxu0 %v7839
        %v7988 = vpop.f32.mrf.mxu0
        %v7989 = vadd.f32 0.0, %v7988
        %v7990 = vpop.f32.mrf.mxu0
        %v7991 = vpop.f32.mrf.mxu0
        %v7992 = vadd.f32 0.0, %v7991
        %v7993 = vpop.f32.mrf.mxu0
        %7994 = vmatprep.mubr.bf16.mxu0 0
        %7995 = vmatmul.mubr.bf16.gmra.mxu0 %v7840
        %v7996 = vpop.f32.mrf.mxu0
        %v7997 = vadd.f32 0.0, %v7996
        %v7998 = vpop.f32.mrf.mxu0
        %v7999 = vpop.f32.mrf.mxu0
        %v8000 = vadd.f32 0.0, %v7999
        %v8001 = vpop.f32.mrf.mxu0
        %8002 = vdwg.mxu0
        %v8019 = vunpack.c.l.b16 %v7761
        %v8020 = vunpack.c.l.b16 %v7762
        %v8021 = vunpack.c.l.b16 %v7763
        %v8022 = vunpack.c.l.b16 %v7764
        %v8023 = vunpack.c.l.b16 %v7765
        %v8024 = vunpack.c.l.b16 %v7766
        %v8025 = vunpack.c.l.b16 %v7767
        %v8026 = vunpack.c.l.b16 %v7768
        %v8027 = vunpack.c.l.b16 %v7769
        %v8028 = vunpack.c.l.b16 %v7770
        %v8029 = vunpack.c.l.b16 %v7771
        %v8030 = vunpack.c.l.b16 %v7772
        %v8031 = vunpack.c.l.b16 %v7773
        %v8032 = vunpack.c.l.b16 %v7774
        %v8033 = vunpack.c.l.b16 %v7775
        %v8034 = vunpack.c.l.b16 %v7776
        %v8035 = vpack.c.b16 %v8020, %v8019
        %v8036 = vpack.c.b16 %v8022, %v8021
        %v8037 = vpack.c.b16 %v8024, %v8023
        %v8038 = vpack.c.b16 %v8026, %v8025
        %v8039 = vpack.c.b16 %v8028, %v8027
        %v8040 = vpack.c.b16 %v8030, %v8029
        %v8041 = vpack.c.b16 %v8032, %v8031
        %v8042 = vpack.c.b16 %v8034, %v8033
        %8051 = vmatprep.subr.bf16.mxu0 0
        %8052 = vmatpush1.bf16.msra.mxu0 %v8042
        %8053 = vmatprep.subr.bf16.mxu0 0
        %8054 = vmatpush1.bf16.msra.mxu0 %v8041
        %8055 = vmatprep.subr.bf16.mxu0 0
        %8056 = vmatpush1.bf16.msra.mxu0 %v8040
        %8057 = vmatprep.subr.bf16.mxu0 0
        %8058 = vmatpush1.bf16.msra.mxu0 %v8039
        %8059 = vmatprep.subr.bf16.mxu0 0
        %8060 = vmatpush1.bf16.msra.mxu0 %v8038
        %8061 = vmatprep.subr.bf16.mxu0 0
        %8062 = vmatpush1.bf16.msra.mxu0 %v8037
        %8063 = vmatprep.subr.bf16.mxu0 0
        %8064 = vmatpush1.bf16.msra.mxu0 %v8036
        %8065 = vmatprep.subr.bf16.mxu0 0
        %8066 = vmatpush1.bf16.msra.mxu0 %v8035
        %8067 = vmatprep.subr.bf16.mxu0 0
        %8068 = vmatpush2.bf16.msra.mxu0 0
        %8069 = vmatprep.subr.bf16.mxu0 0
        %8070 = vmatpush2.bf16.msra.mxu0 0
        %8071 = vmatprep.subr.bf16.mxu0 0
        %8072 = vmatpush2.bf16.msra.mxu0 0
        %8073 = vmatprep.subr.bf16.mxu0 0
        %8074 = vmatpush2.bf16.msra.mxu0 0
        %8075 = vmatprep.subr.bf16.mxu0 0
        %8076 = vmatpush2.bf16.msra.mxu0 0
        %8077 = vmatprep.subr.bf16.mxu0 0
        %8078 = vmatpush2.bf16.msra.mxu0 0
        %8079 = vmatprep.subr.bf16.mxu0 0
        %8080 = vmatpush2.bf16.msra.mxu0 0
        %8081 = vmatprep.subr.bf16.mxu0 0
        %8082 = vmatpush2.bf16.msra.mxu0 0
        %8083 = vmatprep.mubr.bf16.mxu0 0
        %8084 = vmatmul.mubr.bf16.gmra.mxu0 %v7753
        %v8085 = vpop.f32.mrf.mxu0
        %v8086 = vadd.f32 %v7941, %v8085
        %v8087 = vpop.f32.mrf.mxu0
        %v8088 = vpop.f32.mrf.mxu0
        %v8089 = vadd.f32 %v7944, %v8088
        %v8090 = vpop.f32.mrf.mxu0
        %8091 = vmatprep.mubr.bf16.mxu0 0
        %8092 = vmatmul.mubr.bf16.gmra.mxu0 %v7754
        %v8093 = vpop.f32.mrf.mxu0
        %v8094 = vadd.f32 %v7949, %v8093
        %v8095 = vpop.f32.mrf.mxu0
        %v8096 = vpop.f32.mrf.mxu0
        %v8097 = vadd.f32 %v7952, %v8096
        %v8098 = vpop.f32.mrf.mxu0
        %8099 = vmatprep.mubr.bf16.mxu0 0
        %8100 = vmatmul.mubr.bf16.gmra.mxu0 %v7755
        %v8101 = vpop.f32.mrf.mxu0
        %v8102 = vadd.f32 %v7957, %v8101
        %v8103 = vpop.f32.mrf.mxu0
        %v8104 = vpop.f32.mrf.mxu0
        %v8105 = vadd.f32 %v7960, %v8104
        %v8106 = vpop.f32.mrf.mxu0
        %8107 = vmatprep.mubr.bf16.mxu0 0
        %8108 = vmatmul.mubr.bf16.gmra.mxu0 %v7756
        %v8109 = vpop.f32.mrf.mxu0
        %v8110 = vadd.f32 %v7965, %v8109
        %v8111 = vpop.f32.mrf.mxu0
        %v8112 = vpop.f32.mrf.mxu0
        %v8113 = vadd.f32 %v7968, %v8112
        %v8114 = vpop.f32.mrf.mxu0
        %8115 = vmatprep.mubr.bf16.mxu0 0
        %8116 = vmatmul.mubr.bf16.gmra.mxu0 %v7757
        %v8117 = vpop.f32.mrf.mxu0
        %v8118 = vadd.f32 %v7973, %v8117
        %v8119 = vpop.f32.mrf.mxu0
        %v8120 = vpop.f32.mrf.mxu0
        %v8121 = vadd.f32 %v7976, %v8120
        %v8122 = vpop.f32.mrf.mxu0
        %8123 = vmatprep.mubr.bf16.mxu0 0
        %8124 = vmatmul.mubr.bf16.gmra.mxu0 %v7758
        %v8125 = vpop.f32.mrf.mxu0
        %v8126 = vadd.f32 %v7981, %v8125
        %v8127 = vpop.f32.mrf.mxu0
        %v8128 = vpop.f32.mrf.mxu0
        %v8129 = vadd.f32 %v7984, %v8128
        %v8130 = vpop.f32.mrf.mxu0
        %8131 = vmatprep.mubr.bf16.mxu0 0
        %8132 = vmatmul.mubr.bf16.gmra.mxu0 %v7759
        %v8133 = vpop.f32.mrf.mxu0
        %v8134 = vadd.f32 %v7989, %v8133
        %v8135 = vpop.f32.mrf.mxu0
        %v8136 = vpop.f32.mrf.mxu0
        %v8137 = vadd.f32 %v7992, %v8136
        %v8138 = vpop.f32.mrf.mxu0
        %8139 = vmatprep.mubr.bf16.mxu0 0
        %8140 = vmatmul.mubr.bf16.gmra.mxu0 %v7760
        %v8141 = vpop.f32.mrf.mxu0
        %v8142 = vadd.f32 %v7997, %v8141
        %v8143 = vpop.f32.mrf.mxu0
        %v8144 = vpop.f32.mrf.mxu0
        %v8145 = vadd.f32 %v8000, %v8144
        %v8146 = vpop.f32.mrf.mxu0
        %8147 = vdwg.mxu0
        %v8148 = vld [vmem:[%s7646] sm:$0xff]
        %v8149 = vld [vmem:[%s7646 + $0x8] sm:$0xff]
        %v8150 = vld [vmem:[%s7646 + $0x10] sm:$0xff]
        %v8151 = vld [vmem:[%s7646 + $0x18] sm:$0xff]
        %v8152 = vld [vmem:[%s7646 + $0x20] sm:$0xff]
        %v8153 = vld [vmem:[%s7646 + $0x28] sm:$0xff]
        %v8154 = vld [vmem:[%s7646 + $0x30] sm:$0xff]
        %v8155 = vld [vmem:[%s7646 + $0x38] sm:$0xff]
        %v8156 = vld [vmem:[%s7646 + $0x40] sm:$0xff]
        %v8157 = vld [vmem:[%s7646 + $0x48] sm:$0xff]
        %v8158 = vld [vmem:[%s7646 + $0x50] sm:$0xff]
        %v8159 = vld [vmem:[%s7646 + $0x58] sm:$0xff]
        %v8160 = vld [vmem:[%s7646 + $0x60] sm:$0xff]
        %v8161 = vld [vmem:[%s7646 + $0x68] sm:$0xff]
        %v8162 = vld [vmem:[%s7646 + $0x70] sm:$0xff]
        %v8163 = vld [vmem:[%s7646 + $0x78] sm:$0xff]
        %s8164 = scalar_lea.vmem %s3, 2
        %v8165 = vld [vmem:[%s8164] sm:$0x1]
        %v8167 = vlaneseq
        %v8168 = vshrl.u32 %v8167, 7
        %v8169 = vsub.s32 0, %v8168
        %v8170 = vrot.slane %v8165, %v8169
        %v8172 = vadd.f32 %v8148, %v8170
        %v8173 = vadd.f32 %v8149, %v8170
        %v8174 = vadd.f32 %v8150, %v8170
        %v8175 = vadd.f32 %v8151, %v8170
        %v8176 = vadd.f32 %v8152, %v8170
        %v8177 = vadd.f32 %v8153, %v8170
        %v8178 = vadd.f32 %v8154, %v8170
        %v8179 = vadd.f32 %v8155, %v8170
        %v8180 = vadd.f32 %v8156, %v8170
        %v8181 = vadd.f32 %v8157, %v8170
        %v8182 = vadd.f32 %v8158, %v8170
        %v8183 = vadd.f32 %v8159, %v8170
        %v8184 = vadd.f32 %v8160, %v8170
        %v8185 = vadd.f32 %v8161, %v8170
        %v8186 = vadd.f32 %v8162, %v8170
        %v8187 = vadd.f32 %v8163, %v8170
        %v8188 = vmax.f32 %v8172, 0.0
        %v8189 = vmax.f32 %v8173, 0.0
        %v8190 = vmax.f32 %v8174, 0.0
        %v8191 = vmax.f32 %v8175, 0.0
        %v8192 = vmax.f32 %v8176, 0.0
        %v8193 = vmax.f32 %v8177, 0.0
        %v8194 = vmax.f32 %v8178, 0.0
        %v8195 = vmax.f32 %v8179, 0.0
        %v8196 = vmax.f32 %v8180, 0.0
        %v8197 = vmax.f32 %v8181, 0.0
        %v8198 = vmax.f32 %v8182, 0.0
        %v8199 = vmax.f32 %v8183, 0.0
        %v8200 = vmax.f32 %v8184, 0.0
        %v8201 = vmax.f32 %v8185, 0.0
        %v8202 = vmax.f32 %v8186, 0.0
        %v8203 = vmax.f32 %v8187, 0.0
        %v8204 = vpack.c.bf16 %v8189, %v8188
        %v8205 = vpack.c.bf16 %v8191, %v8190
        %v8206 = vpack.c.bf16 %v8193, %v8192
        %v8207 = vpack.c.bf16 %v8195, %v8194
        %v8208 = vpack.c.bf16 %v8197, %v8196
        %v8209 = vpack.c.bf16 %v8199, %v8198
        %v8210 = vpack.c.bf16 %v8201, %v8200
        %v8211 = vpack.c.bf16 %v8203, %v8202
        %s8212 = scalar_lea.vmem %s4, 128
        %v8213 = vld [vmem:[%s8212] sm:$0xf]
        %v8214 = vld [vmem:[%s8212 + $0x4] sm:$0xf]
        %v8215 = vld [vmem:[%s8212 + $0x8] sm:$0xf]
        %v8216 = vld [vmem:[%s8212 + $0xc] sm:$0xf]
        %v8217 = vld [vmem:[%s8212 + $0x10] sm:$0xf]
        %v8218 = vld [vmem:[%s8212 + $0x14] sm:$0xf]
        %v8219 = vld [vmem:[%s8212 + $0x18] sm:$0xf]
        %v8220 = vld [vmem:[%s8212 + $0x1c] sm:$0xf]
        %v8221 = vld [vmem:[%s8212 + $0x20] sm:$0xf]
        %v8222 = vld [vmem:[%s8212 + $0x24] sm:$0xf]
        %v8223 = vld [vmem:[%s8212 + $0x28] sm:$0xf]
        %v8224 = vld [vmem:[%s8212 + $0x2c] sm:$0xf]
        %v8225 = vld [vmem:[%s8212 + $0x30] sm:$0xf]
        %v8226 = vld [vmem:[%s8212 + $0x34] sm:$0xf]
        %v8227 = vld [vmem:[%s8212 + $0x38] sm:$0xf]
        %v8228 = vld [vmem:[%s8212 + $0x3c] sm:$0xf]
        %v8245 = vunpack.c.l.b16 %v8213
        %v8246 = vunpack.c.l.b16 %v8214
        %v8247 = vunpack.c.l.b16 %v8215
        %v8248 = vunpack.c.l.b16 %v8216
        %v8249 = vunpack.c.l.b16 %v8217
        %v8250 = vunpack.c.l.b16 %v8218
        %v8251 = vunpack.c.l.b16 %v8219
        %v8252 = vunpack.c.l.b16 %v8220
        %v8253 = vunpack.c.l.b16 %v8221
        %v8254 = vunpack.c.l.b16 %v8222
        %v8255 = vunpack.c.l.b16 %v8223
        %v8256 = vunpack.c.l.b16 %v8224
        %v8257 = vunpack.c.l.b16 %v8225
        %v8258 = vunpack.c.l.b16 %v8226
        %v8259 = vunpack.c.l.b16 %v8227
        %v8260 = vunpack.c.l.b16 %v8228
        %v8261 = vpack.c.b16 %v8246, %v8245
        %v8262 = vpack.c.b16 %v8248, %v8247
        %v8263 = vpack.c.b16 %v8250, %v8249
        %v8264 = vpack.c.b16 %v8252, %v8251
        %v8265 = vpack.c.b16 %v8254, %v8253
        %v8266 = vpack.c.b16 %v8256, %v8255
        %v8267 = vpack.c.b16 %v8258, %v8257
        %v8268 = vpack.c.b16 %v8260, %v8259
        %8277 = vmatprep.subr.bf16.mxu0 0
        %8278 = vmatpush1.bf16.msra.mxu0 %v8268
        %8279 = vmatprep.subr.bf16.mxu0 0
        %8280 = vmatpush1.bf16.msra.mxu0 %v8267
        %8281 = vmatprep.subr.bf16.mxu0 0
        %8282 = vmatpush1.bf16.msra.mxu0 %v8266
        %8283 = vmatprep.subr.bf16.mxu0 0
        %8284 = vmatpush1.bf16.msra.mxu0 %v8265
        %8285 = vmatprep.subr.bf16.mxu0 0
        %8286 = vmatpush1.bf16.msra.mxu0 %v8264
        %8287 = vmatprep.subr.bf16.mxu0 0
        %8288 = vmatpush1.bf16.msra.mxu0 %v8263
        %8289 = vmatprep.subr.bf16.mxu0 0
        %8290 = vmatpush1.bf16.msra.mxu0 %v8262
        %8291 = vmatprep.subr.bf16.mxu0 0
        %8292 = vmatpush1.bf16.msra.mxu0 %v8261
        %8293 = vmatprep.subr.bf16.mxu0 0
        %8294 = vmatpush2.bf16.msra.mxu0 0
        %8295 = vmatprep.subr.bf16.mxu0 0
        %8296 = vmatpush2.bf16.msra.mxu0 0
        %8297 = vmatprep.subr.bf16.mxu0 0
        %8298 = vmatpush2.bf16.msra.mxu0 0
        %8299 = vmatprep.subr.bf16.mxu0 0
        %8300 = vmatpush2.bf16.msra.mxu0 0
        %8301 = vmatprep.subr.bf16.mxu0 0
        %8302 = vmatpush2.bf16.msra.mxu0 0
        %8303 = vmatprep.subr.bf16.mxu0 0
        %8304 = vmatpush2.bf16.msra.mxu0 0
        %8305 = vmatprep.subr.bf16.mxu0 0
        %8306 = vmatpush2.bf16.msra.mxu0 0
        %8307 = vmatprep.subr.bf16.mxu0 0
        %8308 = vmatpush2.bf16.msra.mxu0 0
        %8309 = vmatprep.mubr.bf16.mxu0 0
        %8310 = vmatmul.mubr.bf16.gmra.mxu0 %v8204
        %v8311 = vpop.f32.mrf.mxu0
        %v8312 = vadd.f32 0.0, %v8311
        %v8313 = vpop.f32.mrf.mxu0
        %v8314 = vpop.f32.mrf.mxu0
        %v8315 = vadd.f32 0.0, %v8314
        %v8316 = vpop.f32.mrf.mxu0
        %8317 = vmatprep.mubr.bf16.mxu0 0
        %8318 = vmatmul.mubr.bf16.gmra.mxu0 %v8205
        %v8319 = vpop.f32.mrf.mxu0
        %v8320 = vadd.f32 0.0, %v8319
        %v8321 = vpop.f32.mrf.mxu0
        %v8322 = vpop.f32.mrf.mxu0
        %v8323 = vadd.f32 0.0, %v8322
        %v8324 = vpop.f32.mrf.mxu0
        %8325 = vmatprep.mubr.bf16.mxu0 0
        %8326 = vmatmul.mubr.bf16.gmra.mxu0 %v8206
        %v8327 = vpop.f32.mrf.mxu0
        %v8328 = vadd.f32 0.0, %v8327
        %v8329 = vpop.f32.mrf.mxu0
        %v8330 = vpop.f32.mrf.mxu0
        %v8331 = vadd.f32 0.0, %v8330
        %v8332 = vpop.f32.mrf.mxu0
        %8333 = vmatprep.mubr.bf16.mxu0 0
        %8334 = vmatmul.mubr.bf16.gmra.mxu0 %v8207
        %v8335 = vpop.f32.mrf.mxu0
        %v8336 = vadd.f32 0.0, %v8335
        %v8337 = vpop.f32.mrf.mxu0
        %v8338 = vpop.f32.mrf.mxu0
        %v8339 = vadd.f32 0.0, %v8338
        %v8340 = vpop.f32.mrf.mxu0
        %8341 = vmatprep.mubr.bf16.mxu0 0
        %8342 = vmatmul.mubr.bf16.gmra.mxu0 %v8208
        %v8343 = vpop.f32.mrf.mxu0
        %v8344 = vadd.f32 0.0, %v8343
        %v8345 = vpop.f32.mrf.mxu0
        %v8346 = vpop.f32.mrf.mxu0
        %v8347 = vadd.f32 0.0, %v8346
        %v8348 = vpop.f32.mrf.mxu0
        %8349 = vmatprep.mubr.bf16.mxu0 0
        %8350 = vmatmul.mubr.bf16.gmra.mxu0 %v8209
        %v8351 = vpop.f32.mrf.mxu0
        %v8352 = vadd.f32 0.0, %v8351
        %v8353 = vpop.f32.mrf.mxu0
        %v8354 = vpop.f32.mrf.mxu0
        %v8355 = vadd.f32 0.0, %v8354
        %v8356 = vpop.f32.mrf.mxu0
        %8357 = vmatprep.mubr.bf16.mxu0 0
        %8358 = vmatmul.mubr.bf16.gmra.mxu0 %v8210
        %v8359 = vpop.f32.mrf.mxu0
        %v8360 = vadd.f32 0.0, %v8359
        %v8361 = vpop.f32.mrf.mxu0
        %v8362 = vpop.f32.mrf.mxu0
        %v8363 = vadd.f32 0.0, %v8362
        %v8364 = vpop.f32.mrf.mxu0
        %8365 = vmatprep.mubr.bf16.mxu0 0
        %8366 = vmatmul.mubr.bf16.gmra.mxu0 %v8211
        %v8367 = vpop.f32.mrf.mxu0
        %v8368 = vadd.f32 0.0, %v8367
        %v8369 = vpop.f32.mrf.mxu0
        %v8370 = vpop.f32.mrf.mxu0
        %v8371 = vadd.f32 0.0, %v8370
        %v8372 = vpop.f32.mrf.mxu0
        %8373 = vdwg.mxu0
        %v8374 = vadd.f32 %v8086, %v8312
        %v8375 = vadd.f32 %v8089, %v8315
        %v8376 = vadd.f32 %v8094, %v8320
        %v8377 = vadd.f32 %v8097, %v8323
        %v8378 = vadd.f32 %v8102, %v8328
        %v8379 = vadd.f32 %v8105, %v8331
        %v8380 = vadd.f32 %v8110, %v8336
        %v8381 = vadd.f32 %v8113, %v8339
        %v8382 = vadd.f32 %v8118, %v8344
        %v8383 = vadd.f32 %v8121, %v8347
        %v8384 = vadd.f32 %v8126, %v8352
        %v8385 = vadd.f32 %v8129, %v8355
        %v8386 = vadd.f32 %v8134, %v8360
        %v8387 = vadd.f32 %v8137, %v8363
        %v8388 = vadd.f32 %v8142, %v8368
        %v8389 = vadd.f32 %v8145, %v8371
        %v8390 = vld [vmem:[%s354] sm:$0x1]
        %v8392 = vlaneseq
        %v8393 = vshrl.u32 %v8392, 7
        %v8394 = vsub.s32 0, %v8393
        %v8395 = vrot.slane %v8390, %v8394
        %v8397 = vadd.f32 %v8374, %v8395
        %v8398 = vadd.f32 %v8375, %v8395
        %v8399 = vadd.f32 %v8376, %v8395
        %v8400 = vadd.f32 %v8377, %v8395
        %v8401 = vadd.f32 %v8378, %v8395
        %v8402 = vadd.f32 %v8379, %v8395
        %v8403 = vadd.f32 %v8380, %v8395
        %v8404 = vadd.f32 %v8381, %v8395
        %v8405 = vadd.f32 %v8382, %v8395
        %v8406 = vadd.f32 %v8383, %v8395
        %v8407 = vadd.f32 %v8384, %v8395
        %v8408 = vadd.f32 %v8385, %v8395
        %v8409 = vadd.f32 %v8386, %v8395
        %v8410 = vadd.f32 %v8387, %v8395
        %v8411 = vadd.f32 %v8388, %v8395
        %v8412 = vadd.f32 %v8389, %v8395
        %v8413 = vmax.f32 %v8397, 0.0
        %v8414 = vmax.f32 %v8398, 0.0
        %v8415 = vmax.f32 %v8399, 0.0
        %v8416 = vmax.f32 %v8400, 0.0
        %v8417 = vmax.f32 %v8401, 0.0
        %v8418 = vmax.f32 %v8402, 0.0
        %v8419 = vmax.f32 %v8403, 0.0
        %v8420 = vmax.f32 %v8404, 0.0
        %v8421 = vmax.f32 %v8405, 0.0
        %v8422 = vmax.f32 %v8406, 0.0
        %v8423 = vmax.f32 %v8407, 0.0
        %v8424 = vmax.f32 %v8408, 0.0
        %v8425 = vmax.f32 %v8409, 0.0
        %v8426 = vmax.f32 %v8410, 0.0
        %v8427 = vmax.f32 %v8411, 0.0
        %v8428 = vmax.f32 %v8412, 0.0
        %8429 = vst [vmem:[%s363] sm:$0xff] %v8413
        %8430 = vst [vmem:[%s363 + $0x8] sm:$0xff] %v8414
        %8431 = vst [vmem:[%s363 + $0x10] sm:$0xff] %v8415
        %8432 = vst [vmem:[%s363 + $0x18] sm:$0xff] %v8416
        %8433 = vst [vmem:[%s363 + $0x20] sm:$0xff] %v8417
        %8434 = vst [vmem:[%s363 + $0x28] sm:$0xff] %v8418
        %8435 = vst [vmem:[%s363 + $0x30] sm:$0xff] %v8419
        %8436 = vst [vmem:[%s363 + $0x38] sm:$0xff] %v8420
        %8437 = vst [vmem:[%s363 + $0x40] sm:$0xff] %v8421
        %8438 = vst [vmem:[%s363 + $0x48] sm:$0xff] %v8422
        %8439 = vst [vmem:[%s363 + $0x50] sm:$0xff] %v8423
        %8440 = vst [vmem:[%s363 + $0x58] sm:$0xff] %v8424
        %8441 = vst [vmem:[%s363 + $0x60] sm:$0xff] %v8425
        %8442 = vst [vmem:[%s363 + $0x68] sm:$0xff] %v8426
        %8443 = vst [vmem:[%s363 + $0x70] sm:$0xff] %v8427
        %8444 = vst [vmem:[%s363 + $0x78] sm:$0xff] %v8428
      $region52: #{_lambda_.1} parent=43 // pred_fallthru
        _
      %p8445 = scmp.lt.s32.totalorder %s22, 1
      %s8446 = scalar_select %p8445, %s22, 1
      %p8447 = scmp.lt.s32.totalorder %s23, 1
      %s8448 = scalar_select %p8447, %s23, 1
      %s8449 = smul.addr %s8448, 16
      %s8450 = smul.addr %s8446, 32
      %s8451 = sadd.s32 %s8449, %s8450
      %s8452 = smul.addr %s8451, 8
      %s8453 = scalar_lea.vmem %s6, %s8452
      // Predicated region
      $region53: #{_lambda_.1} parent=43 // pred_check
        %p8454 = pneg %p206
      $region54: #{_lambda_.1} parent=43 // pred_check_branch
        %8456 = sbr.rel (%p8454) target = $region56
      $region55: #{_lambda_.1} parent=43 // pred_region
        _
      $region56: #{_lambda_.1} parent=43 // pred_fallthru
        _
    $region44: #{_lambda_.1} parent=5 // pred_fallthru
      _
    %p8457 = scmp.le.s32.totalorder 2, %s12
    // Predicated region
    $region57: #{_lambda_.1} parent=5 // pred_check
      %p8458 = pneg %p8457
    $region58: #{_lambda_.1} parent=5 // pred_check_branch
      %8460 = sbr.rel (%p8458) target = $region60
    $region59: #{_lambda_.1} parent=5 // pred_region
      %s8461 = ssub.s32 %s12, 2
      // Predicated region
      $region61: #{_lambda_.1} parent=59 // pred_check
        %p8462 = pneg %p212
      $region62: #{_lambda_.1} parent=59 // pred_check_branch
        %8464 = sbr.rel (%p8462) target = $region64
      $region63: #{_lambda_.1} parent=59 // pred_region
        %p8465 = scmp.lt.s32.totalorder %s25, 1
        %s8466 = scalar_select %p8465, %s25, 1
        %p8467 = scmp.lt.s32.totalorder %s26, 1
        %s8468 = scalar_select %p8467, %s26, 1
        %s8469 = smul.addr %s8468, 16
        %s8470 = smul.addr %s8466, 32
        %s8471 = sadd.s32 %s8469, %s8470
        %s8472 = smul.addr %s8471, 8
        %s8473 = scalar_lea.vmem %s6, %s8472
      $region64: #{_lambda_.1} parent=59 // pred_fallthru
        _
    $region60: #{_lambda_.1} parent=5 // pred_fallthru
      _
  $region6: #{_lambda_.1} parent=0 // loop_footer
    %s16 = sadd.s32 1, %s12
  $region7: #{_lambda_.1} parent=0 // loop_footer_branch
    %11 = sbr.rel target = $region3
  $region8: #{_lambda_.1} parent=0 // loop_exit
    _

</llo_original>
